<compile_context>
chip_gen: v5e
topology: v5e:2x2
jax: 0.10.0
libtpu: 0.0.40
codegen_flags: <defaults>
</compile_context>

<pallas_src>
import functools

import jax
import jax.numpy as jnp
from jax.experimental import pallas as pl
from jax.experimental.pallas import tpu as pltpu

LANES = 128


def _ds(start, size, stride):
    # Plain dynamic slice for stride 1, strided slice otherwise.
    return pl.ds(start, size) if stride == 1 else pl.ds(start, size, stride)


def convblock_kernel(x_ref, w_ref, scale_ref, shift_ref, alpha_ref, o_ref, *,
                     KH, KW, sh, sw, TH, Wo, Cin, Cout_p, fold_taps):
    """Fused conv + BN + PReLU for one (batch n, output-row tile r).

    x_ref:     (1, Hp, Wp, Cin)     bf16  padded image for batch n
    w_ref:     (KH*KW*Cin, Cout_p)  bf16  raw conv weight, tap-major K order
    scale_ref: (1, Cout_p)          f32   gamma * rsqrt(var + eps)
    shift_ref: (1, Cout_p)          f32   beta - mean * scale
    alpha_ref: (1, Cout_p)          f32   PReLU slope
    o_ref:     (1, TH, Wo, Cout_p)  bf16
    """
    r = pl.program_id(1)
    row0 = pl.multiple_of(r * (TH * sh), TH * sh)

    def tap(ki, kj):
        # Direct (strided) ref load of one kernel tap for the whole tile.
        t = x_ref[0, _ds(row0 + ki, TH, sh), _ds(kj, Wo, sw), :]   # (TH, Wo, Cin)
        return t.reshape(TH * Wo, Cin)

    if fold_taps:
        # im2col patch built in-kernel; K order (ki, kj, cin) matches w_ref.
        taps = [tap(ki, kj) for ki in range(KH) for kj in range(KW)]
        patch = taps[0] if len(taps) == 1 else jnp.concatenate(taps, axis=-1)
        acc = jnp.dot(patch, w_ref[...],
                      preferred_element_type=jnp.float32)          # (TH*Wo, Cout_p)
    else:
        # Fallback: per-tap dots (K = Cin) with f32 accumulation; still uses
        # the direct strided ref loads above (no materialized band).
        acc = jnp.zeros((TH * Wo, Cout_p), jnp.float32)
        for idx in range(KH * KW):
            ki, kj = divmod(idx, KW)
            acc = acc + jnp.dot(tap(ki, kj),
                                w_ref[idx * Cin:(idx + 1) * Cin, :],
                                preferred_element_type=jnp.float32)

    # BatchNorm2d (eval) + per-channel PReLU, all f32 (VPU / EUP-free).
    y = acc * scale_ref[...] + shift_ref[...]
    y = jnp.where(y > 0, y, alpha_ref[...] * y)
    o_ref[...] = y.reshape(1, TH, Wo, Cout_p).astype(o_ref.dtype)


def conv_block_forward(x, weight, gamma, beta, running_mean, running_var,
                       prelu_alpha, *, stride=(1, 1), padding=(0, 0), eps=1e-5,
                       block_rows=None, data_format="NCHW",
                       out_dtype=jnp.bfloat16):
    if data_format == "NCHW":
        x = jnp.transpose(x, (0, 2, 3, 1))         # -> NHWC (skip when chaining)
    N, H, W, Cin = x.shape
    Cout, Cin_w, KH, KW = weight.shape
    assert Cin == Cin_w, "groups=1 only"           # TODO(synk): grouped conv
    sh, sw = stride
    ph, pw = padding

    Ho = (H + 2 * ph - KH) // sh + 1
    Wo = (W + 2 * pw - KW) // sw + 1
    K_tot = KH * KW * Cin

    # Only lane-pad Cout when it is already >= 128; small Cout stays dense so
    # the output HBM writes are not blown up ~16x.
    if Cout >= LANES:
        Cout_p = ((Cout + LANES - 1) // LANES) * LANES
    else:
        Cout_p = Cout

    # Output-row tile: target ~512 MXU rows (TH*Wo) per grid step.
    if block_rows is None:
        TH = max(1, min(Ho, pl.cdiv(512, Wo)))
    else:
        TH = max(1, min(block_rows, Ho))
    # Keep the per-tile working set (patch + f32 acc + out tile) modest.
    per_row_bytes = Wo * (K_tot * 2 + Cout_p * 4 + Cout_p * 2)
    TH = max(1, min(TH, (2 << 20) // max(1, per_row_bytes)))
    n_rt = pl.cdiv(Ho, TH)
    Ho_p = n_rt * TH

    # NHWC spatial zero padding; extra rows/cols so the halo of the last
    # (possibly partial) row tile stays in bounds.
    Hp = max(H + 2 * ph, (Ho_p - 1) * sh + KH)
    Wp = max(W + 2 * pw, (Wo - 1) * sw + KW)
    x_pad = jnp.pad(x, ((0, 0), (ph, Hp - H - ph), (pw, Wp - W - pw),
                        (0, 0))).astype(jnp.bfloat16)

    # BatchNorm2d (eval): keep scale/shift as f32 epilogue vectors; conv weight
    # stays raw bf16 (no folded scale -> no compounded quantization error).
    inv_std = jax.lax.rsqrt(running_var.astype(jnp.float32) + eps)
    scale = gamma.astype(jnp.float32) * inv_std
    shift = beta.astype(jnp.float32) - running_mean.astype(jnp.float32) * scale

    # PyTorch weight (Cout, Cin, KH, KW) -> (KH, KW, Cin, Cout) ->
    # (KH*KW*Cin, Cout_p): tap-major contraction dim matching the kernel patch.
    w2 = jnp.transpose(weight, (2, 3, 1, 0)).reshape(K_tot, Cout)
    w2 = jnp.pad(w2, ((0, 0), (0, Cout_p - Cout))).astype(jnp.bfloat16)
    scale_p = jnp.pad(scale, (0, Cout_p - Cout)).reshape(1, Cout_p)
    shift_p = jnp.pad(shift, (0, Cout_p - Cout)).reshape(1, Cout_p)
    alpha_p = jnp.pad(prelu_alpha.astype(jnp.float32),
                      (0, Cout_p - Cout)).reshape(1, Cout_p)

    out_bytes = jnp.dtype(out_dtype).itemsize
    cost = pl.CostEstimate(
        flops=2 * N * Ho_p * Wo * K_tot * Cout_p,
        transcendentals=0,
        bytes_accessed=(x_pad.size * 2 + w2.size * 2 + 3 * Cout_p * 4
                        + N * Ho_p * Wo * Cout_p * out_bytes),
    )

    # Scoped VMEM sized from the actual resident buffers (double-buffered image
    # and out tile, weights/vectors, per-tile working set) + headroom; clamped
    # so it is valid on every generation (v7x has only 64 MiB physical).
    resident = (2 * Hp * Wp * max(Cin, 8) * 2          # image (lane-pessimistic)
                + 2 * K_tot * Cout_p * 2               # weights
                + 6 * Cout_p * 4                       # scale/shift/alpha
                + 2 * TH * Wo * Cout_p * out_bytes     # out tile
                + TH * Wo * (K_tot * 2 + Cout_p * 4))  # patch + acc values
    vmem_limit = int(min(max(32 << 20, resident + (4 << 20)), 48 << 20))

    # Steer the v7x megacore split onto the batch axis when N > 1 so the two
    # TensorCores hold disjoint images (neutral on single-TC v5e/v6e).
    dim_sem = ("parallel", "arbitrary") if N > 1 else ("arbitrary", "parallel")

    def _run(fold_taps):
        kernel = functools.partial(
            convblock_kernel, KH=KH, KW=KW, sh=sh, sw=sw, TH=TH, Wo=Wo,
            Cin=Cin, Cout_p=Cout_p, fold_taps=fold_taps)
        return pl.pallas_call(
            kernel,
            out_shape=jax.ShapeDtypeStruct((N, Ho_p, Wo, Cout_p), out_dtype),
            grid_spec=pltpu.PrefetchScalarGridSpec(
                num_scalar_prefetch=0,
                grid=(N, n_rt),
                in_specs=[
                    # Whole padded image for batch n; constant over the row
                    # axis -> DMA'd once per image.
                    pl.BlockSpec((1, Hp, Wp, Cin), lambda n, r: (n, 0, 0, 0)),
                    # Weights / per-channel vectors: resident across the grid.
                    pl.BlockSpec((K_tot, Cout_p), lambda n, r: (0, 0)),
                    pl.BlockSpec((1, Cout_p), lambda n, r: (0, 0)),
                    pl.BlockSpec((1, Cout_p), lambda n, r: (0, 0)),
                    pl.BlockSpec((1, Cout_p), lambda n, r: (0, 0)),
                ],
                out_specs=pl.BlockSpec((1, TH, Wo, Cout_p),
                                       lambda n, r: (n, r, 0, 0)),
            ),
            compiler_params=pltpu.CompilerParams(
                dimension_semantics=dim_sem,
                vmem_limit_bytes=vmem_limit),
            cost_estimate=cost,
        )(x_pad, w2, scale_p, shift_p, alpha_p)

    try:
        out = _run(fold_taps=True)
    except Exception:
        # Unaligned lane-dim concatenation support varies across Mosaic
        # versions; fall back to per-tap accumulation (still strided ref loads).
        out = _run(fold_taps=False)

    out = out[:, :Ho, :, :Cout]                        # drop row/channel padding
    if data_format == "NCHW":
        out = jnp.transpose(out, (0, 3, 1, 2))
    return out


def reference_forward(x, weight, gamma, beta, mean, var, alpha,
                      stride=(1, 1), padding=(0, 0), eps=1e-5):
    y = jax.lax.conv_general_dilated(
        x, weight, window_strides=stride,
        padding=[(padding[0], padding[0]), (padding[1], padding[1])],
        dimension_numbers=('NCHW', 'OIHW', 'NCHW'))
    inv = 1.0 / jnp.sqrt(var + eps)
    y = (y - mean[None, :, None, None]) * (gamma * inv)[None, :, None, None] \
        + beta[None, :, None, None]
    a = alpha[None, :, None, None]
    return jnp.where(y > 0, y, a * y)


if __name__ == "__main__":
    # ConvBlock(in_c=4, out_c=8, kernel=(3,3), stride=(1,1), padding=(1,1))
    N, Cin, H, W = 2, 4, 16, 16
    Cout, KH, KW = 8, 3, 3
    stride, padding = (1, 1), (1, 1)

    key = jax.random.PRNGKey(0)
    kx, kw, kg, kb, km, kv, ka = jax.random.split(key, 7)

    x = jax.random.normal(kx, (N, Cin, H, W), dtype=jnp.float32)
    weight = jax.random.normal(kw, (Cout, Cin, KH, KW), dtype=jnp.float32) * 0.1
    gamma = 1.0 + 0.1 * jax.random.normal(kg, (Cout,), dtype=jnp.float32)
    beta = 0.1 * jax.random.normal(kb, (Cout,), dtype=jnp.float32)
    running_mean = 0.1 * jax.random.normal(km, (Cout,), dtype=jnp.float32)
    running_var = 1.0 + 0.1 * jax.random.uniform(kv, (Cout,), dtype=jnp.float32)
    prelu_alpha = jnp.full((Cout,), 0.25, dtype=jnp.float32) \
        + 0.01 * jax.random.normal(ka, (Cout,), dtype=jnp.float32)

    out = conv_block_forward(x, weight, gamma, beta, running_mean, running_var,
                             prelu_alpha, stride=stride, padding=padding)
    out = jax.block_until_ready(out)

    ref = reference_forward(x, weight, gamma, beta, running_mean, running_var,
                            prelu_alpha, stride=stride, padding=padding)
    ref = jax.block_until_ready(ref)

    assert out.shape == (N, Cout, H, W), out.shape
    # bf16 MXU operands + bf16 output (f32 accumulate / f32 epilogue) ->
    # loosened tolerance vs the pure-f32 reference; expected quantization
    # error, not a bug.
    assert jnp.allclose(out, ref, atol=5e-2, rtol=5e-2), \
        float(jnp.max(jnp.abs(out.astype(jnp.float32) - ref)))

    print("KERNEL_OK")
</pallas_src>

<mosaic_0001>
module attributes {stable_mosaic.version = 11 : i64} {
  func.func @convblock_kernel(%arg0: i32, %arg1: i32, %arg2: memref<1x18x18x4xbf16, #tpu.memory_space<vmem>>, %arg3: memref<36x8xbf16, #tpu.memory_space<vmem>>, %arg4: memref<1x8xf32, #tpu.memory_space<vmem>>, %arg5: memref<1x8xf32, #tpu.memory_space<vmem>>, %arg6: memref<1x8xf32, #tpu.memory_space<vmem>>, %arg7: memref<1x16x16x8xbf16, #tpu.memory_space<vmem>>) attributes {dimension_semantics = [#tpu.dimension_semantics<parallel>, #tpu.dimension_semantics<arbitrary>], iteration_bounds = array<i64: 2, 1>, scalar_prefetch = 0 : i64, scratch_operands = 0 : i64, tpu.core_type = #tpu.core_type<tc>, window_params = [{transform_indices = @transform_0, window_bounds = array<i64: 1, 18, 18, 4>}, {pipeline_mode = #tpu.pipeline_mode<synchronous>, transform_indices = @transform_1, window_bounds = array<i64: 36, 8>}, {pipeline_mode = #tpu.pipeline_mode<synchronous>, transform_indices = @transform_2, window_bounds = array<i64: 1, 8>}, {pipeline_mode = #tpu.pipeline_mode<synchronous>, transform_indices = @transform_3, window_bounds = array<i64: 1, 8>}, {pipeline_mode = #tpu.pipeline_mode<synchronous>, transform_indices = @transform_4, window_bounds = array<i64: 1, 8>}, {transform_indices = @transform_5, window_bounds = array<i64: 1, 16, 16, 8>}]} {
    %c16_i32 = arith.constant 16 : i32
    %0 = arith.muli %arg1, %c16_i32 : i32
    %1 = tpu.assume_multiple %0, 16 : i32
    %c0_i32 = arith.constant 0 : i32
    %2 = arith.addi %1, %c0_i32 : i32
    %c0 = arith.constant 0 : index
    %3 = arith.index_cast %2 : i32 to index
    %c0_0 = arith.constant 0 : index
    %c0_1 = arith.constant 0 : index
    %4 = vector.load %arg2[%c0, %3, %c0_0, %c0_1] : memref<1x18x18x4xbf16, #tpu.memory_space<vmem>>, vector<1x16x16x4xbf16>
    %5 = vector.shape_cast %4 : vector<1x16x16x4xbf16> to vector<16x16x4xbf16>
    %6 = vector.shape_cast %5 : vector<16x16x4xbf16> to vector<256x4xbf16>
    %c0_i32_2 = arith.constant 0 : i32
    %7 = arith.addi %1, %c0_i32_2 : i32
    %c0_3 = arith.constant 0 : index
    %8 = arith.index_cast %7 : i32 to index
    %c1 = arith.constant 1 : index
    %c0_4 = arith.constant 0 : index
    %9 = vector.load %arg2[%c0_3, %8, %c1, %c0_4] : memref<1x18x18x4xbf16, #tpu.memory_space<vmem>>, vector<1x16x16x4xbf16>
    %10 = vector.shape_cast %9 : vector<1x16x16x4xbf16> to vector<16x16x4xbf16>
    %11 = vector.shape_cast %10 : vector<16x16x4xbf16> to vector<256x4xbf16>
    %c0_i32_5 = arith.constant 0 : i32
    %12 = arith.addi %1, %c0_i32_5 : i32
    %c0_6 = arith.constant 0 : index
    %13 = arith.index_cast %12 : i32 to index
    %c2 = arith.constant 2 : index
    %c0_7 = arith.constant 0 : index
    %14 = vector.load %arg2[%c0_6, %13, %c2, %c0_7] : memref<1x18x18x4xbf16, #tpu.memory_space<vmem>>, vector<1x16x16x4xbf16>
    %15 = vector.shape_cast %14 : vector<1x16x16x4xbf16> to vector<16x16x4xbf16>
    %16 = vector.shape_cast %15 : vector<16x16x4xbf16> to vector<256x4xbf16>
    %c1_i32 = arith.constant 1 : i32
    %17 = arith.addi %1, %c1_i32 : i32
    %c0_8 = arith.constant 0 : index
    %18 = arith.index_cast %17 : i32 to index
    %c0_9 = arith.constant 0 : index
    %c0_10 = arith.constant 0 : index
    %19 = vector.load %arg2[%c0_8, %18, %c0_9, %c0_10] : memref<1x18x18x4xbf16, #tpu.memory_space<vmem>>, vector<1x16x16x4xbf16>
    %20 = vector.shape_cast %19 : vector<1x16x16x4xbf16> to vector<16x16x4xbf16>
    %21 = vector.shape_cast %20 : vector<16x16x4xbf16> to vector<256x4xbf16>
    %c1_i32_11 = arith.constant 1 : i32
    %22 = arith.addi %1, %c1_i32_11 : i32
    %c0_12 = arith.constant 0 : index
    %23 = arith.index_cast %22 : i32 to index
    %c1_13 = arith.constant 1 : index
    %c0_14 = arith.constant 0 : index
    %24 = vector.load %arg2[%c0_12, %23, %c1_13, %c0_14] : memref<1x18x18x4xbf16, #tpu.memory_space<vmem>>, vector<1x16x16x4xbf16>
    %25 = vector.shape_cast %24 : vector<1x16x16x4xbf16> to vector<16x16x4xbf16>
    %26 = vector.shape_cast %25 : vector<16x16x4xbf16> to vector<256x4xbf16>
    %c1_i32_15 = arith.constant 1 : i32
    %27 = arith.addi %1, %c1_i32_15 : i32
    %c0_16 = arith.constant 0 : index
    %28 = arith.index_cast %27 : i32 to index
    %c2_17 = arith.constant 2 : index
    %c0_18 = arith.constant 0 : index
    %29 = vector.load %arg2[%c0_16, %28, %c2_17, %c0_18] : memref<1x18x18x4xbf16, #tpu.memory_space<vmem>>, vector<1x16x16x4xbf16>
    %30 = vector.shape_cast %29 : vector<1x16x16x4xbf16> to vector<16x16x4xbf16>
    %31 = vector.shape_cast %30 : vector<16x16x4xbf16> to vector<256x4xbf16>
    %c2_i32 = arith.constant 2 : i32
    %32 = arith.addi %1, %c2_i32 : i32
    %c0_19 = arith.constant 0 : index
    %33 = arith.index_cast %32 : i32 to index
    %c0_20 = arith.constant 0 : index
    %c0_21 = arith.constant 0 : index
    %34 = vector.load %arg2[%c0_19, %33, %c0_20, %c0_21] : memref<1x18x18x4xbf16, #tpu.memory_space<vmem>>, vector<1x16x16x4xbf16>
    %35 = vector.shape_cast %34 : vector<1x16x16x4xbf16> to vector<16x16x4xbf16>
    %36 = vector.shape_cast %35 : vector<16x16x4xbf16> to vector<256x4xbf16>
    %c2_i32_22 = arith.constant 2 : i32
    %37 = arith.addi %1, %c2_i32_22 : i32
    %c0_23 = arith.constant 0 : index
    %38 = arith.index_cast %37 : i32 to index
    %c1_24 = arith.constant 1 : index
    %c0_25 = arith.constant 0 : index
    %39 = vector.load %arg2[%c0_23, %38, %c1_24, %c0_25] : memref<1x18x18x4xbf16, #tpu.memory_space<vmem>>, vector<1x16x16x4xbf16>
    %40 = vector.shape_cast %39 : vector<1x16x16x4xbf16> to vector<16x16x4xbf16>
    %41 = vector.shape_cast %40 : vector<16x16x4xbf16> to vector<256x4xbf16>
    %c2_i32_26 = arith.constant 2 : i32
    %42 = arith.addi %1, %c2_i32_26 : i32
    %c0_27 = arith.constant 0 : index
    %43 = arith.index_cast %42 : i32 to index
    %c2_28 = arith.constant 2 : index
    %c0_29 = arith.constant 0 : index
    %44 = vector.load %arg2[%c0_27, %43, %c2_28, %c0_29] : memref<1x18x18x4xbf16, #tpu.memory_space<vmem>>, vector<1x16x16x4xbf16>
    %45 = vector.shape_cast %44 : vector<1x16x16x4xbf16> to vector<16x16x4xbf16>
    %46 = vector.shape_cast %45 : vector<16x16x4xbf16> to vector<256x4xbf16>
    %47 = tpu.concatenate %6, %11, %16, %21, %26, %31, %36, %41, %46 in 1 : vector<256x4xbf16>, vector<256x4xbf16>, vector<256x4xbf16>, vector<256x4xbf16>, vector<256x4xbf16>, vector<256x4xbf16>, vector<256x4xbf16>, vector<256x4xbf16>, vector<256x4xbf16> -> vector<256x36xbf16>
    %c0_30 = arith.constant 0 : index
    %c0_31 = arith.constant 0 : index
    %48 = vector.load %arg3[%c0_30, %c0_31] : memref<36x8xbf16, #tpu.memory_space<vmem>>, vector<36x8xbf16>
    %cst = arith.constant dense<0.000000e+00> : vector<256x8xf32>
    %49 = tpu.matmul %47, %48, %cst {dimension_numbers = #tpu.dot_dimension_numbers<[1], [0], [0], [1], [0, 0, 1, 1], [], []>} : vector<256x36xbf16>, vector<36x8xbf16>, vector<256x8xf32> -> vector<256x8xf32>
    %c0_32 = arith.constant 0 : index
    %c0_33 = arith.constant 0 : index
    %50 = vector.load %arg4[%c0_32, %c0_33] : memref<1x8xf32, #tpu.memory_space<vmem>>, vector<1x8xf32>
    %51 = vector.broadcast %50 : vector<1x8xf32> to vector<256x8xf32>
    %52 = arith.mulf %49, %51 : vector<256x8xf32>
    %c0_34 = arith.constant 0 : index
    %c0_35 = arith.constant 0 : index
    %53 = vector.load %arg5[%c0_34, %c0_35] : memref<1x8xf32, #tpu.memory_space<vmem>>, vector<1x8xf32>
    %54 = vector.broadcast %53 : vector<1x8xf32> to vector<256x8xf32>
    %55 = arith.addf %52, %54 : vector<256x8xf32>
    %cst_36 = arith.constant 0.000000e+00 : f32
    %56 = vector.broadcast %cst_36 : f32 to vector<256x8xf32>
    %57 = arith.cmpf ogt, %55, %56 : vector<256x8xf32>
    %c0_37 = arith.constant 0 : index
    %c0_38 = arith.constant 0 : index
    %58 = vector.load %arg6[%c0_37, %c0_38] : memref<1x8xf32, #tpu.memory_space<vmem>>, vector<1x8xf32>
    %59 = vector.broadcast %58 : vector<1x8xf32> to vector<256x8xf32>
    %60 = arith.mulf %59, %55 : vector<256x8xf32>
    %61 = arith.select %57, %55, %60 : vector<256x8xi1>, vector<256x8xf32>
    %62 = vector.shape_cast %61 : vector<256x8xf32> to vector<1x16x16x8xf32>
    %63 = arith.truncf %62 : vector<1x16x16x8xf32> to vector<1x16x16x8xbf16>
    %c0_39 = arith.constant 0 : index
    %c0_40 = arith.constant 0 : index
    %c0_41 = arith.constant 0 : index
    %c0_42 = arith.constant 0 : index
    %64 = vector.load %arg7[%c0_39, %c0_40, %c0_41, %c0_42] : memref<1x16x16x8xbf16, #tpu.memory_space<vmem>>, vector<1x16x16x8xbf16>
    tpu.vector_store %arg7[%c0_39, %c0_40, %c0_41, %c0_42], %63 {strides = array<i32>} : memref<1x16x16x8xbf16, #tpu.memory_space<vmem>>, vector<1x16x16x8xbf16>,
    return
  }
  func.func @transform_0(%arg0: i32, %arg1: i32) -> (i32, i32, i32, i32) {
    %c0_i32 = arith.constant 0 : i32
    %c0_i32_0 = arith.constant 0 : i32
    %c0_i32_1 = arith.constant 0 : i32
    %c0_i32_2 = arith.constant 0 : i32
    return %arg0, %c0_i32, %c0_i32_0, %c0_i32_1 : i32, i32, i32, i32
  }
  func.func @transform_1(%arg0: i32, %arg1: i32) -> (i32, i32) {
    %c0_i32 = arith.constant 0 : i32
    %c0_i32_0 = arith.constant 0 : i32
    %c0_i32_1 = arith.constant 0 : i32
    return %c0_i32, %c0_i32_0 : i32, i32
  }
  func.func @transform_2(%arg0: i32, %arg1: i32) -> (i32, i32) {
    %c0_i32 = arith.constant 0 : i32
    %c0_i32_0 = arith.constant 0 : i32
    %c0_i32_1 = arith.constant 0 : i32
    return %c0_i32, %c0_i32_0 : i32, i32
  }
  func.func @transform_3(%arg0: i32, %arg1: i32) -> (i32, i32) {
    %c0_i32 = arith.constant 0 : i32
    %c0_i32_0 = arith.constant 0 : i32
    %c0_i32_1 = arith.constant 0 : i32
    return %c0_i32, %c0_i32_0 : i32, i32
  }
  func.func @transform_4(%arg0: i32, %arg1: i32) -> (i32, i32) {
    %c0_i32 = arith.constant 0 : i32
    %c0_i32_0 = arith.constant 0 : i32
    %c0_i32_1 = arith.constant 0 : i32
    return %c0_i32, %c0_i32_0 : i32, i32
  }
  func.func @transform_5(%arg0: i32, %arg1: i32) -> (i32, i32, i32, i32) {
    %c0_i32 = arith.constant 0 : i32
    %c0_i32_0 = arith.constant 0 : i32
    %c0_i32_1 = arith.constant 0 : i32
    return %arg0, %arg1, %c0_i32, %c0_i32_0 : i32, i32, i32, i32
  }
}

module attributes {stable_mosaic.version = 11 : i64} {
  func.func @convblock_kernel(%arg0: i32, %arg1: i32, %arg2: memref<1x18x18x4xbf16, #tpu.memory_space<vmem>>, %arg3: memref<36x8xbf16, #tpu.memory_space<vmem>>, %arg4: memref<1x8xf32, #tpu.memory_space<vmem>>, %arg5: memref<1x8xf32, #tpu.memory_space<vmem>>, %arg6: memref<1x8xf32, #tpu.memory_space<vmem>>, %arg7: memref<1x16x16x8xbf16, #tpu.memory_space<vmem>>) attributes {dimension_semantics = [#tpu.dimension_semantics<parallel>, #tpu.dimension_semantics<arbitrary>], iteration_bounds = array<i64: 2, 1>, scalar_prefetch = 0 : i64, scratch_operands = 0 : i64, tpu.core_type = #tpu.core_type<tc>, window_params = [{transform_indices = @transform_0, window_bounds = array<i64: 1, 18, 18, 4>}, {pipeline_mode = #tpu.pipeline_mode<synchronous>, transform_indices = @transform_1, window_bounds = array<i64: 36, 8>}, {pipeline_mode = #tpu.pipeline_mode<synchronous>, transform_indices = @transform_2, window_bounds = array<i64: 1, 8>}, {pipeline_mode = #tpu.pipeline_mode<synchronous>, transform_indices = @transform_3, window_bounds = array<i64: 1, 8>}, {pipeline_mode = #tpu.pipeline_mode<synchronous>, transform_indices = @transform_4, window_bounds = array<i64: 1, 8>}, {transform_indices = @transform_5, window_bounds = array<i64: 1, 16, 16, 8>}]} {
    %c16_i32 = arith.constant 16 : i32
    %0 = arith.muli %arg1, %c16_i32 : i32
    %1 = tpu.assume_multiple %0, 16 : i32
    %cst = arith.constant 0.000000e+00 : f32
    %2 = vector.broadcast %cst : f32 to vector<256x8xf32>
    %c0_i32 = arith.constant 0 : i32
    %3 = arith.addi %1, %c0_i32 : i32
    %c0 = arith.constant 0 : index
    %4 = arith.index_cast %3 : i32 to index
    %c0_0 = arith.constant 0 : index
    %c0_1 = arith.constant 0 : index
    %5 = vector.load %arg2[%c0, %4, %c0_0, %c0_1] : memref<1x18x18x4xbf16, #tpu.memory_space<vmem>>, vector<1x16x16x4xbf16>
    %6 = vector.shape_cast %5 : vector<1x16x16x4xbf16> to vector<16x16x4xbf16>
    %7 = vector.shape_cast %6 : vector<16x16x4xbf16> to vector<256x4xbf16>
    %c0_2 = arith.constant 0 : index
    %c0_3 = arith.constant 0 : index
    %8 = vector.load %arg3[%c0_2, %c0_3] : memref<36x8xbf16, #tpu.memory_space<vmem>>, vector<4x8xbf16>
    %cst_4 = arith.constant dense<0.000000e+00> : vector<256x8xf32>
    %9 = tpu.matmul %7, %8, %cst_4 {dimension_numbers = #tpu.dot_dimension_numbers<[1], [0], [0], [1], [0, 0, 1, 1], [], []>} : vector<256x4xbf16>, vector<4x8xbf16>, vector<256x8xf32> -> vector<256x8xf32>
    %10 = arith.addf %2, %9 : vector<256x8xf32>
    %c0_i32_5 = arith.constant 0 : i32
    %11 = arith.addi %1, %c0_i32_5 : i32
    %c0_6 = arith.constant 0 : index
    %12 = arith.index_cast %11 : i32 to index
    %c1 = arith.constant 1 : index
    %c0_7 = arith.constant 0 : index
    %13 = vector.load %arg2[%c0_6, %12, %c1, %c0_7] : memref<1x18x18x4xbf16, #tpu.memory_space<vmem>>, vector<1x16x16x4xbf16>
    %14 = vector.shape_cast %13 : vector<1x16x16x4xbf16> to vector<16x16x4xbf16>
    %15 = vector.shape_cast %14 : vector<16x16x4xbf16> to vector<256x4xbf16>
    %c4 = arith.constant 4 : index
    %c0_8 = arith.constant 0 : index
    %16 = vector.load %arg3[%c4, %c0_8] : memref<36x8xbf16, #tpu.memory_space<vmem>>, vector<4x8xbf16>
    %cst_9 = arith.constant dense<0.000000e+00> : vector<256x8xf32>
    %17 = tpu.matmul %15, %16, %cst_9 {dimension_numbers = #tpu.dot_dimension_numbers<[1], [0], [0], [1], [0, 0, 1, 1], [], []>} : vector<256x4xbf16>, vector<4x8xbf16>, vector<256x8xf32> -> vector<256x8xf32>
    %18 = arith.addf %10, %17 : vector<256x8xf32>
    %c0_i32_10 = arith.constant 0 : i32
    %19 = arith.addi %1, %c0_i32_10 : i32
    %c0_11 = arith.constant 0 : index
    %20 = arith.index_cast %19 : i32 to index
    %c2 = arith.constant 2 : index
    %c0_12 = arith.constant 0 : index
    %21 = vector.load %arg2[%c0_11, %20, %c2, %c0_12] : memref<1x18x18x4xbf16, #tpu.memory_space<vmem>>, vector<1x16x16x4xbf16>
    %22 = vector.shape_cast %21 : vector<1x16x16x4xbf16> to vector<16x16x4xbf16>
    %23 = vector.shape_cast %22 : vector<16x16x4xbf16> to vector<256x4xbf16>
    %c8 = arith.constant 8 : index
    %c0_13 = arith.constant 0 : index
    %24 = vector.load %arg3[%c8, %c0_13] : memref<36x8xbf16, #tpu.memory_space<vmem>>, vector<4x8xbf16>
    %cst_14 = arith.constant dense<0.000000e+00> : vector<256x8xf32>
    %25 = tpu.matmul %23, %24, %cst_14 {dimension_numbers = #tpu.dot_dimension_numbers<[1], [0], [0], [1], [0, 0, 1, 1], [], []>} : vector<256x4xbf16>, vector<4x8xbf16>, vector<256x8xf32> -> vector<256x8xf32>
    %26 = arith.addf %18, %25 : vector<256x8xf32>
    %c1_i32 = arith.constant 1 : i32
    %27 = arith.addi %1, %c1_i32 : i32
    %c0_15 = arith.constant 0 : index
    %28 = arith.index_cast %27 : i32 to index
    %c0_16 = arith.constant 0 : index
    %c0_17 = arith.constant 0 : index
    %29 = vector.load %arg2[%c0_15, %28, %c0_16, %c0_17] : memref<1x18x18x4xbf16, #tpu.memory_space<vmem>>, vector<1x16x16x4xbf16>
    %30 = vector.shape_cast %29 : vector<1x16x16x4xbf16> to vector<16x16x4xbf16>
    %31 = vector.shape_cast %30 : vector<16x16x4xbf16> to vector<256x4xbf16>
    %c12 = arith.constant 12 : index
    %c0_18 = arith.constant 0 : index
    %32 = vector.load %arg3[%c12, %c0_18] : memref<36x8xbf16, #tpu.memory_space<vmem>>, vector<4x8xbf16>
    %cst_19 = arith.constant dense<0.000000e+00> : vector<256x8xf32>
    %33 = tpu.matmul %31, %32, %cst_19 {dimension_numbers = #tpu.dot_dimension_numbers<[1], [0], [0], [1], [0, 0, 1, 1], [], []>} : vector<256x4xbf16>, vector<4x8xbf16>, vector<256x8xf32> -> vector<256x8xf32>
    %34 = arith.addf %26, %33 : vector<256x8xf32>
    %c1_i32_20 = arith.constant 1 : i32
    %35 = arith.addi %1, %c1_i32_20 : i32
    %c0_21 = arith.constant 0 : index
    %36 = arith.index_cast %35 : i32 to index
    %c1_22 = arith.constant 1 : index
    %c0_23 = arith.constant 0 : index
    %37 = vector.load %arg2[%c0_21, %36, %c1_22, %c0_23] : memref<1x18x18x4xbf16, #tpu.memory_space<vmem>>, vector<1x16x16x4xbf16>
    %38 = vector.shape_cast %37 : vector<1x16x16x4xbf16> to vector<16x16x4xbf16>
    %39 = vector.shape_cast %38 : vector<16x16x4xbf16> to vector<256x4xbf16>
    %c16 = arith.constant 16 : index
    %c0_24 = arith.constant 0 : index
    %40 = vector.load %arg3[%c16, %c0_24] : memref<36x8xbf16, #tpu.memory_space<vmem>>, vector<4x8xbf16>
    %cst_25 = arith.constant dense<0.000000e+00> : vector<256x8xf32>
    %41 = tpu.matmul %39, %40, %cst_25 {dimension_numbers = #tpu.dot_dimension_numbers<[1], [0], [0], [1], [0, 0, 1, 1], [], []>} : vector<256x4xbf16>, vector<4x8xbf16>, vector<256x8xf32> -> vector<256x8xf32>
    %42 = arith.addf %34, %41 : vector<256x8xf32>
    %c1_i32_26 = arith.constant 1 : i32
    %43 = arith.addi %1, %c1_i32_26 : i32
    %c0_27 = arith.constant 0 : index
    %44 = arith.index_cast %43 : i32 to index
    %c2_28 = arith.constant 2 : index
    %c0_29 = arith.constant 0 : index
    %45 = vector.load %arg2[%c0_27, %44, %c2_28, %c0_29] : memref<1x18x18x4xbf16, #tpu.memory_space<vmem>>, vector<1x16x16x4xbf16>
    %46 = vector.shape_cast %45 : vector<1x16x16x4xbf16> to vector<16x16x4xbf16>
    %47 = vector.shape_cast %46 : vector<16x16x4xbf16> to vector<256x4xbf16>
    %c20 = arith.constant 20 : index
    %c0_30 = arith.constant 0 : index
    %48 = vector.load %arg3[%c20, %c0_30] : memref<36x8xbf16, #tpu.memory_space<vmem>>, vector<4x8xbf16>
    %cst_31 = arith.constant dense<0.000000e+00> : vector<256x8xf32>
    %49 = tpu.matmul %47, %48, %cst_31 {dimension_numbers = #tpu.dot_dimension_numbers<[1], [0], [0], [1], [0, 0, 1, 1], [], []>} : vector<256x4xbf16>, vector<4x8xbf16>, vector<256x8xf32> -> vector<256x8xf32>
    %50 = arith.addf %42, %49 : vector<256x8xf32>
    %c2_i32 = arith.constant 2 : i32
    %51 = arith.addi %1, %c2_i32 : i32
    %c0_32 = arith.constant 0 : index
    %52 = arith.index_cast %51 : i32 to index
    %c0_33 = arith.constant 0 : index
    %c0_34 = arith.constant 0 : index
    %53 = vector.load %arg2[%c0_32, %52, %c0_33, %c0_34] : memref<1x18x18x4xbf16, #tpu.memory_space<vmem>>, vector<1x16x16x4xbf16>
    %54 = vector.shape_cast %53 : vector<1x16x16x4xbf16> to vector<16x16x4xbf16>
    %55 = vector.shape_cast %54 : vector<16x16x4xbf16> to vector<256x4xbf16>
    %c24 = arith.constant 24 : index
    %c0_35 = arith.constant 0 : index
    %56 = vector.load %arg3[%c24, %c0_35] : memref<36x8xbf16, #tpu.memory_space<vmem>>, vector<4x8xbf16>
    %cst_36 = arith.constant dense<0.000000e+00> : vector<256x8xf32>
    %57 = tpu.matmul %55, %56, %cst_36 {dimension_numbers = #tpu.dot_dimension_numbers<[1], [0], [0], [1], [0, 0, 1, 1], [], []>} : vector<256x4xbf16>, vector<4x8xbf16>, vector<256x8xf32> -> vector<256x8xf32>
    %58 = arith.addf %50, %57 : vector<256x8xf32>
    %c2_i32_37 = arith.constant 2 : i32
    %59 = arith.addi %1, %c2_i32_37 : i32
    %c0_38 = arith.constant 0 : index
    %60 = arith.index_cast %59 : i32 to index
    %c1_39 = arith.constant 1 : index
    %c0_40 = arith.constant 0 : index
    %61 = vector.load %arg2[%c0_38, %60, %c1_39, %c0_40] : memref<1x18x18x4xbf16, #tpu.memory_space<vmem>>, vector<1x16x16x4xbf16>
    %62 = vector.shape_cast %61 : vector<1x16x16x4xbf16> to vector<16x16x4xbf16>
    %63 = vector.shape_cast %62 : vector<16x16x4xbf16> to vector<256x4xbf16>
    %c28 = arith.constant 28 : index
    %c0_41 = arith.constant 0 : index
    %64 = vector.load %arg3[%c28, %c0_41] : memref<36x8xbf16, #tpu.memory_space<vmem>>, vector<4x8xbf16>
    %cst_42 = arith.constant dense<0.000000e+00> : vector<256x8xf32>
    %65 = tpu.matmul %63, %64, %cst_42 {dimension_numbers = #tpu.dot_dimension_numbers<[1], [0], [0], [1], [0, 0, 1, 1], [], []>} : vector<256x4xbf16>, vector<4x8xbf16>, vector<256x8xf32> -> vector<256x8xf32>
    %66 = arith.addf %58, %65 : vector<256x8xf32>
    %c2_i32_43 = arith.constant 2 : i32
    %67 = arith.addi %1, %c2_i32_43 : i32
    %c0_44 = arith.constant 0 : index
    %68 = arith.index_cast %67 : i32 to index
    %c2_45 = arith.constant 2 : index
    %c0_46 = arith.constant 0 : index
    %69 = vector.load %arg2[%c0_44, %68, %c2_45, %c0_46] : memref<1x18x18x4xbf16, #tpu.memory_space<vmem>>, vector<1x16x16x4xbf16>
    %70 = vector.shape_cast %69 : vector<1x16x16x4xbf16> to vector<16x16x4xbf16>
    %71 = vector.shape_cast %70 : vector<16x16x4xbf16> to vector<256x4xbf16>
    %c32 = arith.constant 32 : index
    %c0_47 = arith.constant 0 : index
    %72 = vector.load %arg3[%c32, %c0_47] : memref<36x8xbf16, #tpu.memory_space<vmem>>, vector<4x8xbf16>
    %cst_48 = arith.constant dense<0.000000e+00> : vector<256x8xf32>
    %73 = tpu.matmul %71, %72, %cst_48 {dimension_numbers = #tpu.dot_dimension_numbers<[1], [0], [0], [1], [0, 0, 1, 1], [], []>} : vector<256x4xbf16>, vector<4x8xbf16>, vector<256x8xf32> -> vector<256x8xf32>
    %74 = arith.addf %66, %73 : vector<256x8xf32>
    %c0_49 = arith.constant 0 : index
    %c0_50 = arith.constant 0 : index
    %75 = vector.load %arg4[%c0_49, %c0_50] : memref<1x8xf32, #tpu.memory_space<vmem>>, vector<1x8xf32>
    %76 = vector.broadcast %75 : vector<1x8xf32> to vector<256x8xf32>
    %77 = arith.mulf %74, %76 : vector<256x8xf32>
    %c0_51 = arith.constant 0 : index
    %c0_52 = arith.constant 0 : index
    %78 = vector.load %arg5[%c0_51, %c0_52] : memref<1x8xf32, #tpu.memory_space<vmem>>, vector<1x8xf32>
    %79 = vector.broadcast %78 : vector<1x8xf32> to vector<256x8xf32>
    %80 = arith.addf %77, %79 : vector<256x8xf32>
    %cst_53 = arith.constant 0.000000e+00 : f32
    %81 = vector.broadcast %cst_53 : f32 to vector<256x8xf32>
    %82 = arith.cmpf ogt, %80, %81 : vector<256x8xf32>
    %c0_54 = arith.constant 0 : index
    %c0_55 = arith.constant 0 : index
    %83 = vector.load %arg6[%c0_54, %c0_55] : memref<1x8xf32, #tpu.memory_space<vmem>>, vector<1x8xf32>
    %84 = vector.broadcast %83 : vector<1x8xf32> to vector<256x8xf32>
    %85 = arith.mulf %84, %80 : vector<256x8xf32>
    %86 = arith.select %82, %80, %85 : vector<256x8xi1>, vector<256x8xf32>
    %87 = vector.shape_cast %86 : vector<256x8xf32> to vector<1x16x16x8xf32>
    %88 = arith.truncf %87 : vector<1x16x16x8xf32> to vector<1x16x16x8xbf16>
    %c0_56 = arith.constant 0 : index
    %c0_57 = arith.constant 0 : index
    %c0_58 = arith.constant 0 : index
    %c0_59 = arith.constant 0 : index
    %89 = vector.load %arg7[%c0_56, %c0_57, %c0_58, %c0_59] : memref<1x16x16x8xbf16, #tpu.memory_space<vmem>>, vector<1x16x16x8xbf16>
    tpu.vector_store %arg7[%c0_56, %c0_57, %c0_58, %c0_59], %88 {strides = array<i32>} : memref<1x16x16x8xbf16, #tpu.memory_space<vmem>>, vector<1x16x16x8xbf16>,
    return
  }
  func.func @transform_0(%arg0: i32, %arg1: i32) -> (i32, i32, i32, i32) {
    %c0_i32 = arith.constant 0 : i32
    %c0_i32_0 = arith.constant 0 : i32
    %c0_i32_1 = arith.constant 0 : i32
    %c0_i32_2 = arith.constant 0 : i32
    return %arg0, %c0_i32, %c0_i32_0, %c0_i32_1 : i32, i32, i32, i32
  }
  func.func @transform_1(%arg0: i32, %arg1: i32) -> (i32, i32) {
    %c0_i32 = arith.constant 0 : i32
    %c0_i32_0 = arith.constant 0 : i32
    %c0_i32_1 = arith.constant 0 : i32
    return %c0_i32, %c0_i32_0 : i32, i32
  }
  func.func @transform_2(%arg0: i32, %arg1: i32) -> (i32, i32) {
    %c0_i32 = arith.constant 0 : i32
    %c0_i32_0 = arith.constant 0 : i32
    %c0_i32_1 = arith.constant 0 : i32
    return %c0_i32, %c0_i32_0 : i32, i32
  }
  func.func @transform_3(%arg0: i32, %arg1: i32) -> (i32, i32) {
    %c0_i32 = arith.constant 0 : i32
    %c0_i32_0 = arith.constant 0 : i32
    %c0_i32_1 = arith.constant 0 : i32
    return %c0_i32, %c0_i32_0 : i32, i32
  }
  func.func @transform_4(%arg0: i32, %arg1: i32) -> (i32, i32) {
    %c0_i32 = arith.constant 0 : i32
    %c0_i32_0 = arith.constant 0 : i32
    %c0_i32_1 = arith.constant 0 : i32
    return %c0_i32, %c0_i32_0 : i32, i32
  }
  func.func @transform_5(%arg0: i32, %arg1: i32) -> (i32, i32, i32, i32) {
    %c0_i32 = arith.constant 0 : i32
    %c0_i32_0 = arith.constant 0 : i32
    %c0_i32_1 = arith.constant 0 : i32
    return %arg0, %arg1, %c0_i32, %c0_i32_0 : i32, i32, i32, i32
  }
}

</mosaic_0001>

<llo_original>
// kernel: tpu_custom_call.1
$region0: #{tpu_custom_call.1}
  #allocation0 [shape = 'u32[]', space=smem, size = 0x4, offset = 0x4, fixed_abs, tag = 'smem constant byte address 0x4 - core index']
  #allocation1 [shape = 'u32[72,128]{1,0:T(1,128)}', space=vmem, size = 0x9000, scoped, tag = 'internal scratch']
  %s0 = inlined_call_operand.vmem [shape: bf16[2,18,18,4], index: 0, kind: input, shape index: {}]
  %s1 = inlined_call_operand.vmem [shape: bf16[36,8], index: 1, kind: input, shape index: {}]
  %s2 = inlined_call_operand.vmem [shape: f32[1,8], index: 2, kind: input, shape index: {}]
  %s3 = inlined_call_operand.vmem [shape: f32[1,8], index: 3, kind: input, shape index: {}]
  %s4 = inlined_call_operand.vmem [shape: f32[1,8], index: 4, kind: input, shape index: {}]
  %s5 = inlined_call_operand.vmem [shape: bf16[2,16,16,8], index: 5, kind: output, shape index: {}]
  %s6 = sld [smem:[#allocation0]]
  $region53: #{tpu_custom_call.1} parent=0
    _
  %s8 = ssub.s32 1, %s6
  %s9 = scalar_select 0, %s8, %s6
  loop: start=0, step=1, limit=4
  $region2: #{tpu_custom_call.1} parent=0 // loop_pre_header
    _
  $region3: #{tpu_custom_call.1} parent=0 // loop_header
    %s11 = sphi 0, %s15
    %p12 = scmp.ge.s32.totalorder %s11, 4
    %s18 = sphi 0, %s30
    %s19 = sphi 0, %s26
    %s20 = sphi 0, %s18
    %s21 = sphi 0, %s19
    %s22 = sphi 0, %s20
    %s23 = sphi 0, %s21
    %s33 = sphi 0, %s35
    %s36 = sphi 0, %s33
    %s37 = sphi 0, %s36
    %s53 = sphi 0, %s37
    %s57 = sphi 0, %s57
    %s59 = sphi 0, %s57
    %s60 = sphi 0, %s59
    %s74 = sphi 0, %s60
    %s78 = sphi 0, %s78
    %s80 = sphi 0, %s78
    %s81 = sphi 0, %s80
    %s95 = sphi 0, %s81
    %s99 = sphi 0, %s99
    %s101 = sphi 0, %s99
    %s102 = sphi 0, %s101
    %s116 = sphi 0, %s102
    %s120 = sphi 0, %s120
    %s122 = sphi 0, %s120
    %s123 = sphi 0, %s122
    %s137 = sphi 0, %s123
    %s145 = sphi 0, %s147
    %s148 = sphi 0, %s145
    %s149 = sphi 0, %s148
    %s165 = sphi 0, %s149
  $region4: #{tpu_custom_call.1} parent=0 // loop_header_branch
    %14 = sbr.rel (%p12) target = $region8
  $region5: #{tpu_custom_call.1} parent=0 // loop_body
    %s16 = ssub.s32 %s11, 1
    %s17 = ssub.s32 %s11, 2
    %s24 = sadd.s32 1, %s19
    %p25 = scmp.ge.s32.totalorder %s24, 1
    %s26 = scalar_select %p25, 0, %s24
    %s27 = sadd.s32 1, %s18
    %s28 = scalar_select %p25, %s27, %s18
    %p29 = scmp.ge.s32.totalorder %s28, 2
    %s30 = scalar_select %p29, 0, %s28
    %s31 = ssub.s32 %s18, %s30
    %p32 = scmp.eq.s32.totalorder %s31, 0
    %s34 = sadd.s32 %s33, 1
    %s35 = scalar_select %p32, %s33, %s34
    %p38 = pneg %p32
    %p39 = scmp.eq.s32.totalorder %s11, 1
    %p40 = por %p38, %p39
    %p41 = scmp.ne.s32.totalorder %s33, %s36
    %p42 = scmp.eq.s32.totalorder %s11, 0
    %p43 = por %p41, %p42
    %p44 = scmp.ne.s32.totalorder %s33, %s36
    %p45 = scmp.eq.s32.totalorder %s16, 1
    %p46 = por %p44, %p45
    %p47 = scmp.ne.s32.totalorder %s36, %s37
    %p48 = scmp.eq.s32.totalorder %s16, 0
    %p49 = por %p47, %p48
    %p50 = scmp.ne.s32.totalorder %s36, %s37
    %p51 = scmp.eq.s32.totalorder %s17, 1
    %p52 = por %p50, %p51
    %p54 = scmp.ne.s32.totalorder %s37, %s53
    %p55 = scmp.eq.s32.totalorder %s17, 0
    %p56 = por %p54, %p55
    %s58 = sadd.s32 %s57, 1
    %p61 = scmp.eq.s32.totalorder %s11, 1
    %p62 = scmp.ne.s32.totalorder %s57, %s59
    %p63 = scmp.eq.s32.totalorder %s11, 0
    %p64 = por %p62, %p63
    %p65 = scmp.ne.s32.totalorder %s57, %s59
    %p66 = scmp.eq.s32.totalorder %s16, 1
    %p67 = por %p65, %p66
    %p68 = scmp.ne.s32.totalorder %s59, %s60
    %p69 = scmp.eq.s32.totalorder %s16, 0
    %p70 = por %p68, %p69
    %p71 = scmp.ne.s32.totalorder %s59, %s60
    %p72 = scmp.eq.s32.totalorder %s17, 1
    %p73 = por %p71, %p72
    %p75 = scmp.ne.s32.totalorder %s60, %s74
    %p76 = scmp.eq.s32.totalorder %s17, 0
    %p77 = por %p75, %p76
    %s79 = sadd.s32 %s78, 1
    %p82 = scmp.eq.s32.totalorder %s11, 1
    %p83 = scmp.ne.s32.totalorder %s78, %s80
    %p84 = scmp.eq.s32.totalorder %s11, 0
    %p85 = por %p83, %p84
    %p86 = scmp.ne.s32.totalorder %s78, %s80
    %p87 = scmp.eq.s32.totalorder %s16, 1
    %p88 = por %p86, %p87
    %p89 = scmp.ne.s32.totalorder %s80, %s81
    %p90 = scmp.eq.s32.totalorder %s16, 0
    %p91 = por %p89, %p90
    %p92 = scmp.ne.s32.totalorder %s80, %s81
    %p93 = scmp.eq.s32.totalorder %s17, 1
    %p94 = por %p92, %p93
    %p96 = scmp.ne.s32.totalorder %s81, %s95
    %p97 = scmp.eq.s32.totalorder %s17, 0
    %p98 = por %p96, %p97
    %s100 = sadd.s32 %s99, 1
    %p103 = scmp.eq.s32.totalorder %s11, 1
    %p104 = scmp.ne.s32.totalorder %s99, %s101
    %p105 = scmp.eq.s32.totalorder %s11, 0
    %p106 = por %p104, %p105
    %p107 = scmp.ne.s32.totalorder %s99, %s101
    %p108 = scmp.eq.s32.totalorder %s16, 1
    %p109 = por %p107, %p108
    %p110 = scmp.ne.s32.totalorder %s101, %s102
    %p111 = scmp.eq.s32.totalorder %s16, 0
    %p112 = por %p110, %p111
    %p113 = scmp.ne.s32.totalorder %s101, %s102
    %p114 = scmp.eq.s32.totalorder %s17, 1
    %p115 = por %p113, %p114
    %p117 = scmp.ne.s32.totalorder %s102, %s116
    %p118 = scmp.eq.s32.totalorder %s17, 0
    %p119 = por %p117, %p118
    %s121 = sadd.s32 %s120, 1
    %p124 = scmp.eq.s32.totalorder %s11, 1
    %p125 = scmp.ne.s32.totalorder %s120, %s122
    %p126 = scmp.eq.s32.totalorder %s11, 0
    %p127 = por %p125, %p126
    %p128 = scmp.ne.s32.totalorder %s120, %s122
    %p129 = scmp.eq.s32.totalorder %s16, 1
    %p130 = por %p128, %p129
    %p131 = scmp.ne.s32.totalorder %s122, %s123
    %p132 = scmp.eq.s32.totalorder %s16, 0
    %p133 = por %p131, %p132
    %p134 = scmp.ne.s32.totalorder %s122, %s123
    %p135 = scmp.eq.s32.totalorder %s17, 1
    %p136 = por %p134, %p135
    %p138 = scmp.ne.s32.totalorder %s123, %s137
    %p139 = scmp.eq.s32.totalorder %s17, 0
    %p140 = por %p138, %p139
    %s141 = ssub.s32 %s18, %s30
    %s142 = ssub.s32 %s19, %s26
    %s143 = sor.u32 %s141, %s142
    %p144 = scmp.eq.s32.totalorder %s143, 0
    %s146 = sadd.s32 %s145, 1
    %s147 = scalar_select %p144, %s145, %s146
    %p150 = pneg %p144
    %p151 = scmp.eq.s32.totalorder %s11, 1
    %p152 = por %p150, %p151
    %p153 = scmp.ne.s32.totalorder %s145, %s148
    %p154 = scmp.eq.s32.totalorder %s11, 0
    %p155 = por %p153, %p154
    %p156 = scmp.ne.s32.totalorder %s145, %s148
    %p157 = scmp.eq.s32.totalorder %s16, 1
    %p158 = por %p156, %p157
    %p159 = scmp.ne.s32.totalorder %s148, %s149
    %p160 = scmp.eq.s32.totalorder %s16, 0
    %p161 = por %p159, %p160
    %p162 = scmp.ne.s32.totalorder %s148, %s149
    %p163 = scmp.eq.s32.totalorder %s17, 1
    %p164 = por %p162, %p163
    %p166 = scmp.ne.s32.totalorder %s149, %s165
    %p167 = scmp.eq.s32.totalorder %s17, 0
    %p168 = por %p166, %p167
    %p169 = scmp.le.s32.totalorder 1, %s11
    %p170 = scmp.lt.s32.totalorder %s11, 3
    %p171 = pnand %p169, %p170
    %p172 = pneg %p171
    // Predicated region
    $region9: #{tpu_custom_call.1} parent=5 // pred_check
      _
    $region10: #{tpu_custom_call.1} parent=5 // pred_check_branch
      %174 = sbr.rel (%p171) target = $region12
    $region11: #{tpu_custom_call.1} parent=5 // pred_region
      %s175 = ssub.s32 %s11, 1
      // Predicated region
      $region13: #{tpu_custom_call.1} parent=11 // pred_check
        %p176 = pneg %p70
      $region14: #{tpu_custom_call.1} parent=11 // pred_check_branch
        %178 = sbr.rel (%p176) target = $region16
      $region15: #{tpu_custom_call.1} parent=11 // pred_region
        _
      $region16: #{tpu_custom_call.1} parent=11 // pred_fallthru
        _
      // Predicated region
      $region17: #{tpu_custom_call.1} parent=11 // pred_check
        %p179 = pneg %p91
      $region18: #{tpu_custom_call.1} parent=11 // pred_check_branch
        %181 = sbr.rel (%p179) target = $region20
      $region19: #{tpu_custom_call.1} parent=11 // pred_region
        _
      $region20: #{tpu_custom_call.1} parent=11 // pred_fallthru
        _
      // Predicated region
      $region21: #{tpu_custom_call.1} parent=11 // pred_check
        %p182 = pneg %p112
      $region22: #{tpu_custom_call.1} parent=11 // pred_check_branch
        %184 = sbr.rel (%p182) target = $region24
      $region23: #{tpu_custom_call.1} parent=11 // pred_region
        _
      $region24: #{tpu_custom_call.1} parent=11 // pred_fallthru
        _
      // Predicated region
      $region25: #{tpu_custom_call.1} parent=11 // pred_check
        %p185 = pneg %p133
      $region26: #{tpu_custom_call.1} parent=11 // pred_check_branch
        %187 = sbr.rel (%p185) target = $region28
      $region27: #{tpu_custom_call.1} parent=11 // pred_region
        _
      $region28: #{tpu_custom_call.1} parent=11 // pred_fallthru
        _
    $region12: #{tpu_custom_call.1} parent=5 // pred_fallthru
      _
    %p188 = scmp.lt.s32.totalorder %s11, 2
    // Predicated region
    $region29: #{tpu_custom_call.1} parent=5 // pred_check
      %p189 = pneg %p188
    $region30: #{tpu_custom_call.1} parent=5 // pred_check_branch
      %191 = sbr.rel (%p189) target = $region32
    $region31: #{tpu_custom_call.1} parent=5 // pred_region
      // Predicated region
      $region33: #{tpu_custom_call.1} parent=31 // pred_check
        %p192 = pneg %p43
      $region34: #{tpu_custom_call.1} parent=31 // pred_check_branch
        %194 = sbr.rel (%p192) target = $region36
      $region35: #{tpu_custom_call.1} parent=31 // pred_region
        %p195 = scmp.lt.s32.totalorder %s18, 1
        %s196 = scalar_select %p195, %s18, 1
        %s197 = smul.addr %s196, 54
        %s198 = smul.addr %s197, 4
        %s199 = scalar_lea.vmem %s0, %s198
      $region36: #{tpu_custom_call.1} parent=31 // pred_fallthru
        _
    $region32: #{tpu_custom_call.1} parent=5 // pred_fallthru
      _
    %p200 = scmp.le.s32.totalorder 1, %s11
    %p201 = scmp.lt.s32.totalorder %s11, 3
    %p202 = pnand %p200, %p201
    %p203 = pneg %p202
    // Predicated region
    $region37: #{tpu_custom_call.1} parent=5 // pred_check
      _
    $region38: #{tpu_custom_call.1} parent=5 // pred_check_branch
      %205 = sbr.rel (%p202) target = $region40
    $region39: #{tpu_custom_call.1} parent=5 // pred_region
      %s206 = ssub.s32 %s11, 1
      %p207 = scmp.lt.s32.totalorder %s20, 1
      %s208 = scalar_select %p207, %s20, 1
      %s209 = smul.addr %s208, 54
      %s210 = smul.addr %s209, 4
      %s211 = scalar_lea.vmem %s0, %s210
      %p212 = pneg %p49
      %p213 = pneg %p46
      %p214 = pneg %p70
      %p215 = pneg %p67
      %p216 = pneg %p91
      %p217 = pneg %p88
      %p218 = pneg %p112
      %p219 = pneg %p109
      %p220 = pneg %p133
      %p221 = pneg %p130
      %p222 = pneg %p161
      %p223 = pneg %p158
      %s224 = smul.u32 16, %s21
      %p225 = scmp.lt.s32.totalorder %s20, 1
      %s226 = scalar_select %p225, %s20, 1
      %p227 = scmp.lt.s32.totalorder %s224, 15
      %s228 = scalar_select %p227, %s224, 15
      %s229 = smul.addr %s228, 2
      %s230 = smul.addr %s226, 32
      %s231 = sadd.s32 %s229, %s230
      %s232 = smul.addr %s231, 4
      %s233 = scalar_lea.vmem %s5, %s232
      %p234 = scmp.lt.s32.totalorder %s20, 1
      %s235 = scalar_select %p234, %s20, 1
      %s236 = smul.addr %s235, 54
      %s237 = smul.addr %s236, 4
      %s238 = scalar_lea.vmem %s0, %s237
      %s239 = smul.u32 16, %s21
      %p240 = scmp.lt.s32.totalorder %s20, 1
      %s241 = scalar_select %p240, %s20, 1
      %p242 = scmp.lt.s32.totalorder %s239, 15
      %s243 = scalar_select %p242, %s239, 15
      %s244 = smul.addr %s243, 2
      %s245 = smul.addr %s241, 32
      %s246 = sadd.s32 %s244, %s245
      %s247 = smul.addr %s246, 4
      %s248 = scalar_lea.vmem %s5, %s247
      %s249 = smul.u32 16, %s21
      %s251 = smul.u32 %s21, 16
      %s252 = smul.u32 %s251, 3
      %s253 = smul.addr %s252, 4
      %s254 = scalar_lea.vmem %s238, %s253
      %v255 = vld [vmem:[%s254] sm:$0xf]
      %v256 = vld [vmem:[%s254 + $0x4] sm:$0xf]
      %v257 = vld [vmem:[%s254 + $0xc] sm:$0xf]
      %v258 = vld [vmem:[%s254 + $0x10] sm:$0xf]
      %v259 = vld [vmem:[%s254 + $0x18] sm:$0xf]
      %v260 = vld [vmem:[%s254 + $0x1c] sm:$0xf]
      %v261 = vld [vmem:[%s254 + $0x24] sm:$0xf]
      %v262 = vld [vmem:[%s254 + $0x28] sm:$0xf]
      %v263 = vld [vmem:[%s254 + $0x30] sm:$0xf]
      %v264 = vld [vmem:[%s254 + $0x34] sm:$0xf]
      %v265 = vld [vmem:[%s254 + $0x3c] sm:$0xf]
      %v266 = vld [vmem:[%s254 + $0x40] sm:$0xf]
      %v267 = vld [vmem:[%s254 + $0x48] sm:$0xf]
      %v268 = vld [vmem:[%s254 + $0x4c] sm:$0xf]
      %v269 = vld [vmem:[%s254 + $0x54] sm:$0xf]
      %v270 = vld [vmem:[%s254 + $0x58] sm:$0xf]
      %v271 = vld [vmem:[%s254 + $0x60] sm:$0xf]
      %v272 = vld [vmem:[%s254 + $0x64] sm:$0xf]
      %v273 = vld [vmem:[%s254 + $0x6c] sm:$0xf]
      %v274 = vld [vmem:[%s254 + $0x70] sm:$0xf]
      %v275 = vld [vmem:[%s254 + $0x78] sm:$0xf]
      %v276 = vld [vmem:[%s254 + $0x7c] sm:$0xf]
      %v277 = vld [vmem:[%s254 + $0x84] sm:$0xf]
      %v278 = vld [vmem:[%s254 + $0x88] sm:$0xf]
      %v279 = vld [vmem:[%s254 + $0x90] sm:$0xf]
      %v280 = vld [vmem:[%s254 + $0x94] sm:$0xf]
      %v281 = vld [vmem:[%s254 + $0x9c] sm:$0xf]
      %v282 = vld [vmem:[%s254 + $0xa0] sm:$0xf]
      %v283 = vld [vmem:[%s254 + $0xa8] sm:$0xf]
      %v284 = vld [vmem:[%s254 + $0xac] sm:$0xf]
      %v285 = vld [vmem:[%s254 + $0xb4] sm:$0xf]
      %v286 = vld [vmem:[%s254 + $0xb8] sm:$0xf]
      %v287 = vld [vmem:[%s254 + $0x8] sm:$0x1]
      %v288 = vld [vmem:[%s254 + $0x14] sm:$0x1]
      %v289 = vld [vmem:[%s254 + $0x20] sm:$0x1]
      %v290 = vld [vmem:[%s254 + $0x2c] sm:$0x1]
      %v291 = vld [vmem:[%s254 + $0x38] sm:$0x1]
      %v292 = vld [vmem:[%s254 + $0x44] sm:$0x1]
      %v293 = vld [vmem:[%s254 + $0x50] sm:$0x1]
      %v294 = vld [vmem:[%s254 + $0x5c] sm:$0x1]
      %v295 = vld [vmem:[%s254 + $0x68] sm:$0x1]
      %v296 = vld [vmem:[%s254 + $0x74] sm:$0x1]
      %v297 = vld [vmem:[%s254 + $0x80] sm:$0x1]
      %v298 = vld [vmem:[%s254 + $0x8c] sm:$0x1]
      %v299 = vld [vmem:[%s254 + $0x98] sm:$0x1]
      %v300 = vld [vmem:[%s254 + $0xa4] sm:$0x1]
      %v301 = vld [vmem:[%s254 + $0xb0] sm:$0x1]
      %v302 = vld [vmem:[%s254 + $0xbc] sm:$0x1]
      %vm303 = vsmask.f32 3328
      %vm304 = vsmask.f32 7440
      %vm305 = vmor %vm303, %vm304
      %v307 = vshrl.u32 %v255, 16
      %v309 = vrot.slane %v307, 4
      %v310 = vshll.u32 %v255, 16
      %v312 = vrot.slane %v310, 5
      %v313 = vor.u32 %v309, %v312
      %v314 = vrot.slane %v313, 4
      %v316 = vshll.u32 %v256, 16
      %v318 = vrot.slane %v316, 5
      %v319 = vsel %vm305, %v314, %v318
      %v320 = vshrl.u32 %v256, 16
      %v322 = vrot.slane %v320, 4
      %v323 = vor.u32 %v322, %v318
      %v324 = vrot.slane %v323, 4
      %v326 = vshll.u32 %v287, 16
      %v328 = vrot.slane %v326, 5
      %v329 = vsel %vm305, %v324, %v328
      %v331 = vshrl.u32 %v257, 16
      %v333 = vrot.slane %v331, 4
      %v334 = vshll.u32 %v257, 16
      %v336 = vrot.slane %v334, 5
      %v337 = vor.u32 %v333, %v336
      %v338 = vrot.slane %v337, 4
      %v340 = vshll.u32 %v258, 16
      %v342 = vrot.slane %v340, 5
      %v343 = vsel %vm305, %v338, %v342
      %v344 = vshrl.u32 %v258, 16
      %v346 = vrot.slane %v344, 4
      %v347 = vor.u32 %v346, %v342
      %v348 = vrot.slane %v347, 4
      %v350 = vshll.u32 %v288, 16
      %v352 = vrot.slane %v350, 5
      %v353 = vsel %vm305, %v348, %v352
      %v355 = vshrl.u32 %v259, 16
      %v357 = vrot.slane %v355, 4
      %v358 = vshll.u32 %v259, 16
      %v360 = vrot.slane %v358, 5
      %v361 = vor.u32 %v357, %v360
      %v362 = vrot.slane %v361, 4
      %v364 = vshll.u32 %v260, 16
      %v366 = vrot.slane %v364, 5
      %v367 = vsel %vm305, %v362, %v366
      %v368 = vshrl.u32 %v260, 16
      %v370 = vrot.slane %v368, 4
      %v371 = vor.u32 %v370, %v366
      %v372 = vrot.slane %v371, 4
      %v374 = vshll.u32 %v289, 16
      %v376 = vrot.slane %v374, 5
      %v377 = vsel %vm305, %v372, %v376
      %v379 = vshrl.u32 %v261, 16
      %v381 = vrot.slane %v379, 4
      %v382 = vshll.u32 %v261, 16
      %v384 = vrot.slane %v382, 5
      %v385 = vor.u32 %v381, %v384
      %v386 = vrot.slane %v385, 4
      %v388 = vshll.u32 %v262, 16
      %v390 = vrot.slane %v388, 5
      %v391 = vsel %vm305, %v386, %v390
      %v392 = vshrl.u32 %v262, 16
      %v394 = vrot.slane %v392, 4
      %v395 = vor.u32 %v394, %v390
      %v396 = vrot.slane %v395, 4
      %v398 = vshll.u32 %v290, 16
      %v400 = vrot.slane %v398, 5
      %v401 = vsel %vm305, %v396, %v400
      %v403 = vshrl.u32 %v263, 16
      %v405 = vrot.slane %v403, 4
      %v406 = vshll.u32 %v263, 16
      %v408 = vrot.slane %v406, 5
      %v409 = vor.u32 %v405, %v408
      %v410 = vrot.slane %v409, 4
      %v412 = vshll.u32 %v264, 16
      %v414 = vrot.slane %v412, 5
      %v415 = vsel %vm305, %v410, %v414
      %v416 = vshrl.u32 %v264, 16
      %v418 = vrot.slane %v416, 4
      %v419 = vor.u32 %v418, %v414
      %v420 = vrot.slane %v419, 4
      %v422 = vshll.u32 %v291, 16
      %v424 = vrot.slane %v422, 5
      %v425 = vsel %vm305, %v420, %v424
      %v427 = vshrl.u32 %v265, 16
      %v429 = vrot.slane %v427, 4
      %v430 = vshll.u32 %v265, 16
      %v432 = vrot.slane %v430, 5
      %v433 = vor.u32 %v429, %v432
      %v434 = vrot.slane %v433, 4
      %v436 = vshll.u32 %v266, 16
      %v438 = vrot.slane %v436, 5
      %v439 = vsel %vm305, %v434, %v438
      %v440 = vshrl.u32 %v266, 16
      %v442 = vrot.slane %v440, 4
      %v443 = vor.u32 %v442, %v438
      %v444 = vrot.slane %v443, 4
      %v446 = vshll.u32 %v292, 16
      %v448 = vrot.slane %v446, 5
      %v449 = vsel %vm305, %v444, %v448
      %v451 = vshrl.u32 %v267, 16
      %v453 = vrot.slane %v451, 4
      %v454 = vshll.u32 %v267, 16
      %v456 = vrot.slane %v454, 5
      %v457 = vor.u32 %v453, %v456
      %v458 = vrot.slane %v457, 4
      %v460 = vshll.u32 %v268, 16
      %v462 = vrot.slane %v460, 5
      %v463 = vsel %vm305, %v458, %v462
      %v464 = vshrl.u32 %v268, 16
      %v466 = vrot.slane %v464, 4
      %v467 = vor.u32 %v466, %v462
      %v468 = vrot.slane %v467, 4
      %v470 = vshll.u32 %v293, 16
      %v472 = vrot.slane %v470, 5
      %v473 = vsel %vm305, %v468, %v472
      %v475 = vshrl.u32 %v269, 16
      %v477 = vrot.slane %v475, 4
      %v478 = vshll.u32 %v269, 16
      %v480 = vrot.slane %v478, 5
      %v481 = vor.u32 %v477, %v480
      %v482 = vrot.slane %v481, 4
      %v484 = vshll.u32 %v270, 16
      %v486 = vrot.slane %v484, 5
      %v487 = vsel %vm305, %v482, %v486
      %v488 = vshrl.u32 %v270, 16
      %v490 = vrot.slane %v488, 4
      %v491 = vor.u32 %v490, %v486
      %v492 = vrot.slane %v491, 4
      %v494 = vshll.u32 %v294, 16
      %v496 = vrot.slane %v494, 5
      %v497 = vsel %vm305, %v492, %v496
      %v499 = vshrl.u32 %v271, 16
      %v501 = vrot.slane %v499, 4
      %v502 = vshll.u32 %v271, 16
      %v504 = vrot.slane %v502, 5
      %v505 = vor.u32 %v501, %v504
      %v506 = vrot.slane %v505, 4
      %v508 = vshll.u32 %v272, 16
      %v510 = vrot.slane %v508, 5
      %v511 = vsel %vm305, %v506, %v510
      %v512 = vshrl.u32 %v272, 16
      %v514 = vrot.slane %v512, 4
      %v515 = vor.u32 %v514, %v510
      %v516 = vrot.slane %v515, 4
      %v518 = vshll.u32 %v295, 16
      %v520 = vrot.slane %v518, 5
      %v521 = vsel %vm305, %v516, %v520
      %v523 = vshrl.u32 %v273, 16
      %v525 = vrot.slane %v523, 4
      %v526 = vshll.u32 %v273, 16
      %v528 = vrot.slane %v526, 5
      %v529 = vor.u32 %v525, %v528
      %v530 = vrot.slane %v529, 4
      %v532 = vshll.u32 %v274, 16
      %v534 = vrot.slane %v532, 5
      %v535 = vsel %vm305, %v530, %v534
      %v536 = vshrl.u32 %v274, 16
      %v538 = vrot.slane %v536, 4
      %v539 = vor.u32 %v538, %v534
      %v540 = vrot.slane %v539, 4
      %v542 = vshll.u32 %v296, 16
      %v544 = vrot.slane %v542, 5
      %v545 = vsel %vm305, %v540, %v544
      %v547 = vshrl.u32 %v275, 16
      %v549 = vrot.slane %v547, 4
      %v550 = vshll.u32 %v275, 16
      %v552 = vrot.slane %v550, 5
      %v553 = vor.u32 %v549, %v552
      %v554 = vrot.slane %v553, 4
      %v556 = vshll.u32 %v276, 16
      %v558 = vrot.slane %v556, 5
      %v559 = vsel %vm305, %v554, %v558
      %v560 = vshrl.u32 %v276, 16
      %v562 = vrot.slane %v560, 4
      %v563 = vor.u32 %v562, %v558
      %v564 = vrot.slane %v563, 4
      %v566 = vshll.u32 %v297, 16
      %v568 = vrot.slane %v566, 5
      %v569 = vsel %vm305, %v564, %v568
      %v571 = vshrl.u32 %v277, 16
      %v573 = vrot.slane %v571, 4
      %v574 = vshll.u32 %v277, 16
      %v576 = vrot.slane %v574, 5
      %v577 = vor.u32 %v573, %v576
      %v578 = vrot.slane %v577, 4
      %v580 = vshll.u32 %v278, 16
      %v582 = vrot.slane %v580, 5
      %v583 = vsel %vm305, %v578, %v582
      %v584 = vshrl.u32 %v278, 16
      %v586 = vrot.slane %v584, 4
      %v587 = vor.u32 %v586, %v582
      %v588 = vrot.slane %v587, 4
      %v590 = vshll.u32 %v298, 16
      %v592 = vrot.slane %v590, 5
      %v593 = vsel %vm305, %v588, %v592
      %v595 = vshrl.u32 %v279, 16
      %v597 = vrot.slane %v595, 4
      %v598 = vshll.u32 %v279, 16
      %v600 = vrot.slane %v598, 5
      %v601 = vor.u32 %v597, %v600
      %v602 = vrot.slane %v601, 4
      %v604 = vshll.u32 %v280, 16
      %v606 = vrot.slane %v604, 5
      %v607 = vsel %vm305, %v602, %v606
      %v608 = vshrl.u32 %v280, 16
      %v610 = vrot.slane %v608, 4
      %v611 = vor.u32 %v610, %v606
      %v612 = vrot.slane %v611, 4
      %v614 = vshll.u32 %v299, 16
      %v616 = vrot.slane %v614, 5
      %v617 = vsel %vm305, %v612, %v616
      %v619 = vshrl.u32 %v281, 16
      %v621 = vrot.slane %v619, 4
      %v622 = vshll.u32 %v281, 16
      %v624 = vrot.slane %v622, 5
      %v625 = vor.u32 %v621, %v624
      %v626 = vrot.slane %v625, 4
      %v628 = vshll.u32 %v282, 16
      %v630 = vrot.slane %v628, 5
      %v631 = vsel %vm305, %v626, %v630
      %v632 = vshrl.u32 %v282, 16
      %v634 = vrot.slane %v632, 4
      %v635 = vor.u32 %v634, %v630
      %v636 = vrot.slane %v635, 4
      %v638 = vshll.u32 %v300, 16
      %v640 = vrot.slane %v638, 5
      %v641 = vsel %vm305, %v636, %v640
      %v643 = vshrl.u32 %v283, 16
      %v645 = vrot.slane %v643, 4
      %v646 = vshll.u32 %v283, 16
      %v648 = vrot.slane %v646, 5
      %v649 = vor.u32 %v645, %v648
      %v650 = vrot.slane %v649, 4
      %v652 = vshll.u32 %v284, 16
      %v654 = vrot.slane %v652, 5
      %v655 = vsel %vm305, %v650, %v654
      %v656 = vshrl.u32 %v284, 16
      %v658 = vrot.slane %v656, 4
      %v659 = vor.u32 %v658, %v654
      %v660 = vrot.slane %v659, 4
      %v662 = vshll.u32 %v301, 16
      %v664 = vrot.slane %v662, 5
      %v665 = vsel %vm305, %v660, %v664
      %v667 = vshrl.u32 %v285, 16
      %v669 = vrot.slane %v667, 4
      %v670 = vshll.u32 %v285, 16
      %v672 = vrot.slane %v670, 5
      %v673 = vor.u32 %v669, %v672
      %v674 = vrot.slane %v673, 4
      %v676 = vshll.u32 %v286, 16
      %v678 = vrot.slane %v676, 5
      %v679 = vsel %vm305, %v674, %v678
      %v680 = vshrl.u32 %v286, 16
      %v682 = vrot.slane %v680, 4
      %v683 = vor.u32 %v682, %v678
      %v684 = vrot.slane %v683, 4
      %v686 = vshll.u32 %v302, 16
      %v688 = vrot.slane %v686, 5
      %v689 = vsel %vm305, %v684, %v688
      %v690 = vld [vmem:[%s254] sm:$0xe]
      %v691 = vld [vmem:[%s254 + $0xc] sm:$0xe]
      %v692 = vld [vmem:[%s254 + $0x18] sm:$0xe]
      %v693 = vld [vmem:[%s254 + $0x24] sm:$0xe]
      %v694 = vld [vmem:[%s254 + $0x30] sm:$0xe]
      %v695 = vld [vmem:[%s254 + $0x3c] sm:$0xe]
      %v696 = vld [vmem:[%s254 + $0x48] sm:$0xe]
      %v697 = vld [vmem:[%s254 + $0x54] sm:$0xe]
      %v698 = vld [vmem:[%s254 + $0x60] sm:$0xe]
      %v699 = vld [vmem:[%s254 + $0x6c] sm:$0xe]
      %v700 = vld [vmem:[%s254 + $0x78] sm:$0xe]
      %v701 = vld [vmem:[%s254 + $0x84] sm:$0xe]
      %v702 = vld [vmem:[%s254 + $0x90] sm:$0xe]
      %v703 = vld [vmem:[%s254 + $0x9c] sm:$0xe]
      %v704 = vld [vmem:[%s254 + $0xa8] sm:$0xe]
      %v705 = vld [vmem:[%s254 + $0xb4] sm:$0xe]
      %vm754 = vcmask 1042432
      %vm755 = vcmask 1046532
      %vm756 = vmor %vm754, %vm755
      %v757 = vrot.slane %v690, 5
      %v758 = vrot.slane %v757, 4
      %v759 = vrot.slane %v256, 5
      %v760 = vsel %vm756, %v758, %v759
      %v761 = vrot.slane %v759, 4
      %v762 = vrot.slane %v287, 5
      %v763 = vsel %vm756, %v761, %v762
      %v764 = vrot.slane %v691, 5
      %v765 = vrot.slane %v764, 4
      %v766 = vrot.slane %v258, 5
      %v767 = vsel %vm756, %v765, %v766
      %v768 = vrot.slane %v766, 4
      %v769 = vrot.slane %v288, 5
      %v770 = vsel %vm756, %v768, %v769
      %v771 = vrot.slane %v692, 5
      %v772 = vrot.slane %v771, 4
      %v773 = vrot.slane %v260, 5
      %v774 = vsel %vm756, %v772, %v773
      %v775 = vrot.slane %v773, 4
      %v776 = vrot.slane %v289, 5
      %v777 = vsel %vm756, %v775, %v776
      %v778 = vrot.slane %v693, 5
      %v779 = vrot.slane %v778, 4
      %v780 = vrot.slane %v262, 5
      %v781 = vsel %vm756, %v779, %v780
      %v782 = vrot.slane %v780, 4
      %v783 = vrot.slane %v290, 5
      %v784 = vsel %vm756, %v782, %v783
      %v785 = vrot.slane %v694, 5
      %v786 = vrot.slane %v785, 4
      %v787 = vrot.slane %v264, 5
      %v788 = vsel %vm756, %v786, %v787
      %v789 = vrot.slane %v787, 4
      %v790 = vrot.slane %v291, 5
      %v791 = vsel %vm756, %v789, %v790
      %v792 = vrot.slane %v695, 5
      %v793 = vrot.slane %v792, 4
      %v794 = vrot.slane %v266, 5
      %v795 = vsel %vm756, %v793, %v794
      %v796 = vrot.slane %v794, 4
      %v797 = vrot.slane %v292, 5
      %v798 = vsel %vm756, %v796, %v797
      %v799 = vrot.slane %v696, 5
      %v800 = vrot.slane %v799, 4
      %v801 = vrot.slane %v268, 5
      %v802 = vsel %vm756, %v800, %v801
      %v803 = vrot.slane %v801, 4
      %v804 = vrot.slane %v293, 5
      %v805 = vsel %vm756, %v803, %v804
      %v806 = vrot.slane %v697, 5
      %v807 = vrot.slane %v806, 4
      %v808 = vrot.slane %v270, 5
      %v809 = vsel %vm756, %v807, %v808
      %v810 = vrot.slane %v808, 4
      %v811 = vrot.slane %v294, 5
      %v812 = vsel %vm756, %v810, %v811
      %v813 = vrot.slane %v698, 5
      %v814 = vrot.slane %v813, 4
      %v815 = vrot.slane %v272, 5
      %v816 = vsel %vm756, %v814, %v815
      %v817 = vrot.slane %v815, 4
      %v818 = vrot.slane %v295, 5
      %v819 = vsel %vm756, %v817, %v818
      %v820 = vrot.slane %v699, 5
      %v821 = vrot.slane %v820, 4
      %v822 = vrot.slane %v274, 5
      %v823 = vsel %vm756, %v821, %v822
      %v824 = vrot.slane %v822, 4
      %v825 = vrot.slane %v296, 5
      %v826 = vsel %vm756, %v824, %v825
      %v827 = vrot.slane %v700, 5
      %v828 = vrot.slane %v827, 4
      %v829 = vrot.slane %v276, 5
      %v830 = vsel %vm756, %v828, %v829
      %v831 = vrot.slane %v829, 4
      %v832 = vrot.slane %v297, 5
      %v833 = vsel %vm756, %v831, %v832
      %v834 = vrot.slane %v701, 5
      %v835 = vrot.slane %v834, 4
      %v836 = vrot.slane %v278, 5
      %v837 = vsel %vm756, %v835, %v836
      %v838 = vrot.slane %v836, 4
      %v839 = vrot.slane %v298, 5
      %v840 = vsel %vm756, %v838, %v839
      %v841 = vrot.slane %v702, 5
      %v842 = vrot.slane %v841, 4
      %v843 = vrot.slane %v280, 5
      %v844 = vsel %vm756, %v842, %v843
      %v845 = vrot.slane %v843, 4
      %v846 = vrot.slane %v299, 5
      %v847 = vsel %vm756, %v845, %v846
      %v848 = vrot.slane %v703, 5
      %v849 = vrot.slane %v848, 4
      %v850 = vrot.slane %v282, 5
      %v851 = vsel %vm756, %v849, %v850
      %v852 = vrot.slane %v850, 4
      %v853 = vrot.slane %v300, 5
      %v854 = vsel %vm756, %v852, %v853
      %v855 = vrot.slane %v704, 5
      %v856 = vrot.slane %v855, 4
      %v857 = vrot.slane %v284, 5
      %v858 = vsel %vm756, %v856, %v857
      %v859 = vrot.slane %v857, 4
      %v860 = vrot.slane %v301, 5
      %v861 = vsel %vm756, %v859, %v860
      %v862 = vrot.slane %v705, 5
      %v863 = vrot.slane %v862, 4
      %v864 = vrot.slane %v286, 5
      %v865 = vsel %vm756, %v863, %v864
      %v866 = vrot.slane %v864, 4
      %v867 = vrot.slane %v302, 5
      %v868 = vsel %vm756, %v866, %v867
      %s869 = sadd.s32 %s251, 1
      %s870 = smul.u32 %s869, 3
      %s871 = smul.addr %s870, 4
      %s872 = scalar_lea.vmem %s238, %s871
      %v873 = vld [vmem:[%s872] sm:$0xf]
      %v874 = vld [vmem:[%s872 + $0x4] sm:$0xf]
      %v875 = vld [vmem:[%s872 + $0xc] sm:$0xf]
      %v876 = vld [vmem:[%s872 + $0x10] sm:$0xf]
      %v877 = vld [vmem:[%s872 + $0x18] sm:$0xf]
      %v878 = vld [vmem:[%s872 + $0x1c] sm:$0xf]
      %v879 = vld [vmem:[%s872 + $0x24] sm:$0xf]
      %v880 = vld [vmem:[%s872 + $0x28] sm:$0xf]
      %v881 = vld [vmem:[%s872 + $0x30] sm:$0xf]
      %v882 = vld [vmem:[%s872 + $0x34] sm:$0xf]
      %v883 = vld [vmem:[%s872 + $0x3c] sm:$0xf]
      %v884 = vld [vmem:[%s872 + $0x40] sm:$0xf]
      %v885 = vld [vmem:[%s872 + $0x48] sm:$0xf]
      %v886 = vld [vmem:[%s872 + $0x4c] sm:$0xf]
      %v887 = vld [vmem:[%s872 + $0x54] sm:$0xf]
      %v888 = vld [vmem:[%s872 + $0x58] sm:$0xf]
      %v889 = vld [vmem:[%s872 + $0x60] sm:$0xf]
      %v890 = vld [vmem:[%s872 + $0x64] sm:$0xf]
      %v891 = vld [vmem:[%s872 + $0x6c] sm:$0xf]
      %v892 = vld [vmem:[%s872 + $0x70] sm:$0xf]
      %v893 = vld [vmem:[%s872 + $0x78] sm:$0xf]
      %v894 = vld [vmem:[%s872 + $0x7c] sm:$0xf]
      %v895 = vld [vmem:[%s872 + $0x84] sm:$0xf]
      %v896 = vld [vmem:[%s872 + $0x88] sm:$0xf]
      %v897 = vld [vmem:[%s872 + $0x90] sm:$0xf]
      %v898 = vld [vmem:[%s872 + $0x94] sm:$0xf]
      %v899 = vld [vmem:[%s872 + $0x9c] sm:$0xf]
      %v900 = vld [vmem:[%s872 + $0xa0] sm:$0xf]
      %v901 = vld [vmem:[%s872 + $0xa8] sm:$0xf]
      %v902 = vld [vmem:[%s872 + $0xac] sm:$0xf]
      %v903 = vld [vmem:[%s872 + $0xb4] sm:$0xf]
      %v904 = vld [vmem:[%s872 + $0xb8] sm:$0xf]
      %v905 = vld [vmem:[%s872 + $0x8] sm:$0x1]
      %v906 = vld [vmem:[%s872 + $0x14] sm:$0x1]
      %v907 = vld [vmem:[%s872 + $0x20] sm:$0x1]
      %v908 = vld [vmem:[%s872 + $0x2c] sm:$0x1]
      %v909 = vld [vmem:[%s872 + $0x38] sm:$0x1]
      %v910 = vld [vmem:[%s872 + $0x44] sm:$0x1]
      %v911 = vld [vmem:[%s872 + $0x50] sm:$0x1]
      %v912 = vld [vmem:[%s872 + $0x5c] sm:$0x1]
      %v913 = vld [vmem:[%s872 + $0x68] sm:$0x1]
      %v914 = vld [vmem:[%s872 + $0x74] sm:$0x1]
      %v915 = vld [vmem:[%s872 + $0x80] sm:$0x1]
      %v916 = vld [vmem:[%s872 + $0x8c] sm:$0x1]
      %v917 = vld [vmem:[%s872 + $0x98] sm:$0x1]
      %v918 = vld [vmem:[%s872 + $0xa4] sm:$0x1]
      %v919 = vld [vmem:[%s872 + $0xb0] sm:$0x1]
      %v920 = vld [vmem:[%s872 + $0xbc] sm:$0x1]
      %v922 = vshrl.u32 %v873, 16
      %v924 = vrot.slane %v922, 4
      %v925 = vshll.u32 %v873, 16
      %v927 = vrot.slane %v925, 5
      %v928 = vor.u32 %v924, %v927
      %v929 = vrot.slane %v928, 4
      %v931 = vshll.u32 %v874, 16
      %v933 = vrot.slane %v931, 5
      %v934 = vsel %vm305, %v929, %v933
      %v935 = vshrl.u32 %v874, 16
      %v937 = vrot.slane %v935, 4
      %v938 = vor.u32 %v937, %v933
      %v939 = vrot.slane %v938, 4
      %v941 = vshll.u32 %v905, 16
      %v943 = vrot.slane %v941, 5
      %v944 = vsel %vm305, %v939, %v943
      %v946 = vshrl.u32 %v875, 16
      %v948 = vrot.slane %v946, 4
      %v949 = vshll.u32 %v875, 16
      %v951 = vrot.slane %v949, 5
      %v952 = vor.u32 %v948, %v951
      %v953 = vrot.slane %v952, 4
      %v955 = vshll.u32 %v876, 16
      %v957 = vrot.slane %v955, 5
      %v958 = vsel %vm305, %v953, %v957
      %v959 = vshrl.u32 %v876, 16
      %v961 = vrot.slane %v959, 4
      %v962 = vor.u32 %v961, %v957
      %v963 = vrot.slane %v962, 4
      %v965 = vshll.u32 %v906, 16
      %v967 = vrot.slane %v965, 5
      %v968 = vsel %vm305, %v963, %v967
      %v970 = vshrl.u32 %v877, 16
      %v972 = vrot.slane %v970, 4
      %v973 = vshll.u32 %v877, 16
      %v975 = vrot.slane %v973, 5
      %v976 = vor.u32 %v972, %v975
      %v977 = vrot.slane %v976, 4
      %v979 = vshll.u32 %v878, 16
      %v981 = vrot.slane %v979, 5
      %v982 = vsel %vm305, %v977, %v981
      %v983 = vshrl.u32 %v878, 16
      %v985 = vrot.slane %v983, 4
      %v986 = vor.u32 %v985, %v981
      %v987 = vrot.slane %v986, 4
      %v989 = vshll.u32 %v907, 16
      %v991 = vrot.slane %v989, 5
      %v992 = vsel %vm305, %v987, %v991
      %v994 = vshrl.u32 %v879, 16
      %v996 = vrot.slane %v994, 4
      %v997 = vshll.u32 %v879, 16
      %v999 = vrot.slane %v997, 5
      %v1000 = vor.u32 %v996, %v999
      %v1001 = vrot.slane %v1000, 4
      %v1003 = vshll.u32 %v880, 16
      %v1005 = vrot.slane %v1003, 5
      %v1006 = vsel %vm305, %v1001, %v1005
      %v1007 = vshrl.u32 %v880, 16
      %v1009 = vrot.slane %v1007, 4
      %v1010 = vor.u32 %v1009, %v1005
      %v1011 = vrot.slane %v1010, 4
      %v1013 = vshll.u32 %v908, 16
      %v1015 = vrot.slane %v1013, 5
      %v1016 = vsel %vm305, %v1011, %v1015
      %v1018 = vshrl.u32 %v881, 16
      %v1020 = vrot.slane %v1018, 4
      %v1021 = vshll.u32 %v881, 16
      %v1023 = vrot.slane %v1021, 5
      %v1024 = vor.u32 %v1020, %v1023
      %v1025 = vrot.slane %v1024, 4
      %v1027 = vshll.u32 %v882, 16
      %v1029 = vrot.slane %v1027, 5
      %v1030 = vsel %vm305, %v1025, %v1029
      %v1031 = vshrl.u32 %v882, 16
      %v1033 = vrot.slane %v1031, 4
      %v1034 = vor.u32 %v1033, %v1029
      %v1035 = vrot.slane %v1034, 4
      %v1037 = vshll.u32 %v909, 16
      %v1039 = vrot.slane %v1037, 5
      %v1040 = vsel %vm305, %v1035, %v1039
      %v1042 = vshrl.u32 %v883, 16
      %v1044 = vrot.slane %v1042, 4
      %v1045 = vshll.u32 %v883, 16
      %v1047 = vrot.slane %v1045, 5
      %v1048 = vor.u32 %v1044, %v1047
      %v1049 = vrot.slane %v1048, 4
      %v1051 = vshll.u32 %v884, 16
      %v1053 = vrot.slane %v1051, 5
      %v1054 = vsel %vm305, %v1049, %v1053
      %v1055 = vshrl.u32 %v884, 16
      %v1057 = vrot.slane %v1055, 4
      %v1058 = vor.u32 %v1057, %v1053
      %v1059 = vrot.slane %v1058, 4
      %v1061 = vshll.u32 %v910, 16
      %v1063 = vrot.slane %v1061, 5
      %v1064 = vsel %vm305, %v1059, %v1063
      %v1066 = vshrl.u32 %v885, 16
      %v1068 = vrot.slane %v1066, 4
      %v1069 = vshll.u32 %v885, 16
      %v1071 = vrot.slane %v1069, 5
      %v1072 = vor.u32 %v1068, %v1071
      %v1073 = vrot.slane %v1072, 4
      %v1075 = vshll.u32 %v886, 16
      %v1077 = vrot.slane %v1075, 5
      %v1078 = vsel %vm305, %v1073, %v1077
      %v1079 = vshrl.u32 %v886, 16
      %v1081 = vrot.slane %v1079, 4
      %v1082 = vor.u32 %v1081, %v1077
      %v1083 = vrot.slane %v1082, 4
      %v1085 = vshll.u32 %v911, 16
      %v1087 = vrot.slane %v1085, 5
      %v1088 = vsel %vm305, %v1083, %v1087
      %v1090 = vshrl.u32 %v887, 16
      %v1092 = vrot.slane %v1090, 4
      %v1093 = vshll.u32 %v887, 16
      %v1095 = vrot.slane %v1093, 5
      %v1096 = vor.u32 %v1092, %v1095
      %v1097 = vrot.slane %v1096, 4
      %v1099 = vshll.u32 %v888, 16
      %v1101 = vrot.slane %v1099, 5
      %v1102 = vsel %vm305, %v1097, %v1101
      %v1103 = vshrl.u32 %v888, 16
      %v1105 = vrot.slane %v1103, 4
      %v1106 = vor.u32 %v1105, %v1101
      %v1107 = vrot.slane %v1106, 4
      %v1109 = vshll.u32 %v912, 16
      %v1111 = vrot.slane %v1109, 5
      %v1112 = vsel %vm305, %v1107, %v1111
      %v1114 = vshrl.u32 %v889, 16
      %v1116 = vrot.slane %v1114, 4
      %v1117 = vshll.u32 %v889, 16
      %v1119 = vrot.slane %v1117, 5
      %v1120 = vor.u32 %v1116, %v1119
      %v1121 = vrot.slane %v1120, 4
      %v1123 = vshll.u32 %v890, 16
      %v1125 = vrot.slane %v1123, 5
      %v1126 = vsel %vm305, %v1121, %v1125
      %v1127 = vshrl.u32 %v890, 16
      %v1129 = vrot.slane %v1127, 4
      %v1130 = vor.u32 %v1129, %v1125
      %v1131 = vrot.slane %v1130, 4
      %v1133 = vshll.u32 %v913, 16
      %v1135 = vrot.slane %v1133, 5
      %v1136 = vsel %vm305, %v1131, %v1135
      %v1138 = vshrl.u32 %v891, 16
      %v1140 = vrot.slane %v1138, 4
      %v1141 = vshll.u32 %v891, 16
      %v1143 = vrot.slane %v1141, 5
      %v1144 = vor.u32 %v1140, %v1143
      %v1145 = vrot.slane %v1144, 4
      %v1147 = vshll.u32 %v892, 16
      %v1149 = vrot.slane %v1147, 5
      %v1150 = vsel %vm305, %v1145, %v1149
      %v1151 = vshrl.u32 %v892, 16
      %v1153 = vrot.slane %v1151, 4
      %v1154 = vor.u32 %v1153, %v1149
      %v1155 = vrot.slane %v1154, 4
      %v1157 = vshll.u32 %v914, 16
      %v1159 = vrot.slane %v1157, 5
      %v1160 = vsel %vm305, %v1155, %v1159
      %v1162 = vshrl.u32 %v893, 16
      %v1164 = vrot.slane %v1162, 4
      %v1165 = vshll.u32 %v893, 16
      %v1167 = vrot.slane %v1165, 5
      %v1168 = vor.u32 %v1164, %v1167
      %v1169 = vrot.slane %v1168, 4
      %v1171 = vshll.u32 %v894, 16
      %v1173 = vrot.slane %v1171, 5
      %v1174 = vsel %vm305, %v1169, %v1173
      %v1175 = vshrl.u32 %v894, 16
      %v1177 = vrot.slane %v1175, 4
      %v1178 = vor.u32 %v1177, %v1173
      %v1179 = vrot.slane %v1178, 4
      %v1181 = vshll.u32 %v915, 16
      %v1183 = vrot.slane %v1181, 5
      %v1184 = vsel %vm305, %v1179, %v1183
      %v1186 = vshrl.u32 %v895, 16
      %v1188 = vrot.slane %v1186, 4
      %v1189 = vshll.u32 %v895, 16
      %v1191 = vrot.slane %v1189, 5
      %v1192 = vor.u32 %v1188, %v1191
      %v1193 = vrot.slane %v1192, 4
      %v1195 = vshll.u32 %v896, 16
      %v1197 = vrot.slane %v1195, 5
      %v1198 = vsel %vm305, %v1193, %v1197
      %v1199 = vshrl.u32 %v896, 16
      %v1201 = vrot.slane %v1199, 4
      %v1202 = vor.u32 %v1201, %v1197
      %v1203 = vrot.slane %v1202, 4
      %v1205 = vshll.u32 %v916, 16
      %v1207 = vrot.slane %v1205, 5
      %v1208 = vsel %vm305, %v1203, %v1207
      %v1210 = vshrl.u32 %v897, 16
      %v1212 = vrot.slane %v1210, 4
      %v1213 = vshll.u32 %v897, 16
      %v1215 = vrot.slane %v1213, 5
      %v1216 = vor.u32 %v1212, %v1215
      %v1217 = vrot.slane %v1216, 4
      %v1219 = vshll.u32 %v898, 16
      %v1221 = vrot.slane %v1219, 5
      %v1222 = vsel %vm305, %v1217, %v1221
      %v1223 = vshrl.u32 %v898, 16
      %v1225 = vrot.slane %v1223, 4
      %v1226 = vor.u32 %v1225, %v1221
      %v1227 = vrot.slane %v1226, 4
      %v1229 = vshll.u32 %v917, 16
      %v1231 = vrot.slane %v1229, 5
      %v1232 = vsel %vm305, %v1227, %v1231
      %v1234 = vshrl.u32 %v899, 16
      %v1236 = vrot.slane %v1234, 4
      %v1237 = vshll.u32 %v899, 16
      %v1239 = vrot.slane %v1237, 5
      %v1240 = vor.u32 %v1236, %v1239
      %v1241 = vrot.slane %v1240, 4
      %v1243 = vshll.u32 %v900, 16
      %v1245 = vrot.slane %v1243, 5
      %v1246 = vsel %vm305, %v1241, %v1245
      %v1247 = vshrl.u32 %v900, 16
      %v1249 = vrot.slane %v1247, 4
      %v1250 = vor.u32 %v1249, %v1245
      %v1251 = vrot.slane %v1250, 4
      %v1253 = vshll.u32 %v918, 16
      %v1255 = vrot.slane %v1253, 5
      %v1256 = vsel %vm305, %v1251, %v1255
      %v1258 = vshrl.u32 %v901, 16
      %v1260 = vrot.slane %v1258, 4
      %v1261 = vshll.u32 %v901, 16
      %v1263 = vrot.slane %v1261, 5
      %v1264 = vor.u32 %v1260, %v1263
      %v1265 = vrot.slane %v1264, 4
      %v1267 = vshll.u32 %v902, 16
      %v1269 = vrot.slane %v1267, 5
      %v1270 = vsel %vm305, %v1265, %v1269
      %v1271 = vshrl.u32 %v902, 16
      %v1273 = vrot.slane %v1271, 4
      %v1274 = vor.u32 %v1273, %v1269
      %v1275 = vrot.slane %v1274, 4
      %v1277 = vshll.u32 %v919, 16
      %v1279 = vrot.slane %v1277, 5
      %v1280 = vsel %vm305, %v1275, %v1279
      %v1282 = vshrl.u32 %v903, 16
      %v1284 = vrot.slane %v1282, 4
      %v1285 = vshll.u32 %v903, 16
      %v1287 = vrot.slane %v1285, 5
      %v1288 = vor.u32 %v1284, %v1287
      %v1289 = vrot.slane %v1288, 4
      %v1291 = vshll.u32 %v904, 16
      %v1293 = vrot.slane %v1291, 5
      %v1294 = vsel %vm305, %v1289, %v1293
      %v1295 = vshrl.u32 %v904, 16
      %v1297 = vrot.slane %v1295, 4
      %v1298 = vor.u32 %v1297, %v1293
      %v1299 = vrot.slane %v1298, 4
      %v1301 = vshll.u32 %v920, 16
      %v1303 = vrot.slane %v1301, 5
      %v1304 = vsel %vm305, %v1299, %v1303
      %v1305 = vld [vmem:[%s872] sm:$0xe]
      %v1306 = vld [vmem:[%s872 + $0xc] sm:$0xe]
      %v1307 = vld [vmem:[%s872 + $0x18] sm:$0xe]
      %v1308 = vld [vmem:[%s872 + $0x24] sm:$0xe]
      %v1309 = vld [vmem:[%s872 + $0x30] sm:$0xe]
      %v1310 = vld [vmem:[%s872 + $0x3c] sm:$0xe]
      %v1311 = vld [vmem:[%s872 + $0x48] sm:$0xe]
      %v1312 = vld [vmem:[%s872 + $0x54] sm:$0xe]
      %v1313 = vld [vmem:[%s872 + $0x60] sm:$0xe]
      %v1314 = vld [vmem:[%s872 + $0x6c] sm:$0xe]
      %v1315 = vld [vmem:[%s872 + $0x78] sm:$0xe]
      %v1316 = vld [vmem:[%s872 + $0x84] sm:$0xe]
      %v1317 = vld [vmem:[%s872 + $0x90] sm:$0xe]
      %v1318 = vld [vmem:[%s872 + $0x9c] sm:$0xe]
      %v1319 = vld [vmem:[%s872 + $0xa8] sm:$0xe]
      %v1320 = vld [vmem:[%s872 + $0xb4] sm:$0xe]
      %v1369 = vrot.slane %v1305, 5
      %v1370 = vrot.slane %v1369, 4
      %v1371 = vrot.slane %v874, 5
      %v1372 = vsel %vm756, %v1370, %v1371
      %v1373 = vrot.slane %v1371, 4
      %v1374 = vrot.slane %v905, 5
      %v1375 = vsel %vm756, %v1373, %v1374
      %v1376 = vrot.slane %v1306, 5
      %v1377 = vrot.slane %v1376, 4
      %v1378 = vrot.slane %v876, 5
      %v1379 = vsel %vm756, %v1377, %v1378
      %v1380 = vrot.slane %v1378, 4
      %v1381 = vrot.slane %v906, 5
      %v1382 = vsel %vm756, %v1380, %v1381
      %v1383 = vrot.slane %v1307, 5
      %v1384 = vrot.slane %v1383, 4
      %v1385 = vrot.slane %v878, 5
      %v1386 = vsel %vm756, %v1384, %v1385
      %v1387 = vrot.slane %v1385, 4
      %v1388 = vrot.slane %v907, 5
      %v1389 = vsel %vm756, %v1387, %v1388
      %v1390 = vrot.slane %v1308, 5
      %v1391 = vrot.slane %v1390, 4
      %v1392 = vrot.slane %v880, 5
      %v1393 = vsel %vm756, %v1391, %v1392
      %v1394 = vrot.slane %v1392, 4
      %v1395 = vrot.slane %v908, 5
      %v1396 = vsel %vm756, %v1394, %v1395
      %v1397 = vrot.slane %v1309, 5
      %v1398 = vrot.slane %v1397, 4
      %v1399 = vrot.slane %v882, 5
      %v1400 = vsel %vm756, %v1398, %v1399
      %v1401 = vrot.slane %v1399, 4
      %v1402 = vrot.slane %v909, 5
      %v1403 = vsel %vm756, %v1401, %v1402
      %v1404 = vrot.slane %v1310, 5
      %v1405 = vrot.slane %v1404, 4
      %v1406 = vrot.slane %v884, 5
      %v1407 = vsel %vm756, %v1405, %v1406
      %v1408 = vrot.slane %v1406, 4
      %v1409 = vrot.slane %v910, 5
      %v1410 = vsel %vm756, %v1408, %v1409
      %v1411 = vrot.slane %v1311, 5
      %v1412 = vrot.slane %v1411, 4
      %v1413 = vrot.slane %v886, 5
      %v1414 = vsel %vm756, %v1412, %v1413
      %v1415 = vrot.slane %v1413, 4
      %v1416 = vrot.slane %v911, 5
      %v1417 = vsel %vm756, %v1415, %v1416
      %v1418 = vrot.slane %v1312, 5
      %v1419 = vrot.slane %v1418, 4
      %v1420 = vrot.slane %v888, 5
      %v1421 = vsel %vm756, %v1419, %v1420
      %v1422 = vrot.slane %v1420, 4
      %v1423 = vrot.slane %v912, 5
      %v1424 = vsel %vm756, %v1422, %v1423
      %v1425 = vrot.slane %v1313, 5
      %v1426 = vrot.slane %v1425, 4
      %v1427 = vrot.slane %v890, 5
      %v1428 = vsel %vm756, %v1426, %v1427
      %v1429 = vrot.slane %v1427, 4
      %v1430 = vrot.slane %v913, 5
      %v1431 = vsel %vm756, %v1429, %v1430
      %v1432 = vrot.slane %v1314, 5
      %v1433 = vrot.slane %v1432, 4
      %v1434 = vrot.slane %v892, 5
      %v1435 = vsel %vm756, %v1433, %v1434
      %v1436 = vrot.slane %v1434, 4
      %v1437 = vrot.slane %v914, 5
      %v1438 = vsel %vm756, %v1436, %v1437
      %v1439 = vrot.slane %v1315, 5
      %v1440 = vrot.slane %v1439, 4
      %v1441 = vrot.slane %v894, 5
      %v1442 = vsel %vm756, %v1440, %v1441
      %v1443 = vrot.slane %v1441, 4
      %v1444 = vrot.slane %v915, 5
      %v1445 = vsel %vm756, %v1443, %v1444
      %v1446 = vrot.slane %v1316, 5
      %v1447 = vrot.slane %v1446, 4
      %v1448 = vrot.slane %v896, 5
      %v1449 = vsel %vm756, %v1447, %v1448
      %v1450 = vrot.slane %v1448, 4
      %v1451 = vrot.slane %v916, 5
      %v1452 = vsel %vm756, %v1450, %v1451
      %v1453 = vrot.slane %v1317, 5
      %v1454 = vrot.slane %v1453, 4
      %v1455 = vrot.slane %v898, 5
      %v1456 = vsel %vm756, %v1454, %v1455
      %v1457 = vrot.slane %v1455, 4
      %v1458 = vrot.slane %v917, 5
      %v1459 = vsel %vm756, %v1457, %v1458
      %v1460 = vrot.slane %v1318, 5
      %v1461 = vrot.slane %v1460, 4
      %v1462 = vrot.slane %v900, 5
      %v1463 = vsel %vm756, %v1461, %v1462
      %v1464 = vrot.slane %v1462, 4
      %v1465 = vrot.slane %v918, 5
      %v1466 = vsel %vm756, %v1464, %v1465
      %v1467 = vrot.slane %v1319, 5
      %v1468 = vrot.slane %v1467, 4
      %v1469 = vrot.slane %v902, 5
      %v1470 = vsel %vm756, %v1468, %v1469
      %v1471 = vrot.slane %v1469, 4
      %v1472 = vrot.slane %v919, 5
      %v1473 = vsel %vm756, %v1471, %v1472
      %v1474 = vrot.slane %v1320, 5
      %v1475 = vrot.slane %v1474, 4
      %v1476 = vrot.slane %v904, 5
      %v1477 = vsel %vm756, %v1475, %v1476
      %v1478 = vrot.slane %v1476, 4
      %v1479 = vrot.slane %v920, 5
      %v1480 = vsel %vm756, %v1478, %v1479
      %s1481 = sadd.s32 %s251, 2
      %s1482 = smul.u32 %s1481, 3
      %s1483 = smul.addr %s1482, 4
      %s1484 = scalar_lea.vmem %s238, %s1483
      %v1485 = vld [vmem:[%s1484] sm:$0xf]
      %v1486 = vld [vmem:[%s1484 + $0x4] sm:$0xf]
      %v1487 = vld [vmem:[%s1484 + $0xc] sm:$0xf]
      %v1488 = vld [vmem:[%s1484 + $0x10] sm:$0xf]
      %v1489 = vld [vmem:[%s1484 + $0x18] sm:$0xf]
      %v1490 = vld [vmem:[%s1484 + $0x1c] sm:$0xf]
      %v1491 = vld [vmem:[%s1484 + $0x24] sm:$0xf]
      %v1492 = vld [vmem:[%s1484 + $0x28] sm:$0xf]
      %v1493 = vld [vmem:[%s1484 + $0x30] sm:$0xf]
      %v1494 = vld [vmem:[%s1484 + $0x34] sm:$0xf]
      %v1495 = vld [vmem:[%s1484 + $0x3c] sm:$0xf]
      %v1496 = vld [vmem:[%s1484 + $0x40] sm:$0xf]
      %v1497 = vld [vmem:[%s1484 + $0x48] sm:$0xf]
      %v1498 = vld [vmem:[%s1484 + $0x4c] sm:$0xf]
      %v1499 = vld [vmem:[%s1484 + $0x54] sm:$0xf]
      %v1500 = vld [vmem:[%s1484 + $0x58] sm:$0xf]
      %v1501 = vld [vmem:[%s1484 + $0x60] sm:$0xf]
      %v1502 = vld [vmem:[%s1484 + $0x64] sm:$0xf]
      %v1503 = vld [vmem:[%s1484 + $0x6c] sm:$0xf]
      %v1504 = vld [vmem:[%s1484 + $0x70] sm:$0xf]
      %v1505 = vld [vmem:[%s1484 + $0x78] sm:$0xf]
      %v1506 = vld [vmem:[%s1484 + $0x7c] sm:$0xf]
      %v1507 = vld [vmem:[%s1484 + $0x84] sm:$0xf]
      %v1508 = vld [vmem:[%s1484 + $0x88] sm:$0xf]
      %v1509 = vld [vmem:[%s1484 + $0x90] sm:$0xf]
      %v1510 = vld [vmem:[%s1484 + $0x94] sm:$0xf]
      %v1511 = vld [vmem:[%s1484 + $0x9c] sm:$0xf]
      %v1512 = vld [vmem:[%s1484 + $0xa0] sm:$0xf]
      %v1513 = vld [vmem:[%s1484 + $0xa8] sm:$0xf]
      %v1514 = vld [vmem:[%s1484 + $0xac] sm:$0xf]
      %v1515 = vld [vmem:[%s1484 + $0xb4] sm:$0xf]
      %v1516 = vld [vmem:[%s1484 + $0xb8] sm:$0xf]
      %v1517 = vld [vmem:[%s1484 + $0x8] sm:$0x1]
      %v1518 = vld [vmem:[%s1484 + $0x14] sm:$0x1]
      %v1519 = vld [vmem:[%s1484 + $0x20] sm:$0x1]
      %v1520 = vld [vmem:[%s1484 + $0x2c] sm:$0x1]
      %v1521 = vld [vmem:[%s1484 + $0x38] sm:$0x1]
      %v1522 = vld [vmem:[%s1484 + $0x44] sm:$0x1]
      %v1523 = vld [vmem:[%s1484 + $0x50] sm:$0x1]
      %v1524 = vld [vmem:[%s1484 + $0x5c] sm:$0x1]
      %v1525 = vld [vmem:[%s1484 + $0x68] sm:$0x1]
      %v1526 = vld [vmem:[%s1484 + $0x74] sm:$0x1]
      %v1527 = vld [vmem:[%s1484 + $0x80] sm:$0x1]
      %v1528 = vld [vmem:[%s1484 + $0x8c] sm:$0x1]
      %v1529 = vld [vmem:[%s1484 + $0x98] sm:$0x1]
      %v1530 = vld [vmem:[%s1484 + $0xa4] sm:$0x1]
      %v1531 = vld [vmem:[%s1484 + $0xb0] sm:$0x1]
      %v1532 = vld [vmem:[%s1484 + $0xbc] sm:$0x1]
      %v1534 = vshrl.u32 %v1485, 16
      %v1536 = vrot.slane %v1534, 4
      %v1537 = vshll.u32 %v1485, 16
      %v1539 = vrot.slane %v1537, 5
      %v1540 = vor.u32 %v1536, %v1539
      %v1541 = vrot.slane %v1540, 4
      %v1543 = vshll.u32 %v1486, 16
      %v1545 = vrot.slane %v1543, 5
      %v1546 = vsel %vm305, %v1541, %v1545
      %v1547 = vshrl.u32 %v1486, 16
      %v1549 = vrot.slane %v1547, 4
      %v1550 = vor.u32 %v1549, %v1545
      %v1551 = vrot.slane %v1550, 4
      %v1553 = vshll.u32 %v1517, 16
      %v1555 = vrot.slane %v1553, 5
      %v1556 = vsel %vm305, %v1551, %v1555
      %v1558 = vshrl.u32 %v1487, 16
      %v1560 = vrot.slane %v1558, 4
      %v1561 = vshll.u32 %v1487, 16
      %v1563 = vrot.slane %v1561, 5
      %v1564 = vor.u32 %v1560, %v1563
      %v1565 = vrot.slane %v1564, 4
      %v1567 = vshll.u32 %v1488, 16
      %v1569 = vrot.slane %v1567, 5
      %v1570 = vsel %vm305, %v1565, %v1569
      %v1571 = vshrl.u32 %v1488, 16
      %v1573 = vrot.slane %v1571, 4
      %v1574 = vor.u32 %v1573, %v1569
      %v1575 = vrot.slane %v1574, 4
      %v1577 = vshll.u32 %v1518, 16
      %v1579 = vrot.slane %v1577, 5
      %v1580 = vsel %vm305, %v1575, %v1579
      %v1582 = vshrl.u32 %v1489, 16
      %v1584 = vrot.slane %v1582, 4
      %v1585 = vshll.u32 %v1489, 16
      %v1587 = vrot.slane %v1585, 5
      %v1588 = vor.u32 %v1584, %v1587
      %v1589 = vrot.slane %v1588, 4
      %v1591 = vshll.u32 %v1490, 16
      %v1593 = vrot.slane %v1591, 5
      %v1594 = vsel %vm305, %v1589, %v1593
      %v1595 = vshrl.u32 %v1490, 16
      %v1597 = vrot.slane %v1595, 4
      %v1598 = vor.u32 %v1597, %v1593
      %v1599 = vrot.slane %v1598, 4
      %v1601 = vshll.u32 %v1519, 16
      %v1603 = vrot.slane %v1601, 5
      %v1604 = vsel %vm305, %v1599, %v1603
      %v1606 = vshrl.u32 %v1491, 16
      %v1608 = vrot.slane %v1606, 4
      %v1609 = vshll.u32 %v1491, 16
      %v1611 = vrot.slane %v1609, 5
      %v1612 = vor.u32 %v1608, %v1611
      %v1613 = vrot.slane %v1612, 4
      %v1615 = vshll.u32 %v1492, 16
      %v1617 = vrot.slane %v1615, 5
      %v1618 = vsel %vm305, %v1613, %v1617
      %v1619 = vshrl.u32 %v1492, 16
      %v1621 = vrot.slane %v1619, 4
      %v1622 = vor.u32 %v1621, %v1617
      %v1623 = vrot.slane %v1622, 4
      %v1625 = vshll.u32 %v1520, 16
      %v1627 = vrot.slane %v1625, 5
      %v1628 = vsel %vm305, %v1623, %v1627
      %v1630 = vshrl.u32 %v1493, 16
      %v1632 = vrot.slane %v1630, 4
      %v1633 = vshll.u32 %v1493, 16
      %v1635 = vrot.slane %v1633, 5
      %v1636 = vor.u32 %v1632, %v1635
      %v1637 = vrot.slane %v1636, 4
      %v1639 = vshll.u32 %v1494, 16
      %v1641 = vrot.slane %v1639, 5
      %v1642 = vsel %vm305, %v1637, %v1641
      %v1643 = vshrl.u32 %v1494, 16
      %v1645 = vrot.slane %v1643, 4
      %v1646 = vor.u32 %v1645, %v1641
      %v1647 = vrot.slane %v1646, 4
      %v1649 = vshll.u32 %v1521, 16
      %v1651 = vrot.slane %v1649, 5
      %v1652 = vsel %vm305, %v1647, %v1651
      %v1654 = vshrl.u32 %v1495, 16
      %v1656 = vrot.slane %v1654, 4
      %v1657 = vshll.u32 %v1495, 16
      %v1659 = vrot.slane %v1657, 5
      %v1660 = vor.u32 %v1656, %v1659
      %v1661 = vrot.slane %v1660, 4
      %v1663 = vshll.u32 %v1496, 16
      %v1665 = vrot.slane %v1663, 5
      %v1666 = vsel %vm305, %v1661, %v1665
      %v1667 = vshrl.u32 %v1496, 16
      %v1669 = vrot.slane %v1667, 4
      %v1670 = vor.u32 %v1669, %v1665
      %v1671 = vrot.slane %v1670, 4
      %v1673 = vshll.u32 %v1522, 16
      %v1675 = vrot.slane %v1673, 5
      %v1676 = vsel %vm305, %v1671, %v1675
      %v1678 = vshrl.u32 %v1497, 16
      %v1680 = vrot.slane %v1678, 4
      %v1681 = vshll.u32 %v1497, 16
      %v1683 = vrot.slane %v1681, 5
      %v1684 = vor.u32 %v1680, %v1683
      %v1685 = vrot.slane %v1684, 4
      %v1687 = vshll.u32 %v1498, 16
      %v1689 = vrot.slane %v1687, 5
      %v1690 = vsel %vm305, %v1685, %v1689
      %v1691 = vshrl.u32 %v1498, 16
      %v1693 = vrot.slane %v1691, 4
      %v1694 = vor.u32 %v1693, %v1689
      %v1695 = vrot.slane %v1694, 4
      %v1697 = vshll.u32 %v1523, 16
      %v1699 = vrot.slane %v1697, 5
      %v1700 = vsel %vm305, %v1695, %v1699
      %v1702 = vshrl.u32 %v1499, 16
      %v1704 = vrot.slane %v1702, 4
      %v1705 = vshll.u32 %v1499, 16
      %v1707 = vrot.slane %v1705, 5
      %v1708 = vor.u32 %v1704, %v1707
      %v1709 = vrot.slane %v1708, 4
      %v1711 = vshll.u32 %v1500, 16
      %v1713 = vrot.slane %v1711, 5
      %v1714 = vsel %vm305, %v1709, %v1713
      %v1715 = vshrl.u32 %v1500, 16
      %v1717 = vrot.slane %v1715, 4
      %v1718 = vor.u32 %v1717, %v1713
      %v1719 = vrot.slane %v1718, 4
      %v1721 = vshll.u32 %v1524, 16
      %v1723 = vrot.slane %v1721, 5
      %v1724 = vsel %vm305, %v1719, %v1723
      %v1726 = vshrl.u32 %v1501, 16
      %v1728 = vrot.slane %v1726, 4
      %v1729 = vshll.u32 %v1501, 16
      %v1731 = vrot.slane %v1729, 5
      %v1732 = vor.u32 %v1728, %v1731
      %v1733 = vrot.slane %v1732, 4
      %v1735 = vshll.u32 %v1502, 16
      %v1737 = vrot.slane %v1735, 5
      %v1738 = vsel %vm305, %v1733, %v1737
      %v1739 = vshrl.u32 %v1502, 16
      %v1741 = vrot.slane %v1739, 4
      %v1742 = vor.u32 %v1741, %v1737
      %v1743 = vrot.slane %v1742, 4
      %v1745 = vshll.u32 %v1525, 16
      %v1747 = vrot.slane %v1745, 5
      %v1748 = vsel %vm305, %v1743, %v1747
      %v1750 = vshrl.u32 %v1503, 16
      %v1752 = vrot.slane %v1750, 4
      %v1753 = vshll.u32 %v1503, 16
      %v1755 = vrot.slane %v1753, 5
      %v1756 = vor.u32 %v1752, %v1755
      %v1757 = vrot.slane %v1756, 4
      %v1759 = vshll.u32 %v1504, 16
      %v1761 = vrot.slane %v1759, 5
      %v1762 = vsel %vm305, %v1757, %v1761
      %v1763 = vshrl.u32 %v1504, 16
      %v1765 = vrot.slane %v1763, 4
      %v1766 = vor.u32 %v1765, %v1761
      %v1767 = vrot.slane %v1766, 4
      %v1769 = vshll.u32 %v1526, 16
      %v1771 = vrot.slane %v1769, 5
      %v1772 = vsel %vm305, %v1767, %v1771
      %v1774 = vshrl.u32 %v1505, 16
      %v1776 = vrot.slane %v1774, 4
      %v1777 = vshll.u32 %v1505, 16
      %v1779 = vrot.slane %v1777, 5
      %v1780 = vor.u32 %v1776, %v1779
      %v1781 = vrot.slane %v1780, 4
      %v1783 = vshll.u32 %v1506, 16
      %v1785 = vrot.slane %v1783, 5
      %v1786 = vsel %vm305, %v1781, %v1785
      %v1787 = vshrl.u32 %v1506, 16
      %v1789 = vrot.slane %v1787, 4
      %v1790 = vor.u32 %v1789, %v1785
      %v1791 = vrot.slane %v1790, 4
      %v1793 = vshll.u32 %v1527, 16
      %v1795 = vrot.slane %v1793, 5
      %v1796 = vsel %vm305, %v1791, %v1795
      %v1798 = vshrl.u32 %v1507, 16
      %v1800 = vrot.slane %v1798, 4
      %v1801 = vshll.u32 %v1507, 16
      %v1803 = vrot.slane %v1801, 5
      %v1804 = vor.u32 %v1800, %v1803
      %v1805 = vrot.slane %v1804, 4
      %v1807 = vshll.u32 %v1508, 16
      %v1809 = vrot.slane %v1807, 5
      %v1810 = vsel %vm305, %v1805, %v1809
      %v1811 = vshrl.u32 %v1508, 16
      %v1813 = vrot.slane %v1811, 4
      %v1814 = vor.u32 %v1813, %v1809
      %v1815 = vrot.slane %v1814, 4
      %v1817 = vshll.u32 %v1528, 16
      %v1819 = vrot.slane %v1817, 5
      %v1820 = vsel %vm305, %v1815, %v1819
      %v1822 = vshrl.u32 %v1509, 16
      %v1824 = vrot.slane %v1822, 4
      %v1825 = vshll.u32 %v1509, 16
      %v1827 = vrot.slane %v1825, 5
      %v1828 = vor.u32 %v1824, %v1827
      %v1829 = vrot.slane %v1828, 4
      %v1831 = vshll.u32 %v1510, 16
      %v1833 = vrot.slane %v1831, 5
      %v1834 = vsel %vm305, %v1829, %v1833
      %v1835 = vshrl.u32 %v1510, 16
      %v1837 = vrot.slane %v1835, 4
      %v1838 = vor.u32 %v1837, %v1833
      %v1839 = vrot.slane %v1838, 4
      %v1841 = vshll.u32 %v1529, 16
      %v1843 = vrot.slane %v1841, 5
      %v1844 = vsel %vm305, %v1839, %v1843
      %v1846 = vshrl.u32 %v1511, 16
      %v1848 = vrot.slane %v1846, 4
      %v1849 = vshll.u32 %v1511, 16
      %v1851 = vrot.slane %v1849, 5
      %v1852 = vor.u32 %v1848, %v1851
      %v1853 = vrot.slane %v1852, 4
      %v1855 = vshll.u32 %v1512, 16
      %v1857 = vrot.slane %v1855, 5
      %v1858 = vsel %vm305, %v1853, %v1857
      %v1859 = vshrl.u32 %v1512, 16
      %v1861 = vrot.slane %v1859, 4
      %v1862 = vor.u32 %v1861, %v1857
      %v1863 = vrot.slane %v1862, 4
      %v1865 = vshll.u32 %v1530, 16
      %v1867 = vrot.slane %v1865, 5
      %v1868 = vsel %vm305, %v1863, %v1867
      %v1870 = vshrl.u32 %v1513, 16
      %v1872 = vrot.slane %v1870, 4
      %v1873 = vshll.u32 %v1513, 16
      %v1875 = vrot.slane %v1873, 5
      %v1876 = vor.u32 %v1872, %v1875
      %v1877 = vrot.slane %v1876, 4
      %v1879 = vshll.u32 %v1514, 16
      %v1881 = vrot.slane %v1879, 5
      %v1882 = vsel %vm305, %v1877, %v1881
      %v1883 = vshrl.u32 %v1514, 16
      %v1885 = vrot.slane %v1883, 4
      %v1886 = vor.u32 %v1885, %v1881
      %v1887 = vrot.slane %v1886, 4
      %v1889 = vshll.u32 %v1531, 16
      %v1891 = vrot.slane %v1889, 5
      %v1892 = vsel %vm305, %v1887, %v1891
      %v1894 = vshrl.u32 %v1515, 16
      %v1896 = vrot.slane %v1894, 4
      %v1897 = vshll.u32 %v1515, 16
      %v1899 = vrot.slane %v1897, 5
      %v1900 = vor.u32 %v1896, %v1899
      %v1901 = vrot.slane %v1900, 4
      %v1903 = vshll.u32 %v1516, 16
      %v1905 = vrot.slane %v1903, 5
      %v1906 = vsel %vm305, %v1901, %v1905
      %v1907 = vshrl.u32 %v1516, 16
      %v1909 = vrot.slane %v1907, 4
      %v1910 = vor.u32 %v1909, %v1905
      %v1911 = vrot.slane %v1910, 4
      %v1913 = vshll.u32 %v1532, 16
      %v1915 = vrot.slane %v1913, 5
      %v1916 = vsel %vm305, %v1911, %v1915
      %v1917 = vld [vmem:[%s1484] sm:$0xe]
      %v1918 = vld [vmem:[%s1484 + $0xc] sm:$0xe]
      %v1919 = vld [vmem:[%s1484 + $0x18] sm:$0xe]
      %v1920 = vld [vmem:[%s1484 + $0x24] sm:$0xe]
      %v1921 = vld [vmem:[%s1484 + $0x30] sm:$0xe]
      %v1922 = vld [vmem:[%s1484 + $0x3c] sm:$0xe]
      %v1923 = vld [vmem:[%s1484 + $0x48] sm:$0xe]
      %v1924 = vld [vmem:[%s1484 + $0x54] sm:$0xe]
      %v1925 = vld [vmem:[%s1484 + $0x60] sm:$0xe]
      %v1926 = vld [vmem:[%s1484 + $0x6c] sm:$0xe]
      %v1927 = vld [vmem:[%s1484 + $0x78] sm:$0xe]
      %v1928 = vld [vmem:[%s1484 + $0x84] sm:$0xe]
      %v1929 = vld [vmem:[%s1484 + $0x90] sm:$0xe]
      %v1930 = vld [vmem:[%s1484 + $0x9c] sm:$0xe]
      %v1931 = vld [vmem:[%s1484 + $0xa8] sm:$0xe]
      %v1932 = vld [vmem:[%s1484 + $0xb4] sm:$0xe]
      %v1981 = vrot.slane %v1917, 5
      %v1982 = vrot.slane %v1981, 4
      %v1983 = vrot.slane %v1486, 5
      %v1984 = vsel %vm756, %v1982, %v1983
      %v1985 = vrot.slane %v1983, 4
      %v1986 = vrot.slane %v1517, 5
      %v1987 = vsel %vm756, %v1985, %v1986
      %v1988 = vrot.slane %v1918, 5
      %v1989 = vrot.slane %v1988, 4
      %v1990 = vrot.slane %v1488, 5
      %v1991 = vsel %vm756, %v1989, %v1990
      %v1992 = vrot.slane %v1990, 4
      %v1993 = vrot.slane %v1518, 5
      %v1994 = vsel %vm756, %v1992, %v1993
      %v1995 = vrot.slane %v1919, 5
      %v1996 = vrot.slane %v1995, 4
      %v1997 = vrot.slane %v1490, 5
      %v1998 = vsel %vm756, %v1996, %v1997
      %v1999 = vrot.slane %v1997, 4
      %v2000 = vrot.slane %v1519, 5
      %v2001 = vsel %vm756, %v1999, %v2000
      %v2002 = vrot.slane %v1920, 5
      %v2003 = vrot.slane %v2002, 4
      %v2004 = vrot.slane %v1492, 5
      %v2005 = vsel %vm756, %v2003, %v2004
      %v2006 = vrot.slane %v2004, 4
      %v2007 = vrot.slane %v1520, 5
      %v2008 = vsel %vm756, %v2006, %v2007
      %v2009 = vrot.slane %v1921, 5
      %v2010 = vrot.slane %v2009, 4
      %v2011 = vrot.slane %v1494, 5
      %v2012 = vsel %vm756, %v2010, %v2011
      %v2013 = vrot.slane %v2011, 4
      %v2014 = vrot.slane %v1521, 5
      %v2015 = vsel %vm756, %v2013, %v2014
      %v2016 = vrot.slane %v1922, 5
      %v2017 = vrot.slane %v2016, 4
      %v2018 = vrot.slane %v1496, 5
      %v2019 = vsel %vm756, %v2017, %v2018
      %v2020 = vrot.slane %v2018, 4
      %v2021 = vrot.slane %v1522, 5
      %v2022 = vsel %vm756, %v2020, %v2021
      %v2023 = vrot.slane %v1923, 5
      %v2024 = vrot.slane %v2023, 4
      %v2025 = vrot.slane %v1498, 5
      %v2026 = vsel %vm756, %v2024, %v2025
      %v2027 = vrot.slane %v2025, 4
      %v2028 = vrot.slane %v1523, 5
      %v2029 = vsel %vm756, %v2027, %v2028
      %v2030 = vrot.slane %v1924, 5
      %v2031 = vrot.slane %v2030, 4
      %v2032 = vrot.slane %v1500, 5
      %v2033 = vsel %vm756, %v2031, %v2032
      %v2034 = vrot.slane %v2032, 4
      %v2035 = vrot.slane %v1524, 5
      %v2036 = vsel %vm756, %v2034, %v2035
      %v2037 = vrot.slane %v1925, 5
      %v2038 = vrot.slane %v2037, 4
      %v2039 = vrot.slane %v1502, 5
      %v2040 = vsel %vm756, %v2038, %v2039
      %v2041 = vrot.slane %v2039, 4
      %v2042 = vrot.slane %v1525, 5
      %v2043 = vsel %vm756, %v2041, %v2042
      %v2044 = vrot.slane %v1926, 5
      %v2045 = vrot.slane %v2044, 4
      %v2046 = vrot.slane %v1504, 5
      %v2047 = vsel %vm756, %v2045, %v2046
      %v2048 = vrot.slane %v2046, 4
      %v2049 = vrot.slane %v1526, 5
      %v2050 = vsel %vm756, %v2048, %v2049
      %v2051 = vrot.slane %v1927, 5
      %v2052 = vrot.slane %v2051, 4
      %v2053 = vrot.slane %v1506, 5
      %v2054 = vsel %vm756, %v2052, %v2053
      %v2055 = vrot.slane %v2053, 4
      %v2056 = vrot.slane %v1527, 5
      %v2057 = vsel %vm756, %v2055, %v2056
      %v2058 = vrot.slane %v1928, 5
      %v2059 = vrot.slane %v2058, 4
      %v2060 = vrot.slane %v1508, 5
      %v2061 = vsel %vm756, %v2059, %v2060
      %v2062 = vrot.slane %v2060, 4
      %v2063 = vrot.slane %v1528, 5
      %v2064 = vsel %vm756, %v2062, %v2063
      %v2065 = vrot.slane %v1929, 5
      %v2066 = vrot.slane %v2065, 4
      %v2067 = vrot.slane %v1510, 5
      %v2068 = vsel %vm756, %v2066, %v2067
      %v2069 = vrot.slane %v2067, 4
      %v2070 = vrot.slane %v1529, 5
      %v2071 = vsel %vm756, %v2069, %v2070
      %v2072 = vrot.slane %v1930, 5
      %v2073 = vrot.slane %v2072, 4
      %v2074 = vrot.slane %v1512, 5
      %v2075 = vsel %vm756, %v2073, %v2074
      %v2076 = vrot.slane %v2074, 4
      %v2077 = vrot.slane %v1530, 5
      %v2078 = vsel %vm756, %v2076, %v2077
      %v2079 = vrot.slane %v1931, 5
      %v2080 = vrot.slane %v2079, 4
      %v2081 = vrot.slane %v1514, 5
      %v2082 = vsel %vm756, %v2080, %v2081
      %v2083 = vrot.slane %v2081, 4
      %v2084 = vrot.slane %v1531, 5
      %v2085 = vsel %vm756, %v2083, %v2084
      %v2086 = vrot.slane %v1932, 5
      %v2087 = vrot.slane %v2086, 4
      %v2088 = vrot.slane %v1516, 5
      %v2089 = vsel %vm756, %v2087, %v2088
      %v2090 = vrot.slane %v2088, 4
      %v2091 = vrot.slane %v1532, 5
      %v2092 = vsel %vm756, %v2090, %v2091
      %v2109 = vunpack.c.l.b16 %v255
      %v2110 = vunpack.c.l.b16 %v256
      %v2111 = vunpack.c.l.b16 %v257
      %v2112 = vunpack.c.l.b16 %v258
      %v2113 = vunpack.c.l.b16 %v259
      %v2114 = vunpack.c.l.b16 %v260
      %v2115 = vunpack.c.l.b16 %v261
      %v2116 = vunpack.c.l.b16 %v262
      %v2117 = vunpack.c.l.b16 %v263
      %v2118 = vunpack.c.l.b16 %v264
      %v2119 = vunpack.c.l.b16 %v265
      %v2120 = vunpack.c.l.b16 %v266
      %v2121 = vunpack.c.l.b16 %v267
      %v2122 = vunpack.c.l.b16 %v268
      %v2123 = vunpack.c.l.b16 %v269
      %v2124 = vunpack.c.l.b16 %v270
      %v2125 = vunpack.c.l.b16 %v271
      %v2126 = vunpack.c.l.b16 %v272
      %v2127 = vunpack.c.l.b16 %v273
      %v2128 = vunpack.c.l.b16 %v274
      %v2129 = vunpack.c.l.b16 %v275
      %v2130 = vunpack.c.l.b16 %v276
      %v2131 = vunpack.c.l.b16 %v277
      %v2132 = vunpack.c.l.b16 %v278
      %v2133 = vunpack.c.l.b16 %v279
      %v2134 = vunpack.c.l.b16 %v280
      %v2135 = vunpack.c.l.b16 %v281
      %v2136 = vunpack.c.l.b16 %v282
      %v2137 = vunpack.c.l.b16 %v283
      %v2138 = vunpack.c.l.b16 %v284
      %v2139 = vunpack.c.l.b16 %v285
      %v2140 = vunpack.c.l.b16 %v286
      %v2141 = vpack.c.b16 %v2110, %v2109
      %v2142 = vpack.c.b16 %v2112, %v2111
      %v2143 = vpack.c.b16 %v2114, %v2113
      %v2144 = vpack.c.b16 %v2116, %v2115
      %v2145 = vpack.c.b16 %v2118, %v2117
      %v2146 = vpack.c.b16 %v2120, %v2119
      %v2147 = vpack.c.b16 %v2122, %v2121
      %v2148 = vpack.c.b16 %v2124, %v2123
      %v2149 = vpack.c.b16 %v2126, %v2125
      %v2150 = vpack.c.b16 %v2128, %v2127
      %v2151 = vpack.c.b16 %v2130, %v2129
      %v2152 = vpack.c.b16 %v2132, %v2131
      %v2153 = vpack.c.b16 %v2134, %v2133
      %v2154 = vpack.c.b16 %v2136, %v2135
      %v2155 = vpack.c.b16 %v2138, %v2137
      %v2156 = vpack.c.b16 %v2140, %v2139
      %v2157 = vunpack.c.l.b16 %v319
      %v2158 = vunpack.c.l.b16 %v329
      %v2159 = vunpack.c.l.b16 %v343
      %v2160 = vunpack.c.l.b16 %v353
      %v2161 = vunpack.c.l.b16 %v367
      %v2162 = vunpack.c.l.b16 %v377
      %v2163 = vunpack.c.l.b16 %v391
      %v2164 = vunpack.c.l.b16 %v401
      %v2165 = vunpack.c.l.b16 %v415
      %v2166 = vunpack.c.l.b16 %v425
      %v2167 = vunpack.c.l.b16 %v439
      %v2168 = vunpack.c.l.b16 %v449
      %v2169 = vunpack.c.l.b16 %v463
      %v2170 = vunpack.c.l.b16 %v473
      %v2171 = vunpack.c.l.b16 %v487
      %v2172 = vunpack.c.l.b16 %v497
      %v2173 = vunpack.c.l.b16 %v511
      %v2174 = vunpack.c.l.b16 %v521
      %v2175 = vunpack.c.l.b16 %v535
      %v2176 = vunpack.c.l.b16 %v545
      %v2177 = vunpack.c.l.b16 %v559
      %v2178 = vunpack.c.l.b16 %v569
      %v2179 = vunpack.c.l.b16 %v583
      %v2180 = vunpack.c.l.b16 %v593
      %v2181 = vunpack.c.l.b16 %v607
      %v2182 = vunpack.c.l.b16 %v617
      %v2183 = vunpack.c.l.b16 %v631
      %v2184 = vunpack.c.l.b16 %v641
      %v2185 = vunpack.c.l.b16 %v655
      %v2186 = vunpack.c.l.b16 %v665
      %v2187 = vunpack.c.l.b16 %v679
      %v2188 = vunpack.c.l.b16 %v689
      %v2189 = vpack.c.b16 %v2158, %v2157
      %v2190 = vpack.c.b16 %v2160, %v2159
      %v2191 = vpack.c.b16 %v2162, %v2161
      %v2192 = vpack.c.b16 %v2164, %v2163
      %v2193 = vpack.c.b16 %v2166, %v2165
      %v2194 = vpack.c.b16 %v2168, %v2167
      %v2195 = vpack.c.b16 %v2170, %v2169
      %v2196 = vpack.c.b16 %v2172, %v2171
      %v2197 = vpack.c.b16 %v2174, %v2173
      %v2198 = vpack.c.b16 %v2176, %v2175
      %v2199 = vpack.c.b16 %v2178, %v2177
      %v2200 = vpack.c.b16 %v2180, %v2179
      %v2201 = vpack.c.b16 %v2182, %v2181
      %v2202 = vpack.c.b16 %v2184, %v2183
      %v2203 = vpack.c.b16 %v2186, %v2185
      %v2204 = vpack.c.b16 %v2188, %v2187
      %2205 = vrot.lane.b32.xlu0 %v2189, 4
      %v2206 = vpop.permute.xlu0 %2205
      %2207 = vrot.lane.b32.xlu0 %v2190, 4
      %v2208 = vpop.permute.xlu0 %2207
      %2209 = vrot.lane.b32.xlu0 %v2191, 4
      %v2210 = vpop.permute.xlu0 %2209
      %2211 = vrot.lane.b32.xlu0 %v2192, 4
      %v2212 = vpop.permute.xlu0 %2211
      %2213 = vrot.lane.b32.xlu0 %v2193, 4
      %v2214 = vpop.permute.xlu0 %2213
      %2215 = vrot.lane.b32.xlu0 %v2194, 4
      %v2216 = vpop.permute.xlu0 %2215
      %2217 = vrot.lane.b32.xlu0 %v2195, 4
      %v2218 = vpop.permute.xlu0 %2217
      %2219 = vrot.lane.b32.xlu0 %v2196, 4
      %v2220 = vpop.permute.xlu0 %2219
      %2221 = vrot.lane.b32.xlu0 %v2197, 4
      %v2222 = vpop.permute.xlu0 %2221
      %2223 = vrot.lane.b32.xlu0 %v2198, 4
      %v2224 = vpop.permute.xlu0 %2223
      %2225 = vrot.lane.b32.xlu0 %v2199, 4
      %v2226 = vpop.permute.xlu0 %2225
      %2227 = vrot.lane.b32.xlu0 %v2200, 4
      %v2228 = vpop.permute.xlu0 %2227
      %2229 = vrot.lane.b32.xlu0 %v2201, 4
      %v2230 = vpop.permute.xlu0 %2229
      %2231 = vrot.lane.b32.xlu0 %v2202, 4
      %v2232 = vpop.permute.xlu0 %2231
      %2233 = vrot.lane.b32.xlu0 %v2203, 4
      %v2234 = vpop.permute.xlu0 %2233
      %2235 = vrot.lane.b32.xlu0 %v2204, 4
      %v2236 = vpop.permute.xlu0 %2235
      %v2237 = vunpack.c.l.b16 %v760
      %v2238 = vunpack.c.l.b16 %v763
      %v2239 = vunpack.c.l.b16 %v767
      %v2240 = vunpack.c.l.b16 %v770
      %v2241 = vunpack.c.l.b16 %v774
      %v2242 = vunpack.c.l.b16 %v777
      %v2243 = vunpack.c.l.b16 %v781
      %v2244 = vunpack.c.l.b16 %v784
      %v2245 = vunpack.c.l.b16 %v788
      %v2246 = vunpack.c.l.b16 %v791
      %v2247 = vunpack.c.l.b16 %v795
      %v2248 = vunpack.c.l.b16 %v798
      %v2249 = vunpack.c.l.b16 %v802
      %v2250 = vunpack.c.l.b16 %v805
      %v2251 = vunpack.c.l.b16 %v809
      %v2252 = vunpack.c.l.b16 %v812
      %v2253 = vunpack.c.l.b16 %v816
      %v2254 = vunpack.c.l.b16 %v819
      %v2255 = vunpack.c.l.b16 %v823
      %v2256 = vunpack.c.l.b16 %v826
      %v2257 = vunpack.c.l.b16 %v830
      %v2258 = vunpack.c.l.b16 %v833
      %v2259 = vunpack.c.l.b16 %v837
      %v2260 = vunpack.c.l.b16 %v840
      %v2261 = vunpack.c.l.b16 %v844
      %v2262 = vunpack.c.l.b16 %v847
      %v2263 = vunpack.c.l.b16 %v851
      %v2264 = vunpack.c.l.b16 %v854
      %v2265 = vunpack.c.l.b16 %v858
      %v2266 = vunpack.c.l.b16 %v861
      %v2267 = vunpack.c.l.b16 %v865
      %v2268 = vunpack.c.l.b16 %v868
      %v2269 = vpack.c.b16 %v2238, %v2237
      %v2270 = vpack.c.b16 %v2240, %v2239
      %v2271 = vpack.c.b16 %v2242, %v2241
      %v2272 = vpack.c.b16 %v2244, %v2243
      %v2273 = vpack.c.b16 %v2246, %v2245
      %v2274 = vpack.c.b16 %v2248, %v2247
      %v2275 = vpack.c.b16 %v2250, %v2249
      %v2276 = vpack.c.b16 %v2252, %v2251
      %v2277 = vpack.c.b16 %v2254, %v2253
      %v2278 = vpack.c.b16 %v2256, %v2255
      %v2279 = vpack.c.b16 %v2258, %v2257
      %v2280 = vpack.c.b16 %v2260, %v2259
      %v2281 = vpack.c.b16 %v2262, %v2261
      %v2282 = vpack.c.b16 %v2264, %v2263
      %v2283 = vpack.c.b16 %v2266, %v2265
      %v2284 = vpack.c.b16 %v2268, %v2267
      %2285 = vrot.lane.b32.xlu0 %v2269, 8
      %v2286 = vpop.permute.xlu0 %2285
      %2287 = vrot.lane.b32.xlu0 %v2270, 8
      %v2288 = vpop.permute.xlu0 %2287
      %2289 = vrot.lane.b32.xlu0 %v2271, 8
      %v2290 = vpop.permute.xlu0 %2289
      %2291 = vrot.lane.b32.xlu0 %v2272, 8
      %v2292 = vpop.permute.xlu0 %2291
      %2293 = vrot.lane.b32.xlu0 %v2273, 8
      %v2294 = vpop.permute.xlu0 %2293
      %2295 = vrot.lane.b32.xlu0 %v2274, 8
      %v2296 = vpop.permute.xlu0 %2295
      %2297 = vrot.lane.b32.xlu0 %v2275, 8
      %v2298 = vpop.permute.xlu0 %2297
      %2299 = vrot.lane.b32.xlu0 %v2276, 8
      %v2300 = vpop.permute.xlu0 %2299
      %2301 = vrot.lane.b32.xlu0 %v2277, 8
      %v2302 = vpop.permute.xlu0 %2301
      %2303 = vrot.lane.b32.xlu0 %v2278, 8
      %v2304 = vpop.permute.xlu0 %2303
      %2305 = vrot.lane.b32.xlu0 %v2279, 8
      %v2306 = vpop.permute.xlu0 %2305
      %2307 = vrot.lane.b32.xlu0 %v2280, 8
      %v2308 = vpop.permute.xlu0 %2307
      %2309 = vrot.lane.b32.xlu0 %v2281, 8
      %v2310 = vpop.permute.xlu0 %2309
      %2311 = vrot.lane.b32.xlu0 %v2282, 8
      %v2312 = vpop.permute.xlu0 %2311
      %2313 = vrot.lane.b32.xlu0 %v2283, 8
      %v2314 = vpop.permute.xlu0 %2313
      %2315 = vrot.lane.b32.xlu0 %v2284, 8
      %v2316 = vpop.permute.xlu0 %2315
      %v2333 = vunpack.c.l.b16 %v873
      %v2334 = vunpack.c.l.b16 %v874
      %v2335 = vunpack.c.l.b16 %v875
      %v2336 = vunpack.c.l.b16 %v876
      %v2337 = vunpack.c.l.b16 %v877
      %v2338 = vunpack.c.l.b16 %v878
      %v2339 = vunpack.c.l.b16 %v879
      %v2340 = vunpack.c.l.b16 %v880
      %v2341 = vunpack.c.l.b16 %v881
      %v2342 = vunpack.c.l.b16 %v882
      %v2343 = vunpack.c.l.b16 %v883
      %v2344 = vunpack.c.l.b16 %v884
      %v2345 = vunpack.c.l.b16 %v885
      %v2346 = vunpack.c.l.b16 %v886
      %v2347 = vunpack.c.l.b16 %v887
      %v2348 = vunpack.c.l.b16 %v888
      %v2349 = vunpack.c.l.b16 %v889
      %v2350 = vunpack.c.l.b16 %v890
      %v2351 = vunpack.c.l.b16 %v891
      %v2352 = vunpack.c.l.b16 %v892
      %v2353 = vunpack.c.l.b16 %v893
      %v2354 = vunpack.c.l.b16 %v894
      %v2355 = vunpack.c.l.b16 %v895
      %v2356 = vunpack.c.l.b16 %v896
      %v2357 = vunpack.c.l.b16 %v897
      %v2358 = vunpack.c.l.b16 %v898
      %v2359 = vunpack.c.l.b16 %v899
      %v2360 = vunpack.c.l.b16 %v900
      %v2361 = vunpack.c.l.b16 %v901
      %v2362 = vunpack.c.l.b16 %v902
      %v2363 = vunpack.c.l.b16 %v903
      %v2364 = vunpack.c.l.b16 %v904
      %v2365 = vpack.c.b16 %v2334, %v2333
      %v2366 = vpack.c.b16 %v2336, %v2335
      %v2367 = vpack.c.b16 %v2338, %v2337
      %v2368 = vpack.c.b16 %v2340, %v2339
      %v2369 = vpack.c.b16 %v2342, %v2341
      %v2370 = vpack.c.b16 %v2344, %v2343
      %v2371 = vpack.c.b16 %v2346, %v2345
      %v2372 = vpack.c.b16 %v2348, %v2347
      %v2373 = vpack.c.b16 %v2350, %v2349
      %v2374 = vpack.c.b16 %v2352, %v2351
      %v2375 = vpack.c.b16 %v2354, %v2353
      %v2376 = vpack.c.b16 %v2356, %v2355
      %v2377 = vpack.c.b16 %v2358, %v2357
      %v2378 = vpack.c.b16 %v2360, %v2359
      %v2379 = vpack.c.b16 %v2362, %v2361
      %v2380 = vpack.c.b16 %v2364, %v2363
      %2381 = vrot.lane.b32.xlu0 %v2365, 12
      %v2382 = vpop.permute.xlu0 %2381
      %2383 = vrot.lane.b32.xlu0 %v2366, 12
      %v2384 = vpop.permute.xlu0 %2383
      %2385 = vrot.lane.b32.xlu0 %v2367, 12
      %v2386 = vpop.permute.xlu0 %2385
      %2387 = vrot.lane.b32.xlu0 %v2368, 12
      %v2388 = vpop.permute.xlu0 %2387
      %2389 = vrot.lane.b32.xlu0 %v2369, 12
      %v2390 = vpop.permute.xlu0 %2389
      %2391 = vrot.lane.b32.xlu0 %v2370, 12
      %v2392 = vpop.permute.xlu0 %2391
      %2393 = vrot.lane.b32.xlu0 %v2371, 12
      %v2394 = vpop.permute.xlu0 %2393
      %2395 = vrot.lane.b32.xlu0 %v2372, 12
      %v2396 = vpop.permute.xlu0 %2395
      %2397 = vrot.lane.b32.xlu0 %v2373, 12
      %v2398 = vpop.permute.xlu0 %2397
      %2399 = vrot.lane.b32.xlu0 %v2374, 12
      %v2400 = vpop.permute.xlu0 %2399
      %2401 = vrot.lane.b32.xlu0 %v2375, 12
      %v2402 = vpop.permute.xlu0 %2401
      %2403 = vrot.lane.b32.xlu0 %v2376, 12
      %v2404 = vpop.permute.xlu0 %2403
      %2405 = vrot.lane.b32.xlu0 %v2377, 12
      %v2406 = vpop.permute.xlu0 %2405
      %2407 = vrot.lane.b32.xlu0 %v2378, 12
      %v2408 = vpop.permute.xlu0 %2407
      %2409 = vrot.lane.b32.xlu0 %v2379, 12
      %v2410 = vpop.permute.xlu0 %2409
      %2411 = vrot.lane.b32.xlu0 %v2380, 12
      %v2412 = vpop.permute.xlu0 %2411
      %v2413 = vunpack.c.l.b16 %v934
      %v2414 = vunpack.c.l.b16 %v944
      %v2415 = vunpack.c.l.b16 %v958
      %v2416 = vunpack.c.l.b16 %v968
      %v2417 = vunpack.c.l.b16 %v982
      %v2418 = vunpack.c.l.b16 %v992
      %v2419 = vunpack.c.l.b16 %v1006
      %v2420 = vunpack.c.l.b16 %v1016
      %v2421 = vunpack.c.l.b16 %v1030
      %v2422 = vunpack.c.l.b16 %v1040
      %v2423 = vunpack.c.l.b16 %v1054
      %v2424 = vunpack.c.l.b16 %v1064
      %v2425 = vunpack.c.l.b16 %v1078
      %v2426 = vunpack.c.l.b16 %v1088
      %v2427 = vunpack.c.l.b16 %v1102
      %v2428 = vunpack.c.l.b16 %v1112
      %v2429 = vunpack.c.l.b16 %v1126
      %v2430 = vunpack.c.l.b16 %v1136
      %v2431 = vunpack.c.l.b16 %v1150
      %v2432 = vunpack.c.l.b16 %v1160
      %v2433 = vunpack.c.l.b16 %v1174
      %v2434 = vunpack.c.l.b16 %v1184
      %v2435 = vunpack.c.l.b16 %v1198
      %v2436 = vunpack.c.l.b16 %v1208
      %v2437 = vunpack.c.l.b16 %v1222
      %v2438 = vunpack.c.l.b16 %v1232
      %v2439 = vunpack.c.l.b16 %v1246
      %v2440 = vunpack.c.l.b16 %v1256
      %v2441 = vunpack.c.l.b16 %v1270
      %v2442 = vunpack.c.l.b16 %v1280
      %v2443 = vunpack.c.l.b16 %v1294
      %v2444 = vunpack.c.l.b16 %v1304
      %v2445 = vpack.c.b16 %v2414, %v2413
      %v2446 = vpack.c.b16 %v2416, %v2415
      %v2447 = vpack.c.b16 %v2418, %v2417
      %v2448 = vpack.c.b16 %v2420, %v2419
      %v2449 = vpack.c.b16 %v2422, %v2421
      %v2450 = vpack.c.b16 %v2424, %v2423
      %v2451 = vpack.c.b16 %v2426, %v2425
      %v2452 = vpack.c.b16 %v2428, %v2427
      %v2453 = vpack.c.b16 %v2430, %v2429
      %v2454 = vpack.c.b16 %v2432, %v2431
      %v2455 = vpack.c.b16 %v2434, %v2433
      %v2456 = vpack.c.b16 %v2436, %v2435
      %v2457 = vpack.c.b16 %v2438, %v2437
      %v2458 = vpack.c.b16 %v2440, %v2439
      %v2459 = vpack.c.b16 %v2442, %v2441
      %v2460 = vpack.c.b16 %v2444, %v2443
      %2461 = vrot.lane.b32.xlu0 %v2445, 16
      %v2462 = vpop.permute.xlu0 %2461
      %2463 = vrot.lane.b32.xlu0 %v2446, 16
      %v2464 = vpop.permute.xlu0 %2463
      %2465 = vrot.lane.b32.xlu0 %v2447, 16
      %v2466 = vpop.permute.xlu0 %2465
      %2467 = vrot.lane.b32.xlu0 %v2448, 16
      %v2468 = vpop.permute.xlu0 %2467
      %2469 = vrot.lane.b32.xlu0 %v2449, 16
      %v2470 = vpop.permute.xlu0 %2469
      %2471 = vrot.lane.b32.xlu0 %v2450, 16
      %v2472 = vpop.permute.xlu0 %2471
      %2473 = vrot.lane.b32.xlu0 %v2451, 16
      %v2474 = vpop.permute.xlu0 %2473
      %2475 = vrot.lane.b32.xlu0 %v2452, 16
      %v2476 = vpop.permute.xlu0 %2475
      %2477 = vrot.lane.b32.xlu0 %v2453, 16
      %v2478 = vpop.permute.xlu0 %2477
      %2479 = vrot.lane.b32.xlu0 %v2454, 16
      %v2480 = vpop.permute.xlu0 %2479
      %2481 = vrot.lane.b32.xlu0 %v2455, 16
      %v2482 = vpop.permute.xlu0 %2481
      %2483 = vrot.lane.b32.xlu0 %v2456, 16
      %v2484 = vpop.permute.xlu0 %2483
      %2485 = vrot.lane.b32.xlu0 %v2457, 16
      %v2486 = vpop.permute.xlu0 %2485
      %2487 = vrot.lane.b32.xlu0 %v2458, 16
      %v2488 = vpop.permute.xlu0 %2487
      %2489 = vrot.lane.b32.xlu0 %v2459, 16
      %v2490 = vpop.permute.xlu0 %2489
      %2491 = vrot.lane.b32.xlu0 %v2460, 16
      %v2492 = vpop.permute.xlu0 %2491
      %v2493 = vunpack.c.l.b16 %v1372
      %v2494 = vunpack.c.l.b16 %v1375
      %v2495 = vunpack.c.l.b16 %v1379
      %v2496 = vunpack.c.l.b16 %v1382
      %v2497 = vunpack.c.l.b16 %v1386
      %v2498 = vunpack.c.l.b16 %v1389
      %v2499 = vunpack.c.l.b16 %v1393
      %v2500 = vunpack.c.l.b16 %v1396
      %v2501 = vunpack.c.l.b16 %v1400
      %v2502 = vunpack.c.l.b16 %v1403
      %v2503 = vunpack.c.l.b16 %v1407
      %v2504 = vunpack.c.l.b16 %v1410
      %v2505 = vunpack.c.l.b16 %v1414
      %v2506 = vunpack.c.l.b16 %v1417
      %v2507 = vunpack.c.l.b16 %v1421
      %v2508 = vunpack.c.l.b16 %v1424
      %v2509 = vunpack.c.l.b16 %v1428
      %v2510 = vunpack.c.l.b16 %v1431
      %v2511 = vunpack.c.l.b16 %v1435
      %v2512 = vunpack.c.l.b16 %v1438
      %v2513 = vunpack.c.l.b16 %v1442
      %v2514 = vunpack.c.l.b16 %v1445
      %v2515 = vunpack.c.l.b16 %v1449
      %v2516 = vunpack.c.l.b16 %v1452
      %v2517 = vunpack.c.l.b16 %v1456
      %v2518 = vunpack.c.l.b16 %v1459
      %v2519 = vunpack.c.l.b16 %v1463
      %v2520 = vunpack.c.l.b16 %v1466
      %v2521 = vunpack.c.l.b16 %v1470
      %v2522 = vunpack.c.l.b16 %v1473
      %v2523 = vunpack.c.l.b16 %v1477
      %v2524 = vunpack.c.l.b16 %v1480
      %v2525 = vpack.c.b16 %v2494, %v2493
      %v2526 = vpack.c.b16 %v2496, %v2495
      %v2527 = vpack.c.b16 %v2498, %v2497
      %v2528 = vpack.c.b16 %v2500, %v2499
      %v2529 = vpack.c.b16 %v2502, %v2501
      %v2530 = vpack.c.b16 %v2504, %v2503
      %v2531 = vpack.c.b16 %v2506, %v2505
      %v2532 = vpack.c.b16 %v2508, %v2507
      %v2533 = vpack.c.b16 %v2510, %v2509
      %v2534 = vpack.c.b16 %v2512, %v2511
      %v2535 = vpack.c.b16 %v2514, %v2513
      %v2536 = vpack.c.b16 %v2516, %v2515
      %v2537 = vpack.c.b16 %v2518, %v2517
      %v2538 = vpack.c.b16 %v2520, %v2519
      %v2539 = vpack.c.b16 %v2522, %v2521
      %v2540 = vpack.c.b16 %v2524, %v2523
      %2541 = vrot.lane.b32.xlu0 %v2525, 20
      %v2542 = vpop.permute.xlu0 %2541
      %2543 = vrot.lane.b32.xlu0 %v2526, 20
      %v2544 = vpop.permute.xlu0 %2543
      %2545 = vrot.lane.b32.xlu0 %v2527, 20
      %v2546 = vpop.permute.xlu0 %2545
      %2547 = vrot.lane.b32.xlu0 %v2528, 20
      %v2548 = vpop.permute.xlu0 %2547
      %2549 = vrot.lane.b32.xlu0 %v2529, 20
      %v2550 = vpop.permute.xlu0 %2549
      %2551 = vrot.lane.b32.xlu0 %v2530, 20
      %v2552 = vpop.permute.xlu0 %2551
      %2553 = vrot.lane.b32.xlu0 %v2531, 20
      %v2554 = vpop.permute.xlu0 %2553
      %2555 = vrot.lane.b32.xlu0 %v2532, 20
      %v2556 = vpop.permute.xlu0 %2555
      %2557 = vrot.lane.b32.xlu0 %v2533, 20
      %v2558 = vpop.permute.xlu0 %2557
      %2559 = vrot.lane.b32.xlu0 %v2534, 20
      %v2560 = vpop.permute.xlu0 %2559
      %2561 = vrot.lane.b32.xlu0 %v2535, 20
      %v2562 = vpop.permute.xlu0 %2561
      %2563 = vrot.lane.b32.xlu0 %v2536, 20
      %v2564 = vpop.permute.xlu0 %2563
      %2565 = vrot.lane.b32.xlu0 %v2537, 20
      %v2566 = vpop.permute.xlu0 %2565
      %2567 = vrot.lane.b32.xlu0 %v2538, 20
      %v2568 = vpop.permute.xlu0 %2567
      %2569 = vrot.lane.b32.xlu0 %v2539, 20
      %v2570 = vpop.permute.xlu0 %2569
      %2571 = vrot.lane.b32.xlu0 %v2540, 20
      %v2572 = vpop.permute.xlu0 %2571
      %v2589 = vunpack.c.l.b16 %v1485
      %v2590 = vunpack.c.l.b16 %v1486
      %v2591 = vunpack.c.l.b16 %v1487
      %v2592 = vunpack.c.l.b16 %v1488
      %v2593 = vunpack.c.l.b16 %v1489
      %v2594 = vunpack.c.l.b16 %v1490
      %v2595 = vunpack.c.l.b16 %v1491
      %v2596 = vunpack.c.l.b16 %v1492
      %v2597 = vunpack.c.l.b16 %v1493
      %v2598 = vunpack.c.l.b16 %v1494
      %v2599 = vunpack.c.l.b16 %v1495
      %v2600 = vunpack.c.l.b16 %v1496
      %v2601 = vunpack.c.l.b16 %v1497
      %v2602 = vunpack.c.l.b16 %v1498
      %v2603 = vunpack.c.l.b16 %v1499
      %v2604 = vunpack.c.l.b16 %v1500
      %v2605 = vunpack.c.l.b16 %v1501
      %v2606 = vunpack.c.l.b16 %v1502
      %v2607 = vunpack.c.l.b16 %v1503
      %v2608 = vunpack.c.l.b16 %v1504
      %v2609 = vunpack.c.l.b16 %v1505
      %v2610 = vunpack.c.l.b16 %v1506
      %v2611 = vunpack.c.l.b16 %v1507
      %v2612 = vunpack.c.l.b16 %v1508
      %v2613 = vunpack.c.l.b16 %v1509
      %v2614 = vunpack.c.l.b16 %v1510
      %v2615 = vunpack.c.l.b16 %v1511
      %v2616 = vunpack.c.l.b16 %v1512
      %v2617 = vunpack.c.l.b16 %v1513
      %v2618 = vunpack.c.l.b16 %v1514
      %v2619 = vunpack.c.l.b16 %v1515
      %v2620 = vunpack.c.l.b16 %v1516
      %v2621 = vpack.c.b16 %v2590, %v2589
      %v2622 = vpack.c.b16 %v2592, %v2591
      %v2623 = vpack.c.b16 %v2594, %v2593
      %v2624 = vpack.c.b16 %v2596, %v2595
      %v2625 = vpack.c.b16 %v2598, %v2597
      %v2626 = vpack.c.b16 %v2600, %v2599
      %v2627 = vpack.c.b16 %v2602, %v2601
      %v2628 = vpack.c.b16 %v2604, %v2603
      %v2629 = vpack.c.b16 %v2606, %v2605
      %v2630 = vpack.c.b16 %v2608, %v2607
      %v2631 = vpack.c.b16 %v2610, %v2609
      %v2632 = vpack.c.b16 %v2612, %v2611
      %v2633 = vpack.c.b16 %v2614, %v2613
      %v2634 = vpack.c.b16 %v2616, %v2615
      %v2635 = vpack.c.b16 %v2618, %v2617
      %v2636 = vpack.c.b16 %v2620, %v2619
      %2637 = vrot.lane.b32.xlu0 %v2621, 24
      %v2638 = vpop.permute.xlu0 %2637
      %2639 = vrot.lane.b32.xlu0 %v2622, 24
      %v2640 = vpop.permute.xlu0 %2639
      %2641 = vrot.lane.b32.xlu0 %v2623, 24
      %v2642 = vpop.permute.xlu0 %2641
      %2643 = vrot.lane.b32.xlu0 %v2624, 24
      %v2644 = vpop.permute.xlu0 %2643
      %2645 = vrot.lane.b32.xlu0 %v2625, 24
      %v2646 = vpop.permute.xlu0 %2645
      %2647 = vrot.lane.b32.xlu0 %v2626, 24
      %v2648 = vpop.permute.xlu0 %2647
      %2649 = vrot.lane.b32.xlu0 %v2627, 24
      %v2650 = vpop.permute.xlu0 %2649
      %2651 = vrot.lane.b32.xlu0 %v2628, 24
      %v2652 = vpop.permute.xlu0 %2651
      %2653 = vrot.lane.b32.xlu0 %v2629, 24
      %v2654 = vpop.permute.xlu0 %2653
      %2655 = vrot.lane.b32.xlu0 %v2630, 24
      %v2656 = vpop.permute.xlu0 %2655
      %2657 = vrot.lane.b32.xlu0 %v2631, 24
      %v2658 = vpop.permute.xlu0 %2657
      %2659 = vrot.lane.b32.xlu0 %v2632, 24
      %v2660 = vpop.permute.xlu0 %2659
      %2661 = vrot.lane.b32.xlu0 %v2633, 24
      %v2662 = vpop.permute.xlu0 %2661
      %2663 = vrot.lane.b32.xlu0 %v2634, 24
      %v2664 = vpop.permute.xlu0 %2663
      %2665 = vrot.lane.b32.xlu0 %v2635, 24
      %v2666 = vpop.permute.xlu0 %2665
      %2667 = vrot.lane.b32.xlu0 %v2636, 24
      %v2668 = vpop.permute.xlu0 %2667
      %v2669 = vunpack.c.l.b16 %v1546
      %v2670 = vunpack.c.l.b16 %v1556
      %v2671 = vunpack.c.l.b16 %v1570
      %v2672 = vunpack.c.l.b16 %v1580
      %v2673 = vunpack.c.l.b16 %v1594
      %v2674 = vunpack.c.l.b16 %v1604
      %v2675 = vunpack.c.l.b16 %v1618
      %v2676 = vunpack.c.l.b16 %v1628
      %v2677 = vunpack.c.l.b16 %v1642
      %v2678 = vunpack.c.l.b16 %v1652
      %v2679 = vunpack.c.l.b16 %v1666
      %v2680 = vunpack.c.l.b16 %v1676
      %v2681 = vunpack.c.l.b16 %v1690
      %v2682 = vunpack.c.l.b16 %v1700
      %v2683 = vunpack.c.l.b16 %v1714
      %v2684 = vunpack.c.l.b16 %v1724
      %v2685 = vunpack.c.l.b16 %v1738
      %v2686 = vunpack.c.l.b16 %v1748
      %v2687 = vunpack.c.l.b16 %v1762
      %v2688 = vunpack.c.l.b16 %v1772
      %v2689 = vunpack.c.l.b16 %v1786
      %v2690 = vunpack.c.l.b16 %v1796
      %v2691 = vunpack.c.l.b16 %v1810
      %v2692 = vunpack.c.l.b16 %v1820
      %v2693 = vunpack.c.l.b16 %v1834
      %v2694 = vunpack.c.l.b16 %v1844
      %v2695 = vunpack.c.l.b16 %v1858
      %v2696 = vunpack.c.l.b16 %v1868
      %v2697 = vunpack.c.l.b16 %v1882
      %v2698 = vunpack.c.l.b16 %v1892
      %v2699 = vunpack.c.l.b16 %v1906
      %v2700 = vunpack.c.l.b16 %v1916
      %v2701 = vpack.c.b16 %v2670, %v2669
      %v2702 = vpack.c.b16 %v2672, %v2671
      %v2703 = vpack.c.b16 %v2674, %v2673
      %v2704 = vpack.c.b16 %v2676, %v2675
      %v2705 = vpack.c.b16 %v2678, %v2677
      %v2706 = vpack.c.b16 %v2680, %v2679
      %v2707 = vpack.c.b16 %v2682, %v2681
      %v2708 = vpack.c.b16 %v2684, %v2683
      %v2709 = vpack.c.b16 %v2686, %v2685
      %v2710 = vpack.c.b16 %v2688, %v2687
      %v2711 = vpack.c.b16 %v2690, %v2689
      %v2712 = vpack.c.b16 %v2692, %v2691
      %v2713 = vpack.c.b16 %v2694, %v2693
      %v2714 = vpack.c.b16 %v2696, %v2695
      %v2715 = vpack.c.b16 %v2698, %v2697
      %v2716 = vpack.c.b16 %v2700, %v2699
      %2717 = vrot.lane.b32.xlu0 %v2701, 28
      %v2718 = vpop.permute.xlu0 %2717
      %2719 = vrot.lane.b32.xlu0 %v2702, 28
      %v2720 = vpop.permute.xlu0 %2719
      %2721 = vrot.lane.b32.xlu0 %v2703, 28
      %v2722 = vpop.permute.xlu0 %2721
      %2723 = vrot.lane.b32.xlu0 %v2704, 28
      %v2724 = vpop.permute.xlu0 %2723
      %2725 = vrot.lane.b32.xlu0 %v2705, 28
      %v2726 = vpop.permute.xlu0 %2725
      %2727 = vrot.lane.b32.xlu0 %v2706, 28
      %v2728 = vpop.permute.xlu0 %2727
      %2729 = vrot.lane.b32.xlu0 %v2707, 28
      %v2730 = vpop.permute.xlu0 %2729
      %2731 = vrot.lane.b32.xlu0 %v2708, 28
      %v2732 = vpop.permute.xlu0 %2731
      %2733 = vrot.lane.b32.xlu0 %v2709, 28
      %v2734 = vpop.permute.xlu0 %2733
      %2735 = vrot.lane.b32.xlu0 %v2710, 28
      %v2736 = vpop.permute.xlu0 %2735
      %2737 = vrot.lane.b32.xlu0 %v2711, 28
      %v2738 = vpop.permute.xlu0 %2737
      %2739 = vrot.lane.b32.xlu0 %v2712, 28
      %v2740 = vpop.permute.xlu0 %2739
      %2741 = vrot.lane.b32.xlu0 %v2713, 28
      %v2742 = vpop.permute.xlu0 %2741
      %2743 = vrot.lane.b32.xlu0 %v2714, 28
      %v2744 = vpop.permute.xlu0 %2743
      %2745 = vrot.lane.b32.xlu0 %v2715, 28
      %v2746 = vpop.permute.xlu0 %2745
      %2747 = vrot.lane.b32.xlu0 %v2716, 28
      %v2748 = vpop.permute.xlu0 %2747
      %v2749 = vunpack.c.l.b16 %v1984
      %v2750 = vunpack.c.l.b16 %v1987
      %v2751 = vunpack.c.l.b16 %v1991
      %v2752 = vunpack.c.l.b16 %v1994
      %v2753 = vunpack.c.l.b16 %v1998
      %v2754 = vunpack.c.l.b16 %v2001
      %v2755 = vunpack.c.l.b16 %v2005
      %v2756 = vunpack.c.l.b16 %v2008
      %v2757 = vunpack.c.l.b16 %v2012
      %v2758 = vunpack.c.l.b16 %v2015
      %v2759 = vunpack.c.l.b16 %v2019
      %v2760 = vunpack.c.l.b16 %v2022
      %v2761 = vunpack.c.l.b16 %v2026
      %v2762 = vunpack.c.l.b16 %v2029
      %v2763 = vunpack.c.l.b16 %v2033
      %v2764 = vunpack.c.l.b16 %v2036
      %v2765 = vunpack.c.l.b16 %v2040
      %v2766 = vunpack.c.l.b16 %v2043
      %v2767 = vunpack.c.l.b16 %v2047
      %v2768 = vunpack.c.l.b16 %v2050
      %v2769 = vunpack.c.l.b16 %v2054
      %v2770 = vunpack.c.l.b16 %v2057
      %v2771 = vunpack.c.l.b16 %v2061
      %v2772 = vunpack.c.l.b16 %v2064
      %v2773 = vunpack.c.l.b16 %v2068
      %v2774 = vunpack.c.l.b16 %v2071
      %v2775 = vunpack.c.l.b16 %v2075
      %v2776 = vunpack.c.l.b16 %v2078
      %v2777 = vunpack.c.l.b16 %v2082
      %v2778 = vunpack.c.l.b16 %v2085
      %v2779 = vunpack.c.l.b16 %v2089
      %v2780 = vunpack.c.l.b16 %v2092
      %v2781 = vpack.c.b16 %v2750, %v2749
      %v2782 = vpack.c.b16 %v2752, %v2751
      %v2783 = vpack.c.b16 %v2754, %v2753
      %v2784 = vpack.c.b16 %v2756, %v2755
      %v2785 = vpack.c.b16 %v2758, %v2757
      %v2786 = vpack.c.b16 %v2760, %v2759
      %v2787 = vpack.c.b16 %v2762, %v2761
      %v2788 = vpack.c.b16 %v2764, %v2763
      %v2789 = vpack.c.b16 %v2766, %v2765
      %v2790 = vpack.c.b16 %v2768, %v2767
      %v2791 = vpack.c.b16 %v2770, %v2769
      %v2792 = vpack.c.b16 %v2772, %v2771
      %v2793 = vpack.c.b16 %v2774, %v2773
      %v2794 = vpack.c.b16 %v2776, %v2775
      %v2795 = vpack.c.b16 %v2778, %v2777
      %v2796 = vpack.c.b16 %v2780, %v2779
      %2797 = vrot.lane.b32.xlu0 %v2781, 32
      %v2798 = vpop.permute.xlu0 %2797
      %2799 = vrot.lane.b32.xlu0 %v2782, 32
      %v2800 = vpop.permute.xlu0 %2799
      %2801 = vrot.lane.b32.xlu0 %v2783, 32
      %v2802 = vpop.permute.xlu0 %2801
      %2803 = vrot.lane.b32.xlu0 %v2784, 32
      %v2804 = vpop.permute.xlu0 %2803
      %2805 = vrot.lane.b32.xlu0 %v2785, 32
      %v2806 = vpop.permute.xlu0 %2805
      %2807 = vrot.lane.b32.xlu0 %v2786, 32
      %v2808 = vpop.permute.xlu0 %2807
      %2809 = vrot.lane.b32.xlu0 %v2787, 32
      %v2810 = vpop.permute.xlu0 %2809
      %2811 = vrot.lane.b32.xlu0 %v2788, 32
      %v2812 = vpop.permute.xlu0 %2811
      %2813 = vrot.lane.b32.xlu0 %v2789, 32
      %v2814 = vpop.permute.xlu0 %2813
      %2815 = vrot.lane.b32.xlu0 %v2790, 32
      %v2816 = vpop.permute.xlu0 %2815
      %2817 = vrot.lane.b32.xlu0 %v2791, 32
      %v2818 = vpop.permute.xlu0 %2817
      %2819 = vrot.lane.b32.xlu0 %v2792, 32
      %v2820 = vpop.permute.xlu0 %2819
      %2821 = vrot.lane.b32.xlu0 %v2793, 32
      %v2822 = vpop.permute.xlu0 %2821
      %2823 = vrot.lane.b32.xlu0 %v2794, 32
      %v2824 = vpop.permute.xlu0 %2823
      %2825 = vrot.lane.b32.xlu0 %v2795, 32
      %v2826 = vpop.permute.xlu0 %2825
      %2827 = vrot.lane.b32.xlu0 %v2796, 32
      %v2828 = vpop.permute.xlu0 %2827
      %vm2829 = vcmask 31744
      %v2832 = vsel %vm2829, %v2141, %v2206
      %v2835 = vsel %vm2829, %v2142, %v2208
      %v2838 = vsel %vm2829, %v2143, %v2210
      %v2841 = vsel %vm2829, %v2144, %v2212
      %v2844 = vsel %vm2829, %v2145, %v2214
      %v2847 = vsel %vm2829, %v2146, %v2216
      %v2850 = vsel %vm2829, %v2147, %v2218
      %v2853 = vsel %vm2829, %v2148, %v2220
      %v2856 = vsel %vm2829, %v2149, %v2222
      %v2859 = vsel %vm2829, %v2150, %v2224
      %v2862 = vsel %vm2829, %v2151, %v2226
      %v2865 = vsel %vm2829, %v2152, %v2228
      %v2868 = vsel %vm2829, %v2153, %v2230
      %v2871 = vsel %vm2829, %v2154, %v2232
      %v2874 = vsel %vm2829, %v2155, %v2234
      %v2877 = vsel %vm2829, %v2156, %v2236
      %vm2878 = vcmask 64512
      %v2880 = vsel %vm2878, %v2832, %v2286
      %v2882 = vsel %vm2878, %v2835, %v2288
      %v2884 = vsel %vm2878, %v2838, %v2290
      %v2886 = vsel %vm2878, %v2841, %v2292
      %v2888 = vsel %vm2878, %v2844, %v2294
      %v2890 = vsel %vm2878, %v2847, %v2296
      %v2892 = vsel %vm2878, %v2850, %v2298
      %v2894 = vsel %vm2878, %v2853, %v2300
      %v2896 = vsel %vm2878, %v2856, %v2302
      %v2898 = vsel %vm2878, %v2859, %v2304
      %v2900 = vsel %vm2878, %v2862, %v2306
      %v2902 = vsel %vm2878, %v2865, %v2308
      %v2904 = vsel %vm2878, %v2868, %v2310
      %v2906 = vsel %vm2878, %v2871, %v2312
      %v2908 = vsel %vm2878, %v2874, %v2314
      %v2910 = vsel %vm2878, %v2877, %v2316
      %vm2911 = vcmask 97280
      %v2913 = vsel %vm2911, %v2880, %v2382
      %v2915 = vsel %vm2911, %v2882, %v2384
      %v2917 = vsel %vm2911, %v2884, %v2386
      %v2919 = vsel %vm2911, %v2886, %v2388
      %v2921 = vsel %vm2911, %v2888, %v2390
      %v2923 = vsel %vm2911, %v2890, %v2392
      %v2925 = vsel %vm2911, %v2892, %v2394
      %v2927 = vsel %vm2911, %v2894, %v2396
      %v2929 = vsel %vm2911, %v2896, %v2398
      %v2931 = vsel %vm2911, %v2898, %v2400
      %v2933 = vsel %vm2911, %v2900, %v2402
      %v2935 = vsel %vm2911, %v2902, %v2404
      %v2937 = vsel %vm2911, %v2904, %v2406
      %v2939 = vsel %vm2911, %v2906, %v2408
      %v2941 = vsel %vm2911, %v2908, %v2410
      %v2943 = vsel %vm2911, %v2910, %v2412
      %vm2944 = vcmask 130048
      %v2946 = vsel %vm2944, %v2913, %v2462
      %v2948 = vsel %vm2944, %v2915, %v2464
      %v2950 = vsel %vm2944, %v2917, %v2466
      %v2952 = vsel %vm2944, %v2919, %v2468
      %v2954 = vsel %vm2944, %v2921, %v2470
      %v2956 = vsel %vm2944, %v2923, %v2472
      %v2958 = vsel %vm2944, %v2925, %v2474
      %v2960 = vsel %vm2944, %v2927, %v2476
      %v2962 = vsel %vm2944, %v2929, %v2478
      %v2964 = vsel %vm2944, %v2931, %v2480
      %v2966 = vsel %vm2944, %v2933, %v2482
      %v2968 = vsel %vm2944, %v2935, %v2484
      %v2970 = vsel %vm2944, %v2937, %v2486
      %v2972 = vsel %vm2944, %v2939, %v2488
      %v2974 = vsel %vm2944, %v2941, %v2490
      %v2976 = vsel %vm2944, %v2943, %v2492
      %vm2977 = vcmask 162816
      %v2979 = vsel %vm2977, %v2946, %v2542
      %v2981 = vsel %vm2977, %v2948, %v2544
      %v2983 = vsel %vm2977, %v2950, %v2546
      %v2985 = vsel %vm2977, %v2952, %v2548
      %v2987 = vsel %vm2977, %v2954, %v2550
      %v2989 = vsel %vm2977, %v2956, %v2552
      %v2991 = vsel %vm2977, %v2958, %v2554
      %v2993 = vsel %vm2977, %v2960, %v2556
      %v2995 = vsel %vm2977, %v2962, %v2558
      %v2997 = vsel %vm2977, %v2964, %v2560
      %v2999 = vsel %vm2977, %v2966, %v2562
      %v3001 = vsel %vm2977, %v2968, %v2564
      %v3003 = vsel %vm2977, %v2970, %v2566
      %v3005 = vsel %vm2977, %v2972, %v2568
      %v3007 = vsel %vm2977, %v2974, %v2570
      %v3009 = vsel %vm2977, %v2976, %v2572
      %vm3010 = vcmask 195584
      %v3012 = vsel %vm3010, %v2979, %v2638
      %v3014 = vsel %vm3010, %v2981, %v2640
      %v3016 = vsel %vm3010, %v2983, %v2642
      %v3018 = vsel %vm3010, %v2985, %v2644
      %v3020 = vsel %vm3010, %v2987, %v2646
      %v3022 = vsel %vm3010, %v2989, %v2648
      %v3024 = vsel %vm3010, %v2991, %v2650
      %v3026 = vsel %vm3010, %v2993, %v2652
      %v3028 = vsel %vm3010, %v2995, %v2654
      %v3030 = vsel %vm3010, %v2997, %v2656
      %v3032 = vsel %vm3010, %v2999, %v2658
      %v3034 = vsel %vm3010, %v3001, %v2660
      %v3036 = vsel %vm3010, %v3003, %v2662
      %v3038 = vsel %vm3010, %v3005, %v2664
      %v3040 = vsel %vm3010, %v3007, %v2666
      %v3042 = vsel %vm3010, %v3009, %v2668
      %vm3043 = vcmask 228352
      %v3045 = vsel %vm3043, %v3012, %v2718
      %v3047 = vsel %vm3043, %v3014, %v2720
      %v3049 = vsel %vm3043, %v3016, %v2722
      %v3051 = vsel %vm3043, %v3018, %v2724
      %v3053 = vsel %vm3043, %v3020, %v2726
      %v3055 = vsel %vm3043, %v3022, %v2728
      %v3057 = vsel %vm3043, %v3024, %v2730
      %v3059 = vsel %vm3043, %v3026, %v2732
      %v3061 = vsel %vm3043, %v3028, %v2734
      %v3063 = vsel %vm3043, %v3030, %v2736
      %v3065 = vsel %vm3043, %v3032, %v2738
      %v3067 = vsel %vm3043, %v3034, %v2740
      %v3069 = vsel %vm3043, %v3036, %v2742
      %v3071 = vsel %vm3043, %v3038, %v2744
      %v3073 = vsel %vm3043, %v3040, %v2746
      %v3075 = vsel %vm3043, %v3042, %v2748
      %vm3076 = vcmask 261120
      %v3078 = vsel %vm3076, %v3045, %v2798
      %v3080 = vsel %vm3076, %v3047, %v2800
      %v3082 = vsel %vm3076, %v3049, %v2802
      %v3084 = vsel %vm3076, %v3051, %v2804
      %v3086 = vsel %vm3076, %v3053, %v2806
      %v3088 = vsel %vm3076, %v3055, %v2808
      %v3090 = vsel %vm3076, %v3057, %v2810
      %v3092 = vsel %vm3076, %v3059, %v2812
      %v3094 = vsel %vm3076, %v3061, %v2814
      %v3096 = vsel %vm3076, %v3063, %v2816
      %v3098 = vsel %vm3076, %v3065, %v2818
      %v3100 = vsel %vm3076, %v3067, %v2820
      %v3102 = vsel %vm3076, %v3069, %v2822
      %v3104 = vsel %vm3076, %v3071, %v2824
      %v3106 = vsel %vm3076, %v3073, %v2826
      %v3108 = vsel %vm3076, %v3075, %v2828
      %v3109 = vld [vmem:[%s1] sm:$0xf]
      %v3110 = vld [vmem:[%s1 + $0x4] sm:$0xf]
      %v3111 = vld [vmem:[%s1 + $0x8] sm:$0xf]
      %v3112 = vld [vmem:[%s1 + $0xc] sm:$0xf]
      %v3113 = vld [vmem:[%s1 + $0x10] sm:$0x3]
      %v3119 = vunpack.c.l.b16 %v3109
      %v3120 = vunpack.c.l.b16 %v3110
      %v3121 = vunpack.c.l.b16 %v3111
      %v3122 = vunpack.c.l.b16 %v3112
      %v3123 = vunpack.c.l.b16 %v3113
      %v3124 = vpack.c.b16 %v3120, %v3119
      %v3125 = vpack.c.b16 %v3122, %v3121
      %v3126 = vpack.c.b16 %v3123, %v3123
      %vm3129 = vcmask 293888
      %v3130 = vsel %vm3129, %v3078, 0
      %v3132 = vsel %vm3129, %v3080, 0
      %v3134 = vsel %vm3129, %v3082, 0
      %v3136 = vsel %vm3129, %v3084, 0
      %v3138 = vsel %vm3129, %v3086, 0
      %v3140 = vsel %vm3129, %v3088, 0
      %v3142 = vsel %vm3129, %v3090, 0
      %v3144 = vsel %vm3129, %v3092, 0
      %v3146 = vsel %vm3129, %v3094, 0
      %v3148 = vsel %vm3129, %v3096, 0
      %v3150 = vsel %vm3129, %v3098, 0
      %v3152 = vsel %vm3129, %v3100, 0
      %v3154 = vsel %vm3129, %v3102, 0
      %v3156 = vsel %vm3129, %v3104, 0
      %v3158 = vsel %vm3129, %v3106, 0
      %v3160 = vsel %vm3129, %v3108, 0
      %vm3162 = vcmask 1041408
      %v3164 = vsel %vm3162, %v3126, 0
      %3166 = vmatpush.bf16.msra.mxu0 0
      %3167 = vmatpush.bf16.msra.mxu0 0
      %3168 = vmatpush.bf16.msra.mxu0 0
      %3169 = vmatpush.bf16.msra.mxu0 0
      %3170 = vmatpush.bf16.msra.mxu0 0
      %3171 = vmatpush.bf16.msra.mxu0 %v3164
      %3172 = vmatpush.bf16.msra.mxu0 %v3125
      %3173 = vmatpush.bf16.msra.mxu0 %v3124
      %3174 = vmatmul.bf16.gmra.mxu0 %v3130
      %v3175 = vpop.f32.mrf.mxu0
      %v3176 = vadd.f32 0.0, %v3175
      %v3177 = vpop.f32.mrf.mxu0
      %v3178 = vadd.f32 0.0, %v3177
      %3179 = vmatmul.bf16.gmra.mxu0 %v3132
      %v3180 = vpop.f32.mrf.mxu0
      %v3181 = vadd.f32 0.0, %v3180
      %v3182 = vpop.f32.mrf.mxu0
      %v3183 = vadd.f32 0.0, %v3182
      %3184 = vmatmul.bf16.gmra.mxu0 %v3134
      %v3185 = vpop.f32.mrf.mxu0
      %v3186 = vadd.f32 0.0, %v3185
      %v3187 = vpop.f32.mrf.mxu0
      %v3188 = vadd.f32 0.0, %v3187
      %3189 = vmatmul.bf16.gmra.mxu0 %v3136
      %v3190 = vpop.f32.mrf.mxu0
      %v3191 = vadd.f32 0.0, %v3190
      %v3192 = vpop.f32.mrf.mxu0
      %v3193 = vadd.f32 0.0, %v3192
      %3194 = vmatmul.bf16.gmra.mxu0 %v3138
      %v3195 = vpop.f32.mrf.mxu0
      %v3196 = vadd.f32 0.0, %v3195
      %v3197 = vpop.f32.mrf.mxu0
      %v3198 = vadd.f32 0.0, %v3197
      %3199 = vmatmul.bf16.gmra.mxu0 %v3140
      %v3200 = vpop.f32.mrf.mxu0
      %v3201 = vadd.f32 0.0, %v3200
      %v3202 = vpop.f32.mrf.mxu0
      %v3203 = vadd.f32 0.0, %v3202
      %3204 = vmatmul.bf16.gmra.mxu0 %v3142
      %v3205 = vpop.f32.mrf.mxu0
      %v3206 = vadd.f32 0.0, %v3205
      %v3207 = vpop.f32.mrf.mxu0
      %v3208 = vadd.f32 0.0, %v3207
      %3209 = vmatmul.bf16.gmra.mxu0 %v3144
      %v3210 = vpop.f32.mrf.mxu0
      %v3211 = vadd.f32 0.0, %v3210
      %v3212 = vpop.f32.mrf.mxu0
      %v3213 = vadd.f32 0.0, %v3212
      %3214 = vmatmul.bf16.gmra.mxu0 %v3146
      %v3215 = vpop.f32.mrf.mxu0
      %v3216 = vadd.f32 0.0, %v3215
      %v3217 = vpop.f32.mrf.mxu0
      %v3218 = vadd.f32 0.0, %v3217
      %3219 = vmatmul.bf16.gmra.mxu0 %v3148
      %v3220 = vpop.f32.mrf.mxu0
      %v3221 = vadd.f32 0.0, %v3220
      %v3222 = vpop.f32.mrf.mxu0
      %v3223 = vadd.f32 0.0, %v3222
      %3224 = vmatmul.bf16.gmra.mxu0 %v3150
      %v3225 = vpop.f32.mrf.mxu0
      %v3226 = vadd.f32 0.0, %v3225
      %v3227 = vpop.f32.mrf.mxu0
      %v3228 = vadd.f32 0.0, %v3227
      %3229 = vmatmul.bf16.gmra.mxu0 %v3152
      %v3230 = vpop.f32.mrf.mxu0
      %v3231 = vadd.f32 0.0, %v3230
      %v3232 = vpop.f32.mrf.mxu0
      %v3233 = vadd.f32 0.0, %v3232
      %3234 = vmatmul.bf16.gmra.mxu0 %v3154
      %v3235 = vpop.f32.mrf.mxu0
      %v3236 = vadd.f32 0.0, %v3235
      %v3237 = vpop.f32.mrf.mxu0
      %v3238 = vadd.f32 0.0, %v3237
      %3239 = vmatmul.bf16.gmra.mxu0 %v3156
      %v3240 = vpop.f32.mrf.mxu0
      %v3241 = vadd.f32 0.0, %v3240
      %v3242 = vpop.f32.mrf.mxu0
      %v3243 = vadd.f32 0.0, %v3242
      %3244 = vmatmul.bf16.gmra.mxu0 %v3158
      %v3245 = vpop.f32.mrf.mxu0
      %v3246 = vadd.f32 0.0, %v3245
      %v3247 = vpop.f32.mrf.mxu0
      %v3248 = vadd.f32 0.0, %v3247
      %3249 = vmatmul.bf16.gmra.mxu0 %v3160
      %v3250 = vpop.f32.mrf.mxu0
      %v3251 = vadd.f32 0.0, %v3250
      %v3252 = vpop.f32.mrf.mxu0
      %v3253 = vadd.f32 0.0, %v3252
      %3254 = vdwg.mxu0
      %v3255 = vld [vmem:[%s2] sm:$0x1]
      %v3257 = vperm.slane %v3255, 0
      %v3259 = vmul.f32 %v3176, %v3257
      %v3260 = vmul.f32 %v3178, %v3257
      %v3261 = vmul.f32 %v3181, %v3257
      %v3262 = vmul.f32 %v3183, %v3257
      %v3263 = vmul.f32 %v3186, %v3257
      %v3264 = vmul.f32 %v3188, %v3257
      %v3265 = vmul.f32 %v3191, %v3257
      %v3266 = vmul.f32 %v3193, %v3257
      %v3267 = vmul.f32 %v3196, %v3257
      %v3268 = vmul.f32 %v3198, %v3257
      %v3269 = vmul.f32 %v3201, %v3257
      %v3270 = vmul.f32 %v3203, %v3257
      %v3271 = vmul.f32 %v3206, %v3257
      %v3272 = vmul.f32 %v3208, %v3257
      %v3273 = vmul.f32 %v3211, %v3257
      %v3274 = vmul.f32 %v3213, %v3257
      %v3275 = vmul.f32 %v3216, %v3257
      %v3276 = vmul.f32 %v3218, %v3257
      %v3277 = vmul.f32 %v3221, %v3257
      %v3278 = vmul.f32 %v3223, %v3257
      %v3279 = vmul.f32 %v3226, %v3257
      %v3280 = vmul.f32 %v3228, %v3257
      %v3281 = vmul.f32 %v3231, %v3257
      %v3282 = vmul.f32 %v3233, %v3257
      %v3283 = vmul.f32 %v3236, %v3257
      %v3284 = vmul.f32 %v3238, %v3257
      %v3285 = vmul.f32 %v3241, %v3257
      %v3286 = vmul.f32 %v3243, %v3257
      %v3287 = vmul.f32 %v3246, %v3257
      %v3288 = vmul.f32 %v3248, %v3257
      %v3289 = vmul.f32 %v3251, %v3257
      %v3290 = vmul.f32 %v3253, %v3257
      %v3291 = vld [vmem:[%s3] sm:$0x1]
      %v3293 = vperm.slane %v3291, 0
      %v3295 = vadd.f32 %v3259, %v3293
      %v3296 = vadd.f32 %v3260, %v3293
      %v3297 = vadd.f32 %v3261, %v3293
      %v3298 = vadd.f32 %v3262, %v3293
      %v3299 = vadd.f32 %v3263, %v3293
      %v3300 = vadd.f32 %v3264, %v3293
      %v3301 = vadd.f32 %v3265, %v3293
      %v3302 = vadd.f32 %v3266, %v3293
      %v3303 = vadd.f32 %v3267, %v3293
      %v3304 = vadd.f32 %v3268, %v3293
      %v3305 = vadd.f32 %v3269, %v3293
      %v3306 = vadd.f32 %v3270, %v3293
      %v3307 = vadd.f32 %v3271, %v3293
      %v3308 = vadd.f32 %v3272, %v3293
      %v3309 = vadd.f32 %v3273, %v3293
      %v3310 = vadd.f32 %v3274, %v3293
      %v3311 = vadd.f32 %v3275, %v3293
      %v3312 = vadd.f32 %v3276, %v3293
      %v3313 = vadd.f32 %v3277, %v3293
      %v3314 = vadd.f32 %v3278, %v3293
      %v3315 = vadd.f32 %v3279, %v3293
      %v3316 = vadd.f32 %v3280, %v3293
      %v3317 = vadd.f32 %v3281, %v3293
      %v3318 = vadd.f32 %v3282, %v3293
      %v3319 = vadd.f32 %v3283, %v3293
      %v3320 = vadd.f32 %v3284, %v3293
      %v3321 = vadd.f32 %v3285, %v3293
      %v3322 = vadd.f32 %v3286, %v3293
      %v3323 = vadd.f32 %v3287, %v3293
      %v3324 = vadd.f32 %v3288, %v3293
      %v3325 = vadd.f32 %v3289, %v3293
      %v3326 = vadd.f32 %v3290, %v3293
      %vm3327 = vcmp.gt.f32.partialorder %v3295, 0.0
      %vm3328 = vcmp.gt.f32.partialorder %v3296, 0.0
      %vm3329 = vcmp.gt.f32.partialorder %v3297, 0.0
      %vm3330 = vcmp.gt.f32.partialorder %v3298, 0.0
      %vm3331 = vcmp.gt.f32.partialorder %v3299, 0.0
      %vm3332 = vcmp.gt.f32.partialorder %v3300, 0.0
      %vm3333 = vcmp.gt.f32.partialorder %v3301, 0.0
      %vm3334 = vcmp.gt.f32.partialorder %v3302, 0.0
      %vm3335 = vcmp.gt.f32.partialorder %v3303, 0.0
      %vm3336 = vcmp.gt.f32.partialorder %v3304, 0.0
      %vm3337 = vcmp.gt.f32.partialorder %v3305, 0.0
      %vm3338 = vcmp.gt.f32.partialorder %v3306, 0.0
      %vm3339 = vcmp.gt.f32.partialorder %v3307, 0.0
      %vm3340 = vcmp.gt.f32.partialorder %v3308, 0.0
      %vm3341 = vcmp.gt.f32.partialorder %v3309, 0.0
      %vm3342 = vcmp.gt.f32.partialorder %v3310, 0.0
      %vm3343 = vcmp.gt.f32.partialorder %v3311, 0.0
      %vm3344 = vcmp.gt.f32.partialorder %v3312, 0.0
      %vm3345 = vcmp.gt.f32.partialorder %v3313, 0.0
      %vm3346 = vcmp.gt.f32.partialorder %v3314, 0.0
      %vm3347 = vcmp.gt.f32.partialorder %v3315, 0.0
      %vm3348 = vcmp.gt.f32.partialorder %v3316, 0.0
      %vm3349 = vcmp.gt.f32.partialorder %v3317, 0.0
      %vm3350 = vcmp.gt.f32.partialorder %v3318, 0.0
      %vm3351 = vcmp.gt.f32.partialorder %v3319, 0.0
      %vm3352 = vcmp.gt.f32.partialorder %v3320, 0.0
      %vm3353 = vcmp.gt.f32.partialorder %v3321, 0.0
      %vm3354 = vcmp.gt.f32.partialorder %v3322, 0.0
      %vm3355 = vcmp.gt.f32.partialorder %v3323, 0.0
      %vm3356 = vcmp.gt.f32.partialorder %v3324, 0.0
      %vm3357 = vcmp.gt.f32.partialorder %v3325, 0.0
      %vm3358 = vcmp.gt.f32.partialorder %v3326, 0.0
      %v3359 = vld [vmem:[%s4] sm:$0x1]
      %v3361 = vperm.slane %v3359, 0
      %v3363 = vmul.f32 %v3361, %v3295
      %v3364 = vmul.f32 %v3361, %v3296
      %v3365 = vmul.f32 %v3361, %v3297
      %v3366 = vmul.f32 %v3361, %v3298
      %v3367 = vmul.f32 %v3361, %v3299
      %v3368 = vmul.f32 %v3361, %v3300
      %v3369 = vmul.f32 %v3361, %v3301
      %v3370 = vmul.f32 %v3361, %v3302
      %v3371 = vmul.f32 %v3361, %v3303
      %v3372 = vmul.f32 %v3361, %v3304
      %v3373 = vmul.f32 %v3361, %v3305
      %v3374 = vmul.f32 %v3361, %v3306
      %v3375 = vmul.f32 %v3361, %v3307
      %v3376 = vmul.f32 %v3361, %v3308
      %v3377 = vmul.f32 %v3361, %v3309
      %v3378 = vmul.f32 %v3361, %v3310
      %v3379 = vmul.f32 %v3361, %v3311
      %v3380 = vmul.f32 %v3361, %v3312
      %v3381 = vmul.f32 %v3361, %v3313
      %v3382 = vmul.f32 %v3361, %v3314
      %v3383 = vmul.f32 %v3361, %v3315
      %v3384 = vmul.f32 %v3361, %v3316
      %v3385 = vmul.f32 %v3361, %v3317
      %v3386 = vmul.f32 %v3361, %v3318
      %v3387 = vmul.f32 %v3361, %v3319
      %v3388 = vmul.f32 %v3361, %v3320
      %v3389 = vmul.f32 %v3361, %v3321
      %v3390 = vmul.f32 %v3361, %v3322
      %v3391 = vmul.f32 %v3361, %v3323
      %v3392 = vmul.f32 %v3361, %v3324
      %v3393 = vmul.f32 %v3361, %v3325
      %v3394 = vmul.f32 %v3361, %v3326
      %v3395 = vsel %vm3327, %v3295, %v3363
      %v3396 = vsel %vm3328, %v3296, %v3364
      %v3397 = vsel %vm3329, %v3297, %v3365
      %v3398 = vsel %vm3330, %v3298, %v3366
      %v3399 = vsel %vm3331, %v3299, %v3367
      %v3400 = vsel %vm3332, %v3300, %v3368
      %v3401 = vsel %vm3333, %v3301, %v3369
      %v3402 = vsel %vm3334, %v3302, %v3370
      %v3403 = vsel %vm3335, %v3303, %v3371
      %v3404 = vsel %vm3336, %v3304, %v3372
      %v3405 = vsel %vm3337, %v3305, %v3373
      %v3406 = vsel %vm3338, %v3306, %v3374
      %v3407 = vsel %vm3339, %v3307, %v3375
      %v3408 = vsel %vm3340, %v3308, %v3376
      %v3409 = vsel %vm3341, %v3309, %v3377
      %v3410 = vsel %vm3342, %v3310, %v3378
      %v3411 = vsel %vm3343, %v3311, %v3379
      %v3412 = vsel %vm3344, %v3312, %v3380
      %v3413 = vsel %vm3345, %v3313, %v3381
      %v3414 = vsel %vm3346, %v3314, %v3382
      %v3415 = vsel %vm3347, %v3315, %v3383
      %v3416 = vsel %vm3348, %v3316, %v3384
      %v3417 = vsel %vm3349, %v3317, %v3385
      %v3418 = vsel %vm3350, %v3318, %v3386
      %v3419 = vsel %vm3351, %v3319, %v3387
      %v3420 = vsel %vm3352, %v3320, %v3388
      %v3421 = vsel %vm3353, %v3321, %v3389
      %v3422 = vsel %vm3354, %v3322, %v3390
      %v3423 = vsel %vm3355, %v3323, %v3391
      %v3424 = vsel %vm3356, %v3324, %v3392
      %v3425 = vsel %vm3357, %v3325, %v3393
      %v3426 = vsel %vm3358, %v3326, %v3394
      %v3427 = vpack.c.bf16 %v3395, %v3395
      %v3428 = vpack.c.bf16 %v3396, %v3396
      %v3429 = vpack.c.bf16 %v3397, %v3397
      %v3430 = vpack.c.bf16 %v3398, %v3398
      %v3431 = vpack.c.bf16 %v3399, %v3399
      %v3432 = vpack.c.bf16 %v3400, %v3400
      %v3433 = vpack.c.bf16 %v3401, %v3401
      %v3434 = vpack.c.bf16 %v3402, %v3402
      %v3435 = vpack.c.bf16 %v3403, %v3403
      %v3436 = vpack.c.bf16 %v3404, %v3404
      %v3437 = vpack.c.bf16 %v3405, %v3405
      %v3438 = vpack.c.bf16 %v3406, %v3406
      %v3439 = vpack.c.bf16 %v3407, %v3407
      %v3440 = vpack.c.bf16 %v3408, %v3408
      %v3441 = vpack.c.bf16 %v3409, %v3409
      %v3442 = vpack.c.bf16 %v3410, %v3410
      %v3443 = vpack.c.bf16 %v3411, %v3411
      %v3444 = vpack.c.bf16 %v3412, %v3412
      %v3445 = vpack.c.bf16 %v3413, %v3413
      %v3446 = vpack.c.bf16 %v3414, %v3414
      %v3447 = vpack.c.bf16 %v3415, %v3415
      %v3448 = vpack.c.bf16 %v3416, %v3416
      %v3449 = vpack.c.bf16 %v3417, %v3417
      %v3450 = vpack.c.bf16 %v3418, %v3418
      %v3451 = vpack.c.bf16 %v3419, %v3419
      %v3452 = vpack.c.bf16 %v3420, %v3420
      %v3453 = vpack.c.bf16 %v3421, %v3421
      %v3454 = vpack.c.bf16 %v3422, %v3422
      %v3455 = vpack.c.bf16 %v3423, %v3423
      %v3456 = vpack.c.bf16 %v3424, %v3424
      %v3457 = vpack.c.bf16 %v3425, %v3425
      %v3458 = vpack.c.bf16 %v3426, %v3426
      %vm3459 = vcmask 60416
      %3460 = vst.msk [vmem:[%s248] sm:$0xf] %vm3459, %v3427
      %3461 = vst.msk [vmem:[%s248 + $0x4] sm:$0xf] %vm3459, %v3428
      %3462 = vst.msk [vmem:[%s248 + $0x8] sm:$0xf] %vm3459, %v3429
      %3463 = vst.msk [vmem:[%s248 + $0xc] sm:$0xf] %vm3459, %v3430
      %3464 = vst.msk [vmem:[%s248 + $0x10] sm:$0xf] %vm3459, %v3431
      %3465 = vst.msk [vmem:[%s248 + $0x14] sm:$0xf] %vm3459, %v3432
      %3466 = vst.msk [vmem:[%s248 + $0x18] sm:$0xf] %vm3459, %v3433
      %3467 = vst.msk [vmem:[%s248 + $0x1c] sm:$0xf] %vm3459, %v3434
      %3468 = vst.msk [vmem:[%s248 + $0x20] sm:$0xf] %vm3459, %v3435
      %3469 = vst.msk [vmem:[%s248 + $0x24] sm:$0xf] %vm3459, %v3436
      %3470 = vst.msk [vmem:[%s248 + $0x28] sm:$0xf] %vm3459, %v3437
      %3471 = vst.msk [vmem:[%s248 + $0x2c] sm:$0xf] %vm3459, %v3438
      %3472 = vst.msk [vmem:[%s248 + $0x30] sm:$0xf] %vm3459, %v3439
      %3473 = vst.msk [vmem:[%s248 + $0x34] sm:$0xf] %vm3459, %v3440
      %3474 = vst.msk [vmem:[%s248 + $0x38] sm:$0xf] %vm3459, %v3441
      %3475 = vst.msk [vmem:[%s248 + $0x3c] sm:$0xf] %vm3459, %v3442
      %3476 = vst.msk [vmem:[%s248 + $0x40] sm:$0xf] %vm3459, %v3443
      %3477 = vst.msk [vmem:[%s248 + $0x44] sm:$0xf] %vm3459, %v3444
      %3478 = vst.msk [vmem:[%s248 + $0x48] sm:$0xf] %vm3459, %v3445
      %3479 = vst.msk [vmem:[%s248 + $0x4c] sm:$0xf] %vm3459, %v3446
      %3480 = vst.msk [vmem:[%s248 + $0x50] sm:$0xf] %vm3459, %v3447
      %3481 = vst.msk [vmem:[%s248 + $0x54] sm:$0xf] %vm3459, %v3448
      %3482 = vst.msk [vmem:[%s248 + $0x58] sm:$0xf] %vm3459, %v3449
      %3483 = vst.msk [vmem:[%s248 + $0x5c] sm:$0xf] %vm3459, %v3450
      %3484 = vst.msk [vmem:[%s248 + $0x60] sm:$0xf] %vm3459, %v3451
      %3485 = vst.msk [vmem:[%s248 + $0x64] sm:$0xf] %vm3459, %v3452
      %3486 = vst.msk [vmem:[%s248 + $0x68] sm:$0xf] %vm3459, %v3453
      %3487 = vst.msk [vmem:[%s248 + $0x6c] sm:$0xf] %vm3459, %v3454
      %3488 = vst.msk [vmem:[%s248 + $0x70] sm:$0xf] %vm3459, %v3455
      %3489 = vst.msk [vmem:[%s248 + $0x74] sm:$0xf] %vm3459, %v3456
      %3490 = vst.msk [vmem:[%s248 + $0x78] sm:$0xf] %vm3459, %v3457
      %3491 = vst.msk [vmem:[%s248 + $0x7c] sm:$0xf] %vm3459, %v3458
      %s3492 = smul.u32 16, %s21
      %p3493 = scmp.lt.s32.totalorder %s20, 1
      %s3494 = scalar_select %p3493, %s20, 1
      %p3495 = scmp.lt.s32.totalorder %s3492, 15
      %s3496 = scalar_select %p3495, %s3492, 15
      %s3497 = smul.addr %s3496, 2
      %s3498 = smul.addr %s3494, 32
      %s3499 = sadd.s32 %s3497, %s3498
      %s3500 = smul.addr %s3499, 4
      %s3501 = scalar_lea.vmem %s5, %s3500
      // Predicated region
      $region41: #{tpu_custom_call.1} parent=39 // pred_check
        %p3502 = pneg %p158
      $region42: #{tpu_custom_call.1} parent=39 // pred_check_branch
        %3504 = sbr.rel (%p3502) target = $region44
      $region43: #{tpu_custom_call.1} parent=39 // pred_region
        %s3505 = smul.u32 16, %s21
      $region44: #{tpu_custom_call.1} parent=39 // pred_fallthru
        _
    $region40: #{tpu_custom_call.1} parent=5 // pred_fallthru
      _
    %p3506 = scmp.le.s32.totalorder 2, %s11
    // Predicated region
    $region45: #{tpu_custom_call.1} parent=5 // pred_check
      %p3507 = pneg %p3506
    $region46: #{tpu_custom_call.1} parent=5 // pred_check_branch
      %3509 = sbr.rel (%p3507) target = $region48
    $region47: #{tpu_custom_call.1} parent=5 // pred_region
      %s3510 = ssub.s32 %s11, 2
      // Predicated region
      $region49: #{tpu_custom_call.1} parent=47 // pred_check
        %p3511 = pneg %p164
      $region50: #{tpu_custom_call.1} parent=47 // pred_check_branch
        %3513 = sbr.rel (%p3511) target = $region52
      $region51: #{tpu_custom_call.1} parent=47 // pred_region
        %s3514 = smul.u32 16, %s23
        %p3515 = scmp.lt.s32.totalorder %s22, 1
        %s3516 = scalar_select %p3515, %s22, 1
        %p3517 = scmp.lt.s32.totalorder %s3514, 15
        %s3518 = scalar_select %p3517, %s3514, 15
        %s3519 = smul.addr %s3518, 2
        %s3520 = smul.addr %s3516, 32
        %s3521 = sadd.s32 %s3519, %s3520
        %s3522 = smul.addr %s3521, 4
        %s3523 = scalar_lea.vmem %s5, %s3522
      $region52: #{tpu_custom_call.1} parent=47 // pred_fallthru
        _
    $region48: #{tpu_custom_call.1} parent=5 // pred_fallthru
      _
  $region6: #{tpu_custom_call.1} parent=0 // loop_footer
    %s15 = sadd.s32 1, %s11
  $region7: #{tpu_custom_call.1} parent=0 // loop_footer_branch
    %10 = sbr.rel target = $region3
  $region8: #{tpu_custom_call.1} parent=0 // loop_exit
    _

// kernel: tpu_custom_call.1
$region0: #{tpu_custom_call.1}
  #allocation0 [shape = 'u32[]', space=smem, size = 0x4, offset = 0x4, fixed_abs, tag = 'smem constant byte address 0x4 - core index']
  #allocation1 [shape = 'u32[72,128]{1,0:T(1,128)}', space=vmem, size = 0x9000, scoped, tag = 'internal scratch']
  %s0 = inlined_call_operand.vmem [shape: bf16[2,18,18,4], index: 0, kind: input, shape index: {}]
  %s1 = inlined_call_operand.vmem [shape: bf16[36,8], index: 1, kind: input, shape index: {}]
  %s2 = inlined_call_operand.vmem [shape: f32[1,8], index: 2, kind: input, shape index: {}]
  %s3 = inlined_call_operand.vmem [shape: f32[1,8], index: 3, kind: input, shape index: {}]
  %s4 = inlined_call_operand.vmem [shape: f32[1,8], index: 4, kind: input, shape index: {}]
  %s5 = inlined_call_operand.vmem [shape: bf16[2,16,16,8], index: 5, kind: output, shape index: {}]
  %s6 = sld [smem:[#allocation0]]
  $region53: #{tpu_custom_call.1} parent=0
    _
  %s8 = ssub.s32 1, %s6
  %s9 = scalar_select 0, %s8, %s6
  loop: start=0, step=1, limit=4
  $region2: #{tpu_custom_call.1} parent=0 // loop_pre_header
    _
  $region3: #{tpu_custom_call.1} parent=0 // loop_header
    %s11 = sphi 0, %s15
    %p12 = scmp.ge.s32.totalorder %s11, 4
    %s18 = sphi 0, %s30
    %s19 = sphi 0, %s26
    %s20 = sphi 0, %s18
    %s21 = sphi 0, %s19
    %s22 = sphi 0, %s20
    %s23 = sphi 0, %s21
    %s33 = sphi 0, %s35
    %s36 = sphi 0, %s33
    %s37 = sphi 0, %s36
    %s53 = sphi 0, %s37
    %s57 = sphi 0, %s57
    %s59 = sphi 0, %s57
    %s60 = sphi 0, %s59
    %s74 = sphi 0, %s60
    %s78 = sphi 0, %s78
    %s80 = sphi 0, %s78
    %s81 = sphi 0, %s80
    %s95 = sphi 0, %s81
    %s99 = sphi 0, %s99
    %s101 = sphi 0, %s99
    %s102 = sphi 0, %s101
    %s116 = sphi 0, %s102
    %s120 = sphi 0, %s120
    %s122 = sphi 0, %s120
    %s123 = sphi 0, %s122
    %s137 = sphi 0, %s123
    %s145 = sphi 0, %s147
    %s148 = sphi 0, %s145
    %s149 = sphi 0, %s148
    %s165 = sphi 0, %s149
  $region4: #{tpu_custom_call.1} parent=0 // loop_header_branch
    %14 = sbr.rel (%p12) target = $region8
  $region5: #{tpu_custom_call.1} parent=0 // loop_body
    %s16 = ssub.s32 %s11, 1
    %s17 = ssub.s32 %s11, 2
    %s24 = sadd.s32 1, %s19
    %p25 = scmp.ge.s32.totalorder %s24, 1
    %s26 = scalar_select %p25, 0, %s24
    %s27 = sadd.s32 1, %s18
    %s28 = scalar_select %p25, %s27, %s18
    %p29 = scmp.ge.s32.totalorder %s28, 2
    %s30 = scalar_select %p29, 0, %s28
    %s31 = ssub.s32 %s18, %s30
    %p32 = scmp.eq.s32.totalorder %s31, 0
    %s34 = sadd.s32 %s33, 1
    %s35 = scalar_select %p32, %s33, %s34
    %p38 = pneg %p32
    %p39 = scmp.eq.s32.totalorder %s11, 1
    %p40 = por %p38, %p39
    %p41 = scmp.ne.s32.totalorder %s33, %s36
    %p42 = scmp.eq.s32.totalorder %s11, 0
    %p43 = por %p41, %p42
    %p44 = scmp.ne.s32.totalorder %s33, %s36
    %p45 = scmp.eq.s32.totalorder %s16, 1
    %p46 = por %p44, %p45
    %p47 = scmp.ne.s32.totalorder %s36, %s37
    %p48 = scmp.eq.s32.totalorder %s16, 0
    %p49 = por %p47, %p48
    %p50 = scmp.ne.s32.totalorder %s36, %s37
    %p51 = scmp.eq.s32.totalorder %s17, 1
    %p52 = por %p50, %p51
    %p54 = scmp.ne.s32.totalorder %s37, %s53
    %p55 = scmp.eq.s32.totalorder %s17, 0
    %p56 = por %p54, %p55
    %s58 = sadd.s32 %s57, 1
    %p61 = scmp.eq.s32.totalorder %s11, 1
    %p62 = scmp.ne.s32.totalorder %s57, %s59
    %p63 = scmp.eq.s32.totalorder %s11, 0
    %p64 = por %p62, %p63
    %p65 = scmp.ne.s32.totalorder %s57, %s59
    %p66 = scmp.eq.s32.totalorder %s16, 1
    %p67 = por %p65, %p66
    %p68 = scmp.ne.s32.totalorder %s59, %s60
    %p69 = scmp.eq.s32.totalorder %s16, 0
    %p70 = por %p68, %p69
    %p71 = scmp.ne.s32.totalorder %s59, %s60
    %p72 = scmp.eq.s32.totalorder %s17, 1
    %p73 = por %p71, %p72
    %p75 = scmp.ne.s32.totalorder %s60, %s74
    %p76 = scmp.eq.s32.totalorder %s17, 0
    %p77 = por %p75, %p76
    %s79 = sadd.s32 %s78, 1
    %p82 = scmp.eq.s32.totalorder %s11, 1
    %p83 = scmp.ne.s32.totalorder %s78, %s80
    %p84 = scmp.eq.s32.totalorder %s11, 0
    %p85 = por %p83, %p84
    %p86 = scmp.ne.s32.totalorder %s78, %s80
    %p87 = scmp.eq.s32.totalorder %s16, 1
    %p88 = por %p86, %p87
    %p89 = scmp.ne.s32.totalorder %s80, %s81
    %p90 = scmp.eq.s32.totalorder %s16, 0
    %p91 = por %p89, %p90
    %p92 = scmp.ne.s32.totalorder %s80, %s81
    %p93 = scmp.eq.s32.totalorder %s17, 1
    %p94 = por %p92, %p93
    %p96 = scmp.ne.s32.totalorder %s81, %s95
    %p97 = scmp.eq.s32.totalorder %s17, 0
    %p98 = por %p96, %p97
    %s100 = sadd.s32 %s99, 1
    %p103 = scmp.eq.s32.totalorder %s11, 1
    %p104 = scmp.ne.s32.totalorder %s99, %s101
    %p105 = scmp.eq.s32.totalorder %s11, 0
    %p106 = por %p104, %p105
    %p107 = scmp.ne.s32.totalorder %s99, %s101
    %p108 = scmp.eq.s32.totalorder %s16, 1
    %p109 = por %p107, %p108
    %p110 = scmp.ne.s32.totalorder %s101, %s102
    %p111 = scmp.eq.s32.totalorder %s16, 0
    %p112 = por %p110, %p111
    %p113 = scmp.ne.s32.totalorder %s101, %s102
    %p114 = scmp.eq.s32.totalorder %s17, 1
    %p115 = por %p113, %p114
    %p117 = scmp.ne.s32.totalorder %s102, %s116
    %p118 = scmp.eq.s32.totalorder %s17, 0
    %p119 = por %p117, %p118
    %s121 = sadd.s32 %s120, 1
    %p124 = scmp.eq.s32.totalorder %s11, 1
    %p125 = scmp.ne.s32.totalorder %s120, %s122
    %p126 = scmp.eq.s32.totalorder %s11, 0
    %p127 = por %p125, %p126
    %p128 = scmp.ne.s32.totalorder %s120, %s122
    %p129 = scmp.eq.s32.totalorder %s16, 1
    %p130 = por %p128, %p129
    %p131 = scmp.ne.s32.totalorder %s122, %s123
    %p132 = scmp.eq.s32.totalorder %s16, 0
    %p133 = por %p131, %p132
    %p134 = scmp.ne.s32.totalorder %s122, %s123
    %p135 = scmp.eq.s32.totalorder %s17, 1
    %p136 = por %p134, %p135
    %p138 = scmp.ne.s32.totalorder %s123, %s137
    %p139 = scmp.eq.s32.totalorder %s17, 0
    %p140 = por %p138, %p139
    %s141 = ssub.s32 %s18, %s30
    %s142 = ssub.s32 %s19, %s26
    %s143 = sor.u32 %s141, %s142
    %p144 = scmp.eq.s32.totalorder %s143, 0
    %s146 = sadd.s32 %s145, 1
    %s147 = scalar_select %p144, %s145, %s146
    %p150 = pneg %p144
    %p151 = scmp.eq.s32.totalorder %s11, 1
    %p152 = por %p150, %p151
    %p153 = scmp.ne.s32.totalorder %s145, %s148
    %p154 = scmp.eq.s32.totalorder %s11, 0
    %p155 = por %p153, %p154
    %p156 = scmp.ne.s32.totalorder %s145, %s148
    %p157 = scmp.eq.s32.totalorder %s16, 1
    %p158 = por %p156, %p157
    %p159 = scmp.ne.s32.totalorder %s148, %s149
    %p160 = scmp.eq.s32.totalorder %s16, 0
    %p161 = por %p159, %p160
    %p162 = scmp.ne.s32.totalorder %s148, %s149
    %p163 = scmp.eq.s32.totalorder %s17, 1
    %p164 = por %p162, %p163
    %p166 = scmp.ne.s32.totalorder %s149, %s165
    %p167 = scmp.eq.s32.totalorder %s17, 0
    %p168 = por %p166, %p167
    %p169 = scmp.le.s32.totalorder 1, %s11
    %p170 = scmp.lt.s32.totalorder %s11, 3
    %p171 = pnand %p169, %p170
    %p172 = pneg %p171
    // Predicated region
    $region9: #{tpu_custom_call.1} parent=5 // pred_check
      _
    $region10: #{tpu_custom_call.1} parent=5 // pred_check_branch
      %174 = sbr.rel (%p171) target = $region12
    $region11: #{tpu_custom_call.1} parent=5 // pred_region
      %s175 = ssub.s32 %s11, 1
      // Predicated region
      $region13: #{tpu_custom_call.1} parent=11 // pred_check
        %p176 = pneg %p70
      $region14: #{tpu_custom_call.1} parent=11 // pred_check_branch
        %178 = sbr.rel (%p176) target = $region16
      $region15: #{tpu_custom_call.1} parent=11 // pred_region
        _
      $region16: #{tpu_custom_call.1} parent=11 // pred_fallthru
        _
      // Predicated region
      $region17: #{tpu_custom_call.1} parent=11 // pred_check
        %p179 = pneg %p91
      $region18: #{tpu_custom_call.1} parent=11 // pred_check_branch
        %181 = sbr.rel (%p179) target = $region20
      $region19: #{tpu_custom_call.1} parent=11 // pred_region
        _
      $region20: #{tpu_custom_call.1} parent=11 // pred_fallthru
        _
      // Predicated region
      $region21: #{tpu_custom_call.1} parent=11 // pred_check
        %p182 = pneg %p112
      $region22: #{tpu_custom_call.1} parent=11 // pred_check_branch
        %184 = sbr.rel (%p182) target = $region24
      $region23: #{tpu_custom_call.1} parent=11 // pred_region
        _
      $region24: #{tpu_custom_call.1} parent=11 // pred_fallthru
        _
      // Predicated region
      $region25: #{tpu_custom_call.1} parent=11 // pred_check
        %p185 = pneg %p133
      $region26: #{tpu_custom_call.1} parent=11 // pred_check_branch
        %187 = sbr.rel (%p185) target = $region28
      $region27: #{tpu_custom_call.1} parent=11 // pred_region
        _
      $region28: #{tpu_custom_call.1} parent=11 // pred_fallthru
        _
    $region12: #{tpu_custom_call.1} parent=5 // pred_fallthru
      _
    %p188 = scmp.lt.s32.totalorder %s11, 2
    // Predicated region
    $region29: #{tpu_custom_call.1} parent=5 // pred_check
      %p189 = pneg %p188
    $region30: #{tpu_custom_call.1} parent=5 // pred_check_branch
      %191 = sbr.rel (%p189) target = $region32
    $region31: #{tpu_custom_call.1} parent=5 // pred_region
      // Predicated region
      $region33: #{tpu_custom_call.1} parent=31 // pred_check
        %p192 = pneg %p43
      $region34: #{tpu_custom_call.1} parent=31 // pred_check_branch
        %194 = sbr.rel (%p192) target = $region36
      $region35: #{tpu_custom_call.1} parent=31 // pred_region
        %p195 = scmp.lt.s32.totalorder %s18, 1
        %s196 = scalar_select %p195, %s18, 1
        %s197 = smul.addr %s196, 54
        %s198 = smul.addr %s197, 4
        %s199 = scalar_lea.vmem %s0, %s198
      $region36: #{tpu_custom_call.1} parent=31 // pred_fallthru
        _
    $region32: #{tpu_custom_call.1} parent=5 // pred_fallthru
      _
    %p200 = scmp.le.s32.totalorder 1, %s11
    %p201 = scmp.lt.s32.totalorder %s11, 3
    %p202 = pnand %p200, %p201
    %p203 = pneg %p202
    // Predicated region
    $region37: #{tpu_custom_call.1} parent=5 // pred_check
      _
    $region38: #{tpu_custom_call.1} parent=5 // pred_check_branch
      %205 = sbr.rel (%p202) target = $region40
    $region39: #{tpu_custom_call.1} parent=5 // pred_region
      %s206 = ssub.s32 %s11, 1
      %p207 = scmp.lt.s32.totalorder %s20, 1
      %s208 = scalar_select %p207, %s20, 1
      %s209 = smul.addr %s208, 54
      %s210 = smul.addr %s209, 4
      %s211 = scalar_lea.vmem %s0, %s210
      %p212 = pneg %p49
      %p213 = pneg %p46
      %p214 = pneg %p70
      %p215 = pneg %p67
      %p216 = pneg %p91
      %p217 = pneg %p88
      %p218 = pneg %p112
      %p219 = pneg %p109
      %p220 = pneg %p133
      %p221 = pneg %p130
      %p222 = pneg %p161
      %p223 = pneg %p158
      %s224 = smul.u32 16, %s21
      %p225 = scmp.lt.s32.totalorder %s20, 1
      %s226 = scalar_select %p225, %s20, 1
      %p227 = scmp.lt.s32.totalorder %s224, 15
      %s228 = scalar_select %p227, %s224, 15
      %s229 = smul.addr %s228, 2
      %s230 = smul.addr %s226, 32
      %s231 = sadd.s32 %s229, %s230
      %s232 = smul.addr %s231, 4
      %s233 = scalar_lea.vmem %s5, %s232
      %p234 = scmp.lt.s32.totalorder %s20, 1
      %s235 = scalar_select %p234, %s20, 1
      %s236 = smul.addr %s235, 54
      %s237 = smul.addr %s236, 4
      %s238 = scalar_lea.vmem %s0, %s237
      %s239 = smul.u32 16, %s21
      %p240 = scmp.lt.s32.totalorder %s20, 1
      %s241 = scalar_select %p240, %s20, 1
      %p242 = scmp.lt.s32.totalorder %s239, 15
      %s243 = scalar_select %p242, %s239, 15
      %s244 = smul.addr %s243, 2
      %s245 = smul.addr %s241, 32
      %s246 = sadd.s32 %s244, %s245
      %s247 = smul.addr %s246, 4
      %s248 = scalar_lea.vmem %s5, %s247
      %s249 = smul.u32 16, %s21
      %s251 = smul.u32 %s21, 16
      %s252 = smul.u32 %s251, 3
      %s253 = smul.addr %s252, 4
      %s254 = scalar_lea.vmem %s238, %s253
      %v255 = vld [vmem:[%s254] sm:$0xf]
      %v256 = vld [vmem:[%s254 + $0x4] sm:$0xf]
      %v257 = vld [vmem:[%s254 + $0xc] sm:$0xf]
      %v258 = vld [vmem:[%s254 + $0x10] sm:$0xf]
      %v259 = vld [vmem:[%s254 + $0x18] sm:$0xf]
      %v260 = vld [vmem:[%s254 + $0x1c] sm:$0xf]
      %v261 = vld [vmem:[%s254 + $0x24] sm:$0xf]
      %v262 = vld [vmem:[%s254 + $0x28] sm:$0xf]
      %v263 = vld [vmem:[%s254 + $0x30] sm:$0xf]
      %v264 = vld [vmem:[%s254 + $0x34] sm:$0xf]
      %v265 = vld [vmem:[%s254 + $0x3c] sm:$0xf]
      %v266 = vld [vmem:[%s254 + $0x40] sm:$0xf]
      %v267 = vld [vmem:[%s254 + $0x48] sm:$0xf]
      %v268 = vld [vmem:[%s254 + $0x4c] sm:$0xf]
      %v269 = vld [vmem:[%s254 + $0x54] sm:$0xf]
      %v270 = vld [vmem:[%s254 + $0x58] sm:$0xf]
      %v271 = vld [vmem:[%s254 + $0x60] sm:$0xf]
      %v272 = vld [vmem:[%s254 + $0x64] sm:$0xf]
      %v273 = vld [vmem:[%s254 + $0x6c] sm:$0xf]
      %v274 = vld [vmem:[%s254 + $0x70] sm:$0xf]
      %v275 = vld [vmem:[%s254 + $0x78] sm:$0xf]
      %v276 = vld [vmem:[%s254 + $0x7c] sm:$0xf]
      %v277 = vld [vmem:[%s254 + $0x84] sm:$0xf]
      %v278 = vld [vmem:[%s254 + $0x88] sm:$0xf]
      %v279 = vld [vmem:[%s254 + $0x90] sm:$0xf]
      %v280 = vld [vmem:[%s254 + $0x94] sm:$0xf]
      %v281 = vld [vmem:[%s254 + $0x9c] sm:$0xf]
      %v282 = vld [vmem:[%s254 + $0xa0] sm:$0xf]
      %v283 = vld [vmem:[%s254 + $0xa8] sm:$0xf]
      %v284 = vld [vmem:[%s254 + $0xac] sm:$0xf]
      %v285 = vld [vmem:[%s254 + $0xb4] sm:$0xf]
      %v286 = vld [vmem:[%s254 + $0xb8] sm:$0xf]
      %v287 = vld [vmem:[%s1] sm:$0x3]
      %v288 = vld [vmem:[%s254 + $0x8] sm:$0x1]
      %v289 = vld [vmem:[%s254 + $0x14] sm:$0x1]
      %v290 = vld [vmem:[%s254 + $0x20] sm:$0x1]
      %v291 = vld [vmem:[%s254 + $0x2c] sm:$0x1]
      %v292 = vld [vmem:[%s254 + $0x38] sm:$0x1]
      %v293 = vld [vmem:[%s254 + $0x44] sm:$0x1]
      %v294 = vld [vmem:[%s254 + $0x50] sm:$0x1]
      %v295 = vld [vmem:[%s254 + $0x5c] sm:$0x1]
      %v296 = vld [vmem:[%s254 + $0x68] sm:$0x1]
      %v297 = vld [vmem:[%s254 + $0x74] sm:$0x1]
      %v298 = vld [vmem:[%s254 + $0x80] sm:$0x1]
      %v299 = vld [vmem:[%s254 + $0x8c] sm:$0x1]
      %v300 = vld [vmem:[%s254 + $0x98] sm:$0x1]
      %v301 = vld [vmem:[%s254 + $0xa4] sm:$0x1]
      %v302 = vld [vmem:[%s254 + $0xb0] sm:$0x1]
      %v303 = vld [vmem:[%s254 + $0xbc] sm:$0x1]
      %vm304 = vsmask.f32 3328
      %vm305 = vsmask.f32 7440
      %vm306 = vmor %vm304, %vm305
      %v308 = vshrl.u32 %v255, 16
      %v310 = vrot.slane %v308, 4
      %v311 = vshll.u32 %v255, 16
      %v313 = vrot.slane %v311, 5
      %v314 = vor.u32 %v310, %v313
      %v315 = vrot.slane %v314, 4
      %v317 = vshll.u32 %v256, 16
      %v319 = vrot.slane %v317, 5
      %v320 = vsel %vm306, %v315, %v319
      %v321 = vshrl.u32 %v256, 16
      %v323 = vrot.slane %v321, 4
      %v324 = vor.u32 %v323, %v319
      %v325 = vrot.slane %v324, 4
      %v327 = vshll.u32 %v288, 16
      %v329 = vrot.slane %v327, 5
      %v330 = vsel %vm306, %v325, %v329
      %v332 = vshrl.u32 %v257, 16
      %v334 = vrot.slane %v332, 4
      %v335 = vshll.u32 %v257, 16
      %v337 = vrot.slane %v335, 5
      %v338 = vor.u32 %v334, %v337
      %v339 = vrot.slane %v338, 4
      %v341 = vshll.u32 %v258, 16
      %v343 = vrot.slane %v341, 5
      %v344 = vsel %vm306, %v339, %v343
      %v345 = vshrl.u32 %v258, 16
      %v347 = vrot.slane %v345, 4
      %v348 = vor.u32 %v347, %v343
      %v349 = vrot.slane %v348, 4
      %v351 = vshll.u32 %v289, 16
      %v353 = vrot.slane %v351, 5
      %v354 = vsel %vm306, %v349, %v353
      %v356 = vshrl.u32 %v259, 16
      %v358 = vrot.slane %v356, 4
      %v359 = vshll.u32 %v259, 16
      %v361 = vrot.slane %v359, 5
      %v362 = vor.u32 %v358, %v361
      %v363 = vrot.slane %v362, 4
      %v365 = vshll.u32 %v260, 16
      %v367 = vrot.slane %v365, 5
      %v368 = vsel %vm306, %v363, %v367
      %v369 = vshrl.u32 %v260, 16
      %v371 = vrot.slane %v369, 4
      %v372 = vor.u32 %v371, %v367
      %v373 = vrot.slane %v372, 4
      %v375 = vshll.u32 %v290, 16
      %v377 = vrot.slane %v375, 5
      %v378 = vsel %vm306, %v373, %v377
      %v380 = vshrl.u32 %v261, 16
      %v382 = vrot.slane %v380, 4
      %v383 = vshll.u32 %v261, 16
      %v385 = vrot.slane %v383, 5
      %v386 = vor.u32 %v382, %v385
      %v387 = vrot.slane %v386, 4
      %v389 = vshll.u32 %v262, 16
      %v391 = vrot.slane %v389, 5
      %v392 = vsel %vm306, %v387, %v391
      %v393 = vshrl.u32 %v262, 16
      %v395 = vrot.slane %v393, 4
      %v396 = vor.u32 %v395, %v391
      %v397 = vrot.slane %v396, 4
      %v399 = vshll.u32 %v291, 16
      %v401 = vrot.slane %v399, 5
      %v402 = vsel %vm306, %v397, %v401
      %v404 = vshrl.u32 %v263, 16
      %v406 = vrot.slane %v404, 4
      %v407 = vshll.u32 %v263, 16
      %v409 = vrot.slane %v407, 5
      %v410 = vor.u32 %v406, %v409
      %v411 = vrot.slane %v410, 4
      %v413 = vshll.u32 %v264, 16
      %v415 = vrot.slane %v413, 5
      %v416 = vsel %vm306, %v411, %v415
      %v417 = vshrl.u32 %v264, 16
      %v419 = vrot.slane %v417, 4
      %v420 = vor.u32 %v419, %v415
      %v421 = vrot.slane %v420, 4
      %v423 = vshll.u32 %v292, 16
      %v425 = vrot.slane %v423, 5
      %v426 = vsel %vm306, %v421, %v425
      %v428 = vshrl.u32 %v265, 16
      %v430 = vrot.slane %v428, 4
      %v431 = vshll.u32 %v265, 16
      %v433 = vrot.slane %v431, 5
      %v434 = vor.u32 %v430, %v433
      %v435 = vrot.slane %v434, 4
      %v437 = vshll.u32 %v266, 16
      %v439 = vrot.slane %v437, 5
      %v440 = vsel %vm306, %v435, %v439
      %v441 = vshrl.u32 %v266, 16
      %v443 = vrot.slane %v441, 4
      %v444 = vor.u32 %v443, %v439
      %v445 = vrot.slane %v444, 4
      %v447 = vshll.u32 %v293, 16
      %v449 = vrot.slane %v447, 5
      %v450 = vsel %vm306, %v445, %v449
      %v452 = vshrl.u32 %v267, 16
      %v454 = vrot.slane %v452, 4
      %v455 = vshll.u32 %v267, 16
      %v457 = vrot.slane %v455, 5
      %v458 = vor.u32 %v454, %v457
      %v459 = vrot.slane %v458, 4
      %v461 = vshll.u32 %v268, 16
      %v463 = vrot.slane %v461, 5
      %v464 = vsel %vm306, %v459, %v463
      %v465 = vshrl.u32 %v268, 16
      %v467 = vrot.slane %v465, 4
      %v468 = vor.u32 %v467, %v463
      %v469 = vrot.slane %v468, 4
      %v471 = vshll.u32 %v294, 16
      %v473 = vrot.slane %v471, 5
      %v474 = vsel %vm306, %v469, %v473
      %v476 = vshrl.u32 %v269, 16
      %v478 = vrot.slane %v476, 4
      %v479 = vshll.u32 %v269, 16
      %v481 = vrot.slane %v479, 5
      %v482 = vor.u32 %v478, %v481
      %v483 = vrot.slane %v482, 4
      %v485 = vshll.u32 %v270, 16
      %v487 = vrot.slane %v485, 5
      %v488 = vsel %vm306, %v483, %v487
      %v489 = vshrl.u32 %v270, 16
      %v491 = vrot.slane %v489, 4
      %v492 = vor.u32 %v491, %v487
      %v493 = vrot.slane %v492, 4
      %v495 = vshll.u32 %v295, 16
      %v497 = vrot.slane %v495, 5
      %v498 = vsel %vm306, %v493, %v497
      %v500 = vshrl.u32 %v271, 16
      %v502 = vrot.slane %v500, 4
      %v503 = vshll.u32 %v271, 16
      %v505 = vrot.slane %v503, 5
      %v506 = vor.u32 %v502, %v505
      %v507 = vrot.slane %v506, 4
      %v509 = vshll.u32 %v272, 16
      %v511 = vrot.slane %v509, 5
      %v512 = vsel %vm306, %v507, %v511
      %v513 = vshrl.u32 %v272, 16
      %v515 = vrot.slane %v513, 4
      %v516 = vor.u32 %v515, %v511
      %v517 = vrot.slane %v516, 4
      %v519 = vshll.u32 %v296, 16
      %v521 = vrot.slane %v519, 5
      %v522 = vsel %vm306, %v517, %v521
      %v524 = vshrl.u32 %v273, 16
      %v526 = vrot.slane %v524, 4
      %v527 = vshll.u32 %v273, 16
      %v529 = vrot.slane %v527, 5
      %v530 = vor.u32 %v526, %v529
      %v531 = vrot.slane %v530, 4
      %v533 = vshll.u32 %v274, 16
      %v535 = vrot.slane %v533, 5
      %v536 = vsel %vm306, %v531, %v535
      %v537 = vshrl.u32 %v274, 16
      %v539 = vrot.slane %v537, 4
      %v540 = vor.u32 %v539, %v535
      %v541 = vrot.slane %v540, 4
      %v543 = vshll.u32 %v297, 16
      %v545 = vrot.slane %v543, 5
      %v546 = vsel %vm306, %v541, %v545
      %v548 = vshrl.u32 %v275, 16
      %v550 = vrot.slane %v548, 4
      %v551 = vshll.u32 %v275, 16
      %v553 = vrot.slane %v551, 5
      %v554 = vor.u32 %v550, %v553
      %v555 = vrot.slane %v554, 4
      %v557 = vshll.u32 %v276, 16
      %v559 = vrot.slane %v557, 5
      %v560 = vsel %vm306, %v555, %v559
      %v561 = vshrl.u32 %v276, 16
      %v563 = vrot.slane %v561, 4
      %v564 = vor.u32 %v563, %v559
      %v565 = vrot.slane %v564, 4
      %v567 = vshll.u32 %v298, 16
      %v569 = vrot.slane %v567, 5
      %v570 = vsel %vm306, %v565, %v569
      %v572 = vshrl.u32 %v277, 16
      %v574 = vrot.slane %v572, 4
      %v575 = vshll.u32 %v277, 16
      %v577 = vrot.slane %v575, 5
      %v578 = vor.u32 %v574, %v577
      %v579 = vrot.slane %v578, 4
      %v581 = vshll.u32 %v278, 16
      %v583 = vrot.slane %v581, 5
      %v584 = vsel %vm306, %v579, %v583
      %v585 = vshrl.u32 %v278, 16
      %v587 = vrot.slane %v585, 4
      %v588 = vor.u32 %v587, %v583
      %v589 = vrot.slane %v588, 4
      %v591 = vshll.u32 %v299, 16
      %v593 = vrot.slane %v591, 5
      %v594 = vsel %vm306, %v589, %v593
      %v596 = vshrl.u32 %v279, 16
      %v598 = vrot.slane %v596, 4
      %v599 = vshll.u32 %v279, 16
      %v601 = vrot.slane %v599, 5
      %v602 = vor.u32 %v598, %v601
      %v603 = vrot.slane %v602, 4
      %v605 = vshll.u32 %v280, 16
      %v607 = vrot.slane %v605, 5
      %v608 = vsel %vm306, %v603, %v607
      %v609 = vshrl.u32 %v280, 16
      %v611 = vrot.slane %v609, 4
      %v612 = vor.u32 %v611, %v607
      %v613 = vrot.slane %v612, 4
      %v615 = vshll.u32 %v300, 16
      %v617 = vrot.slane %v615, 5
      %v618 = vsel %vm306, %v613, %v617
      %v620 = vshrl.u32 %v281, 16
      %v622 = vrot.slane %v620, 4
      %v623 = vshll.u32 %v281, 16
      %v625 = vrot.slane %v623, 5
      %v626 = vor.u32 %v622, %v625
      %v627 = vrot.slane %v626, 4
      %v629 = vshll.u32 %v282, 16
      %v631 = vrot.slane %v629, 5
      %v632 = vsel %vm306, %v627, %v631
      %v633 = vshrl.u32 %v282, 16
      %v635 = vrot.slane %v633, 4
      %v636 = vor.u32 %v635, %v631
      %v637 = vrot.slane %v636, 4
      %v639 = vshll.u32 %v301, 16
      %v641 = vrot.slane %v639, 5
      %v642 = vsel %vm306, %v637, %v641
      %v644 = vshrl.u32 %v283, 16
      %v646 = vrot.slane %v644, 4
      %v647 = vshll.u32 %v283, 16
      %v649 = vrot.slane %v647, 5
      %v650 = vor.u32 %v646, %v649
      %v651 = vrot.slane %v650, 4
      %v653 = vshll.u32 %v284, 16
      %v655 = vrot.slane %v653, 5
      %v656 = vsel %vm306, %v651, %v655
      %v657 = vshrl.u32 %v284, 16
      %v659 = vrot.slane %v657, 4
      %v660 = vor.u32 %v659, %v655
      %v661 = vrot.slane %v660, 4
      %v663 = vshll.u32 %v302, 16
      %v665 = vrot.slane %v663, 5
      %v666 = vsel %vm306, %v661, %v665
      %v668 = vshrl.u32 %v285, 16
      %v670 = vrot.slane %v668, 4
      %v671 = vshll.u32 %v285, 16
      %v673 = vrot.slane %v671, 5
      %v674 = vor.u32 %v670, %v673
      %v675 = vrot.slane %v674, 4
      %v677 = vshll.u32 %v286, 16
      %v679 = vrot.slane %v677, 5
      %v680 = vsel %vm306, %v675, %v679
      %v681 = vshrl.u32 %v286, 16
      %v683 = vrot.slane %v681, 4
      %v684 = vor.u32 %v683, %v679
      %v685 = vrot.slane %v684, 4
      %v687 = vshll.u32 %v303, 16
      %v689 = vrot.slane %v687, 5
      %v690 = vsel %vm306, %v685, %v689
      %v691 = vld [vmem:[%s1] sm:$0xc]
      %v692 = vunpack.c.l.b16 %v320
      %v693 = vunpack.c.l.b16 %v330
      %v694 = vunpack.c.l.b16 %v344
      %v695 = vunpack.c.l.b16 %v354
      %v696 = vunpack.c.l.b16 %v368
      %v697 = vunpack.c.l.b16 %v378
      %v698 = vunpack.c.l.b16 %v392
      %v699 = vunpack.c.l.b16 %v402
      %v700 = vunpack.c.l.b16 %v416
      %v701 = vunpack.c.l.b16 %v426
      %v702 = vunpack.c.l.b16 %v440
      %v703 = vunpack.c.l.b16 %v450
      %v704 = vunpack.c.l.b16 %v464
      %v705 = vunpack.c.l.b16 %v474
      %v706 = vunpack.c.l.b16 %v488
      %v707 = vunpack.c.l.b16 %v498
      %v708 = vunpack.c.l.b16 %v512
      %v709 = vunpack.c.l.b16 %v522
      %v710 = vunpack.c.l.b16 %v536
      %v711 = vunpack.c.l.b16 %v546
      %v712 = vunpack.c.l.b16 %v560
      %v713 = vunpack.c.l.b16 %v570
      %v714 = vunpack.c.l.b16 %v584
      %v715 = vunpack.c.l.b16 %v594
      %v716 = vunpack.c.l.b16 %v608
      %v717 = vunpack.c.l.b16 %v618
      %v718 = vunpack.c.l.b16 %v632
      %v719 = vunpack.c.l.b16 %v642
      %v720 = vunpack.c.l.b16 %v656
      %v721 = vunpack.c.l.b16 %v666
      %v722 = vunpack.c.l.b16 %v680
      %v723 = vunpack.c.l.b16 %v690
      %v724 = vpack.c.b16 %v693, %v692
      %v725 = vpack.c.b16 %v695, %v694
      %v726 = vpack.c.b16 %v697, %v696
      %v727 = vpack.c.b16 %v699, %v698
      %v728 = vpack.c.b16 %v701, %v700
      %v729 = vpack.c.b16 %v703, %v702
      %v730 = vpack.c.b16 %v705, %v704
      %v731 = vpack.c.b16 %v707, %v706
      %v732 = vpack.c.b16 %v709, %v708
      %v733 = vpack.c.b16 %v711, %v710
      %v734 = vpack.c.b16 %v713, %v712
      %v735 = vpack.c.b16 %v715, %v714
      %v736 = vpack.c.b16 %v717, %v716
      %v737 = vpack.c.b16 %v719, %v718
      %v738 = vpack.c.b16 %v721, %v720
      %v739 = vpack.c.b16 %v723, %v722
      %v741 = vunpack.c.l.b16 %v691
      %v742 = vpack.c.b16 %v741, %v741
      %v743 = vrot.slane %v742, 2
      %vm744 = vcmask 31744
      %v746 = vsel %vm744, %v724, 0
      %v749 = vsel %vm744, %v725, 0
      %v752 = vsel %vm744, %v726, 0
      %v755 = vsel %vm744, %v727, 0
      %v758 = vsel %vm744, %v728, 0
      %v761 = vsel %vm744, %v729, 0
      %v764 = vsel %vm744, %v730, 0
      %v767 = vsel %vm744, %v731, 0
      %v770 = vsel %vm744, %v732, 0
      %v773 = vsel %vm744, %v733, 0
      %v776 = vsel %vm744, %v734, 0
      %v779 = vsel %vm744, %v735, 0
      %v782 = vsel %vm744, %v736, 0
      %v785 = vsel %vm744, %v737, 0
      %v788 = vsel %vm744, %v738, 0
      %v791 = vsel %vm744, %v739, 0
      %vm793 = vcmask 1041408
      %v795 = vsel %vm793, %v743, 0
      %797 = vmatpush.bf16.msra.mxu0 0
      %798 = vmatpush.bf16.msra.mxu0 0
      %799 = vmatpush.bf16.msra.mxu0 0
      %800 = vmatpush.bf16.msra.mxu0 0
      %801 = vmatpush.bf16.msra.mxu0 0
      %802 = vmatpush.bf16.msra.mxu0 0
      %803 = vmatpush.bf16.msra.mxu0 0
      %804 = vmatpush.bf16.msra.mxu0 %v795
      %805 = vmatmul.bf16.gmra.mxu0 %v746
      %v806 = vpop.f32.mrf.mxu0
      %v807 = vadd.f32 0.0, %v806
      %v808 = vpop.f32.mrf.mxu0
      %v809 = vadd.f32 0.0, %v808
      %810 = vmatmul.bf16.gmra.mxu0 %v749
      %v811 = vpop.f32.mrf.mxu0
      %v812 = vadd.f32 0.0, %v811
      %v813 = vpop.f32.mrf.mxu0
      %v814 = vadd.f32 0.0, %v813
      %815 = vmatmul.bf16.gmra.mxu0 %v752
      %v816 = vpop.f32.mrf.mxu0
      %v817 = vadd.f32 0.0, %v816
      %v818 = vpop.f32.mrf.mxu0
      %v819 = vadd.f32 0.0, %v818
      %820 = vmatmul.bf16.gmra.mxu0 %v755
      %v821 = vpop.f32.mrf.mxu0
      %v822 = vadd.f32 0.0, %v821
      %v823 = vpop.f32.mrf.mxu0
      %v824 = vadd.f32 0.0, %v823
      %825 = vmatmul.bf16.gmra.mxu0 %v758
      %v826 = vpop.f32.mrf.mxu0
      %v827 = vadd.f32 0.0, %v826
      %v828 = vpop.f32.mrf.mxu0
      %v829 = vadd.f32 0.0, %v828
      %830 = vmatmul.bf16.gmra.mxu0 %v761
      %v831 = vpop.f32.mrf.mxu0
      %v832 = vadd.f32 0.0, %v831
      %v833 = vpop.f32.mrf.mxu0
      %v834 = vadd.f32 0.0, %v833
      %835 = vmatmul.bf16.gmra.mxu0 %v764
      %v836 = vpop.f32.mrf.mxu0
      %v837 = vadd.f32 0.0, %v836
      %v838 = vpop.f32.mrf.mxu0
      %v839 = vadd.f32 0.0, %v838
      %840 = vmatmul.bf16.gmra.mxu0 %v767
      %v841 = vpop.f32.mrf.mxu0
      %v842 = vadd.f32 0.0, %v841
      %v843 = vpop.f32.mrf.mxu0
      %v844 = vadd.f32 0.0, %v843
      %845 = vmatmul.bf16.gmra.mxu0 %v770
      %v846 = vpop.f32.mrf.mxu0
      %v847 = vadd.f32 0.0, %v846
      %v848 = vpop.f32.mrf.mxu0
      %v849 = vadd.f32 0.0, %v848
      %850 = vmatmul.bf16.gmra.mxu0 %v773
      %v851 = vpop.f32.mrf.mxu0
      %v852 = vadd.f32 0.0, %v851
      %v853 = vpop.f32.mrf.mxu0
      %v854 = vadd.f32 0.0, %v853
      %855 = vmatmul.bf16.gmra.mxu0 %v776
      %v856 = vpop.f32.mrf.mxu0
      %v857 = vadd.f32 0.0, %v856
      %v858 = vpop.f32.mrf.mxu0
      %v859 = vadd.f32 0.0, %v858
      %860 = vmatmul.bf16.gmra.mxu0 %v779
      %v861 = vpop.f32.mrf.mxu0
      %v862 = vadd.f32 0.0, %v861
      %v863 = vpop.f32.mrf.mxu0
      %v864 = vadd.f32 0.0, %v863
      %865 = vmatmul.bf16.gmra.mxu0 %v782
      %v866 = vpop.f32.mrf.mxu0
      %v867 = vadd.f32 0.0, %v866
      %v868 = vpop.f32.mrf.mxu0
      %v869 = vadd.f32 0.0, %v868
      %870 = vmatmul.bf16.gmra.mxu0 %v785
      %v871 = vpop.f32.mrf.mxu0
      %v872 = vadd.f32 0.0, %v871
      %v873 = vpop.f32.mrf.mxu0
      %v874 = vadd.f32 0.0, %v873
      %875 = vmatmul.bf16.gmra.mxu0 %v788
      %v876 = vpop.f32.mrf.mxu0
      %v877 = vadd.f32 0.0, %v876
      %v878 = vpop.f32.mrf.mxu0
      %v879 = vadd.f32 0.0, %v878
      %880 = vmatmul.bf16.gmra.mxu0 %v791
      %v881 = vpop.f32.mrf.mxu0
      %v882 = vadd.f32 0.0, %v881
      %v883 = vpop.f32.mrf.mxu0
      %v884 = vadd.f32 0.0, %v883
      %885 = vdwg.mxu0
      %v918 = vunpack.c.l.b16 %v255
      %v919 = vunpack.c.l.b16 %v256
      %v920 = vunpack.c.l.b16 %v257
      %v921 = vunpack.c.l.b16 %v258
      %v922 = vunpack.c.l.b16 %v259
      %v923 = vunpack.c.l.b16 %v260
      %v924 = vunpack.c.l.b16 %v261
      %v925 = vunpack.c.l.b16 %v262
      %v926 = vunpack.c.l.b16 %v263
      %v927 = vunpack.c.l.b16 %v264
      %v928 = vunpack.c.l.b16 %v265
      %v929 = vunpack.c.l.b16 %v266
      %v930 = vunpack.c.l.b16 %v267
      %v931 = vunpack.c.l.b16 %v268
      %v932 = vunpack.c.l.b16 %v269
      %v933 = vunpack.c.l.b16 %v270
      %v934 = vunpack.c.l.b16 %v271
      %v935 = vunpack.c.l.b16 %v272
      %v936 = vunpack.c.l.b16 %v273
      %v937 = vunpack.c.l.b16 %v274
      %v938 = vunpack.c.l.b16 %v275
      %v939 = vunpack.c.l.b16 %v276
      %v940 = vunpack.c.l.b16 %v277
      %v941 = vunpack.c.l.b16 %v278
      %v942 = vunpack.c.l.b16 %v279
      %v943 = vunpack.c.l.b16 %v280
      %v944 = vunpack.c.l.b16 %v281
      %v945 = vunpack.c.l.b16 %v282
      %v946 = vunpack.c.l.b16 %v283
      %v947 = vunpack.c.l.b16 %v284
      %v948 = vunpack.c.l.b16 %v285
      %v949 = vunpack.c.l.b16 %v286
      %v950 = vpack.c.b16 %v919, %v918
      %v951 = vpack.c.b16 %v921, %v920
      %v952 = vpack.c.b16 %v923, %v922
      %v953 = vpack.c.b16 %v925, %v924
      %v954 = vpack.c.b16 %v927, %v926
      %v955 = vpack.c.b16 %v929, %v928
      %v956 = vpack.c.b16 %v931, %v930
      %v957 = vpack.c.b16 %v933, %v932
      %v958 = vpack.c.b16 %v935, %v934
      %v959 = vpack.c.b16 %v937, %v936
      %v960 = vpack.c.b16 %v939, %v938
      %v961 = vpack.c.b16 %v941, %v940
      %v962 = vpack.c.b16 %v943, %v942
      %v963 = vpack.c.b16 %v945, %v944
      %v964 = vpack.c.b16 %v947, %v946
      %v965 = vpack.c.b16 %v949, %v948
      %v967 = vsel %vm744, %v950, 0
      %v970 = vsel %vm744, %v951, 0
      %v973 = vsel %vm744, %v952, 0
      %v976 = vsel %vm744, %v953, 0
      %v979 = vsel %vm744, %v954, 0
      %v982 = vsel %vm744, %v955, 0
      %v985 = vsel %vm744, %v956, 0
      %v988 = vsel %vm744, %v957, 0
      %v991 = vsel %vm744, %v958, 0
      %v994 = vsel %vm744, %v959, 0
      %v997 = vsel %vm744, %v960, 0
      %v1000 = vsel %vm744, %v961, 0
      %v1003 = vsel %vm744, %v962, 0
      %v1006 = vsel %vm744, %v963, 0
      %v1009 = vsel %vm744, %v964, 0
      %v1012 = vsel %vm744, %v965, 0
      %v1015 = vsel %vm793, %v287, 0
      %1017 = vmatpush.bf16.msra.mxu0 0
      %1018 = vmatpush.bf16.msra.mxu0 0
      %1019 = vmatpush.bf16.msra.mxu0 0
      %1020 = vmatpush.bf16.msra.mxu0 0
      %1021 = vmatpush.bf16.msra.mxu0 0
      %1022 = vmatpush.bf16.msra.mxu0 0
      %1023 = vmatpush.bf16.msra.mxu0 0
      %1024 = vmatpush.bf16.msra.mxu0 %v1015
      %1025 = vmatmul.bf16.gmra.mxu0 %v967
      %v1026 = vpop.f32.mrf.mxu0
      %v1027 = vadd.f32 %v807, %v1026
      %v1028 = vpop.f32.mrf.mxu0
      %v1029 = vadd.f32 %v809, %v1028
      %1030 = vmatmul.bf16.gmra.mxu0 %v970
      %v1031 = vpop.f32.mrf.mxu0
      %v1032 = vadd.f32 %v812, %v1031
      %v1033 = vpop.f32.mrf.mxu0
      %v1034 = vadd.f32 %v814, %v1033
      %1035 = vmatmul.bf16.gmra.mxu0 %v973
      %v1036 = vpop.f32.mrf.mxu0
      %v1037 = vadd.f32 %v817, %v1036
      %v1038 = vpop.f32.mrf.mxu0
      %v1039 = vadd.f32 %v819, %v1038
      %1040 = vmatmul.bf16.gmra.mxu0 %v976
      %v1041 = vpop.f32.mrf.mxu0
      %v1042 = vadd.f32 %v822, %v1041
      %v1043 = vpop.f32.mrf.mxu0
      %v1044 = vadd.f32 %v824, %v1043
      %1045 = vmatmul.bf16.gmra.mxu0 %v979
      %v1046 = vpop.f32.mrf.mxu0
      %v1047 = vadd.f32 %v827, %v1046
      %v1048 = vpop.f32.mrf.mxu0
      %v1049 = vadd.f32 %v829, %v1048
      %1050 = vmatmul.bf16.gmra.mxu0 %v982
      %v1051 = vpop.f32.mrf.mxu0
      %v1052 = vadd.f32 %v832, %v1051
      %v1053 = vpop.f32.mrf.mxu0
      %v1054 = vadd.f32 %v834, %v1053
      %1055 = vmatmul.bf16.gmra.mxu0 %v985
      %v1056 = vpop.f32.mrf.mxu0
      %v1057 = vadd.f32 %v837, %v1056
      %v1058 = vpop.f32.mrf.mxu0
      %v1059 = vadd.f32 %v839, %v1058
      %1060 = vmatmul.bf16.gmra.mxu0 %v988
      %v1061 = vpop.f32.mrf.mxu0
      %v1062 = vadd.f32 %v842, %v1061
      %v1063 = vpop.f32.mrf.mxu0
      %v1064 = vadd.f32 %v844, %v1063
      %1065 = vmatmul.bf16.gmra.mxu0 %v991
      %v1066 = vpop.f32.mrf.mxu0
      %v1067 = vadd.f32 %v847, %v1066
      %v1068 = vpop.f32.mrf.mxu0
      %v1069 = vadd.f32 %v849, %v1068
      %1070 = vmatmul.bf16.gmra.mxu0 %v994
      %v1071 = vpop.f32.mrf.mxu0
      %v1072 = vadd.f32 %v852, %v1071
      %v1073 = vpop.f32.mrf.mxu0
      %v1074 = vadd.f32 %v854, %v1073
      %1075 = vmatmul.bf16.gmra.mxu0 %v997
      %v1076 = vpop.f32.mrf.mxu0
      %v1077 = vadd.f32 %v857, %v1076
      %v1078 = vpop.f32.mrf.mxu0
      %v1079 = vadd.f32 %v859, %v1078
      %1080 = vmatmul.bf16.gmra.mxu0 %v1000
      %v1081 = vpop.f32.mrf.mxu0
      %v1082 = vadd.f32 %v862, %v1081
      %v1083 = vpop.f32.mrf.mxu0
      %v1084 = vadd.f32 %v864, %v1083
      %1085 = vmatmul.bf16.gmra.mxu0 %v1003
      %v1086 = vpop.f32.mrf.mxu0
      %v1087 = vadd.f32 %v867, %v1086
      %v1088 = vpop.f32.mrf.mxu0
      %v1089 = vadd.f32 %v869, %v1088
      %1090 = vmatmul.bf16.gmra.mxu0 %v1006
      %v1091 = vpop.f32.mrf.mxu0
      %v1092 = vadd.f32 %v872, %v1091
      %v1093 = vpop.f32.mrf.mxu0
      %v1094 = vadd.f32 %v874, %v1093
      %1095 = vmatmul.bf16.gmra.mxu0 %v1009
      %v1096 = vpop.f32.mrf.mxu0
      %v1097 = vadd.f32 %v877, %v1096
      %v1098 = vpop.f32.mrf.mxu0
      %v1099 = vadd.f32 %v879, %v1098
      %1100 = vmatmul.bf16.gmra.mxu0 %v1012
      %v1101 = vpop.f32.mrf.mxu0
      %v1102 = vadd.f32 %v882, %v1101
      %v1103 = vpop.f32.mrf.mxu0
      %v1104 = vadd.f32 %v884, %v1103
      %1105 = vdwg.mxu0
      %v1106 = vld [vmem:[%s254] sm:$0xe]
      %v1107 = vld [vmem:[%s254 + $0xc] sm:$0xe]
      %v1108 = vld [vmem:[%s254 + $0x18] sm:$0xe]
      %v1109 = vld [vmem:[%s254 + $0x24] sm:$0xe]
      %v1110 = vld [vmem:[%s254 + $0x30] sm:$0xe]
      %v1111 = vld [vmem:[%s254 + $0x3c] sm:$0xe]
      %v1112 = vld [vmem:[%s254 + $0x48] sm:$0xe]
      %v1113 = vld [vmem:[%s254 + $0x54] sm:$0xe]
      %v1114 = vld [vmem:[%s254 + $0x60] sm:$0xe]
      %v1115 = vld [vmem:[%s254 + $0x6c] sm:$0xe]
      %v1116 = vld [vmem:[%s254 + $0x78] sm:$0xe]
      %v1117 = vld [vmem:[%s254 + $0x84] sm:$0xe]
      %v1118 = vld [vmem:[%s254 + $0x90] sm:$0xe]
      %v1119 = vld [vmem:[%s254 + $0x9c] sm:$0xe]
      %v1120 = vld [vmem:[%s254 + $0xa8] sm:$0xe]
      %v1121 = vld [vmem:[%s254 + $0xb4] sm:$0xe]
      %vm1154 = vcmask 1042432
      %vm1155 = vcmask 1046532
      %vm1156 = vmor %vm1154, %vm1155
      %v1157 = vrot.slane %v1106, 5
      %v1158 = vrot.slane %v1157, 4
      %v1159 = vrot.slane %v256, 5
      %v1160 = vsel %vm1156, %v1158, %v1159
      %v1161 = vrot.slane %v1159, 4
      %v1162 = vrot.slane %v288, 5
      %v1163 = vsel %vm1156, %v1161, %v1162
      %v1164 = vrot.slane %v1107, 5
      %v1165 = vrot.slane %v1164, 4
      %v1166 = vrot.slane %v258, 5
      %v1167 = vsel %vm1156, %v1165, %v1166
      %v1168 = vrot.slane %v1166, 4
      %v1169 = vrot.slane %v289, 5
      %v1170 = vsel %vm1156, %v1168, %v1169
      %v1171 = vrot.slane %v1108, 5
      %v1172 = vrot.slane %v1171, 4
      %v1173 = vrot.slane %v260, 5
      %v1174 = vsel %vm1156, %v1172, %v1173
      %v1175 = vrot.slane %v1173, 4
      %v1176 = vrot.slane %v290, 5
      %v1177 = vsel %vm1156, %v1175, %v1176
      %v1178 = vrot.slane %v1109, 5
      %v1179 = vrot.slane %v1178, 4
      %v1180 = vrot.slane %v262, 5
      %v1181 = vsel %vm1156, %v1179, %v1180
      %v1182 = vrot.slane %v1180, 4
      %v1183 = vrot.slane %v291, 5
      %v1184 = vsel %vm1156, %v1182, %v1183
      %v1185 = vrot.slane %v1110, 5
      %v1186 = vrot.slane %v1185, 4
      %v1187 = vrot.slane %v264, 5
      %v1188 = vsel %vm1156, %v1186, %v1187
      %v1189 = vrot.slane %v1187, 4
      %v1190 = vrot.slane %v292, 5
      %v1191 = vsel %vm1156, %v1189, %v1190
      %v1192 = vrot.slane %v1111, 5
      %v1193 = vrot.slane %v1192, 4
      %v1194 = vrot.slane %v266, 5
      %v1195 = vsel %vm1156, %v1193, %v1194
      %v1196 = vrot.slane %v1194, 4
      %v1197 = vrot.slane %v293, 5
      %v1198 = vsel %vm1156, %v1196, %v1197
      %v1199 = vrot.slane %v1112, 5
      %v1200 = vrot.slane %v1199, 4
      %v1201 = vrot.slane %v268, 5
      %v1202 = vsel %vm1156, %v1200, %v1201
      %v1203 = vrot.slane %v1201, 4
      %v1204 = vrot.slane %v294, 5
      %v1205 = vsel %vm1156, %v1203, %v1204
      %v1206 = vrot.slane %v1113, 5
      %v1207 = vrot.slane %v1206, 4
      %v1208 = vrot.slane %v270, 5
      %v1209 = vsel %vm1156, %v1207, %v1208
      %v1210 = vrot.slane %v1208, 4
      %v1211 = vrot.slane %v295, 5
      %v1212 = vsel %vm1156, %v1210, %v1211
      %v1213 = vrot.slane %v1114, 5
      %v1214 = vrot.slane %v1213, 4
      %v1215 = vrot.slane %v272, 5
      %v1216 = vsel %vm1156, %v1214, %v1215
      %v1217 = vrot.slane %v1215, 4
      %v1218 = vrot.slane %v296, 5
      %v1219 = vsel %vm1156, %v1217, %v1218
      %v1220 = vrot.slane %v1115, 5
      %v1221 = vrot.slane %v1220, 4
      %v1222 = vrot.slane %v274, 5
      %v1223 = vsel %vm1156, %v1221, %v1222
      %v1224 = vrot.slane %v1222, 4
      %v1225 = vrot.slane %v297, 5
      %v1226 = vsel %vm1156, %v1224, %v1225
      %v1227 = vrot.slane %v1116, 5
      %v1228 = vrot.slane %v1227, 4
      %v1229 = vrot.slane %v276, 5
      %v1230 = vsel %vm1156, %v1228, %v1229
      %v1231 = vrot.slane %v1229, 4
      %v1232 = vrot.slane %v298, 5
      %v1233 = vsel %vm1156, %v1231, %v1232
      %v1234 = vrot.slane %v1117, 5
      %v1235 = vrot.slane %v1234, 4
      %v1236 = vrot.slane %v278, 5
      %v1237 = vsel %vm1156, %v1235, %v1236
      %v1238 = vrot.slane %v1236, 4
      %v1239 = vrot.slane %v299, 5
      %v1240 = vsel %vm1156, %v1238, %v1239
      %v1241 = vrot.slane %v1118, 5
      %v1242 = vrot.slane %v1241, 4
      %v1243 = vrot.slane %v280, 5
      %v1244 = vsel %vm1156, %v1242, %v1243
      %v1245 = vrot.slane %v1243, 4
      %v1246 = vrot.slane %v300, 5
      %v1247 = vsel %vm1156, %v1245, %v1246
      %v1248 = vrot.slane %v1119, 5
      %v1249 = vrot.slane %v1248, 4
      %v1250 = vrot.slane %v282, 5
      %v1251 = vsel %vm1156, %v1249, %v1250
      %v1252 = vrot.slane %v1250, 4
      %v1253 = vrot.slane %v301, 5
      %v1254 = vsel %vm1156, %v1252, %v1253
      %v1255 = vrot.slane %v1120, 5
      %v1256 = vrot.slane %v1255, 4
      %v1257 = vrot.slane %v284, 5
      %v1258 = vsel %vm1156, %v1256, %v1257
      %v1259 = vrot.slane %v1257, 4
      %v1260 = vrot.slane %v302, 5
      %v1261 = vsel %vm1156, %v1259, %v1260
      %v1262 = vrot.slane %v1121, 5
      %v1263 = vrot.slane %v1262, 4
      %v1264 = vrot.slane %v286, 5
      %v1265 = vsel %vm1156, %v1263, %v1264
      %v1266 = vrot.slane %v1264, 4
      %v1267 = vrot.slane %v303, 5
      %v1268 = vsel %vm1156, %v1266, %v1267
      %v1269 = vld [vmem:[%s1 + $0x4] sm:$0x3]
      %v1270 = vunpack.c.l.b16 %v1160
      %v1271 = vunpack.c.l.b16 %v1163
      %v1272 = vunpack.c.l.b16 %v1167
      %v1273 = vunpack.c.l.b16 %v1170
      %v1274 = vunpack.c.l.b16 %v1174
      %v1275 = vunpack.c.l.b16 %v1177
      %v1276 = vunpack.c.l.b16 %v1181
      %v1277 = vunpack.c.l.b16 %v1184
      %v1278 = vunpack.c.l.b16 %v1188
      %v1279 = vunpack.c.l.b16 %v1191
      %v1280 = vunpack.c.l.b16 %v1195
      %v1281 = vunpack.c.l.b16 %v1198
      %v1282 = vunpack.c.l.b16 %v1202
      %v1283 = vunpack.c.l.b16 %v1205
      %v1284 = vunpack.c.l.b16 %v1209
      %v1285 = vunpack.c.l.b16 %v1212
      %v1286 = vunpack.c.l.b16 %v1216
      %v1287 = vunpack.c.l.b16 %v1219
      %v1288 = vunpack.c.l.b16 %v1223
      %v1289 = vunpack.c.l.b16 %v1226
      %v1290 = vunpack.c.l.b16 %v1230
      %v1291 = vunpack.c.l.b16 %v1233
      %v1292 = vunpack.c.l.b16 %v1237
      %v1293 = vunpack.c.l.b16 %v1240
      %v1294 = vunpack.c.l.b16 %v1244
      %v1295 = vunpack.c.l.b16 %v1247
      %v1296 = vunpack.c.l.b16 %v1251
      %v1297 = vunpack.c.l.b16 %v1254
      %v1298 = vunpack.c.l.b16 %v1258
      %v1299 = vunpack.c.l.b16 %v1261
      %v1300 = vunpack.c.l.b16 %v1265
      %v1301 = vunpack.c.l.b16 %v1268
      %v1302 = vpack.c.b16 %v1271, %v1270
      %v1303 = vpack.c.b16 %v1273, %v1272
      %v1304 = vpack.c.b16 %v1275, %v1274
      %v1305 = vpack.c.b16 %v1277, %v1276
      %v1306 = vpack.c.b16 %v1279, %v1278
      %v1307 = vpack.c.b16 %v1281, %v1280
      %v1308 = vpack.c.b16 %v1283, %v1282
      %v1309 = vpack.c.b16 %v1285, %v1284
      %v1310 = vpack.c.b16 %v1287, %v1286
      %v1311 = vpack.c.b16 %v1289, %v1288
      %v1312 = vpack.c.b16 %v1291, %v1290
      %v1313 = vpack.c.b16 %v1293, %v1292
      %v1314 = vpack.c.b16 %v1295, %v1294
      %v1315 = vpack.c.b16 %v1297, %v1296
      %v1316 = vpack.c.b16 %v1299, %v1298
      %v1317 = vpack.c.b16 %v1301, %v1300
      %v1319 = vsel %vm744, %v1302, 0
      %v1322 = vsel %vm744, %v1303, 0
      %v1325 = vsel %vm744, %v1304, 0
      %v1328 = vsel %vm744, %v1305, 0
      %v1331 = vsel %vm744, %v1306, 0
      %v1334 = vsel %vm744, %v1307, 0
      %v1337 = vsel %vm744, %v1308, 0
      %v1340 = vsel %vm744, %v1309, 0
      %v1343 = vsel %vm744, %v1310, 0
      %v1346 = vsel %vm744, %v1311, 0
      %v1349 = vsel %vm744, %v1312, 0
      %v1352 = vsel %vm744, %v1313, 0
      %v1355 = vsel %vm744, %v1314, 0
      %v1358 = vsel %vm744, %v1315, 0
      %v1361 = vsel %vm744, %v1316, 0
      %v1364 = vsel %vm744, %v1317, 0
      %v1367 = vsel %vm793, %v1269, 0
      %1369 = vmatpush.bf16.msra.mxu0 0
      %1370 = vmatpush.bf16.msra.mxu0 0
      %1371 = vmatpush.bf16.msra.mxu0 0
      %1372 = vmatpush.bf16.msra.mxu0 0
      %1373 = vmatpush.bf16.msra.mxu0 0
      %1374 = vmatpush.bf16.msra.mxu0 0
      %1375 = vmatpush.bf16.msra.mxu0 0
      %1376 = vmatpush.bf16.msra.mxu0 %v1367
      %1377 = vmatmul.bf16.gmra.mxu0 %v1319
      %v1378 = vpop.f32.mrf.mxu0
      %v1379 = vadd.f32 0.0, %v1378
      %v1380 = vpop.f32.mrf.mxu0
      %v1381 = vadd.f32 0.0, %v1380
      %1382 = vmatmul.bf16.gmra.mxu0 %v1322
      %v1383 = vpop.f32.mrf.mxu0
      %v1384 = vadd.f32 0.0, %v1383
      %v1385 = vpop.f32.mrf.mxu0
      %v1386 = vadd.f32 0.0, %v1385
      %1387 = vmatmul.bf16.gmra.mxu0 %v1325
      %v1388 = vpop.f32.mrf.mxu0
      %v1389 = vadd.f32 0.0, %v1388
      %v1390 = vpop.f32.mrf.mxu0
      %v1391 = vadd.f32 0.0, %v1390
      %1392 = vmatmul.bf16.gmra.mxu0 %v1328
      %v1393 = vpop.f32.mrf.mxu0
      %v1394 = vadd.f32 0.0, %v1393
      %v1395 = vpop.f32.mrf.mxu0
      %v1396 = vadd.f32 0.0, %v1395
      %1397 = vmatmul.bf16.gmra.mxu0 %v1331
      %v1398 = vpop.f32.mrf.mxu0
      %v1399 = vadd.f32 0.0, %v1398
      %v1400 = vpop.f32.mrf.mxu0
      %v1401 = vadd.f32 0.0, %v1400
      %1402 = vmatmul.bf16.gmra.mxu0 %v1334
      %v1403 = vpop.f32.mrf.mxu0
      %v1404 = vadd.f32 0.0, %v1403
      %v1405 = vpop.f32.mrf.mxu0
      %v1406 = vadd.f32 0.0, %v1405
      %1407 = vmatmul.bf16.gmra.mxu0 %v1337
      %v1408 = vpop.f32.mrf.mxu0
      %v1409 = vadd.f32 0.0, %v1408
      %v1410 = vpop.f32.mrf.mxu0
      %v1411 = vadd.f32 0.0, %v1410
      %1412 = vmatmul.bf16.gmra.mxu0 %v1340
      %v1413 = vpop.f32.mrf.mxu0
      %v1414 = vadd.f32 0.0, %v1413
      %v1415 = vpop.f32.mrf.mxu0
      %v1416 = vadd.f32 0.0, %v1415
      %1417 = vmatmul.bf16.gmra.mxu0 %v1343
      %v1418 = vpop.f32.mrf.mxu0
      %v1419 = vadd.f32 0.0, %v1418
      %v1420 = vpop.f32.mrf.mxu0
      %v1421 = vadd.f32 0.0, %v1420
      %1422 = vmatmul.bf16.gmra.mxu0 %v1346
      %v1423 = vpop.f32.mrf.mxu0
      %v1424 = vadd.f32 0.0, %v1423
      %v1425 = vpop.f32.mrf.mxu0
      %v1426 = vadd.f32 0.0, %v1425
      %1427 = vmatmul.bf16.gmra.mxu0 %v1349
      %v1428 = vpop.f32.mrf.mxu0
      %v1429 = vadd.f32 0.0, %v1428
      %v1430 = vpop.f32.mrf.mxu0
      %v1431 = vadd.f32 0.0, %v1430
      %1432 = vmatmul.bf16.gmra.mxu0 %v1352
      %v1433 = vpop.f32.mrf.mxu0
      %v1434 = vadd.f32 0.0, %v1433
      %v1435 = vpop.f32.mrf.mxu0
      %v1436 = vadd.f32 0.0, %v1435
      %1437 = vmatmul.bf16.gmra.mxu0 %v1355
      %v1438 = vpop.f32.mrf.mxu0
      %v1439 = vadd.f32 0.0, %v1438
      %v1440 = vpop.f32.mrf.mxu0
      %v1441 = vadd.f32 0.0, %v1440
      %1442 = vmatmul.bf16.gmra.mxu0 %v1358
      %v1443 = vpop.f32.mrf.mxu0
      %v1444 = vadd.f32 0.0, %v1443
      %v1445 = vpop.f32.mrf.mxu0
      %v1446 = vadd.f32 0.0, %v1445
      %1447 = vmatmul.bf16.gmra.mxu0 %v1361
      %v1448 = vpop.f32.mrf.mxu0
      %v1449 = vadd.f32 0.0, %v1448
      %v1450 = vpop.f32.mrf.mxu0
      %v1451 = vadd.f32 0.0, %v1450
      %1452 = vmatmul.bf16.gmra.mxu0 %v1364
      %v1453 = vpop.f32.mrf.mxu0
      %v1454 = vadd.f32 0.0, %v1453
      %v1455 = vpop.f32.mrf.mxu0
      %v1456 = vadd.f32 0.0, %v1455
      %1457 = vdwg.mxu0
      %v1458 = vadd.f32 %v1027, %v1379
      %v1459 = vadd.f32 %v1029, %v1381
      %v1460 = vadd.f32 %v1032, %v1384
      %v1461 = vadd.f32 %v1034, %v1386
      %v1462 = vadd.f32 %v1037, %v1389
      %v1463 = vadd.f32 %v1039, %v1391
      %v1464 = vadd.f32 %v1042, %v1394
      %v1465 = vadd.f32 %v1044, %v1396
      %v1466 = vadd.f32 %v1047, %v1399
      %v1467 = vadd.f32 %v1049, %v1401
      %v1468 = vadd.f32 %v1052, %v1404
      %v1469 = vadd.f32 %v1054, %v1406
      %v1470 = vadd.f32 %v1057, %v1409
      %v1471 = vadd.f32 %v1059, %v1411
      %v1472 = vadd.f32 %v1062, %v1414
      %v1473 = vadd.f32 %v1064, %v1416
      %v1474 = vadd.f32 %v1067, %v1419
      %v1475 = vadd.f32 %v1069, %v1421
      %v1476 = vadd.f32 %v1072, %v1424
      %v1477 = vadd.f32 %v1074, %v1426
      %v1478 = vadd.f32 %v1077, %v1429
      %v1479 = vadd.f32 %v1079, %v1431
      %v1480 = vadd.f32 %v1082, %v1434
      %v1481 = vadd.f32 %v1084, %v1436
      %v1482 = vadd.f32 %v1087, %v1439
      %v1483 = vadd.f32 %v1089, %v1441
      %v1484 = vadd.f32 %v1092, %v1444
      %v1485 = vadd.f32 %v1094, %v1446
      %v1486 = vadd.f32 %v1097, %v1449
      %v1487 = vadd.f32 %v1099, %v1451
      %v1488 = vadd.f32 %v1102, %v1454
      %v1489 = vadd.f32 %v1104, %v1456
      %s1490 = sadd.s32 %s251, 1
      %s1491 = smul.u32 %s1490, 3
      %s1492 = smul.addr %s1491, 4
      %s1493 = scalar_lea.vmem %s238, %s1492
      %v1494 = vld [vmem:[%s1493] sm:$0xf]
      %v1495 = vld [vmem:[%s1493 + $0x4] sm:$0xf]
      %v1496 = vld [vmem:[%s1493 + $0xc] sm:$0xf]
      %v1497 = vld [vmem:[%s1493 + $0x10] sm:$0xf]
      %v1498 = vld [vmem:[%s1493 + $0x18] sm:$0xf]
      %v1499 = vld [vmem:[%s1493 + $0x1c] sm:$0xf]
      %v1500 = vld [vmem:[%s1493 + $0x24] sm:$0xf]
      %v1501 = vld [vmem:[%s1493 + $0x28] sm:$0xf]
      %v1502 = vld [vmem:[%s1493 + $0x30] sm:$0xf]
      %v1503 = vld [vmem:[%s1493 + $0x34] sm:$0xf]
      %v1504 = vld [vmem:[%s1493 + $0x3c] sm:$0xf]
      %v1505 = vld [vmem:[%s1493 + $0x40] sm:$0xf]
      %v1506 = vld [vmem:[%s1493 + $0x48] sm:$0xf]
      %v1507 = vld [vmem:[%s1493 + $0x4c] sm:$0xf]
      %v1508 = vld [vmem:[%s1493 + $0x54] sm:$0xf]
      %v1509 = vld [vmem:[%s1493 + $0x58] sm:$0xf]
      %v1510 = vld [vmem:[%s1493 + $0x60] sm:$0xf]
      %v1511 = vld [vmem:[%s1493 + $0x64] sm:$0xf]
      %v1512 = vld [vmem:[%s1493 + $0x6c] sm:$0xf]
      %v1513 = vld [vmem:[%s1493 + $0x70] sm:$0xf]
      %v1514 = vld [vmem:[%s1493 + $0x78] sm:$0xf]
      %v1515 = vld [vmem:[%s1493 + $0x7c] sm:$0xf]
      %v1516 = vld [vmem:[%s1493 + $0x84] sm:$0xf]
      %v1517 = vld [vmem:[%s1493 + $0x88] sm:$0xf]
      %v1518 = vld [vmem:[%s1493 + $0x90] sm:$0xf]
      %v1519 = vld [vmem:[%s1493 + $0x94] sm:$0xf]
      %v1520 = vld [vmem:[%s1493 + $0x9c] sm:$0xf]
      %v1521 = vld [vmem:[%s1493 + $0xa0] sm:$0xf]
      %v1522 = vld [vmem:[%s1493 + $0xa8] sm:$0xf]
      %v1523 = vld [vmem:[%s1493 + $0xac] sm:$0xf]
      %v1524 = vld [vmem:[%s1493 + $0xb4] sm:$0xf]
      %v1525 = vld [vmem:[%s1493 + $0xb8] sm:$0xf]
      %v1526 = vld [vmem:[%s1 + $0x4] sm:$0xc]
      %v1559 = vunpack.c.l.b16 %v1494
      %v1560 = vunpack.c.l.b16 %v1495
      %v1561 = vunpack.c.l.b16 %v1496
      %v1562 = vunpack.c.l.b16 %v1497
      %v1563 = vunpack.c.l.b16 %v1498
      %v1564 = vunpack.c.l.b16 %v1499
      %v1565 = vunpack.c.l.b16 %v1500
      %v1566 = vunpack.c.l.b16 %v1501
      %v1567 = vunpack.c.l.b16 %v1502
      %v1568 = vunpack.c.l.b16 %v1503
      %v1569 = vunpack.c.l.b16 %v1504
      %v1570 = vunpack.c.l.b16 %v1505
      %v1571 = vunpack.c.l.b16 %v1506
      %v1572 = vunpack.c.l.b16 %v1507
      %v1573 = vunpack.c.l.b16 %v1508
      %v1574 = vunpack.c.l.b16 %v1509
      %v1575 = vunpack.c.l.b16 %v1510
      %v1576 = vunpack.c.l.b16 %v1511
      %v1577 = vunpack.c.l.b16 %v1512
      %v1578 = vunpack.c.l.b16 %v1513
      %v1579 = vunpack.c.l.b16 %v1514
      %v1580 = vunpack.c.l.b16 %v1515
      %v1581 = vunpack.c.l.b16 %v1516
      %v1582 = vunpack.c.l.b16 %v1517
      %v1583 = vunpack.c.l.b16 %v1518
      %v1584 = vunpack.c.l.b16 %v1519
      %v1585 = vunpack.c.l.b16 %v1520
      %v1586 = vunpack.c.l.b16 %v1521
      %v1587 = vunpack.c.l.b16 %v1522
      %v1588 = vunpack.c.l.b16 %v1523
      %v1589 = vunpack.c.l.b16 %v1524
      %v1590 = vunpack.c.l.b16 %v1525
      %v1591 = vpack.c.b16 %v1560, %v1559
      %v1592 = vpack.c.b16 %v1562, %v1561
      %v1593 = vpack.c.b16 %v1564, %v1563
      %v1594 = vpack.c.b16 %v1566, %v1565
      %v1595 = vpack.c.b16 %v1568, %v1567
      %v1596 = vpack.c.b16 %v1570, %v1569
      %v1597 = vpack.c.b16 %v1572, %v1571
      %v1598 = vpack.c.b16 %v1574, %v1573
      %v1599 = vpack.c.b16 %v1576, %v1575
      %v1600 = vpack.c.b16 %v1578, %v1577
      %v1601 = vpack.c.b16 %v1580, %v1579
      %v1602 = vpack.c.b16 %v1582, %v1581
      %v1603 = vpack.c.b16 %v1584, %v1583
      %v1604 = vpack.c.b16 %v1586, %v1585
      %v1605 = vpack.c.b16 %v1588, %v1587
      %v1606 = vpack.c.b16 %v1590, %v1589
      %v1608 = vunpack.c.l.b16 %v1526
      %v1609 = vpack.c.b16 %v1608, %v1608
      %v1610 = vrot.slane %v1609, 2
      %v1612 = vsel %vm744, %v1591, 0
      %v1615 = vsel %vm744, %v1592, 0
      %v1618 = vsel %vm744, %v1593, 0
      %v1621 = vsel %vm744, %v1594, 0
      %v1624 = vsel %vm744, %v1595, 0
      %v1627 = vsel %vm744, %v1596, 0
      %v1630 = vsel %vm744, %v1597, 0
      %v1633 = vsel %vm744, %v1598, 0
      %v1636 = vsel %vm744, %v1599, 0
      %v1639 = vsel %vm744, %v1600, 0
      %v1642 = vsel %vm744, %v1601, 0
      %v1645 = vsel %vm744, %v1602, 0
      %v1648 = vsel %vm744, %v1603, 0
      %v1651 = vsel %vm744, %v1604, 0
      %v1654 = vsel %vm744, %v1605, 0
      %v1657 = vsel %vm744, %v1606, 0
      %v1660 = vsel %vm793, %v1610, 0
      %1662 = vmatpush.bf16.msra.mxu0 0
      %1663 = vmatpush.bf16.msra.mxu0 0
      %1664 = vmatpush.bf16.msra.mxu0 0
      %1665 = vmatpush.bf16.msra.mxu0 0
      %1666 = vmatpush.bf16.msra.mxu0 0
      %1667 = vmatpush.bf16.msra.mxu0 0
      %1668 = vmatpush.bf16.msra.mxu0 0
      %1669 = vmatpush.bf16.msra.mxu0 %v1660
      %1670 = vmatmul.bf16.gmra.mxu0 %v1612
      %v1671 = vpop.f32.mrf.mxu0
      %v1672 = vadd.f32 0.0, %v1671
      %v1673 = vpop.f32.mrf.mxu0
      %v1674 = vadd.f32 0.0, %v1673
      %1675 = vmatmul.bf16.gmra.mxu0 %v1615
      %v1676 = vpop.f32.mrf.mxu0
      %v1677 = vadd.f32 0.0, %v1676
      %v1678 = vpop.f32.mrf.mxu0
      %v1679 = vadd.f32 0.0, %v1678
      %1680 = vmatmul.bf16.gmra.mxu0 %v1618
      %v1681 = vpop.f32.mrf.mxu0
      %v1682 = vadd.f32 0.0, %v1681
      %v1683 = vpop.f32.mrf.mxu0
      %v1684 = vadd.f32 0.0, %v1683
      %1685 = vmatmul.bf16.gmra.mxu0 %v1621
      %v1686 = vpop.f32.mrf.mxu0
      %v1687 = vadd.f32 0.0, %v1686
      %v1688 = vpop.f32.mrf.mxu0
      %v1689 = vadd.f32 0.0, %v1688
      %1690 = vmatmul.bf16.gmra.mxu0 %v1624
      %v1691 = vpop.f32.mrf.mxu0
      %v1692 = vadd.f32 0.0, %v1691
      %v1693 = vpop.f32.mrf.mxu0
      %v1694 = vadd.f32 0.0, %v1693
      %1695 = vmatmul.bf16.gmra.mxu0 %v1627
      %v1696 = vpop.f32.mrf.mxu0
      %v1697 = vadd.f32 0.0, %v1696
      %v1698 = vpop.f32.mrf.mxu0
      %v1699 = vadd.f32 0.0, %v1698
      %1700 = vmatmul.bf16.gmra.mxu0 %v1630
      %v1701 = vpop.f32.mrf.mxu0
      %v1702 = vadd.f32 0.0, %v1701
      %v1703 = vpop.f32.mrf.mxu0
      %v1704 = vadd.f32 0.0, %v1703
      %1705 = vmatmul.bf16.gmra.mxu0 %v1633
      %v1706 = vpop.f32.mrf.mxu0
      %v1707 = vadd.f32 0.0, %v1706
      %v1708 = vpop.f32.mrf.mxu0
      %v1709 = vadd.f32 0.0, %v1708
      %1710 = vmatmul.bf16.gmra.mxu0 %v1636
      %v1711 = vpop.f32.mrf.mxu0
      %v1712 = vadd.f32 0.0, %v1711
      %v1713 = vpop.f32.mrf.mxu0
      %v1714 = vadd.f32 0.0, %v1713
      %1715 = vmatmul.bf16.gmra.mxu0 %v1639
      %v1716 = vpop.f32.mrf.mxu0
      %v1717 = vadd.f32 0.0, %v1716
      %v1718 = vpop.f32.mrf.mxu0
      %v1719 = vadd.f32 0.0, %v1718
      %1720 = vmatmul.bf16.gmra.mxu0 %v1642
      %v1721 = vpop.f32.mrf.mxu0
      %v1722 = vadd.f32 0.0, %v1721
      %v1723 = vpop.f32.mrf.mxu0
      %v1724 = vadd.f32 0.0, %v1723
      %1725 = vmatmul.bf16.gmra.mxu0 %v1645
      %v1726 = vpop.f32.mrf.mxu0
      %v1727 = vadd.f32 0.0, %v1726
      %v1728 = vpop.f32.mrf.mxu0
      %v1729 = vadd.f32 0.0, %v1728
      %1730 = vmatmul.bf16.gmra.mxu0 %v1648
      %v1731 = vpop.f32.mrf.mxu0
      %v1732 = vadd.f32 0.0, %v1731
      %v1733 = vpop.f32.mrf.mxu0
      %v1734 = vadd.f32 0.0, %v1733
      %1735 = vmatmul.bf16.gmra.mxu0 %v1651
      %v1736 = vpop.f32.mrf.mxu0
      %v1737 = vadd.f32 0.0, %v1736
      %v1738 = vpop.f32.mrf.mxu0
      %v1739 = vadd.f32 0.0, %v1738
      %1740 = vmatmul.bf16.gmra.mxu0 %v1654
      %v1741 = vpop.f32.mrf.mxu0
      %v1742 = vadd.f32 0.0, %v1741
      %v1743 = vpop.f32.mrf.mxu0
      %v1744 = vadd.f32 0.0, %v1743
      %1745 = vmatmul.bf16.gmra.mxu0 %v1657
      %v1746 = vpop.f32.mrf.mxu0
      %v1747 = vadd.f32 0.0, %v1746
      %v1748 = vpop.f32.mrf.mxu0
      %v1749 = vadd.f32 0.0, %v1748
      %1750 = vdwg.mxu0
      %v1751 = vadd.f32 %v1458, %v1672
      %v1752 = vadd.f32 %v1459, %v1674
      %v1753 = vadd.f32 %v1460, %v1677
      %v1754 = vadd.f32 %v1461, %v1679
      %v1755 = vadd.f32 %v1462, %v1682
      %v1756 = vadd.f32 %v1463, %v1684
      %v1757 = vadd.f32 %v1464, %v1687
      %v1758 = vadd.f32 %v1465, %v1689
      %v1759 = vadd.f32 %v1466, %v1692
      %v1760 = vadd.f32 %v1467, %v1694
      %v1761 = vadd.f32 %v1468, %v1697
      %v1762 = vadd.f32 %v1469, %v1699
      %v1763 = vadd.f32 %v1470, %v1702
      %v1764 = vadd.f32 %v1471, %v1704
      %v1765 = vadd.f32 %v1472, %v1707
      %v1766 = vadd.f32 %v1473, %v1709
      %v1767 = vadd.f32 %v1474, %v1712
      %v1768 = vadd.f32 %v1475, %v1714
      %v1769 = vadd.f32 %v1476, %v1717
      %v1770 = vadd.f32 %v1477, %v1719
      %v1771 = vadd.f32 %v1478, %v1722
      %v1772 = vadd.f32 %v1479, %v1724
      %v1773 = vadd.f32 %v1480, %v1727
      %v1774 = vadd.f32 %v1481, %v1729
      %v1775 = vadd.f32 %v1482, %v1732
      %v1776 = vadd.f32 %v1483, %v1734
      %v1777 = vadd.f32 %v1484, %v1737
      %v1778 = vadd.f32 %v1485, %v1739
      %v1779 = vadd.f32 %v1486, %v1742
      %v1780 = vadd.f32 %v1487, %v1744
      %v1781 = vadd.f32 %v1488, %v1747
      %v1782 = vadd.f32 %v1489, %v1749
      %v1783 = vld [vmem:[%s1493] sm:$0xf]
      %v1784 = vld [vmem:[%s1493 + $0x4] sm:$0xf]
      %v1785 = vld [vmem:[%s1493 + $0x8] sm:$0x1]
      %v1786 = vld [vmem:[%s1493 + $0xc] sm:$0xf]
      %v1787 = vld [vmem:[%s1493 + $0x10] sm:$0xf]
      %v1788 = vld [vmem:[%s1493 + $0x14] sm:$0x1]
      %v1789 = vld [vmem:[%s1493 + $0x18] sm:$0xf]
      %v1790 = vld [vmem:[%s1493 + $0x1c] sm:$0xf]
      %v1791 = vld [vmem:[%s1493 + $0x20] sm:$0x1]
      %v1792 = vld [vmem:[%s1493 + $0x24] sm:$0xf]
      %v1793 = vld [vmem:[%s1493 + $0x28] sm:$0xf]
      %v1794 = vld [vmem:[%s1493 + $0x2c] sm:$0x1]
      %v1795 = vld [vmem:[%s1493 + $0x30] sm:$0xf]
      %v1796 = vld [vmem:[%s1493 + $0x34] sm:$0xf]
      %v1797 = vld [vmem:[%s1493 + $0x38] sm:$0x1]
      %v1798 = vld [vmem:[%s1493 + $0x3c] sm:$0xf]
      %v1799 = vld [vmem:[%s1493 + $0x40] sm:$0xf]
      %v1800 = vld [vmem:[%s1493 + $0x44] sm:$0x1]
      %v1801 = vld [vmem:[%s1493 + $0x48] sm:$0xf]
      %v1802 = vld [vmem:[%s1493 + $0x4c] sm:$0xf]
      %v1803 = vld [vmem:[%s1493 + $0x50] sm:$0x1]
      %v1804 = vld [vmem:[%s1493 + $0x54] sm:$0xf]
      %v1805 = vld [vmem:[%s1493 + $0x58] sm:$0xf]
      %v1806 = vld [vmem:[%s1493 + $0x5c] sm:$0x1]
      %v1807 = vld [vmem:[%s1493 + $0x60] sm:$0xf]
      %v1808 = vld [vmem:[%s1493 + $0x64] sm:$0xf]
      %v1809 = vld [vmem:[%s1493 + $0x68] sm:$0x1]
      %v1810 = vld [vmem:[%s1493 + $0x6c] sm:$0xf]
      %v1811 = vld [vmem:[%s1493 + $0x70] sm:$0xf]
      %v1812 = vld [vmem:[%s1493 + $0x74] sm:$0x1]
      %v1813 = vld [vmem:[%s1493 + $0x78] sm:$0xf]
      %v1814 = vld [vmem:[%s1493 + $0x7c] sm:$0xf]
      %v1815 = vld [vmem:[%s1493 + $0x80] sm:$0x1]
      %v1816 = vld [vmem:[%s1493 + $0x84] sm:$0xf]
      %v1817 = vld [vmem:[%s1493 + $0x88] sm:$0xf]
      %v1818 = vld [vmem:[%s1493 + $0x8c] sm:$0x1]
      %v1819 = vld [vmem:[%s1493 + $0x90] sm:$0xf]
      %v1820 = vld [vmem:[%s1493 + $0x94] sm:$0xf]
      %v1821 = vld [vmem:[%s1493 + $0x98] sm:$0x1]
      %v1822 = vld [vmem:[%s1493 + $0x9c] sm:$0xf]
      %v1823 = vld [vmem:[%s1493 + $0xa0] sm:$0xf]
      %v1824 = vld [vmem:[%s1493 + $0xa4] sm:$0x1]
      %v1825 = vld [vmem:[%s1493 + $0xa8] sm:$0xf]
      %v1826 = vld [vmem:[%s1493 + $0xac] sm:$0xf]
      %v1827 = vld [vmem:[%s1493 + $0xb0] sm:$0x1]
      %v1828 = vld [vmem:[%s1493 + $0xb4] sm:$0xf]
      %v1829 = vld [vmem:[%s1493 + $0xb8] sm:$0xf]
      %v1830 = vld [vmem:[%s1493 + $0xbc] sm:$0x1]
      %v1832 = vshrl.u32 %v1783, 16
      %v1834 = vrot.slane %v1832, 4
      %v1835 = vshll.u32 %v1783, 16
      %v1837 = vrot.slane %v1835, 5
      %v1838 = vor.u32 %v1834, %v1837
      %v1839 = vrot.slane %v1838, 4
      %v1841 = vshll.u32 %v1784, 16
      %v1843 = vrot.slane %v1841, 5
      %v1844 = vsel %vm306, %v1839, %v1843
      %v1845 = vshrl.u32 %v1784, 16
      %v1847 = vrot.slane %v1845, 4
      %v1848 = vor.u32 %v1847, %v1843
      %v1849 = vrot.slane %v1848, 4
      %v1851 = vshll.u32 %v1785, 16
      %v1853 = vrot.slane %v1851, 5
      %v1854 = vsel %vm306, %v1849, %v1853
      %v1856 = vshrl.u32 %v1786, 16
      %v1858 = vrot.slane %v1856, 4
      %v1859 = vshll.u32 %v1786, 16
      %v1861 = vrot.slane %v1859, 5
      %v1862 = vor.u32 %v1858, %v1861
      %v1863 = vrot.slane %v1862, 4
      %v1865 = vshll.u32 %v1787, 16
      %v1867 = vrot.slane %v1865, 5
      %v1868 = vsel %vm306, %v1863, %v1867
      %v1869 = vshrl.u32 %v1787, 16
      %v1871 = vrot.slane %v1869, 4
      %v1872 = vor.u32 %v1871, %v1867
      %v1873 = vrot.slane %v1872, 4
      %v1875 = vshll.u32 %v1788, 16
      %v1877 = vrot.slane %v1875, 5
      %v1878 = vsel %vm306, %v1873, %v1877
      %v1880 = vshrl.u32 %v1789, 16
      %v1882 = vrot.slane %v1880, 4
      %v1883 = vshll.u32 %v1789, 16
      %v1885 = vrot.slane %v1883, 5
      %v1886 = vor.u32 %v1882, %v1885
      %v1887 = vrot.slane %v1886, 4
      %v1889 = vshll.u32 %v1790, 16
      %v1891 = vrot.slane %v1889, 5
      %v1892 = vsel %vm306, %v1887, %v1891
      %v1893 = vshrl.u32 %v1790, 16
      %v1895 = vrot.slane %v1893, 4
      %v1896 = vor.u32 %v1895, %v1891
      %v1897 = vrot.slane %v1896, 4
      %v1899 = vshll.u32 %v1791, 16
      %v1901 = vrot.slane %v1899, 5
      %v1902 = vsel %vm306, %v1897, %v1901
      %v1904 = vshrl.u32 %v1792, 16
      %v1906 = vrot.slane %v1904, 4
      %v1907 = vshll.u32 %v1792, 16
      %v1909 = vrot.slane %v1907, 5
      %v1910 = vor.u32 %v1906, %v1909
      %v1911 = vrot.slane %v1910, 4
      %v1913 = vshll.u32 %v1793, 16
      %v1915 = vrot.slane %v1913, 5
      %v1916 = vsel %vm306, %v1911, %v1915
      %v1917 = vshrl.u32 %v1793, 16
      %v1919 = vrot.slane %v1917, 4
      %v1920 = vor.u32 %v1919, %v1915
      %v1921 = vrot.slane %v1920, 4
      %v1923 = vshll.u32 %v1794, 16
      %v1925 = vrot.slane %v1923, 5
      %v1926 = vsel %vm306, %v1921, %v1925
      %v1928 = vshrl.u32 %v1795, 16
      %v1930 = vrot.slane %v1928, 4
      %v1931 = vshll.u32 %v1795, 16
      %v1933 = vrot.slane %v1931, 5
      %v1934 = vor.u32 %v1930, %v1933
      %v1935 = vrot.slane %v1934, 4
      %v1937 = vshll.u32 %v1796, 16
      %v1939 = vrot.slane %v1937, 5
      %v1940 = vsel %vm306, %v1935, %v1939
      %v1941 = vshrl.u32 %v1796, 16
      %v1943 = vrot.slane %v1941, 4
      %v1944 = vor.u32 %v1943, %v1939
      %v1945 = vrot.slane %v1944, 4
      %v1947 = vshll.u32 %v1797, 16
      %v1949 = vrot.slane %v1947, 5
      %v1950 = vsel %vm306, %v1945, %v1949
      %v1952 = vshrl.u32 %v1798, 16
      %v1954 = vrot.slane %v1952, 4
      %v1955 = vshll.u32 %v1798, 16
      %v1957 = vrot.slane %v1955, 5
      %v1958 = vor.u32 %v1954, %v1957
      %v1959 = vrot.slane %v1958, 4
      %v1961 = vshll.u32 %v1799, 16
      %v1963 = vrot.slane %v1961, 5
      %v1964 = vsel %vm306, %v1959, %v1963
      %v1965 = vshrl.u32 %v1799, 16
      %v1967 = vrot.slane %v1965, 4
      %v1968 = vor.u32 %v1967, %v1963
      %v1969 = vrot.slane %v1968, 4
      %v1971 = vshll.u32 %v1800, 16
      %v1973 = vrot.slane %v1971, 5
      %v1974 = vsel %vm306, %v1969, %v1973
      %v1976 = vshrl.u32 %v1801, 16
      %v1978 = vrot.slane %v1976, 4
      %v1979 = vshll.u32 %v1801, 16
      %v1981 = vrot.slane %v1979, 5
      %v1982 = vor.u32 %v1978, %v1981
      %v1983 = vrot.slane %v1982, 4
      %v1985 = vshll.u32 %v1802, 16
      %v1987 = vrot.slane %v1985, 5
      %v1988 = vsel %vm306, %v1983, %v1987
      %v1989 = vshrl.u32 %v1802, 16
      %v1991 = vrot.slane %v1989, 4
      %v1992 = vor.u32 %v1991, %v1987
      %v1993 = vrot.slane %v1992, 4
      %v1995 = vshll.u32 %v1803, 16
      %v1997 = vrot.slane %v1995, 5
      %v1998 = vsel %vm306, %v1993, %v1997
      %v2000 = vshrl.u32 %v1804, 16
      %v2002 = vrot.slane %v2000, 4
      %v2003 = vshll.u32 %v1804, 16
      %v2005 = vrot.slane %v2003, 5
      %v2006 = vor.u32 %v2002, %v2005
      %v2007 = vrot.slane %v2006, 4
      %v2009 = vshll.u32 %v1805, 16
      %v2011 = vrot.slane %v2009, 5
      %v2012 = vsel %vm306, %v2007, %v2011
      %v2013 = vshrl.u32 %v1805, 16
      %v2015 = vrot.slane %v2013, 4
      %v2016 = vor.u32 %v2015, %v2011
      %v2017 = vrot.slane %v2016, 4
      %v2019 = vshll.u32 %v1806, 16
      %v2021 = vrot.slane %v2019, 5
      %v2022 = vsel %vm306, %v2017, %v2021
      %v2024 = vshrl.u32 %v1807, 16
      %v2026 = vrot.slane %v2024, 4
      %v2027 = vshll.u32 %v1807, 16
      %v2029 = vrot.slane %v2027, 5
      %v2030 = vor.u32 %v2026, %v2029
      %v2031 = vrot.slane %v2030, 4
      %v2033 = vshll.u32 %v1808, 16
      %v2035 = vrot.slane %v2033, 5
      %v2036 = vsel %vm306, %v2031, %v2035
      %v2037 = vshrl.u32 %v1808, 16
      %v2039 = vrot.slane %v2037, 4
      %v2040 = vor.u32 %v2039, %v2035
      %v2041 = vrot.slane %v2040, 4
      %v2043 = vshll.u32 %v1809, 16
      %v2045 = vrot.slane %v2043, 5
      %v2046 = vsel %vm306, %v2041, %v2045
      %v2048 = vshrl.u32 %v1810, 16
      %v2050 = vrot.slane %v2048, 4
      %v2051 = vshll.u32 %v1810, 16
      %v2053 = vrot.slane %v2051, 5
      %v2054 = vor.u32 %v2050, %v2053
      %v2055 = vrot.slane %v2054, 4
      %v2057 = vshll.u32 %v1811, 16
      %v2059 = vrot.slane %v2057, 5
      %v2060 = vsel %vm306, %v2055, %v2059
      %v2061 = vshrl.u32 %v1811, 16
      %v2063 = vrot.slane %v2061, 4
      %v2064 = vor.u32 %v2063, %v2059
      %v2065 = vrot.slane %v2064, 4
      %v2067 = vshll.u32 %v1812, 16
      %v2069 = vrot.slane %v2067, 5
      %v2070 = vsel %vm306, %v2065, %v2069
      %v2072 = vshrl.u32 %v1813, 16
      %v2074 = vrot.slane %v2072, 4
      %v2075 = vshll.u32 %v1813, 16
      %v2077 = vrot.slane %v2075, 5
      %v2078 = vor.u32 %v2074, %v2077
      %v2079 = vrot.slane %v2078, 4
      %v2081 = vshll.u32 %v1814, 16
      %v2083 = vrot.slane %v2081, 5
      %v2084 = vsel %vm306, %v2079, %v2083
      %v2085 = vshrl.u32 %v1814, 16
      %v2087 = vrot.slane %v2085, 4
      %v2088 = vor.u32 %v2087, %v2083
      %v2089 = vrot.slane %v2088, 4
      %v2091 = vshll.u32 %v1815, 16
      %v2093 = vrot.slane %v2091, 5
      %v2094 = vsel %vm306, %v2089, %v2093
      %v2096 = vshrl.u32 %v1816, 16
      %v2098 = vrot.slane %v2096, 4
      %v2099 = vshll.u32 %v1816, 16
      %v2101 = vrot.slane %v2099, 5
      %v2102 = vor.u32 %v2098, %v2101
      %v2103 = vrot.slane %v2102, 4
      %v2105 = vshll.u32 %v1817, 16
      %v2107 = vrot.slane %v2105, 5
      %v2108 = vsel %vm306, %v2103, %v2107
      %v2109 = vshrl.u32 %v1817, 16
      %v2111 = vrot.slane %v2109, 4
      %v2112 = vor.u32 %v2111, %v2107
      %v2113 = vrot.slane %v2112, 4
      %v2115 = vshll.u32 %v1818, 16
      %v2117 = vrot.slane %v2115, 5
      %v2118 = vsel %vm306, %v2113, %v2117
      %v2120 = vshrl.u32 %v1819, 16
      %v2122 = vrot.slane %v2120, 4
      %v2123 = vshll.u32 %v1819, 16
      %v2125 = vrot.slane %v2123, 5
      %v2126 = vor.u32 %v2122, %v2125
      %v2127 = vrot.slane %v2126, 4
      %v2129 = vshll.u32 %v1820, 16
      %v2131 = vrot.slane %v2129, 5
      %v2132 = vsel %vm306, %v2127, %v2131
      %v2133 = vshrl.u32 %v1820, 16
      %v2135 = vrot.slane %v2133, 4
      %v2136 = vor.u32 %v2135, %v2131
      %v2137 = vrot.slane %v2136, 4
      %v2139 = vshll.u32 %v1821, 16
      %v2141 = vrot.slane %v2139, 5
      %v2142 = vsel %vm306, %v2137, %v2141
      %v2144 = vshrl.u32 %v1822, 16
      %v2146 = vrot.slane %v2144, 4
      %v2147 = vshll.u32 %v1822, 16
      %v2149 = vrot.slane %v2147, 5
      %v2150 = vor.u32 %v2146, %v2149
      %v2151 = vrot.slane %v2150, 4
      %v2153 = vshll.u32 %v1823, 16
      %v2155 = vrot.slane %v2153, 5
      %v2156 = vsel %vm306, %v2151, %v2155
      %v2157 = vshrl.u32 %v1823, 16
      %v2159 = vrot.slane %v2157, 4
      %v2160 = vor.u32 %v2159, %v2155
      %v2161 = vrot.slane %v2160, 4
      %v2163 = vshll.u32 %v1824, 16
      %v2165 = vrot.slane %v2163, 5
      %v2166 = vsel %vm306, %v2161, %v2165
      %v2168 = vshrl.u32 %v1825, 16
      %v2170 = vrot.slane %v2168, 4
      %v2171 = vshll.u32 %v1825, 16
      %v2173 = vrot.slane %v2171, 5
      %v2174 = vor.u32 %v2170, %v2173
      %v2175 = vrot.slane %v2174, 4
      %v2177 = vshll.u32 %v1826, 16
      %v2179 = vrot.slane %v2177, 5
      %v2180 = vsel %vm306, %v2175, %v2179
      %v2181 = vshrl.u32 %v1826, 16
      %v2183 = vrot.slane %v2181, 4
      %v2184 = vor.u32 %v2183, %v2179
      %v2185 = vrot.slane %v2184, 4
      %v2187 = vshll.u32 %v1827, 16
      %v2189 = vrot.slane %v2187, 5
      %v2190 = vsel %vm306, %v2185, %v2189
      %v2192 = vshrl.u32 %v1828, 16
      %v2194 = vrot.slane %v2192, 4
      %v2195 = vshll.u32 %v1828, 16
      %v2197 = vrot.slane %v2195, 5
      %v2198 = vor.u32 %v2194, %v2197
      %v2199 = vrot.slane %v2198, 4
      %v2201 = vshll.u32 %v1829, 16
      %v2203 = vrot.slane %v2201, 5
      %v2204 = vsel %vm306, %v2199, %v2203
      %v2205 = vshrl.u32 %v1829, 16
      %v2207 = vrot.slane %v2205, 4
      %v2208 = vor.u32 %v2207, %v2203
      %v2209 = vrot.slane %v2208, 4
      %v2211 = vshll.u32 %v1830, 16
      %v2213 = vrot.slane %v2211, 5
      %v2214 = vsel %vm306, %v2209, %v2213
      %v2215 = vld [vmem:[%s1 + $0x8] sm:$0x3]
      %v2216 = vunpack.c.l.b16 %v1844
      %v2217 = vunpack.c.l.b16 %v1854
      %v2218 = vunpack.c.l.b16 %v1868
      %v2219 = vunpack.c.l.b16 %v1878
      %v2220 = vunpack.c.l.b16 %v1892
      %v2221 = vunpack.c.l.b16 %v1902
      %v2222 = vunpack.c.l.b16 %v1916
      %v2223 = vunpack.c.l.b16 %v1926
      %v2224 = vunpack.c.l.b16 %v1940
      %v2225 = vunpack.c.l.b16 %v1950
      %v2226 = vunpack.c.l.b16 %v1964
      %v2227 = vunpack.c.l.b16 %v1974
      %v2228 = vunpack.c.l.b16 %v1988
      %v2229 = vunpack.c.l.b16 %v1998
      %v2230 = vunpack.c.l.b16 %v2012
      %v2231 = vunpack.c.l.b16 %v2022
      %v2232 = vunpack.c.l.b16 %v2036
      %v2233 = vunpack.c.l.b16 %v2046
      %v2234 = vunpack.c.l.b16 %v2060
      %v2235 = vunpack.c.l.b16 %v2070
      %v2236 = vunpack.c.l.b16 %v2084
      %v2237 = vunpack.c.l.b16 %v2094
      %v2238 = vunpack.c.l.b16 %v2108
      %v2239 = vunpack.c.l.b16 %v2118
      %v2240 = vunpack.c.l.b16 %v2132
      %v2241 = vunpack.c.l.b16 %v2142
      %v2242 = vunpack.c.l.b16 %v2156
      %v2243 = vunpack.c.l.b16 %v2166
      %v2244 = vunpack.c.l.b16 %v2180
      %v2245 = vunpack.c.l.b16 %v2190
      %v2246 = vunpack.c.l.b16 %v2204
      %v2247 = vunpack.c.l.b16 %v2214
      %v2248 = vpack.c.b16 %v2217, %v2216
      %v2249 = vpack.c.b16 %v2219, %v2218
      %v2250 = vpack.c.b16 %v2221, %v2220
      %v2251 = vpack.c.b16 %v2223, %v2222
      %v2252 = vpack.c.b16 %v2225, %v2224
      %v2253 = vpack.c.b16 %v2227, %v2226
      %v2254 = vpack.c.b16 %v2229, %v2228
      %v2255 = vpack.c.b16 %v2231, %v2230
      %v2256 = vpack.c.b16 %v2233, %v2232
      %v2257 = vpack.c.b16 %v2235, %v2234
      %v2258 = vpack.c.b16 %v2237, %v2236
      %v2259 = vpack.c.b16 %v2239, %v2238
      %v2260 = vpack.c.b16 %v2241, %v2240
      %v2261 = vpack.c.b16 %v2243, %v2242
      %v2262 = vpack.c.b16 %v2245, %v2244
      %v2263 = vpack.c.b16 %v2247, %v2246
      %v2265 = vsel %vm744, %v2248, 0
      %v2268 = vsel %vm744, %v2249, 0
      %v2271 = vsel %vm744, %v2250, 0
      %v2274 = vsel %vm744, %v2251, 0
      %v2277 = vsel %vm744, %v2252, 0
      %v2280 = vsel %vm744, %v2253, 0
      %v2283 = vsel %vm744, %v2254, 0
      %v2286 = vsel %vm744, %v2255, 0
      %v2289 = vsel %vm744, %v2256, 0
      %v2292 = vsel %vm744, %v2257, 0
      %v2295 = vsel %vm744, %v2258, 0
      %v2298 = vsel %vm744, %v2259, 0
      %v2301 = vsel %vm744, %v2260, 0
      %v2304 = vsel %vm744, %v2261, 0
      %v2307 = vsel %vm744, %v2262, 0
      %v2310 = vsel %vm744, %v2263, 0
      %v2313 = vsel %vm793, %v2215, 0
      %2315 = vmatpush.bf16.msra.mxu0 0
      %2316 = vmatpush.bf16.msra.mxu0 0
      %2317 = vmatpush.bf16.msra.mxu0 0
      %2318 = vmatpush.bf16.msra.mxu0 0
      %2319 = vmatpush.bf16.msra.mxu0 0
      %2320 = vmatpush.bf16.msra.mxu0 0
      %2321 = vmatpush.bf16.msra.mxu0 0
      %2322 = vmatpush.bf16.msra.mxu0 %v2313
      %2323 = vmatmul.bf16.gmra.mxu0 %v2265
      %v2324 = vpop.f32.mrf.mxu0
      %v2325 = vadd.f32 0.0, %v2324
      %v2326 = vpop.f32.mrf.mxu0
      %v2327 = vadd.f32 0.0, %v2326
      %2328 = vmatmul.bf16.gmra.mxu0 %v2268
      %v2329 = vpop.f32.mrf.mxu0
      %v2330 = vadd.f32 0.0, %v2329
      %v2331 = vpop.f32.mrf.mxu0
      %v2332 = vadd.f32 0.0, %v2331
      %2333 = vmatmul.bf16.gmra.mxu0 %v2271
      %v2334 = vpop.f32.mrf.mxu0
      %v2335 = vadd.f32 0.0, %v2334
      %v2336 = vpop.f32.mrf.mxu0
      %v2337 = vadd.f32 0.0, %v2336
      %2338 = vmatmul.bf16.gmra.mxu0 %v2274
      %v2339 = vpop.f32.mrf.mxu0
      %v2340 = vadd.f32 0.0, %v2339
      %v2341 = vpop.f32.mrf.mxu0
      %v2342 = vadd.f32 0.0, %v2341
      %2343 = vmatmul.bf16.gmra.mxu0 %v2277
      %v2344 = vpop.f32.mrf.mxu0
      %v2345 = vadd.f32 0.0, %v2344
      %v2346 = vpop.f32.mrf.mxu0
      %v2347 = vadd.f32 0.0, %v2346
      %2348 = vmatmul.bf16.gmra.mxu0 %v2280
      %v2349 = vpop.f32.mrf.mxu0
      %v2350 = vadd.f32 0.0, %v2349
      %v2351 = vpop.f32.mrf.mxu0
      %v2352 = vadd.f32 0.0, %v2351
      %2353 = vmatmul.bf16.gmra.mxu0 %v2283
      %v2354 = vpop.f32.mrf.mxu0
      %v2355 = vadd.f32 0.0, %v2354
      %v2356 = vpop.f32.mrf.mxu0
      %v2357 = vadd.f32 0.0, %v2356
      %2358 = vmatmul.bf16.gmra.mxu0 %v2286
      %v2359 = vpop.f32.mrf.mxu0
      %v2360 = vadd.f32 0.0, %v2359
      %v2361 = vpop.f32.mrf.mxu0
      %v2362 = vadd.f32 0.0, %v2361
      %2363 = vmatmul.bf16.gmra.mxu0 %v2289
      %v2364 = vpop.f32.mrf.mxu0
      %v2365 = vadd.f32 0.0, %v2364
      %v2366 = vpop.f32.mrf.mxu0
      %v2367 = vadd.f32 0.0, %v2366
      %2368 = vmatmul.bf16.gmra.mxu0 %v2292
      %v2369 = vpop.f32.mrf.mxu0
      %v2370 = vadd.f32 0.0, %v2369
      %v2371 = vpop.f32.mrf.mxu0
      %v2372 = vadd.f32 0.0, %v2371
      %2373 = vmatmul.bf16.gmra.mxu0 %v2295
      %v2374 = vpop.f32.mrf.mxu0
      %v2375 = vadd.f32 0.0, %v2374
      %v2376 = vpop.f32.mrf.mxu0
      %v2377 = vadd.f32 0.0, %v2376
      %2378 = vmatmul.bf16.gmra.mxu0 %v2298
      %v2379 = vpop.f32.mrf.mxu0
      %v2380 = vadd.f32 0.0, %v2379
      %v2381 = vpop.f32.mrf.mxu0
      %v2382 = vadd.f32 0.0, %v2381
      %2383 = vmatmul.bf16.gmra.mxu0 %v2301
      %v2384 = vpop.f32.mrf.mxu0
      %v2385 = vadd.f32 0.0, %v2384
      %v2386 = vpop.f32.mrf.mxu0
      %v2387 = vadd.f32 0.0, %v2386
      %2388 = vmatmul.bf16.gmra.mxu0 %v2304
      %v2389 = vpop.f32.mrf.mxu0
      %v2390 = vadd.f32 0.0, %v2389
      %v2391 = vpop.f32.mrf.mxu0
      %v2392 = vadd.f32 0.0, %v2391
      %2393 = vmatmul.bf16.gmra.mxu0 %v2307
      %v2394 = vpop.f32.mrf.mxu0
      %v2395 = vadd.f32 0.0, %v2394
      %v2396 = vpop.f32.mrf.mxu0
      %v2397 = vadd.f32 0.0, %v2396
      %2398 = vmatmul.bf16.gmra.mxu0 %v2310
      %v2399 = vpop.f32.mrf.mxu0
      %v2400 = vadd.f32 0.0, %v2399
      %v2401 = vpop.f32.mrf.mxu0
      %v2402 = vadd.f32 0.0, %v2401
      %2403 = vdwg.mxu0
      %v2404 = vadd.f32 %v1751, %v2325
      %v2405 = vadd.f32 %v1752, %v2327
      %v2406 = vadd.f32 %v1753, %v2330
      %v2407 = vadd.f32 %v1754, %v2332
      %v2408 = vadd.f32 %v1755, %v2335
      %v2409 = vadd.f32 %v1756, %v2337
      %v2410 = vadd.f32 %v1757, %v2340
      %v2411 = vadd.f32 %v1758, %v2342
      %v2412 = vadd.f32 %v1759, %v2345
      %v2413 = vadd.f32 %v1760, %v2347
      %v2414 = vadd.f32 %v1761, %v2350
      %v2415 = vadd.f32 %v1762, %v2352
      %v2416 = vadd.f32 %v1763, %v2355
      %v2417 = vadd.f32 %v1764, %v2357
      %v2418 = vadd.f32 %v1765, %v2360
      %v2419 = vadd.f32 %v1766, %v2362
      %v2420 = vadd.f32 %v1767, %v2365
      %v2421 = vadd.f32 %v1768, %v2367
      %v2422 = vadd.f32 %v1769, %v2370
      %v2423 = vadd.f32 %v1770, %v2372
      %v2424 = vadd.f32 %v1771, %v2375
      %v2425 = vadd.f32 %v1772, %v2377
      %v2426 = vadd.f32 %v1773, %v2380
      %v2427 = vadd.f32 %v1774, %v2382
      %v2428 = vadd.f32 %v1775, %v2385
      %v2429 = vadd.f32 %v1776, %v2387
      %v2430 = vadd.f32 %v1777, %v2390
      %v2431 = vadd.f32 %v1778, %v2392
      %v2432 = vadd.f32 %v1779, %v2395
      %v2433 = vadd.f32 %v1780, %v2397
      %v2434 = vadd.f32 %v1781, %v2400
      %v2435 = vadd.f32 %v1782, %v2402
      %v2436 = vld [vmem:[%s1493] sm:$0xe]
      %v2437 = vld [vmem:[%s1493 + $0xc] sm:$0xe]
      %v2438 = vld [vmem:[%s1493 + $0x18] sm:$0xe]
      %v2439 = vld [vmem:[%s1493 + $0x24] sm:$0xe]
      %v2440 = vld [vmem:[%s1493 + $0x30] sm:$0xe]
      %v2441 = vld [vmem:[%s1493 + $0x3c] sm:$0xe]
      %v2442 = vld [vmem:[%s1493 + $0x48] sm:$0xe]
      %v2443 = vld [vmem:[%s1493 + $0x54] sm:$0xe]
      %v2444 = vld [vmem:[%s1493 + $0x60] sm:$0xe]
      %v2445 = vld [vmem:[%s1493 + $0x6c] sm:$0xe]
      %v2446 = vld [vmem:[%s1493 + $0x78] sm:$0xe]
      %v2447 = vld [vmem:[%s1493 + $0x84] sm:$0xe]
      %v2448 = vld [vmem:[%s1493 + $0x90] sm:$0xe]
      %v2449 = vld [vmem:[%s1493 + $0x9c] sm:$0xe]
      %v2450 = vld [vmem:[%s1493 + $0xa8] sm:$0xe]
      %v2451 = vld [vmem:[%s1493 + $0xb4] sm:$0xe]
      %v2500 = vrot.slane %v2436, 5
      %v2501 = vrot.slane %v2500, 4
      %v2502 = vrot.slane %v1784, 5
      %v2503 = vsel %vm1156, %v2501, %v2502
      %v2504 = vrot.slane %v2502, 4
      %v2505 = vrot.slane %v1785, 5
      %v2506 = vsel %vm1156, %v2504, %v2505
      %v2507 = vrot.slane %v2437, 5
      %v2508 = vrot.slane %v2507, 4
      %v2509 = vrot.slane %v1787, 5
      %v2510 = vsel %vm1156, %v2508, %v2509
      %v2511 = vrot.slane %v2509, 4
      %v2512 = vrot.slane %v1788, 5
      %v2513 = vsel %vm1156, %v2511, %v2512
      %v2514 = vrot.slane %v2438, 5
      %v2515 = vrot.slane %v2514, 4
      %v2516 = vrot.slane %v1790, 5
      %v2517 = vsel %vm1156, %v2515, %v2516
      %v2518 = vrot.slane %v2516, 4
      %v2519 = vrot.slane %v1791, 5
      %v2520 = vsel %vm1156, %v2518, %v2519
      %v2521 = vrot.slane %v2439, 5
      %v2522 = vrot.slane %v2521, 4
      %v2523 = vrot.slane %v1793, 5
      %v2524 = vsel %vm1156, %v2522, %v2523
      %v2525 = vrot.slane %v2523, 4
      %v2526 = vrot.slane %v1794, 5
      %v2527 = vsel %vm1156, %v2525, %v2526
      %v2528 = vrot.slane %v2440, 5
      %v2529 = vrot.slane %v2528, 4
      %v2530 = vrot.slane %v1796, 5
      %v2531 = vsel %vm1156, %v2529, %v2530
      %v2532 = vrot.slane %v2530, 4
      %v2533 = vrot.slane %v1797, 5
      %v2534 = vsel %vm1156, %v2532, %v2533
      %v2535 = vrot.slane %v2441, 5
      %v2536 = vrot.slane %v2535, 4
      %v2537 = vrot.slane %v1799, 5
      %v2538 = vsel %vm1156, %v2536, %v2537
      %v2539 = vrot.slane %v2537, 4
      %v2540 = vrot.slane %v1800, 5
      %v2541 = vsel %vm1156, %v2539, %v2540
      %v2542 = vrot.slane %v2442, 5
      %v2543 = vrot.slane %v2542, 4
      %v2544 = vrot.slane %v1802, 5
      %v2545 = vsel %vm1156, %v2543, %v2544
      %v2546 = vrot.slane %v2544, 4
      %v2547 = vrot.slane %v1803, 5
      %v2548 = vsel %vm1156, %v2546, %v2547
      %v2549 = vrot.slane %v2443, 5
      %v2550 = vrot.slane %v2549, 4
      %v2551 = vrot.slane %v1805, 5
      %v2552 = vsel %vm1156, %v2550, %v2551
      %v2553 = vrot.slane %v2551, 4
      %v2554 = vrot.slane %v1806, 5
      %v2555 = vsel %vm1156, %v2553, %v2554
      %v2556 = vrot.slane %v2444, 5
      %v2557 = vrot.slane %v2556, 4
      %v2558 = vrot.slane %v1808, 5
      %v2559 = vsel %vm1156, %v2557, %v2558
      %v2560 = vrot.slane %v2558, 4
      %v2561 = vrot.slane %v1809, 5
      %v2562 = vsel %vm1156, %v2560, %v2561
      %v2563 = vrot.slane %v2445, 5
      %v2564 = vrot.slane %v2563, 4
      %v2565 = vrot.slane %v1811, 5
      %v2566 = vsel %vm1156, %v2564, %v2565
      %v2567 = vrot.slane %v2565, 4
      %v2568 = vrot.slane %v1812, 5
      %v2569 = vsel %vm1156, %v2567, %v2568
      %v2570 = vrot.slane %v2446, 5
      %v2571 = vrot.slane %v2570, 4
      %v2572 = vrot.slane %v1814, 5
      %v2573 = vsel %vm1156, %v2571, %v2572
      %v2574 = vrot.slane %v2572, 4
      %v2575 = vrot.slane %v1815, 5
      %v2576 = vsel %vm1156, %v2574, %v2575
      %v2577 = vrot.slane %v2447, 5
      %v2578 = vrot.slane %v2577, 4
      %v2579 = vrot.slane %v1817, 5
      %v2580 = vsel %vm1156, %v2578, %v2579
      %v2581 = vrot.slane %v2579, 4
      %v2582 = vrot.slane %v1818, 5
      %v2583 = vsel %vm1156, %v2581, %v2582
      %v2584 = vrot.slane %v2448, 5
      %v2585 = vrot.slane %v2584, 4
      %v2586 = vrot.slane %v1820, 5
      %v2587 = vsel %vm1156, %v2585, %v2586
      %v2588 = vrot.slane %v2586, 4
      %v2589 = vrot.slane %v1821, 5
      %v2590 = vsel %vm1156, %v2588, %v2589
      %v2591 = vrot.slane %v2449, 5
      %v2592 = vrot.slane %v2591, 4
      %v2593 = vrot.slane %v1823, 5
      %v2594 = vsel %vm1156, %v2592, %v2593
      %v2595 = vrot.slane %v2593, 4
      %v2596 = vrot.slane %v1824, 5
      %v2597 = vsel %vm1156, %v2595, %v2596
      %v2598 = vrot.slane %v2450, 5
      %v2599 = vrot.slane %v2598, 4
      %v2600 = vrot.slane %v1826, 5
      %v2601 = vsel %vm1156, %v2599, %v2600
      %v2602 = vrot.slane %v2600, 4
      %v2603 = vrot.slane %v1827, 5
      %v2604 = vsel %vm1156, %v2602, %v2603
      %v2605 = vrot.slane %v2451, 5
      %v2606 = vrot.slane %v2605, 4
      %v2607 = vrot.slane %v1829, 5
      %v2608 = vsel %vm1156, %v2606, %v2607
      %v2609 = vrot.slane %v2607, 4
      %v2610 = vrot.slane %v1830, 5
      %v2611 = vsel %vm1156, %v2609, %v2610
      %v2612 = vld [vmem:[%s1 + $0x8] sm:$0xc]
      %v2613 = vunpack.c.l.b16 %v2503
      %v2614 = vunpack.c.l.b16 %v2506
      %v2615 = vunpack.c.l.b16 %v2510
      %v2616 = vunpack.c.l.b16 %v2513
      %v2617 = vunpack.c.l.b16 %v2517
      %v2618 = vunpack.c.l.b16 %v2520
      %v2619 = vunpack.c.l.b16 %v2524
      %v2620 = vunpack.c.l.b16 %v2527
      %v2621 = vunpack.c.l.b16 %v2531
      %v2622 = vunpack.c.l.b16 %v2534
      %v2623 = vunpack.c.l.b16 %v2538
      %v2624 = vunpack.c.l.b16 %v2541
      %v2625 = vunpack.c.l.b16 %v2545
      %v2626 = vunpack.c.l.b16 %v2548
      %v2627 = vunpack.c.l.b16 %v2552
      %v2628 = vunpack.c.l.b16 %v2555
      %v2629 = vunpack.c.l.b16 %v2559
      %v2630 = vunpack.c.l.b16 %v2562
      %v2631 = vunpack.c.l.b16 %v2566
      %v2632 = vunpack.c.l.b16 %v2569
      %v2633 = vunpack.c.l.b16 %v2573
      %v2634 = vunpack.c.l.b16 %v2576
      %v2635 = vunpack.c.l.b16 %v2580
      %v2636 = vunpack.c.l.b16 %v2583
      %v2637 = vunpack.c.l.b16 %v2587
      %v2638 = vunpack.c.l.b16 %v2590
      %v2639 = vunpack.c.l.b16 %v2594
      %v2640 = vunpack.c.l.b16 %v2597
      %v2641 = vunpack.c.l.b16 %v2601
      %v2642 = vunpack.c.l.b16 %v2604
      %v2643 = vunpack.c.l.b16 %v2608
      %v2644 = vunpack.c.l.b16 %v2611
      %v2645 = vpack.c.b16 %v2614, %v2613
      %v2646 = vpack.c.b16 %v2616, %v2615
      %v2647 = vpack.c.b16 %v2618, %v2617
      %v2648 = vpack.c.b16 %v2620, %v2619
      %v2649 = vpack.c.b16 %v2622, %v2621
      %v2650 = vpack.c.b16 %v2624, %v2623
      %v2651 = vpack.c.b16 %v2626, %v2625
      %v2652 = vpack.c.b16 %v2628, %v2627
      %v2653 = vpack.c.b16 %v2630, %v2629
      %v2654 = vpack.c.b16 %v2632, %v2631
      %v2655 = vpack.c.b16 %v2634, %v2633
      %v2656 = vpack.c.b16 %v2636, %v2635
      %v2657 = vpack.c.b16 %v2638, %v2637
      %v2658 = vpack.c.b16 %v2640, %v2639
      %v2659 = vpack.c.b16 %v2642, %v2641
      %v2660 = vpack.c.b16 %v2644, %v2643
      %v2662 = vunpack.c.l.b16 %v2612
      %v2663 = vpack.c.b16 %v2662, %v2662
      %v2664 = vrot.slane %v2663, 2
      %v2666 = vsel %vm744, %v2645, 0
      %v2669 = vsel %vm744, %v2646, 0
      %v2672 = vsel %vm744, %v2647, 0
      %v2675 = vsel %vm744, %v2648, 0
      %v2678 = vsel %vm744, %v2649, 0
      %v2681 = vsel %vm744, %v2650, 0
      %v2684 = vsel %vm744, %v2651, 0
      %v2687 = vsel %vm744, %v2652, 0
      %v2690 = vsel %vm744, %v2653, 0
      %v2693 = vsel %vm744, %v2654, 0
      %v2696 = vsel %vm744, %v2655, 0
      %v2699 = vsel %vm744, %v2656, 0
      %v2702 = vsel %vm744, %v2657, 0
      %v2705 = vsel %vm744, %v2658, 0
      %v2708 = vsel %vm744, %v2659, 0
      %v2711 = vsel %vm744, %v2660, 0
      %v2714 = vsel %vm793, %v2664, 0
      %2716 = vmatpush.bf16.msra.mxu0 0
      %2717 = vmatpush.bf16.msra.mxu0 0
      %2718 = vmatpush.bf16.msra.mxu0 0
      %2719 = vmatpush.bf16.msra.mxu0 0
      %2720 = vmatpush.bf16.msra.mxu0 0
      %2721 = vmatpush.bf16.msra.mxu0 0
      %2722 = vmatpush.bf16.msra.mxu0 0
      %2723 = vmatpush.bf16.msra.mxu0 %v2714
      %2724 = vmatmul.bf16.gmra.mxu0 %v2666
      %v2725 = vpop.f32.mrf.mxu0
      %v2726 = vadd.f32 0.0, %v2725
      %v2727 = vpop.f32.mrf.mxu0
      %v2728 = vadd.f32 0.0, %v2727
      %2729 = vmatmul.bf16.gmra.mxu0 %v2669
      %v2730 = vpop.f32.mrf.mxu0
      %v2731 = vadd.f32 0.0, %v2730
      %v2732 = vpop.f32.mrf.mxu0
      %v2733 = vadd.f32 0.0, %v2732
      %2734 = vmatmul.bf16.gmra.mxu0 %v2672
      %v2735 = vpop.f32.mrf.mxu0
      %v2736 = vadd.f32 0.0, %v2735
      %v2737 = vpop.f32.mrf.mxu0
      %v2738 = vadd.f32 0.0, %v2737
      %2739 = vmatmul.bf16.gmra.mxu0 %v2675
      %v2740 = vpop.f32.mrf.mxu0
      %v2741 = vadd.f32 0.0, %v2740
      %v2742 = vpop.f32.mrf.mxu0
      %v2743 = vadd.f32 0.0, %v2742
      %2744 = vmatmul.bf16.gmra.mxu0 %v2678
      %v2745 = vpop.f32.mrf.mxu0
      %v2746 = vadd.f32 0.0, %v2745
      %v2747 = vpop.f32.mrf.mxu0
      %v2748 = vadd.f32 0.0, %v2747
      %2749 = vmatmul.bf16.gmra.mxu0 %v2681
      %v2750 = vpop.f32.mrf.mxu0
      %v2751 = vadd.f32 0.0, %v2750
      %v2752 = vpop.f32.mrf.mxu0
      %v2753 = vadd.f32 0.0, %v2752
      %2754 = vmatmul.bf16.gmra.mxu0 %v2684
      %v2755 = vpop.f32.mrf.mxu0
      %v2756 = vadd.f32 0.0, %v2755
      %v2757 = vpop.f32.mrf.mxu0
      %v2758 = vadd.f32 0.0, %v2757
      %2759 = vmatmul.bf16.gmra.mxu0 %v2687
      %v2760 = vpop.f32.mrf.mxu0
      %v2761 = vadd.f32 0.0, %v2760
      %v2762 = vpop.f32.mrf.mxu0
      %v2763 = vadd.f32 0.0, %v2762
      %2764 = vmatmul.bf16.gmra.mxu0 %v2690
      %v2765 = vpop.f32.mrf.mxu0
      %v2766 = vadd.f32 0.0, %v2765
      %v2767 = vpop.f32.mrf.mxu0
      %v2768 = vadd.f32 0.0, %v2767
      %2769 = vmatmul.bf16.gmra.mxu0 %v2693
      %v2770 = vpop.f32.mrf.mxu0
      %v2771 = vadd.f32 0.0, %v2770
      %v2772 = vpop.f32.mrf.mxu0
      %v2773 = vadd.f32 0.0, %v2772
      %2774 = vmatmul.bf16.gmra.mxu0 %v2696
      %v2775 = vpop.f32.mrf.mxu0
      %v2776 = vadd.f32 0.0, %v2775
      %v2777 = vpop.f32.mrf.mxu0
      %v2778 = vadd.f32 0.0, %v2777
      %2779 = vmatmul.bf16.gmra.mxu0 %v2699
      %v2780 = vpop.f32.mrf.mxu0
      %v2781 = vadd.f32 0.0, %v2780
      %v2782 = vpop.f32.mrf.mxu0
      %v2783 = vadd.f32 0.0, %v2782
      %2784 = vmatmul.bf16.gmra.mxu0 %v2702
      %v2785 = vpop.f32.mrf.mxu0
      %v2786 = vadd.f32 0.0, %v2785
      %v2787 = vpop.f32.mrf.mxu0
      %v2788 = vadd.f32 0.0, %v2787
      %2789 = vmatmul.bf16.gmra.mxu0 %v2705
      %v2790 = vpop.f32.mrf.mxu0
      %v2791 = vadd.f32 0.0, %v2790
      %v2792 = vpop.f32.mrf.mxu0
      %v2793 = vadd.f32 0.0, %v2792
      %2794 = vmatmul.bf16.gmra.mxu0 %v2708
      %v2795 = vpop.f32.mrf.mxu0
      %v2796 = vadd.f32 0.0, %v2795
      %v2797 = vpop.f32.mrf.mxu0
      %v2798 = vadd.f32 0.0, %v2797
      %2799 = vmatmul.bf16.gmra.mxu0 %v2711
      %v2800 = vpop.f32.mrf.mxu0
      %v2801 = vadd.f32 0.0, %v2800
      %v2802 = vpop.f32.mrf.mxu0
      %v2803 = vadd.f32 0.0, %v2802
      %2804 = vdwg.mxu0
      %v2805 = vadd.f32 %v2404, %v2726
      %v2806 = vadd.f32 %v2405, %v2728
      %v2807 = vadd.f32 %v2406, %v2731
      %v2808 = vadd.f32 %v2407, %v2733
      %v2809 = vadd.f32 %v2408, %v2736
      %v2810 = vadd.f32 %v2409, %v2738
      %v2811 = vadd.f32 %v2410, %v2741
      %v2812 = vadd.f32 %v2411, %v2743
      %v2813 = vadd.f32 %v2412, %v2746
      %v2814 = vadd.f32 %v2413, %v2748
      %v2815 = vadd.f32 %v2414, %v2751
      %v2816 = vadd.f32 %v2415, %v2753
      %v2817 = vadd.f32 %v2416, %v2756
      %v2818 = vadd.f32 %v2417, %v2758
      %v2819 = vadd.f32 %v2418, %v2761
      %v2820 = vadd.f32 %v2419, %v2763
      %v2821 = vadd.f32 %v2420, %v2766
      %v2822 = vadd.f32 %v2421, %v2768
      %v2823 = vadd.f32 %v2422, %v2771
      %v2824 = vadd.f32 %v2423, %v2773
      %v2825 = vadd.f32 %v2424, %v2776
      %v2826 = vadd.f32 %v2425, %v2778
      %v2827 = vadd.f32 %v2426, %v2781
      %v2828 = vadd.f32 %v2427, %v2783
      %v2829 = vadd.f32 %v2428, %v2786
      %v2830 = vadd.f32 %v2429, %v2788
      %v2831 = vadd.f32 %v2430, %v2791
      %v2832 = vadd.f32 %v2431, %v2793
      %v2833 = vadd.f32 %v2432, %v2796
      %v2834 = vadd.f32 %v2433, %v2798
      %v2835 = vadd.f32 %v2434, %v2801
      %v2836 = vadd.f32 %v2435, %v2803
      %s2837 = sadd.s32 %s251, 2
      %s2838 = smul.u32 %s2837, 3
      %s2839 = smul.addr %s2838, 4
      %s2840 = scalar_lea.vmem %s238, %s2839
      %v2841 = vld [vmem:[%s2840] sm:$0xf]
      %v2842 = vld [vmem:[%s2840 + $0x4] sm:$0xf]
      %v2843 = vld [vmem:[%s2840 + $0xc] sm:$0xf]
      %v2844 = vld [vmem:[%s2840 + $0x10] sm:$0xf]
      %v2845 = vld [vmem:[%s2840 + $0x18] sm:$0xf]
      %v2846 = vld [vmem:[%s2840 + $0x1c] sm:$0xf]
      %v2847 = vld [vmem:[%s2840 + $0x24] sm:$0xf]
      %v2848 = vld [vmem:[%s2840 + $0x28] sm:$0xf]
      %v2849 = vld [vmem:[%s2840 + $0x30] sm:$0xf]
      %v2850 = vld [vmem:[%s2840 + $0x34] sm:$0xf]
      %v2851 = vld [vmem:[%s2840 + $0x3c] sm:$0xf]
      %v2852 = vld [vmem:[%s2840 + $0x40] sm:$0xf]
      %v2853 = vld [vmem:[%s2840 + $0x48] sm:$0xf]
      %v2854 = vld [vmem:[%s2840 + $0x4c] sm:$0xf]
      %v2855 = vld [vmem:[%s2840 + $0x54] sm:$0xf]
      %v2856 = vld [vmem:[%s2840 + $0x58] sm:$0xf]
      %v2857 = vld [vmem:[%s2840 + $0x60] sm:$0xf]
      %v2858 = vld [vmem:[%s2840 + $0x64] sm:$0xf]
      %v2859 = vld [vmem:[%s2840 + $0x6c] sm:$0xf]
      %v2860 = vld [vmem:[%s2840 + $0x70] sm:$0xf]
      %v2861 = vld [vmem:[%s2840 + $0x78] sm:$0xf]
      %v2862 = vld [vmem:[%s2840 + $0x7c] sm:$0xf]
      %v2863 = vld [vmem:[%s2840 + $0x84] sm:$0xf]
      %v2864 = vld [vmem:[%s2840 + $0x88] sm:$0xf]
      %v2865 = vld [vmem:[%s2840 + $0x90] sm:$0xf]
      %v2866 = vld [vmem:[%s2840 + $0x94] sm:$0xf]
      %v2867 = vld [vmem:[%s2840 + $0x9c] sm:$0xf]
      %v2868 = vld [vmem:[%s2840 + $0xa0] sm:$0xf]
      %v2869 = vld [vmem:[%s2840 + $0xa8] sm:$0xf]
      %v2870 = vld [vmem:[%s2840 + $0xac] sm:$0xf]
      %v2871 = vld [vmem:[%s2840 + $0xb4] sm:$0xf]
      %v2872 = vld [vmem:[%s2840 + $0xb8] sm:$0xf]
      %v2873 = vld [vmem:[%s1 + $0xc] sm:$0x3]
      %v2906 = vunpack.c.l.b16 %v2841
      %v2907 = vunpack.c.l.b16 %v2842
      %v2908 = vunpack.c.l.b16 %v2843
      %v2909 = vunpack.c.l.b16 %v2844
      %v2910 = vunpack.c.l.b16 %v2845
      %v2911 = vunpack.c.l.b16 %v2846
      %v2912 = vunpack.c.l.b16 %v2847
      %v2913 = vunpack.c.l.b16 %v2848
      %v2914 = vunpack.c.l.b16 %v2849
      %v2915 = vunpack.c.l.b16 %v2850
      %v2916 = vunpack.c.l.b16 %v2851
      %v2917 = vunpack.c.l.b16 %v2852
      %v2918 = vunpack.c.l.b16 %v2853
      %v2919 = vunpack.c.l.b16 %v2854
      %v2920 = vunpack.c.l.b16 %v2855
      %v2921 = vunpack.c.l.b16 %v2856
      %v2922 = vunpack.c.l.b16 %v2857
      %v2923 = vunpack.c.l.b16 %v2858
      %v2924 = vunpack.c.l.b16 %v2859
      %v2925 = vunpack.c.l.b16 %v2860
      %v2926 = vunpack.c.l.b16 %v2861
      %v2927 = vunpack.c.l.b16 %v2862
      %v2928 = vunpack.c.l.b16 %v2863
      %v2929 = vunpack.c.l.b16 %v2864
      %v2930 = vunpack.c.l.b16 %v2865
      %v2931 = vunpack.c.l.b16 %v2866
      %v2932 = vunpack.c.l.b16 %v2867
      %v2933 = vunpack.c.l.b16 %v2868
      %v2934 = vunpack.c.l.b16 %v2869
      %v2935 = vunpack.c.l.b16 %v2870
      %v2936 = vunpack.c.l.b16 %v2871
      %v2937 = vunpack.c.l.b16 %v2872
      %v2938 = vpack.c.b16 %v2907, %v2906
      %v2939 = vpack.c.b16 %v2909, %v2908
      %v2940 = vpack.c.b16 %v2911, %v2910
      %v2941 = vpack.c.b16 %v2913, %v2912
      %v2942 = vpack.c.b16 %v2915, %v2914
      %v2943 = vpack.c.b16 %v2917, %v2916
      %v2944 = vpack.c.b16 %v2919, %v2918
      %v2945 = vpack.c.b16 %v2921, %v2920
      %v2946 = vpack.c.b16 %v2923, %v2922
      %v2947 = vpack.c.b16 %v2925, %v2924
      %v2948 = vpack.c.b16 %v2927, %v2926
      %v2949 = vpack.c.b16 %v2929, %v2928
      %v2950 = vpack.c.b16 %v2931, %v2930
      %v2951 = vpack.c.b16 %v2933, %v2932
      %v2952 = vpack.c.b16 %v2935, %v2934
      %v2953 = vpack.c.b16 %v2937, %v2936
      %v2955 = vsel %vm744, %v2938, 0
      %v2958 = vsel %vm744, %v2939, 0
      %v2961 = vsel %vm744, %v2940, 0
      %v2964 = vsel %vm744, %v2941, 0
      %v2967 = vsel %vm744, %v2942, 0
      %v2970 = vsel %vm744, %v2943, 0
      %v2973 = vsel %vm744, %v2944, 0
      %v2976 = vsel %vm744, %v2945, 0
      %v2979 = vsel %vm744, %v2946, 0
      %v2982 = vsel %vm744, %v2947, 0
      %v2985 = vsel %vm744, %v2948, 0
      %v2988 = vsel %vm744, %v2949, 0
      %v2991 = vsel %vm744, %v2950, 0
      %v2994 = vsel %vm744, %v2951, 0
      %v2997 = vsel %vm744, %v2952, 0
      %v3000 = vsel %vm744, %v2953, 0
      %v3003 = vsel %vm793, %v2873, 0
      %3005 = vmatpush.bf16.msra.mxu0 0
      %3006 = vmatpush.bf16.msra.mxu0 0
      %3007 = vmatpush.bf16.msra.mxu0 0
      %3008 = vmatpush.bf16.msra.mxu0 0
      %3009 = vmatpush.bf16.msra.mxu0 0
      %3010 = vmatpush.bf16.msra.mxu0 0
      %3011 = vmatpush.bf16.msra.mxu0 0
      %3012 = vmatpush.bf16.msra.mxu0 %v3003
      %3013 = vmatmul.bf16.gmra.mxu0 %v2955
      %v3014 = vpop.f32.mrf.mxu0
      %v3015 = vadd.f32 0.0, %v3014
      %v3016 = vpop.f32.mrf.mxu0
      %v3017 = vadd.f32 0.0, %v3016
      %3018 = vmatmul.bf16.gmra.mxu0 %v2958
      %v3019 = vpop.f32.mrf.mxu0
      %v3020 = vadd.f32 0.0, %v3019
      %v3021 = vpop.f32.mrf.mxu0
      %v3022 = vadd.f32 0.0, %v3021
      %3023 = vmatmul.bf16.gmra.mxu0 %v2961
      %v3024 = vpop.f32.mrf.mxu0
      %v3025 = vadd.f32 0.0, %v3024
      %v3026 = vpop.f32.mrf.mxu0
      %v3027 = vadd.f32 0.0, %v3026
      %3028 = vmatmul.bf16.gmra.mxu0 %v2964
      %v3029 = vpop.f32.mrf.mxu0
      %v3030 = vadd.f32 0.0, %v3029
      %v3031 = vpop.f32.mrf.mxu0
      %v3032 = vadd.f32 0.0, %v3031
      %3033 = vmatmul.bf16.gmra.mxu0 %v2967
      %v3034 = vpop.f32.mrf.mxu0
      %v3035 = vadd.f32 0.0, %v3034
      %v3036 = vpop.f32.mrf.mxu0
      %v3037 = vadd.f32 0.0, %v3036
      %3038 = vmatmul.bf16.gmra.mxu0 %v2970
      %v3039 = vpop.f32.mrf.mxu0
      %v3040 = vadd.f32 0.0, %v3039
      %v3041 = vpop.f32.mrf.mxu0
      %v3042 = vadd.f32 0.0, %v3041
      %3043 = vmatmul.bf16.gmra.mxu0 %v2973
      %v3044 = vpop.f32.mrf.mxu0
      %v3045 = vadd.f32 0.0, %v3044
      %v3046 = vpop.f32.mrf.mxu0
      %v3047 = vadd.f32 0.0, %v3046
      %3048 = vmatmul.bf16.gmra.mxu0 %v2976
      %v3049 = vpop.f32.mrf.mxu0
      %v3050 = vadd.f32 0.0, %v3049
      %v3051 = vpop.f32.mrf.mxu0
      %v3052 = vadd.f32 0.0, %v3051
      %3053 = vmatmul.bf16.gmra.mxu0 %v2979
      %v3054 = vpop.f32.mrf.mxu0
      %v3055 = vadd.f32 0.0, %v3054
      %v3056 = vpop.f32.mrf.mxu0
      %v3057 = vadd.f32 0.0, %v3056
      %3058 = vmatmul.bf16.gmra.mxu0 %v2982
      %v3059 = vpop.f32.mrf.mxu0
      %v3060 = vadd.f32 0.0, %v3059
      %v3061 = vpop.f32.mrf.mxu0
      %v3062 = vadd.f32 0.0, %v3061
      %3063 = vmatmul.bf16.gmra.mxu0 %v2985
      %v3064 = vpop.f32.mrf.mxu0
      %v3065 = vadd.f32 0.0, %v3064
      %v3066 = vpop.f32.mrf.mxu0
      %v3067 = vadd.f32 0.0, %v3066
      %3068 = vmatmul.bf16.gmra.mxu0 %v2988
      %v3069 = vpop.f32.mrf.mxu0
      %v3070 = vadd.f32 0.0, %v3069
      %v3071 = vpop.f32.mrf.mxu0
      %v3072 = vadd.f32 0.0, %v3071
      %3073 = vmatmul.bf16.gmra.mxu0 %v2991
      %v3074 = vpop.f32.mrf.mxu0
      %v3075 = vadd.f32 0.0, %v3074
      %v3076 = vpop.f32.mrf.mxu0
      %v3077 = vadd.f32 0.0, %v3076
      %3078 = vmatmul.bf16.gmra.mxu0 %v2994
      %v3079 = vpop.f32.mrf.mxu0
      %v3080 = vadd.f32 0.0, %v3079
      %v3081 = vpop.f32.mrf.mxu0
      %v3082 = vadd.f32 0.0, %v3081
      %3083 = vmatmul.bf16.gmra.mxu0 %v2997
      %v3084 = vpop.f32.mrf.mxu0
      %v3085 = vadd.f32 0.0, %v3084
      %v3086 = vpop.f32.mrf.mxu0
      %v3087 = vadd.f32 0.0, %v3086
      %3088 = vmatmul.bf16.gmra.mxu0 %v3000
      %v3089 = vpop.f32.mrf.mxu0
      %v3090 = vadd.f32 0.0, %v3089
      %v3091 = vpop.f32.mrf.mxu0
      %v3092 = vadd.f32 0.0, %v3091
      %3093 = vdwg.mxu0
      %v3094 = vadd.f32 %v2805, %v3015
      %v3095 = vadd.f32 %v2806, %v3017
      %v3096 = vadd.f32 %v2807, %v3020
      %v3097 = vadd.f32 %v2808, %v3022
      %v3098 = vadd.f32 %v2809, %v3025
      %v3099 = vadd.f32 %v2810, %v3027
      %v3100 = vadd.f32 %v2811, %v3030
      %v3101 = vadd.f32 %v2812, %v3032
      %v3102 = vadd.f32 %v2813, %v3035
      %v3103 = vadd.f32 %v2814, %v3037
      %v3104 = vadd.f32 %v2815, %v3040
      %v3105 = vadd.f32 %v2816, %v3042
      %v3106 = vadd.f32 %v2817, %v3045
      %v3107 = vadd.f32 %v2818, %v3047
      %v3108 = vadd.f32 %v2819, %v3050
      %v3109 = vadd.f32 %v2820, %v3052
      %v3110 = vadd.f32 %v2821, %v3055
      %v3111 = vadd.f32 %v2822, %v3057
      %v3112 = vadd.f32 %v2823, %v3060
      %v3113 = vadd.f32 %v2824, %v3062
      %v3114 = vadd.f32 %v2825, %v3065
      %v3115 = vadd.f32 %v2826, %v3067
      %v3116 = vadd.f32 %v2827, %v3070
      %v3117 = vadd.f32 %v2828, %v3072
      %v3118 = vadd.f32 %v2829, %v3075
      %v3119 = vadd.f32 %v2830, %v3077
      %v3120 = vadd.f32 %v2831, %v3080
      %v3121 = vadd.f32 %v2832, %v3082
      %v3122 = vadd.f32 %v2833, %v3085
      %v3123 = vadd.f32 %v2834, %v3087
      %v3124 = vadd.f32 %v2835, %v3090
      %v3125 = vadd.f32 %v2836, %v3092
      %v3126 = vld [vmem:[%s2840] sm:$0xf]
      %v3127 = vld [vmem:[%s2840 + $0x4] sm:$0xf]
      %v3128 = vld [vmem:[%s2840 + $0x8] sm:$0x1]
      %v3129 = vld [vmem:[%s2840 + $0xc] sm:$0xf]
      %v3130 = vld [vmem:[%s2840 + $0x10] sm:$0xf]
      %v3131 = vld [vmem:[%s2840 + $0x14] sm:$0x1]
      %v3132 = vld [vmem:[%s2840 + $0x18] sm:$0xf]
      %v3133 = vld [vmem:[%s2840 + $0x1c] sm:$0xf]
      %v3134 = vld [vmem:[%s2840 + $0x20] sm:$0x1]
      %v3135 = vld [vmem:[%s2840 + $0x24] sm:$0xf]
      %v3136 = vld [vmem:[%s2840 + $0x28] sm:$0xf]
      %v3137 = vld [vmem:[%s2840 + $0x2c] sm:$0x1]
      %v3138 = vld [vmem:[%s2840 + $0x30] sm:$0xf]
      %v3139 = vld [vmem:[%s2840 + $0x34] sm:$0xf]
      %v3140 = vld [vmem:[%s2840 + $0x38] sm:$0x1]
      %v3141 = vld [vmem:[%s2840 + $0x3c] sm:$0xf]
      %v3142 = vld [vmem:[%s2840 + $0x40] sm:$0xf]
      %v3143 = vld [vmem:[%s2840 + $0x44] sm:$0x1]
      %v3144 = vld [vmem:[%s2840 + $0x48] sm:$0xf]
      %v3145 = vld [vmem:[%s2840 + $0x4c] sm:$0xf]
      %v3146 = vld [vmem:[%s2840 + $0x50] sm:$0x1]
      %v3147 = vld [vmem:[%s2840 + $0x54] sm:$0xf]
      %v3148 = vld [vmem:[%s2840 + $0x58] sm:$0xf]
      %v3149 = vld [vmem:[%s2840 + $0x5c] sm:$0x1]
      %v3150 = vld [vmem:[%s2840 + $0x60] sm:$0xf]
      %v3151 = vld [vmem:[%s2840 + $0x64] sm:$0xf]
      %v3152 = vld [vmem:[%s2840 + $0x68] sm:$0x1]
      %v3153 = vld [vmem:[%s2840 + $0x6c] sm:$0xf]
      %v3154 = vld [vmem:[%s2840 + $0x70] sm:$0xf]
      %v3155 = vld [vmem:[%s2840 + $0x74] sm:$0x1]
      %v3156 = vld [vmem:[%s2840 + $0x78] sm:$0xf]
      %v3157 = vld [vmem:[%s2840 + $0x7c] sm:$0xf]
      %v3158 = vld [vmem:[%s2840 + $0x80] sm:$0x1]
      %v3159 = vld [vmem:[%s2840 + $0x84] sm:$0xf]
      %v3160 = vld [vmem:[%s2840 + $0x88] sm:$0xf]
      %v3161 = vld [vmem:[%s2840 + $0x8c] sm:$0x1]
      %v3162 = vld [vmem:[%s2840 + $0x90] sm:$0xf]
      %v3163 = vld [vmem:[%s2840 + $0x94] sm:$0xf]
      %v3164 = vld [vmem:[%s2840 + $0x98] sm:$0x1]
      %v3165 = vld [vmem:[%s2840 + $0x9c] sm:$0xf]
      %v3166 = vld [vmem:[%s2840 + $0xa0] sm:$0xf]
      %v3167 = vld [vmem:[%s2840 + $0xa4] sm:$0x1]
      %v3168 = vld [vmem:[%s2840 + $0xa8] sm:$0xf]
      %v3169 = vld [vmem:[%s2840 + $0xac] sm:$0xf]
      %v3170 = vld [vmem:[%s2840 + $0xb0] sm:$0x1]
      %v3171 = vld [vmem:[%s2840 + $0xb4] sm:$0xf]
      %v3172 = vld [vmem:[%s2840 + $0xb8] sm:$0xf]
      %v3173 = vld [vmem:[%s2840 + $0xbc] sm:$0x1]
      %v3175 = vshrl.u32 %v3126, 16
      %v3177 = vrot.slane %v3175, 4
      %v3178 = vshll.u32 %v3126, 16
      %v3180 = vrot.slane %v3178, 5
      %v3181 = vor.u32 %v3177, %v3180
      %v3182 = vrot.slane %v3181, 4
      %v3184 = vshll.u32 %v3127, 16
      %v3186 = vrot.slane %v3184, 5
      %v3187 = vsel %vm306, %v3182, %v3186
      %v3188 = vshrl.u32 %v3127, 16
      %v3190 = vrot.slane %v3188, 4
      %v3191 = vor.u32 %v3190, %v3186
      %v3192 = vrot.slane %v3191, 4
      %v3194 = vshll.u32 %v3128, 16
      %v3196 = vrot.slane %v3194, 5
      %v3197 = vsel %vm306, %v3192, %v3196
      %v3199 = vshrl.u32 %v3129, 16
      %v3201 = vrot.slane %v3199, 4
      %v3202 = vshll.u32 %v3129, 16
      %v3204 = vrot.slane %v3202, 5
      %v3205 = vor.u32 %v3201, %v3204
      %v3206 = vrot.slane %v3205, 4
      %v3208 = vshll.u32 %v3130, 16
      %v3210 = vrot.slane %v3208, 5
      %v3211 = vsel %vm306, %v3206, %v3210
      %v3212 = vshrl.u32 %v3130, 16
      %v3214 = vrot.slane %v3212, 4
      %v3215 = vor.u32 %v3214, %v3210
      %v3216 = vrot.slane %v3215, 4
      %v3218 = vshll.u32 %v3131, 16
      %v3220 = vrot.slane %v3218, 5
      %v3221 = vsel %vm306, %v3216, %v3220
      %v3223 = vshrl.u32 %v3132, 16
      %v3225 = vrot.slane %v3223, 4
      %v3226 = vshll.u32 %v3132, 16
      %v3228 = vrot.slane %v3226, 5
      %v3229 = vor.u32 %v3225, %v3228
      %v3230 = vrot.slane %v3229, 4
      %v3232 = vshll.u32 %v3133, 16
      %v3234 = vrot.slane %v3232, 5
      %v3235 = vsel %vm306, %v3230, %v3234
      %v3236 = vshrl.u32 %v3133, 16
      %v3238 = vrot.slane %v3236, 4
      %v3239 = vor.u32 %v3238, %v3234
      %v3240 = vrot.slane %v3239, 4
      %v3242 = vshll.u32 %v3134, 16
      %v3244 = vrot.slane %v3242, 5
      %v3245 = vsel %vm306, %v3240, %v3244
      %v3247 = vshrl.u32 %v3135, 16
      %v3249 = vrot.slane %v3247, 4
      %v3250 = vshll.u32 %v3135, 16
      %v3252 = vrot.slane %v3250, 5
      %v3253 = vor.u32 %v3249, %v3252
      %v3254 = vrot.slane %v3253, 4
      %v3256 = vshll.u32 %v3136, 16
      %v3258 = vrot.slane %v3256, 5
      %v3259 = vsel %vm306, %v3254, %v3258
      %v3260 = vshrl.u32 %v3136, 16
      %v3262 = vrot.slane %v3260, 4
      %v3263 = vor.u32 %v3262, %v3258
      %v3264 = vrot.slane %v3263, 4
      %v3266 = vshll.u32 %v3137, 16
      %v3268 = vrot.slane %v3266, 5
      %v3269 = vsel %vm306, %v3264, %v3268
      %v3271 = vshrl.u32 %v3138, 16
      %v3273 = vrot.slane %v3271, 4
      %v3274 = vshll.u32 %v3138, 16
      %v3276 = vrot.slane %v3274, 5
      %v3277 = vor.u32 %v3273, %v3276
      %v3278 = vrot.slane %v3277, 4
      %v3280 = vshll.u32 %v3139, 16
      %v3282 = vrot.slane %v3280, 5
      %v3283 = vsel %vm306, %v3278, %v3282
      %v3284 = vshrl.u32 %v3139, 16
      %v3286 = vrot.slane %v3284, 4
      %v3287 = vor.u32 %v3286, %v3282
      %v3288 = vrot.slane %v3287, 4
      %v3290 = vshll.u32 %v3140, 16
      %v3292 = vrot.slane %v3290, 5
      %v3293 = vsel %vm306, %v3288, %v3292
      %v3295 = vshrl.u32 %v3141, 16
      %v3297 = vrot.slane %v3295, 4
      %v3298 = vshll.u32 %v3141, 16
      %v3300 = vrot.slane %v3298, 5
      %v3301 = vor.u32 %v3297, %v3300
      %v3302 = vrot.slane %v3301, 4
      %v3304 = vshll.u32 %v3142, 16
      %v3306 = vrot.slane %v3304, 5
      %v3307 = vsel %vm306, %v3302, %v3306
      %v3308 = vshrl.u32 %v3142, 16
      %v3310 = vrot.slane %v3308, 4
      %v3311 = vor.u32 %v3310, %v3306
      %v3312 = vrot.slane %v3311, 4
      %v3314 = vshll.u32 %v3143, 16
      %v3316 = vrot.slane %v3314, 5
      %v3317 = vsel %vm306, %v3312, %v3316
      %v3319 = vshrl.u32 %v3144, 16
      %v3321 = vrot.slane %v3319, 4
      %v3322 = vshll.u32 %v3144, 16
      %v3324 = vrot.slane %v3322, 5
      %v3325 = vor.u32 %v3321, %v3324
      %v3326 = vrot.slane %v3325, 4
      %v3328 = vshll.u32 %v3145, 16
      %v3330 = vrot.slane %v3328, 5
      %v3331 = vsel %vm306, %v3326, %v3330
      %v3332 = vshrl.u32 %v3145, 16
      %v3334 = vrot.slane %v3332, 4
      %v3335 = vor.u32 %v3334, %v3330
      %v3336 = vrot.slane %v3335, 4
      %v3338 = vshll.u32 %v3146, 16
      %v3340 = vrot.slane %v3338, 5
      %v3341 = vsel %vm306, %v3336, %v3340
      %v3343 = vshrl.u32 %v3147, 16
      %v3345 = vrot.slane %v3343, 4
      %v3346 = vshll.u32 %v3147, 16
      %v3348 = vrot.slane %v3346, 5
      %v3349 = vor.u32 %v3345, %v3348
      %v3350 = vrot.slane %v3349, 4
      %v3352 = vshll.u32 %v3148, 16
      %v3354 = vrot.slane %v3352, 5
      %v3355 = vsel %vm306, %v3350, %v3354
      %v3356 = vshrl.u32 %v3148, 16
      %v3358 = vrot.slane %v3356, 4
      %v3359 = vor.u32 %v3358, %v3354
      %v3360 = vrot.slane %v3359, 4
      %v3362 = vshll.u32 %v3149, 16
      %v3364 = vrot.slane %v3362, 5
      %v3365 = vsel %vm306, %v3360, %v3364
      %v3367 = vshrl.u32 %v3150, 16
      %v3369 = vrot.slane %v3367, 4
      %v3370 = vshll.u32 %v3150, 16
      %v3372 = vrot.slane %v3370, 5
      %v3373 = vor.u32 %v3369, %v3372
      %v3374 = vrot.slane %v3373, 4
      %v3376 = vshll.u32 %v3151, 16
      %v3378 = vrot.slane %v3376, 5
      %v3379 = vsel %vm306, %v3374, %v3378
      %v3380 = vshrl.u32 %v3151, 16
      %v3382 = vrot.slane %v3380, 4
      %v3383 = vor.u32 %v3382, %v3378
      %v3384 = vrot.slane %v3383, 4
      %v3386 = vshll.u32 %v3152, 16
      %v3388 = vrot.slane %v3386, 5
      %v3389 = vsel %vm306, %v3384, %v3388
      %v3391 = vshrl.u32 %v3153, 16
      %v3393 = vrot.slane %v3391, 4
      %v3394 = vshll.u32 %v3153, 16
      %v3396 = vrot.slane %v3394, 5
      %v3397 = vor.u32 %v3393, %v3396
      %v3398 = vrot.slane %v3397, 4
      %v3400 = vshll.u32 %v3154, 16
      %v3402 = vrot.slane %v3400, 5
      %v3403 = vsel %vm306, %v3398, %v3402
      %v3404 = vshrl.u32 %v3154, 16
      %v3406 = vrot.slane %v3404, 4
      %v3407 = vor.u32 %v3406, %v3402
      %v3408 = vrot.slane %v3407, 4
      %v3410 = vshll.u32 %v3155, 16
      %v3412 = vrot.slane %v3410, 5
      %v3413 = vsel %vm306, %v3408, %v3412
      %v3415 = vshrl.u32 %v3156, 16
      %v3417 = vrot.slane %v3415, 4
      %v3418 = vshll.u32 %v3156, 16
      %v3420 = vrot.slane %v3418, 5
      %v3421 = vor.u32 %v3417, %v3420
      %v3422 = vrot.slane %v3421, 4
      %v3424 = vshll.u32 %v3157, 16
      %v3426 = vrot.slane %v3424, 5
      %v3427 = vsel %vm306, %v3422, %v3426
      %v3428 = vshrl.u32 %v3157, 16
      %v3430 = vrot.slane %v3428, 4
      %v3431 = vor.u32 %v3430, %v3426
      %v3432 = vrot.slane %v3431, 4
      %v3434 = vshll.u32 %v3158, 16
      %v3436 = vrot.slane %v3434, 5
      %v3437 = vsel %vm306, %v3432, %v3436
      %v3439 = vshrl.u32 %v3159, 16
      %v3441 = vrot.slane %v3439, 4
      %v3442 = vshll.u32 %v3159, 16
      %v3444 = vrot.slane %v3442, 5
      %v3445 = vor.u32 %v3441, %v3444
      %v3446 = vrot.slane %v3445, 4
      %v3448 = vshll.u32 %v3160, 16
      %v3450 = vrot.slane %v3448, 5
      %v3451 = vsel %vm306, %v3446, %v3450
      %v3452 = vshrl.u32 %v3160, 16
      %v3454 = vrot.slane %v3452, 4
      %v3455 = vor.u32 %v3454, %v3450
      %v3456 = vrot.slane %v3455, 4
      %v3458 = vshll.u32 %v3161, 16
      %v3460 = vrot.slane %v3458, 5
      %v3461 = vsel %vm306, %v3456, %v3460
      %v3463 = vshrl.u32 %v3162, 16
      %v3465 = vrot.slane %v3463, 4
      %v3466 = vshll.u32 %v3162, 16
      %v3468 = vrot.slane %v3466, 5
      %v3469 = vor.u32 %v3465, %v3468
      %v3470 = vrot.slane %v3469, 4
      %v3472 = vshll.u32 %v3163, 16
      %v3474 = vrot.slane %v3472, 5
      %v3475 = vsel %vm306, %v3470, %v3474
      %v3476 = vshrl.u32 %v3163, 16
      %v3478 = vrot.slane %v3476, 4
      %v3479 = vor.u32 %v3478, %v3474
      %v3480 = vrot.slane %v3479, 4
      %v3482 = vshll.u32 %v3164, 16
      %v3484 = vrot.slane %v3482, 5
      %v3485 = vsel %vm306, %v3480, %v3484
      %v3487 = vshrl.u32 %v3165, 16
      %v3489 = vrot.slane %v3487, 4
      %v3490 = vshll.u32 %v3165, 16
      %v3492 = vrot.slane %v3490, 5
      %v3493 = vor.u32 %v3489, %v3492
      %v3494 = vrot.slane %v3493, 4
      %v3496 = vshll.u32 %v3166, 16
      %v3498 = vrot.slane %v3496, 5
      %v3499 = vsel %vm306, %v3494, %v3498
      %v3500 = vshrl.u32 %v3166, 16
      %v3502 = vrot.slane %v3500, 4
      %v3503 = vor.u32 %v3502, %v3498
      %v3504 = vrot.slane %v3503, 4
      %v3506 = vshll.u32 %v3167, 16
      %v3508 = vrot.slane %v3506, 5
      %v3509 = vsel %vm306, %v3504, %v3508
      %v3511 = vshrl.u32 %v3168, 16
      %v3513 = vrot.slane %v3511, 4
      %v3514 = vshll.u32 %v3168, 16
      %v3516 = vrot.slane %v3514, 5
      %v3517 = vor.u32 %v3513, %v3516
      %v3518 = vrot.slane %v3517, 4
      %v3520 = vshll.u32 %v3169, 16
      %v3522 = vrot.slane %v3520, 5
      %v3523 = vsel %vm306, %v3518, %v3522
      %v3524 = vshrl.u32 %v3169, 16
      %v3526 = vrot.slane %v3524, 4
      %v3527 = vor.u32 %v3526, %v3522
      %v3528 = vrot.slane %v3527, 4
      %v3530 = vshll.u32 %v3170, 16
      %v3532 = vrot.slane %v3530, 5
      %v3533 = vsel %vm306, %v3528, %v3532
      %v3535 = vshrl.u32 %v3171, 16
      %v3537 = vrot.slane %v3535, 4
      %v3538 = vshll.u32 %v3171, 16
      %v3540 = vrot.slane %v3538, 5
      %v3541 = vor.u32 %v3537, %v3540
      %v3542 = vrot.slane %v3541, 4
      %v3544 = vshll.u32 %v3172, 16
      %v3546 = vrot.slane %v3544, 5
      %v3547 = vsel %vm306, %v3542, %v3546
      %v3548 = vshrl.u32 %v3172, 16
      %v3550 = vrot.slane %v3548, 4
      %v3551 = vor.u32 %v3550, %v3546
      %v3552 = vrot.slane %v3551, 4
      %v3554 = vshll.u32 %v3173, 16
      %v3556 = vrot.slane %v3554, 5
      %v3557 = vsel %vm306, %v3552, %v3556
      %v3558 = vld [vmem:[%s1 + $0xc] sm:$0xc]
      %v3559 = vunpack.c.l.b16 %v3187
      %v3560 = vunpack.c.l.b16 %v3197
      %v3561 = vunpack.c.l.b16 %v3211
      %v3562 = vunpack.c.l.b16 %v3221
      %v3563 = vunpack.c.l.b16 %v3235
      %v3564 = vunpack.c.l.b16 %v3245
      %v3565 = vunpack.c.l.b16 %v3259
      %v3566 = vunpack.c.l.b16 %v3269
      %v3567 = vunpack.c.l.b16 %v3283
      %v3568 = vunpack.c.l.b16 %v3293
      %v3569 = vunpack.c.l.b16 %v3307
      %v3570 = vunpack.c.l.b16 %v3317
      %v3571 = vunpack.c.l.b16 %v3331
      %v3572 = vunpack.c.l.b16 %v3341
      %v3573 = vunpack.c.l.b16 %v3355
      %v3574 = vunpack.c.l.b16 %v3365
      %v3575 = vunpack.c.l.b16 %v3379
      %v3576 = vunpack.c.l.b16 %v3389
      %v3577 = vunpack.c.l.b16 %v3403
      %v3578 = vunpack.c.l.b16 %v3413
      %v3579 = vunpack.c.l.b16 %v3427
      %v3580 = vunpack.c.l.b16 %v3437
      %v3581 = vunpack.c.l.b16 %v3451
      %v3582 = vunpack.c.l.b16 %v3461
      %v3583 = vunpack.c.l.b16 %v3475
      %v3584 = vunpack.c.l.b16 %v3485
      %v3585 = vunpack.c.l.b16 %v3499
      %v3586 = vunpack.c.l.b16 %v3509
      %v3587 = vunpack.c.l.b16 %v3523
      %v3588 = vunpack.c.l.b16 %v3533
      %v3589 = vunpack.c.l.b16 %v3547
      %v3590 = vunpack.c.l.b16 %v3557
      %v3591 = vpack.c.b16 %v3560, %v3559
      %v3592 = vpack.c.b16 %v3562, %v3561
      %v3593 = vpack.c.b16 %v3564, %v3563
      %v3594 = vpack.c.b16 %v3566, %v3565
      %v3595 = vpack.c.b16 %v3568, %v3567
      %v3596 = vpack.c.b16 %v3570, %v3569
      %v3597 = vpack.c.b16 %v3572, %v3571
      %v3598 = vpack.c.b16 %v3574, %v3573
      %v3599 = vpack.c.b16 %v3576, %v3575
      %v3600 = vpack.c.b16 %v3578, %v3577
      %v3601 = vpack.c.b16 %v3580, %v3579
      %v3602 = vpack.c.b16 %v3582, %v3581
      %v3603 = vpack.c.b16 %v3584, %v3583
      %v3604 = vpack.c.b16 %v3586, %v3585
      %v3605 = vpack.c.b16 %v3588, %v3587
      %v3606 = vpack.c.b16 %v3590, %v3589
      %v3608 = vunpack.c.l.b16 %v3558
      %v3609 = vpack.c.b16 %v3608, %v3608
      %v3610 = vrot.slane %v3609, 2
      %v3612 = vsel %vm744, %v3591, 0
      %v3615 = vsel %vm744, %v3592, 0
      %v3618 = vsel %vm744, %v3593, 0
      %v3621 = vsel %vm744, %v3594, 0
      %v3624 = vsel %vm744, %v3595, 0
      %v3627 = vsel %vm744, %v3596, 0
      %v3630 = vsel %vm744, %v3597, 0
      %v3633 = vsel %vm744, %v3598, 0
      %v3636 = vsel %vm744, %v3599, 0
      %v3639 = vsel %vm744, %v3600, 0
      %v3642 = vsel %vm744, %v3601, 0
      %v3645 = vsel %vm744, %v3602, 0
      %v3648 = vsel %vm744, %v3603, 0
      %v3651 = vsel %vm744, %v3604, 0
      %v3654 = vsel %vm744, %v3605, 0
      %v3657 = vsel %vm744, %v3606, 0
      %v3660 = vsel %vm793, %v3610, 0
      %3662 = vmatpush.bf16.msra.mxu0 0
      %3663 = vmatpush.bf16.msra.mxu0 0
      %3664 = vmatpush.bf16.msra.mxu0 0
      %3665 = vmatpush.bf16.msra.mxu0 0
      %3666 = vmatpush.bf16.msra.mxu0 0
      %3667 = vmatpush.bf16.msra.mxu0 0
      %3668 = vmatpush.bf16.msra.mxu0 0
      %3669 = vmatpush.bf16.msra.mxu0 %v3660
      %3670 = vmatmul.bf16.gmra.mxu0 %v3612
      %v3671 = vpop.f32.mrf.mxu0
      %v3672 = vadd.f32 0.0, %v3671
      %v3673 = vpop.f32.mrf.mxu0
      %v3674 = vadd.f32 0.0, %v3673
      %3675 = vmatmul.bf16.gmra.mxu0 %v3615
      %v3676 = vpop.f32.mrf.mxu0
      %v3677 = vadd.f32 0.0, %v3676
      %v3678 = vpop.f32.mrf.mxu0
      %v3679 = vadd.f32 0.0, %v3678
      %3680 = vmatmul.bf16.gmra.mxu0 %v3618
      %v3681 = vpop.f32.mrf.mxu0
      %v3682 = vadd.f32 0.0, %v3681
      %v3683 = vpop.f32.mrf.mxu0
      %v3684 = vadd.f32 0.0, %v3683
      %3685 = vmatmul.bf16.gmra.mxu0 %v3621
      %v3686 = vpop.f32.mrf.mxu0
      %v3687 = vadd.f32 0.0, %v3686
      %v3688 = vpop.f32.mrf.mxu0
      %v3689 = vadd.f32 0.0, %v3688
      %3690 = vmatmul.bf16.gmra.mxu0 %v3624
      %v3691 = vpop.f32.mrf.mxu0
      %v3692 = vadd.f32 0.0, %v3691
      %v3693 = vpop.f32.mrf.mxu0
      %v3694 = vadd.f32 0.0, %v3693
      %3695 = vmatmul.bf16.gmra.mxu0 %v3627
      %v3696 = vpop.f32.mrf.mxu0
      %v3697 = vadd.f32 0.0, %v3696
      %v3698 = vpop.f32.mrf.mxu0
      %v3699 = vadd.f32 0.0, %v3698
      %3700 = vmatmul.bf16.gmra.mxu0 %v3630
      %v3701 = vpop.f32.mrf.mxu0
      %v3702 = vadd.f32 0.0, %v3701
      %v3703 = vpop.f32.mrf.mxu0
      %v3704 = vadd.f32 0.0, %v3703
      %3705 = vmatmul.bf16.gmra.mxu0 %v3633
      %v3706 = vpop.f32.mrf.mxu0
      %v3707 = vadd.f32 0.0, %v3706
      %v3708 = vpop.f32.mrf.mxu0
      %v3709 = vadd.f32 0.0, %v3708
      %3710 = vmatmul.bf16.gmra.mxu0 %v3636
      %v3711 = vpop.f32.mrf.mxu0
      %v3712 = vadd.f32 0.0, %v3711
      %v3713 = vpop.f32.mrf.mxu0
      %v3714 = vadd.f32 0.0, %v3713
      %3715 = vmatmul.bf16.gmra.mxu0 %v3639
      %v3716 = vpop.f32.mrf.mxu0
      %v3717 = vadd.f32 0.0, %v3716
      %v3718 = vpop.f32.mrf.mxu0
      %v3719 = vadd.f32 0.0, %v3718
      %3720 = vmatmul.bf16.gmra.mxu0 %v3642
      %v3721 = vpop.f32.mrf.mxu0
      %v3722 = vadd.f32 0.0, %v3721
      %v3723 = vpop.f32.mrf.mxu0
      %v3724 = vadd.f32 0.0, %v3723
      %3725 = vmatmul.bf16.gmra.mxu0 %v3645
      %v3726 = vpop.f32.mrf.mxu0
      %v3727 = vadd.f32 0.0, %v3726
      %v3728 = vpop.f32.mrf.mxu0
      %v3729 = vadd.f32 0.0, %v3728
      %3730 = vmatmul.bf16.gmra.mxu0 %v3648
      %v3731 = vpop.f32.mrf.mxu0
      %v3732 = vadd.f32 0.0, %v3731
      %v3733 = vpop.f32.mrf.mxu0
      %v3734 = vadd.f32 0.0, %v3733
      %3735 = vmatmul.bf16.gmra.mxu0 %v3651
      %v3736 = vpop.f32.mrf.mxu0
      %v3737 = vadd.f32 0.0, %v3736
      %v3738 = vpop.f32.mrf.mxu0
      %v3739 = vadd.f32 0.0, %v3738
      %3740 = vmatmul.bf16.gmra.mxu0 %v3654
      %v3741 = vpop.f32.mrf.mxu0
      %v3742 = vadd.f32 0.0, %v3741
      %v3743 = vpop.f32.mrf.mxu0
      %v3744 = vadd.f32 0.0, %v3743
      %3745 = vmatmul.bf16.gmra.mxu0 %v3657
      %v3746 = vpop.f32.mrf.mxu0
      %v3747 = vadd.f32 0.0, %v3746
      %v3748 = vpop.f32.mrf.mxu0
      %v3749 = vadd.f32 0.0, %v3748
      %3750 = vdwg.mxu0
      %v3751 = vadd.f32 %v3094, %v3672
      %v3752 = vadd.f32 %v3095, %v3674
      %v3753 = vadd.f32 %v3096, %v3677
      %v3754 = vadd.f32 %v3097, %v3679
      %v3755 = vadd.f32 %v3098, %v3682
      %v3756 = vadd.f32 %v3099, %v3684
      %v3757 = vadd.f32 %v3100, %v3687
      %v3758 = vadd.f32 %v3101, %v3689
      %v3759 = vadd.f32 %v3102, %v3692
      %v3760 = vadd.f32 %v3103, %v3694
      %v3761 = vadd.f32 %v3104, %v3697
      %v3762 = vadd.f32 %v3105, %v3699
      %v3763 = vadd.f32 %v3106, %v3702
      %v3764 = vadd.f32 %v3107, %v3704
      %v3765 = vadd.f32 %v3108, %v3707
      %v3766 = vadd.f32 %v3109, %v3709
      %v3767 = vadd.f32 %v3110, %v3712
      %v3768 = vadd.f32 %v3111, %v3714
      %v3769 = vadd.f32 %v3112, %v3717
      %v3770 = vadd.f32 %v3113, %v3719
      %v3771 = vadd.f32 %v3114, %v3722
      %v3772 = vadd.f32 %v3115, %v3724
      %v3773 = vadd.f32 %v3116, %v3727
      %v3774 = vadd.f32 %v3117, %v3729
      %v3775 = vadd.f32 %v3118, %v3732
      %v3776 = vadd.f32 %v3119, %v3734
      %v3777 = vadd.f32 %v3120, %v3737
      %v3778 = vadd.f32 %v3121, %v3739
      %v3779 = vadd.f32 %v3122, %v3742
      %v3780 = vadd.f32 %v3123, %v3744
      %v3781 = vadd.f32 %v3124, %v3747
      %v3782 = vadd.f32 %v3125, %v3749
      %v3783 = vld [vmem:[%s2840] sm:$0xe]
      %v3784 = vld [vmem:[%s2840 + $0xc] sm:$0xe]
      %v3785 = vld [vmem:[%s2840 + $0x18] sm:$0xe]
      %v3786 = vld [vmem:[%s2840 + $0x24] sm:$0xe]
      %v3787 = vld [vmem:[%s2840 + $0x30] sm:$0xe]
      %v3788 = vld [vmem:[%s2840 + $0x3c] sm:$0xe]
      %v3789 = vld [vmem:[%s2840 + $0x48] sm:$0xe]
      %v3790 = vld [vmem:[%s2840 + $0x54] sm:$0xe]
      %v3791 = vld [vmem:[%s2840 + $0x60] sm:$0xe]
      %v3792 = vld [vmem:[%s2840 + $0x6c] sm:$0xe]
      %v3793 = vld [vmem:[%s2840 + $0x78] sm:$0xe]
      %v3794 = vld [vmem:[%s2840 + $0x84] sm:$0xe]
      %v3795 = vld [vmem:[%s2840 + $0x90] sm:$0xe]
      %v3796 = vld [vmem:[%s2840 + $0x9c] sm:$0xe]
      %v3797 = vld [vmem:[%s2840 + $0xa8] sm:$0xe]
      %v3798 = vld [vmem:[%s2840 + $0xb4] sm:$0xe]
      %v3847 = vrot.slane %v3783, 5
      %v3848 = vrot.slane %v3847, 4
      %v3849 = vrot.slane %v3127, 5
      %v3850 = vsel %vm1156, %v3848, %v3849
      %v3851 = vrot.slane %v3849, 4
      %v3852 = vrot.slane %v3128, 5
      %v3853 = vsel %vm1156, %v3851, %v3852
      %v3854 = vrot.slane %v3784, 5
      %v3855 = vrot.slane %v3854, 4
      %v3856 = vrot.slane %v3130, 5
      %v3857 = vsel %vm1156, %v3855, %v3856
      %v3858 = vrot.slane %v3856, 4
      %v3859 = vrot.slane %v3131, 5
      %v3860 = vsel %vm1156, %v3858, %v3859
      %v3861 = vrot.slane %v3785, 5
      %v3862 = vrot.slane %v3861, 4
      %v3863 = vrot.slane %v3133, 5
      %v3864 = vsel %vm1156, %v3862, %v3863
      %v3865 = vrot.slane %v3863, 4
      %v3866 = vrot.slane %v3134, 5
      %v3867 = vsel %vm1156, %v3865, %v3866
      %v3868 = vrot.slane %v3786, 5
      %v3869 = vrot.slane %v3868, 4
      %v3870 = vrot.slane %v3136, 5
      %v3871 = vsel %vm1156, %v3869, %v3870
      %v3872 = vrot.slane %v3870, 4
      %v3873 = vrot.slane %v3137, 5
      %v3874 = vsel %vm1156, %v3872, %v3873
      %v3875 = vrot.slane %v3787, 5
      %v3876 = vrot.slane %v3875, 4
      %v3877 = vrot.slane %v3139, 5
      %v3878 = vsel %vm1156, %v3876, %v3877
      %v3879 = vrot.slane %v3877, 4
      %v3880 = vrot.slane %v3140, 5
      %v3881 = vsel %vm1156, %v3879, %v3880
      %v3882 = vrot.slane %v3788, 5
      %v3883 = vrot.slane %v3882, 4
      %v3884 = vrot.slane %v3142, 5
      %v3885 = vsel %vm1156, %v3883, %v3884
      %v3886 = vrot.slane %v3884, 4
      %v3887 = vrot.slane %v3143, 5
      %v3888 = vsel %vm1156, %v3886, %v3887
      %v3889 = vrot.slane %v3789, 5
      %v3890 = vrot.slane %v3889, 4
      %v3891 = vrot.slane %v3145, 5
      %v3892 = vsel %vm1156, %v3890, %v3891
      %v3893 = vrot.slane %v3891, 4
      %v3894 = vrot.slane %v3146, 5
      %v3895 = vsel %vm1156, %v3893, %v3894
      %v3896 = vrot.slane %v3790, 5
      %v3897 = vrot.slane %v3896, 4
      %v3898 = vrot.slane %v3148, 5
      %v3899 = vsel %vm1156, %v3897, %v3898
      %v3900 = vrot.slane %v3898, 4
      %v3901 = vrot.slane %v3149, 5
      %v3902 = vsel %vm1156, %v3900, %v3901
      %v3903 = vrot.slane %v3791, 5
      %v3904 = vrot.slane %v3903, 4
      %v3905 = vrot.slane %v3151, 5
      %v3906 = vsel %vm1156, %v3904, %v3905
      %v3907 = vrot.slane %v3905, 4
      %v3908 = vrot.slane %v3152, 5
      %v3909 = vsel %vm1156, %v3907, %v3908
      %v3910 = vrot.slane %v3792, 5
      %v3911 = vrot.slane %v3910, 4
      %v3912 = vrot.slane %v3154, 5
      %v3913 = vsel %vm1156, %v3911, %v3912
      %v3914 = vrot.slane %v3912, 4
      %v3915 = vrot.slane %v3155, 5
      %v3916 = vsel %vm1156, %v3914, %v3915
      %v3917 = vrot.slane %v3793, 5
      %v3918 = vrot.slane %v3917, 4
      %v3919 = vrot.slane %v3157, 5
      %v3920 = vsel %vm1156, %v3918, %v3919
      %v3921 = vrot.slane %v3919, 4
      %v3922 = vrot.slane %v3158, 5
      %v3923 = vsel %vm1156, %v3921, %v3922
      %v3924 = vrot.slane %v3794, 5
      %v3925 = vrot.slane %v3924, 4
      %v3926 = vrot.slane %v3160, 5
      %v3927 = vsel %vm1156, %v3925, %v3926
      %v3928 = vrot.slane %v3926, 4
      %v3929 = vrot.slane %v3161, 5
      %v3930 = vsel %vm1156, %v3928, %v3929
      %v3931 = vrot.slane %v3795, 5
      %v3932 = vrot.slane %v3931, 4
      %v3933 = vrot.slane %v3163, 5
      %v3934 = vsel %vm1156, %v3932, %v3933
      %v3935 = vrot.slane %v3933, 4
      %v3936 = vrot.slane %v3164, 5
      %v3937 = vsel %vm1156, %v3935, %v3936
      %v3938 = vrot.slane %v3796, 5
      %v3939 = vrot.slane %v3938, 4
      %v3940 = vrot.slane %v3166, 5
      %v3941 = vsel %vm1156, %v3939, %v3940
      %v3942 = vrot.slane %v3940, 4
      %v3943 = vrot.slane %v3167, 5
      %v3944 = vsel %vm1156, %v3942, %v3943
      %v3945 = vrot.slane %v3797, 5
      %v3946 = vrot.slane %v3945, 4
      %v3947 = vrot.slane %v3169, 5
      %v3948 = vsel %vm1156, %v3946, %v3947
      %v3949 = vrot.slane %v3947, 4
      %v3950 = vrot.slane %v3170, 5
      %v3951 = vsel %vm1156, %v3949, %v3950
      %v3952 = vrot.slane %v3798, 5
      %v3953 = vrot.slane %v3952, 4
      %v3954 = vrot.slane %v3172, 5
      %v3955 = vsel %vm1156, %v3953, %v3954
      %v3956 = vrot.slane %v3954, 4
      %v3957 = vrot.slane %v3173, 5
      %v3958 = vsel %vm1156, %v3956, %v3957
      %v3959 = vld [vmem:[%s1 + $0x10] sm:$0x3]
      %v3960 = vunpack.c.l.b16 %v3850
      %v3961 = vunpack.c.l.b16 %v3853
      %v3962 = vunpack.c.l.b16 %v3857
      %v3963 = vunpack.c.l.b16 %v3860
      %v3964 = vunpack.c.l.b16 %v3864
      %v3965 = vunpack.c.l.b16 %v3867
      %v3966 = vunpack.c.l.b16 %v3871
      %v3967 = vunpack.c.l.b16 %v3874
      %v3968 = vunpack.c.l.b16 %v3878
      %v3969 = vunpack.c.l.b16 %v3881
      %v3970 = vunpack.c.l.b16 %v3885
      %v3971 = vunpack.c.l.b16 %v3888
      %v3972 = vunpack.c.l.b16 %v3892
      %v3973 = vunpack.c.l.b16 %v3895
      %v3974 = vunpack.c.l.b16 %v3899
      %v3975 = vunpack.c.l.b16 %v3902
      %v3976 = vunpack.c.l.b16 %v3906
      %v3977 = vunpack.c.l.b16 %v3909
      %v3978 = vunpack.c.l.b16 %v3913
      %v3979 = vunpack.c.l.b16 %v3916
      %v3980 = vunpack.c.l.b16 %v3920
      %v3981 = vunpack.c.l.b16 %v3923
      %v3982 = vunpack.c.l.b16 %v3927
      %v3983 = vunpack.c.l.b16 %v3930
      %v3984 = vunpack.c.l.b16 %v3934
      %v3985 = vunpack.c.l.b16 %v3937
      %v3986 = vunpack.c.l.b16 %v3941
      %v3987 = vunpack.c.l.b16 %v3944
      %v3988 = vunpack.c.l.b16 %v3948
      %v3989 = vunpack.c.l.b16 %v3951
      %v3990 = vunpack.c.l.b16 %v3955
      %v3991 = vunpack.c.l.b16 %v3958
      %v3992 = vpack.c.b16 %v3961, %v3960
      %v3993 = vpack.c.b16 %v3963, %v3962
      %v3994 = vpack.c.b16 %v3965, %v3964
      %v3995 = vpack.c.b16 %v3967, %v3966
      %v3996 = vpack.c.b16 %v3969, %v3968
      %v3997 = vpack.c.b16 %v3971, %v3970
      %v3998 = vpack.c.b16 %v3973, %v3972
      %v3999 = vpack.c.b16 %v3975, %v3974
      %v4000 = vpack.c.b16 %v3977, %v3976
      %v4001 = vpack.c.b16 %v3979, %v3978
      %v4002 = vpack.c.b16 %v3981, %v3980
      %v4003 = vpack.c.b16 %v3983, %v3982
      %v4004 = vpack.c.b16 %v3985, %v3984
      %v4005 = vpack.c.b16 %v3987, %v3986
      %v4006 = vpack.c.b16 %v3989, %v3988
      %v4007 = vpack.c.b16 %v3991, %v3990
      %v4009 = vsel %vm744, %v3992, 0
      %v4012 = vsel %vm744, %v3993, 0
      %v4015 = vsel %vm744, %v3994, 0
      %v4018 = vsel %vm744, %v3995, 0
      %v4021 = vsel %vm744, %v3996, 0
      %v4024 = vsel %vm744, %v3997, 0
      %v4027 = vsel %vm744, %v3998, 0
      %v4030 = vsel %vm744, %v3999, 0
      %v4033 = vsel %vm744, %v4000, 0
      %v4036 = vsel %vm744, %v4001, 0
      %v4039 = vsel %vm744, %v4002, 0
      %v4042 = vsel %vm744, %v4003, 0
      %v4045 = vsel %vm744, %v4004, 0
      %v4048 = vsel %vm744, %v4005, 0
      %v4051 = vsel %vm744, %v4006, 0
      %v4054 = vsel %vm744, %v4007, 0
      %v4057 = vsel %vm793, %v3959, 0
      %4059 = vmatpush.bf16.msra.mxu0 0
      %4060 = vmatpush.bf16.msra.mxu0 0
      %4061 = vmatpush.bf16.msra.mxu0 0
      %4062 = vmatpush.bf16.msra.mxu0 0
      %4063 = vmatpush.bf16.msra.mxu0 0
      %4064 = vmatpush.bf16.msra.mxu0 0
      %4065 = vmatpush.bf16.msra.mxu0 0
      %4066 = vmatpush.bf16.msra.mxu0 %v4057
      %4067 = vmatmul.bf16.gmra.mxu0 %v4009
      %v4068 = vpop.f32.mrf.mxu0
      %v4069 = vadd.f32 0.0, %v4068
      %v4070 = vpop.f32.mrf.mxu0
      %v4071 = vadd.f32 0.0, %v4070
      %4072 = vmatmul.bf16.gmra.mxu0 %v4012
      %v4073 = vpop.f32.mrf.mxu0
      %v4074 = vadd.f32 0.0, %v4073
      %v4075 = vpop.f32.mrf.mxu0
      %v4076 = vadd.f32 0.0, %v4075
      %4077 = vmatmul.bf16.gmra.mxu0 %v4015
      %v4078 = vpop.f32.mrf.mxu0
      %v4079 = vadd.f32 0.0, %v4078
      %v4080 = vpop.f32.mrf.mxu0
      %v4081 = vadd.f32 0.0, %v4080
      %4082 = vmatmul.bf16.gmra.mxu0 %v4018
      %v4083 = vpop.f32.mrf.mxu0
      %v4084 = vadd.f32 0.0, %v4083
      %v4085 = vpop.f32.mrf.mxu0
      %v4086 = vadd.f32 0.0, %v4085
      %4087 = vmatmul.bf16.gmra.mxu0 %v4021
      %v4088 = vpop.f32.mrf.mxu0
      %v4089 = vadd.f32 0.0, %v4088
      %v4090 = vpop.f32.mrf.mxu0
      %v4091 = vadd.f32 0.0, %v4090
      %4092 = vmatmul.bf16.gmra.mxu0 %v4024
      %v4093 = vpop.f32.mrf.mxu0
      %v4094 = vadd.f32 0.0, %v4093
      %v4095 = vpop.f32.mrf.mxu0
      %v4096 = vadd.f32 0.0, %v4095
      %4097 = vmatmul.bf16.gmra.mxu0 %v4027
      %v4098 = vpop.f32.mrf.mxu0
      %v4099 = vadd.f32 0.0, %v4098
      %v4100 = vpop.f32.mrf.mxu0
      %v4101 = vadd.f32 0.0, %v4100
      %4102 = vmatmul.bf16.gmra.mxu0 %v4030
      %v4103 = vpop.f32.mrf.mxu0
      %v4104 = vadd.f32 0.0, %v4103
      %v4105 = vpop.f32.mrf.mxu0
      %v4106 = vadd.f32 0.0, %v4105
      %4107 = vmatmul.bf16.gmra.mxu0 %v4033
      %v4108 = vpop.f32.mrf.mxu0
      %v4109 = vadd.f32 0.0, %v4108
      %v4110 = vpop.f32.mrf.mxu0
      %v4111 = vadd.f32 0.0, %v4110
      %4112 = vmatmul.bf16.gmra.mxu0 %v4036
      %v4113 = vpop.f32.mrf.mxu0
      %v4114 = vadd.f32 0.0, %v4113
      %v4115 = vpop.f32.mrf.mxu0
      %v4116 = vadd.f32 0.0, %v4115
      %4117 = vmatmul.bf16.gmra.mxu0 %v4039
      %v4118 = vpop.f32.mrf.mxu0
      %v4119 = vadd.f32 0.0, %v4118
      %v4120 = vpop.f32.mrf.mxu0
      %v4121 = vadd.f32 0.0, %v4120
      %4122 = vmatmul.bf16.gmra.mxu0 %v4042
      %v4123 = vpop.f32.mrf.mxu0
      %v4124 = vadd.f32 0.0, %v4123
      %v4125 = vpop.f32.mrf.mxu0
      %v4126 = vadd.f32 0.0, %v4125
      %4127 = vmatmul.bf16.gmra.mxu0 %v4045
      %v4128 = vpop.f32.mrf.mxu0
      %v4129 = vadd.f32 0.0, %v4128
      %v4130 = vpop.f32.mrf.mxu0
      %v4131 = vadd.f32 0.0, %v4130
      %4132 = vmatmul.bf16.gmra.mxu0 %v4048
      %v4133 = vpop.f32.mrf.mxu0
      %v4134 = vadd.f32 0.0, %v4133
      %v4135 = vpop.f32.mrf.mxu0
      %v4136 = vadd.f32 0.0, %v4135
      %4137 = vmatmul.bf16.gmra.mxu0 %v4051
      %v4138 = vpop.f32.mrf.mxu0
      %v4139 = vadd.f32 0.0, %v4138
      %v4140 = vpop.f32.mrf.mxu0
      %v4141 = vadd.f32 0.0, %v4140
      %4142 = vmatmul.bf16.gmra.mxu0 %v4054
      %v4143 = vpop.f32.mrf.mxu0
      %v4144 = vadd.f32 0.0, %v4143
      %v4145 = vpop.f32.mrf.mxu0
      %v4146 = vadd.f32 0.0, %v4145
      %4147 = vdwg.mxu0
      %v4148 = vadd.f32 %v3751, %v4069
      %v4149 = vadd.f32 %v3752, %v4071
      %v4150 = vadd.f32 %v3753, %v4074
      %v4151 = vadd.f32 %v3754, %v4076
      %v4152 = vadd.f32 %v3755, %v4079
      %v4153 = vadd.f32 %v3756, %v4081
      %v4154 = vadd.f32 %v3757, %v4084
      %v4155 = vadd.f32 %v3758, %v4086
      %v4156 = vadd.f32 %v3759, %v4089
      %v4157 = vadd.f32 %v3760, %v4091
      %v4158 = vadd.f32 %v3761, %v4094
      %v4159 = vadd.f32 %v3762, %v4096
      %v4160 = vadd.f32 %v3763, %v4099
      %v4161 = vadd.f32 %v3764, %v4101
      %v4162 = vadd.f32 %v3765, %v4104
      %v4163 = vadd.f32 %v3766, %v4106
      %v4164 = vadd.f32 %v3767, %v4109
      %v4165 = vadd.f32 %v3768, %v4111
      %v4166 = vadd.f32 %v3769, %v4114
      %v4167 = vadd.f32 %v3770, %v4116
      %v4168 = vadd.f32 %v3771, %v4119
      %v4169 = vadd.f32 %v3772, %v4121
      %v4170 = vadd.f32 %v3773, %v4124
      %v4171 = vadd.f32 %v3774, %v4126
      %v4172 = vadd.f32 %v3775, %v4129
      %v4173 = vadd.f32 %v3776, %v4131
      %v4174 = vadd.f32 %v3777, %v4134
      %v4175 = vadd.f32 %v3778, %v4136
      %v4176 = vadd.f32 %v3779, %v4139
      %v4177 = vadd.f32 %v3780, %v4141
      %v4178 = vadd.f32 %v3781, %v4144
      %v4179 = vadd.f32 %v3782, %v4146
      %v4180 = vld [vmem:[%s2] sm:$0x1]
      %v4182 = vperm.slane %v4180, 0
      %v4184 = vmul.f32 %v4148, %v4182
      %v4185 = vmul.f32 %v4149, %v4182
      %v4186 = vmul.f32 %v4150, %v4182
      %v4187 = vmul.f32 %v4151, %v4182
      %v4188 = vmul.f32 %v4152, %v4182
      %v4189 = vmul.f32 %v4153, %v4182
      %v4190 = vmul.f32 %v4154, %v4182
      %v4191 = vmul.f32 %v4155, %v4182
      %v4192 = vmul.f32 %v4156, %v4182
      %v4193 = vmul.f32 %v4157, %v4182
      %v4194 = vmul.f32 %v4158, %v4182
      %v4195 = vmul.f32 %v4159, %v4182
      %v4196 = vmul.f32 %v4160, %v4182
      %v4197 = vmul.f32 %v4161, %v4182
      %v4198 = vmul.f32 %v4162, %v4182
      %v4199 = vmul.f32 %v4163, %v4182
      %v4200 = vmul.f32 %v4164, %v4182
      %v4201 = vmul.f32 %v4165, %v4182
      %v4202 = vmul.f32 %v4166, %v4182
      %v4203 = vmul.f32 %v4167, %v4182
      %v4204 = vmul.f32 %v4168, %v4182
      %v4205 = vmul.f32 %v4169, %v4182
      %v4206 = vmul.f32 %v4170, %v4182
      %v4207 = vmul.f32 %v4171, %v4182
      %v4208 = vmul.f32 %v4172, %v4182
      %v4209 = vmul.f32 %v4173, %v4182
      %v4210 = vmul.f32 %v4174, %v4182
      %v4211 = vmul.f32 %v4175, %v4182
      %v4212 = vmul.f32 %v4176, %v4182
      %v4213 = vmul.f32 %v4177, %v4182
      %v4214 = vmul.f32 %v4178, %v4182
      %v4215 = vmul.f32 %v4179, %v4182
      %v4216 = vld [vmem:[%s3] sm:$0x1]
      %v4218 = vperm.slane %v4216, 0
      %v4220 = vadd.f32 %v4184, %v4218
      %v4221 = vadd.f32 %v4185, %v4218
      %v4222 = vadd.f32 %v4186, %v4218
      %v4223 = vadd.f32 %v4187, %v4218
      %v4224 = vadd.f32 %v4188, %v4218
      %v4225 = vadd.f32 %v4189, %v4218
      %v4226 = vadd.f32 %v4190, %v4218
      %v4227 = vadd.f32 %v4191, %v4218
      %v4228 = vadd.f32 %v4192, %v4218
      %v4229 = vadd.f32 %v4193, %v4218
      %v4230 = vadd.f32 %v4194, %v4218
      %v4231 = vadd.f32 %v4195, %v4218
      %v4232 = vadd.f32 %v4196, %v4218
      %v4233 = vadd.f32 %v4197, %v4218
      %v4234 = vadd.f32 %v4198, %v4218
      %v4235 = vadd.f32 %v4199, %v4218
      %v4236 = vadd.f32 %v4200, %v4218
      %v4237 = vadd.f32 %v4201, %v4218
      %v4238 = vadd.f32 %v4202, %v4218
      %v4239 = vadd.f32 %v4203, %v4218
      %v4240 = vadd.f32 %v4204, %v4218
      %v4241 = vadd.f32 %v4205, %v4218
      %v4242 = vadd.f32 %v4206, %v4218
      %v4243 = vadd.f32 %v4207, %v4218
      %v4244 = vadd.f32 %v4208, %v4218
      %v4245 = vadd.f32 %v4209, %v4218
      %v4246 = vadd.f32 %v4210, %v4218
      %v4247 = vadd.f32 %v4211, %v4218
      %v4248 = vadd.f32 %v4212, %v4218
      %v4249 = vadd.f32 %v4213, %v4218
      %v4250 = vadd.f32 %v4214, %v4218
      %v4251 = vadd.f32 %v4215, %v4218
      %vm4252 = vcmp.gt.f32.partialorder %v4220, 0.0
      %vm4253 = vcmp.gt.f32.partialorder %v4221, 0.0
      %vm4254 = vcmp.gt.f32.partialorder %v4222, 0.0
      %vm4255 = vcmp.gt.f32.partialorder %v4223, 0.0
      %vm4256 = vcmp.gt.f32.partialorder %v4224, 0.0
      %vm4257 = vcmp.gt.f32.partialorder %v4225, 0.0
      %vm4258 = vcmp.gt.f32.partialorder %v4226, 0.0
      %vm4259 = vcmp.gt.f32.partialorder %v4227, 0.0
      %vm4260 = vcmp.gt.f32.partialorder %v4228, 0.0
      %vm4261 = vcmp.gt.f32.partialorder %v4229, 0.0
      %vm4262 = vcmp.gt.f32.partialorder %v4230, 0.0
      %vm4263 = vcmp.gt.f32.partialorder %v4231, 0.0
      %vm4264 = vcmp.gt.f32.partialorder %v4232, 0.0
      %vm4265 = vcmp.gt.f32.partialorder %v4233, 0.0
      %vm4266 = vcmp.gt.f32.partialorder %v4234, 0.0
      %vm4267 = vcmp.gt.f32.partialorder %v4235, 0.0
      %vm4268 = vcmp.gt.f32.partialorder %v4236, 0.0
      %vm4269 = vcmp.gt.f32.partialorder %v4237, 0.0
      %vm4270 = vcmp.gt.f32.partialorder %v4238, 0.0
      %vm4271 = vcmp.gt.f32.partialorder %v4239, 0.0
      %vm4272 = vcmp.gt.f32.partialorder %v4240, 0.0
      %vm4273 = vcmp.gt.f32.partialorder %v4241, 0.0
      %vm4274 = vcmp.gt.f32.partialorder %v4242, 0.0
      %vm4275 = vcmp.gt.f32.partialorder %v4243, 0.0
      %vm4276 = vcmp.gt.f32.partialorder %v4244, 0.0
      %vm4277 = vcmp.gt.f32.partialorder %v4245, 0.0
      %vm4278 = vcmp.gt.f32.partialorder %v4246, 0.0
      %vm4279 = vcmp.gt.f32.partialorder %v4247, 0.0
      %vm4280 = vcmp.gt.f32.partialorder %v4248, 0.0
      %vm4281 = vcmp.gt.f32.partialorder %v4249, 0.0
      %vm4282 = vcmp.gt.f32.partialorder %v4250, 0.0
      %vm4283 = vcmp.gt.f32.partialorder %v4251, 0.0
      %v4284 = vld [vmem:[%s4] sm:$0x1]
      %v4286 = vperm.slane %v4284, 0
      %v4288 = vmul.f32 %v4286, %v4220
      %v4289 = vmul.f32 %v4286, %v4221
      %v4290 = vmul.f32 %v4286, %v4222
      %v4291 = vmul.f32 %v4286, %v4223
      %v4292 = vmul.f32 %v4286, %v4224
      %v4293 = vmul.f32 %v4286, %v4225
      %v4294 = vmul.f32 %v4286, %v4226
      %v4295 = vmul.f32 %v4286, %v4227
      %v4296 = vmul.f32 %v4286, %v4228
      %v4297 = vmul.f32 %v4286, %v4229
      %v4298 = vmul.f32 %v4286, %v4230
      %v4299 = vmul.f32 %v4286, %v4231
      %v4300 = vmul.f32 %v4286, %v4232
      %v4301 = vmul.f32 %v4286, %v4233
      %v4302 = vmul.f32 %v4286, %v4234
      %v4303 = vmul.f32 %v4286, %v4235
      %v4304 = vmul.f32 %v4286, %v4236
      %v4305 = vmul.f32 %v4286, %v4237
      %v4306 = vmul.f32 %v4286, %v4238
      %v4307 = vmul.f32 %v4286, %v4239
      %v4308 = vmul.f32 %v4286, %v4240
      %v4309 = vmul.f32 %v4286, %v4241
      %v4310 = vmul.f32 %v4286, %v4242
      %v4311 = vmul.f32 %v4286, %v4243
      %v4312 = vmul.f32 %v4286, %v4244
      %v4313 = vmul.f32 %v4286, %v4245
      %v4314 = vmul.f32 %v4286, %v4246
      %v4315 = vmul.f32 %v4286, %v4247
      %v4316 = vmul.f32 %v4286, %v4248
      %v4317 = vmul.f32 %v4286, %v4249
      %v4318 = vmul.f32 %v4286, %v4250
      %v4319 = vmul.f32 %v4286, %v4251
      %v4320 = vsel %vm4252, %v4220, %v4288
      %v4321 = vsel %vm4253, %v4221, %v4289
      %v4322 = vsel %vm4254, %v4222, %v4290
      %v4323 = vsel %vm4255, %v4223, %v4291
      %v4324 = vsel %vm4256, %v4224, %v4292
      %v4325 = vsel %vm4257, %v4225, %v4293
      %v4326 = vsel %vm4258, %v4226, %v4294
      %v4327 = vsel %vm4259, %v4227, %v4295
      %v4328 = vsel %vm4260, %v4228, %v4296
      %v4329 = vsel %vm4261, %v4229, %v4297
      %v4330 = vsel %vm4262, %v4230, %v4298
      %v4331 = vsel %vm4263, %v4231, %v4299
      %v4332 = vsel %vm4264, %v4232, %v4300
      %v4333 = vsel %vm4265, %v4233, %v4301
      %v4334 = vsel %vm4266, %v4234, %v4302
      %v4335 = vsel %vm4267, %v4235, %v4303
      %v4336 = vsel %vm4268, %v4236, %v4304
      %v4337 = vsel %vm4269, %v4237, %v4305
      %v4338 = vsel %vm4270, %v4238, %v4306
      %v4339 = vsel %vm4271, %v4239, %v4307
      %v4340 = vsel %vm4272, %v4240, %v4308
      %v4341 = vsel %vm4273, %v4241, %v4309
      %v4342 = vsel %vm4274, %v4242, %v4310
      %v4343 = vsel %vm4275, %v4243, %v4311
      %v4344 = vsel %vm4276, %v4244, %v4312
      %v4345 = vsel %vm4277, %v4245, %v4313
      %v4346 = vsel %vm4278, %v4246, %v4314
      %v4347 = vsel %vm4279, %v4247, %v4315
      %v4348 = vsel %vm4280, %v4248, %v4316
      %v4349 = vsel %vm4281, %v4249, %v4317
      %v4350 = vsel %vm4282, %v4250, %v4318
      %v4351 = vsel %vm4283, %v4251, %v4319
      %v4352 = vpack.c.bf16 %v4320, %v4320
      %v4353 = vpack.c.bf16 %v4321, %v4321
      %v4354 = vpack.c.bf16 %v4322, %v4322
      %v4355 = vpack.c.bf16 %v4323, %v4323
      %v4356 = vpack.c.bf16 %v4324, %v4324
      %v4357 = vpack.c.bf16 %v4325, %v4325
      %v4358 = vpack.c.bf16 %v4326, %v4326
      %v4359 = vpack.c.bf16 %v4327, %v4327
      %v4360 = vpack.c.bf16 %v4328, %v4328
      %v4361 = vpack.c.bf16 %v4329, %v4329
      %v4362 = vpack.c.bf16 %v4330, %v4330
      %v4363 = vpack.c.bf16 %v4331, %v4331
      %v4364 = vpack.c.bf16 %v4332, %v4332
      %v4365 = vpack.c.bf16 %v4333, %v4333
      %v4366 = vpack.c.bf16 %v4334, %v4334
      %v4367 = vpack.c.bf16 %v4335, %v4335
      %v4368 = vpack.c.bf16 %v4336, %v4336
      %v4369 = vpack.c.bf16 %v4337, %v4337
      %v4370 = vpack.c.bf16 %v4338, %v4338
      %v4371 = vpack.c.bf16 %v4339, %v4339
      %v4372 = vpack.c.bf16 %v4340, %v4340
      %v4373 = vpack.c.bf16 %v4341, %v4341
      %v4374 = vpack.c.bf16 %v4342, %v4342
      %v4375 = vpack.c.bf16 %v4343, %v4343
      %v4376 = vpack.c.bf16 %v4344, %v4344
      %v4377 = vpack.c.bf16 %v4345, %v4345
      %v4378 = vpack.c.bf16 %v4346, %v4346
      %v4379 = vpack.c.bf16 %v4347, %v4347
      %v4380 = vpack.c.bf16 %v4348, %v4348
      %v4381 = vpack.c.bf16 %v4349, %v4349
      %v4382 = vpack.c.bf16 %v4350, %v4350
      %v4383 = vpack.c.bf16 %v4351, %v4351
      %vm4384 = vcmask 60416
      %4385 = vst.msk [vmem:[%s248] sm:$0xf] %vm4384, %v4352
      %4386 = vst.msk [vmem:[%s248 + $0x4] sm:$0xf] %vm4384, %v4353
      %4387 = vst.msk [vmem:[%s248 + $0x8] sm:$0xf] %vm4384, %v4354
      %4388 = vst.msk [vmem:[%s248 + $0xc] sm:$0xf] %vm4384, %v4355
      %4389 = vst.msk [vmem:[%s248 + $0x10] sm:$0xf] %vm4384, %v4356
      %4390 = vst.msk [vmem:[%s248 + $0x14] sm:$0xf] %vm4384, %v4357
      %4391 = vst.msk [vmem:[%s248 + $0x18] sm:$0xf] %vm4384, %v4358
      %4392 = vst.msk [vmem:[%s248 + $0x1c] sm:$0xf] %vm4384, %v4359
      %4393 = vst.msk [vmem:[%s248 + $0x20] sm:$0xf] %vm4384, %v4360
      %4394 = vst.msk [vmem:[%s248 + $0x24] sm:$0xf] %vm4384, %v4361
      %4395 = vst.msk [vmem:[%s248 + $0x28] sm:$0xf] %vm4384, %v4362
      %4396 = vst.msk [vmem:[%s248 + $0x2c] sm:$0xf] %vm4384, %v4363
      %4397 = vst.msk [vmem:[%s248 + $0x30] sm:$0xf] %vm4384, %v4364
      %4398 = vst.msk [vmem:[%s248 + $0x34] sm:$0xf] %vm4384, %v4365
      %4399 = vst.msk [vmem:[%s248 + $0x38] sm:$0xf] %vm4384, %v4366
      %4400 = vst.msk [vmem:[%s248 + $0x3c] sm:$0xf] %vm4384, %v4367
      %4401 = vst.msk [vmem:[%s248 + $0x40] sm:$0xf] %vm4384, %v4368
      %4402 = vst.msk [vmem:[%s248 + $0x44] sm:$0xf] %vm4384, %v4369
      %4403 = vst.msk [vmem:[%s248 + $0x48] sm:$0xf] %vm4384, %v4370
      %4404 = vst.msk [vmem:[%s248 + $0x4c] sm:$0xf] %vm4384, %v4371
      %4405 = vst.msk [vmem:[%s248 + $0x50] sm:$0xf] %vm4384, %v4372
      %4406 = vst.msk [vmem:[%s248 + $0x54] sm:$0xf] %vm4384, %v4373
      %4407 = vst.msk [vmem:[%s248 + $0x58] sm:$0xf] %vm4384, %v4374
      %4408 = vst.msk [vmem:[%s248 + $0x5c] sm:$0xf] %vm4384, %v4375
      %4409 = vst.msk [vmem:[%s248 + $0x60] sm:$0xf] %vm4384, %v4376
      %4410 = vst.msk [vmem:[%s248 + $0x64] sm:$0xf] %vm4384, %v4377
      %4411 = vst.msk [vmem:[%s248 + $0x68] sm:$0xf] %vm4384, %v4378
      %4412 = vst.msk [vmem:[%s248 + $0x6c] sm:$0xf] %vm4384, %v4379
      %4413 = vst.msk [vmem:[%s248 + $0x70] sm:$0xf] %vm4384, %v4380
      %4414 = vst.msk [vmem:[%s248 + $0x74] sm:$0xf] %vm4384, %v4381
      %4415 = vst.msk [vmem:[%s248 + $0x78] sm:$0xf] %vm4384, %v4382
      %4416 = vst.msk [vmem:[%s248 + $0x7c] sm:$0xf] %vm4384, %v4383
      %s4417 = smul.u32 16, %s21
      %p4418 = scmp.lt.s32.totalorder %s20, 1
      %s4419 = scalar_select %p4418, %s20, 1
      %p4420 = scmp.lt.s32.totalorder %s4417, 15
      %s4421 = scalar_select %p4420, %s4417, 15
      %s4422 = smul.addr %s4421, 2
      %s4423 = smul.addr %s4419, 32
      %s4424 = sadd.s32 %s4422, %s4423
      %s4425 = smul.addr %s4424, 4
      %s4426 = scalar_lea.vmem %s5, %s4425
      // Predicated region
      $region41: #{tpu_custom_call.1} parent=39 // pred_check
        %p4427 = pneg %p158
      $region42: #{tpu_custom_call.1} parent=39 // pred_check_branch
        %4429 = sbr.rel (%p4427) target = $region44
      $region43: #{tpu_custom_call.1} parent=39 // pred_region
        %s4430 = smul.u32 16, %s21
      $region44: #{tpu_custom_call.1} parent=39 // pred_fallthru
        _
    $region40: #{tpu_custom_call.1} parent=5 // pred_fallthru
      _
    %p4431 = scmp.le.s32.totalorder 2, %s11
    // Predicated region
    $region45: #{tpu_custom_call.1} parent=5 // pred_check
      %p4432 = pneg %p4431
    $region46: #{tpu_custom_call.1} parent=5 // pred_check_branch
      %4434 = sbr.rel (%p4432) target = $region48
    $region47: #{tpu_custom_call.1} parent=5 // pred_region
      %s4435 = ssub.s32 %s11, 2
      // Predicated region
      $region49: #{tpu_custom_call.1} parent=47 // pred_check
        %p4436 = pneg %p164
      $region50: #{tpu_custom_call.1} parent=47 // pred_check_branch
        %4438 = sbr.rel (%p4436) target = $region52
      $region51: #{tpu_custom_call.1} parent=47 // pred_region
        %s4439 = smul.u32 16, %s23
        %p4440 = scmp.lt.s32.totalorder %s22, 1
        %s4441 = scalar_select %p4440, %s22, 1
        %p4442 = scmp.lt.s32.totalorder %s4439, 15
        %s4443 = scalar_select %p4442, %s4439, 15
        %s4444 = smul.addr %s4443, 2
        %s4445 = smul.addr %s4441, 32
        %s4446 = sadd.s32 %s4444, %s4445
        %s4447 = smul.addr %s4446, 4
        %s4448 = scalar_lea.vmem %s5, %s4447
      $region52: #{tpu_custom_call.1} parent=47 // pred_fallthru
        _
    $region48: #{tpu_custom_call.1} parent=5 // pred_fallthru
      _
  $region6: #{tpu_custom_call.1} parent=0 // loop_footer
    %s15 = sadd.s32 1, %s11
  $region7: #{tpu_custom_call.1} parent=0 // loop_footer_branch
    %10 = sbr.rel target = $region3
  $region8: #{tpu_custom_call.1} parent=0 // loop_exit
    _

</llo_original>
